<compile_context>
chip_gen: v7x
topology: tpu7x:2x2x1
jax: 0.10.0
libtpu: 0.0.40
codegen_flags: <defaults>
</compile_context>

<pallas_src>
import numpy as np
import jax
import jax.numpy as jnp
from jax.experimental import pallas as pl
from jax.experimental.pallas import tpu as pltpu

# ---- hyperparameters (consistent with the module's __init__) ----
NC = 1          # nc
NGF = 4         # ngf
NZ = 8          # nz
KERNELS = [4, 4, 4, 4, 4, 4]
STRIDES = [1, 2, 2, 2, 2, 2]
PADS    = [0, 1, 1, 1, 1, 1]
BN_EPS = 1e-5
N_LAYERS = 6
H_FINAL = 4 * 2 ** (N_LAYERS - 1)   # 128


# ---------------------------------------------------------------------------
# Fused Pallas kernel: the whole 6-layer generator in one invocation.
# Ref order: [z, M0, R0, T0, g0, b0, (Lcat, Mcat, R, T, g, b) for layers 1..4,
#             Lcat5, Mcat5, out]
# Activation layout: rows = h*N + n, lanes = w*C + c  (256 lanes hidden, 128 final).
# ---------------------------------------------------------------------------
def _bn_relu(y, r_ref, t_ref, g_ref, b_ref, inv_cnt):
    """Training-mode BatchNorm2d + ReLU in the folded (rows=(h,n), lanes=w*C) layout.

    r_ref (W*C, C) and t_ref (C, W*C) are 0/1 gather/tile matrices: s @ R sums the W
    spatial copies of every channel; (.) @ T tiles per-channel rows back onto the lanes.
    Sums / mean / rsqrt stay in f32 (single-pass biased variance); R/T are exact in bf16.
    """
    s = jnp.concatenate([jnp.sum(y, axis=0, keepdims=True),
                         jnp.sum(y * y, axis=0, keepdims=True)], axis=0)      # (2, W*C) f32
    chan = jnp.dot(s, r_ref[...].astype(jnp.float32),
                   preferred_element_type=jnp.float32) * inv_cnt              # (2, C): E[y], E[y^2]
    mean = chan[0:1, :]
    var = chan[1:2, :] - mean * mean                                          # biased variance
    scale = jax.lax.rsqrt(var + BN_EPS) * g_ref[...]                          # (1, C)
    shift = b_ref[...] - mean * scale                                         # (1, C)
    st = jnp.dot(jnp.concatenate([scale, shift], axis=0),
                 t_ref[...].astype(jnp.float32),
                 preferred_element_type=jnp.float32)                          # (2, W*C), lane-tiled
    return jnp.maximum(y * st[0:1, :] + st[1:2, :], 0.0)


def _netg_fused_kernel(*refs):
    z_ref = refs[0]
    out_ref = refs[-1]
    n = z_ref.shape[0]
    pos = 1

    # ---- layer 0: ConvTranspose2d(nz -> 16*ngf, K=4, s=1, p=0) on a 1x1 input ----
    # One (N, NZ) @ (NZ, 16*C0) matmul; lane index = kh*(4*C0) + kw*C0 + co.  The four
    # kh lane-blocks (256 lanes each, aligned) are stacked on sublanes -> rows h*N + n.
    m0_ref = refs[pos]; pos += 1
    zm = jnp.dot(z_ref[...].astype(jnp.bfloat16), m0_ref[...],
                 preferred_element_type=jnp.float32)                  # (N, 16*C0)
    blk = m0_ref.shape[1] // 4                                        # 4*C0 = 256
    y = jnp.concatenate([zm[:, kh * blk:(kh + 1) * blk] for kh in range(4)], axis=0)
    y = _bn_relu(y, refs[pos], refs[pos + 1], refs[pos + 2], refs[pos + 3],
                 1.0 / (n * 4 * 4))
    pos += 4

    # ---- layers 1..5: stride-2 ConvTranspose2d via sub-pixel decomposition ----
    #   Y = sum_t L_t @ X @ M_t  ==  L_cat @ vstack_t(X @ M_t)
    # fused into two bf16 MXU matmuls per layer (f32 accumulation):
    #   1) XM = X @ M_cat   (M_cat = [M_0|M_1|M_2|M_3], lane-concatenated)
    #   2) Y  = L_cat @ vstack(XM blocks)   (L_cat = [L_0|L_1|L_2|L_3])
    # The vstack is 4 aligned 128/256-lane slices restacked on (8-aligned) sublanes.
    for layer in range(1, N_LAYERS):
        l_ref, m_ref = refs[pos], refs[pos + 1]; pos += 2
        woc = m_ref.shape[1] // 4                                     # W_out * C_out
        xm = jnp.dot(y.astype(jnp.bfloat16), m_ref[...],
                     preferred_element_type=jnp.float32)              # (N*H_in, 4*woc)
        vst = jnp.concatenate([xm[:, t * woc:(t + 1) * woc] for t in range(4)], axis=0)
        y = jnp.dot(l_ref[...], vst.astype(jnp.bfloat16),
                    preferred_element_type=jnp.float32)               # (N*H_out, woc)
        if layer < N_LAYERS - 1:
            h_out = 4 << layer
            y = _bn_relu(y, refs[pos], refs[pos + 1], refs[pos + 2], refs[pos + 3],
                         1.0 / (n * h_out * h_out))
            pos += 4
        else:
            y = jnp.tanh(y)                                           # final layer

    out_ref[...] = y                                                  # (N*128, 128), lane-dense


# ---------------------------------------------------------------------------
# Host-side builders for the constant structure matrices (numpy) and the
# weight-dependent band matrices (tiny jnp einsums). Packed ONCE per weight set.
# ---------------------------------------------------------------------------
def _np_build_L(h_in, n_batch, py, ty):
    """(N*2H_in, N*H_in) 0/1 matrix: row shift + row-phase interleave, h-major rows."""
    h_out = 2 * h_in
    L = np.zeros((n_batch * h_out, n_batch * h_in), np.float32)
    for nb in range(n_batch):
        for i in range(h_in):
            src = i + py - 1 + ty
            if 0 <= src < h_in:
                L[(2 * i + py) * n_batch + nb, src * n_batch + nb] = 1.0
    return L


def _np_build_P(w_in):
    """(W_in, 2*W_in, 4) column-tap placement: P[ix, ox, kw] = 1 iff kw == ox - 2*ix + 1."""
    P = np.zeros((w_in, 2 * w_in, 4), np.float32)
    for ix in range(w_in):
        for ox in range(2 * w_in):
            kw = ox - 2 * ix + 1
            if 0 <= kw < 4:
                P[ix, ox, kw] = 1.0
    return P


def _np_build_R(w_out, c):
    """(W*C, C) 0/1 channel-gather matrix: R[w*C + c', c] = 1 iff c' == c."""
    q = np.arange(w_out * c)
    return np.equal.outer(q % c, np.arange(c)).astype(np.float32)


def pack_generator_operands(params, n_batch):
    """Pre-pack PyTorch-layout weights into the kernel's operand list.

    Structure matrices (L_cat, R, T) are 0/1 and the M matrices are plain placements of
    the (already bf16-representable) conv weights, so bf16 storage halves the dominant
    HBM->VMEM DMA without extra rounding. gamma/beta stay f32 for the BN path.
    """
    dims = [NZ, NGF * 16, NGF * 8, NGF * 4, NGF * 2, NGF, NC]
    ops = []
    h = 1
    for l in range(N_LAYERS):
        w = jnp.asarray(params[f"w{l}"], jnp.float32)                 # (Cin, Cout, 4, 4)
        cin, cout = dims[l], dims[l + 1]
        if l == 0:
            h_out = 4
            # M0[ci, kh*4*C0 + kw*C0 + co] = w[ci, co, kh, kw]
            ops.append(jnp.transpose(w, (0, 2, 3, 1)).reshape(cin, 16 * cout)
                       .astype(jnp.bfloat16))
        else:
            h_out = 2 * h
            P = jnp.asarray(_np_build_P(h))                           # (W_in, W_out, 4)
            Ls, Ms = [], []
            for t in range(4):
                py, ty = t >> 1, t & 1
                Ls.append(_np_build_L(h, n_batch, py, ty))
                kh = 3 - 2 * ty - py
                m4 = jnp.einsum("xok,ick->xioc", P, w[:, :, kh, :])   # (Win,Cin,Wout,Cout)
                Ms.append(m4.reshape(h * cin, h_out * cout))
            ops.append(jnp.asarray(np.concatenate(Ls, axis=1), jnp.bfloat16))  # L_cat
            ops.append(jnp.concatenate(Ms, axis=1).astype(jnp.bfloat16))       # M_cat
        if l < N_LAYERS - 1:
            R = _np_build_R(h_out, cout)
            ops.append(jnp.asarray(R, jnp.bfloat16))                           # R  (W*C, C)
            ops.append(jnp.asarray(np.ascontiguousarray(R.T), jnp.bfloat16))   # T  (C, W*C)
            ops.append(jnp.asarray(params[f"gamma{l}"], jnp.float32).reshape(1, cout))
            ops.append(jnp.asarray(params[f"beta{l}"], jnp.float32).reshape(1, cout))
        h = h_out
    return ops


def _run_fused(z, ops):
    n_batch = z.shape[0]
    operands = [z] + list(ops)
    out_shape = jax.ShapeDtypeStruct((n_batch * H_FINAL, H_FINAL * NC), jnp.float32)
    in_specs = [pl.BlockSpec(a.shape, lambda i: (0, 0)) for a in operands]
    return pl.pallas_call(
        _netg_fused_kernel,
        out_shape=out_shape,
        grid=(1,),
        in_specs=in_specs,
        out_specs=pl.BlockSpec(out_shape.shape, lambda i: (0, 0)),
        compiler_params=pltpu.CompilerParams(
            dimension_semantics=("arbitrary",),
            # Working set (bf16 operands, double-buffered, + f32 intermediates) < 10 MiB;
            # 24 MiB keeps headroom and fits comfortably inside v7x's 64 MiB VMEM.
            vmem_limit_bytes=24 * 1024 * 1024,
        ),
    )(*operands)


def netG_forward(x_nchw, ops):
    n_batch = x_nchw.shape[0]
    z = x_nchw.reshape(n_batch, NZ)                        # (N, nz, 1, 1) -> (N, nz)
    out = _run_fused(z, ops)                               # (H*N, W*NC), rows = h*N + n
    img = out.reshape(H_FINAL, n_batch, H_FINAL, NC)       # (H, N, W, C)
    return jnp.transpose(img, (1, 3, 0, 2))                # (N, C, H, W)


# ---------------------------------------------------------------------------
# Pure-JAX reference (numerical sanity check of the fused Pallas pipeline)
# ---------------------------------------------------------------------------
def netG_reference(x_nchw, params):
    x = jnp.transpose(x_nchw, (0, 2, 3, 1))
    for li in range(N_LAYERS):
        w_t = params[f"w{li}"]
        K, s, p = KERNELS[li], STRIDES[li], PADS[li]
        w_hwio = jnp.transpose(jnp.flip(w_t, axis=(2, 3)), (2, 3, 0, 1))
        y = jax.lax.conv_general_dilated(
            x, w_hwio, window_strides=(1, 1),
            padding=[(K - 1 - p, K - 1 - p)] * 2,
            lhs_dilation=(s, s),
            dimension_numbers=("NHWC", "HWIO", "NHWC"),
            precision=jax.lax.Precision.HIGHEST)
        if li < N_LAYERS - 1:
            mean = jnp.mean(y, axis=(0, 1, 2), keepdims=True)
            var = jnp.mean(jnp.square(y - mean), axis=(0, 1, 2), keepdims=True)
            y = (y - mean) * jax.lax.rsqrt(var + BN_EPS)
            y = y * params[f"gamma{li}"] + params[f"beta{li}"]
            y = jnp.maximum(y, 0.0)
        else:
            y = jnp.tanh(y)
        x = y
    return jnp.transpose(x, (0, 3, 1, 2))


# ---------------------------------------------------------------------------
def init_params(key):
    # Deterministic synthetic init (DCGAN-style N(0, 0.02) conv weights).
    dims = [NZ, NGF * 16, NGF * 8, NGF * 4, NGF * 2, NGF, NC]
    params = {}
    for li in range(N_LAYERS):
        key, kw, kg, kb = jax.random.split(key, 4)
        cin, cout, K = dims[li], dims[li + 1], KERNELS[li]
        params[f"w{li}"] = 0.02 * jax.random.normal(kw, (cin, cout, K, K), jnp.float32)
        if li < N_LAYERS - 1:
            params[f"gamma{li}"] = 1.0 + 0.1 * jax.random.normal(kg, (cout,), jnp.float32)
            params[f"beta{li}"] = 0.1 * jax.random.normal(kb, (cout,), jnp.float32)
    return params, key


if __name__ == "__main__":
    key = jax.random.PRNGKey(0)
    params, key = init_params(key)
    # Conv weights are stored / DMA'd in bf16 by the kernel; use the same bf16-rounded
    # (then f32) weights for the f32 reference so the check isolates kernel numerics.
    params = {k: (v.astype(jnp.bfloat16).astype(jnp.float32) if k.startswith("w") else v)
              for k, v in params.items()}

    key, kx = jax.random.split(key)
    x = jax.random.normal(kx, (2, NZ, 1, 1), jnp.float32)   # (N, nz, 1, 1) latent

    ops = pack_generator_operands(params, n_batch=x.shape[0])   # one-time packing

    out = jax.jit(netG_forward)(x, ops)
    out = jax.block_until_ready(out)
    assert out.shape == (2, NC, H_FINAL, H_FINAL), out.shape
    assert bool(jnp.all(jnp.isfinite(out)))

    ref = jax.block_until_ready(jax.jit(netG_reference)(x, params))
    np.testing.assert_allclose(np.asarray(out), np.asarray(ref), atol=5e-3, rtol=5e-3)

    print("KERNEL_OK")
</pallas_src>

<mosaic_0001>
module attributes {stable_mosaic.version = 11 : i64} {
  func.func @_netg_fused_kernel(%arg0: i32, %arg1: memref<2x8xf32, #tpu.memory_space<vmem>>, %arg2: memref<8x1024xbf16, #tpu.memory_space<vmem>>, %arg3: memref<256x64xbf16, #tpu.memory_space<vmem>>, %arg4: memref<64x256xbf16, #tpu.memory_space<vmem>>, %arg5: memref<1x64xf32, #tpu.memory_space<vmem>>, %arg6: memref<1x64xf32, #tpu.memory_space<vmem>>, %arg7: memref<16x32xbf16, #tpu.memory_space<vmem>>, %arg8: memref<256x1024xbf16, #tpu.memory_space<vmem>>, %arg9: memref<256x32xbf16, #tpu.memory_space<vmem>>, %arg10: memref<32x256xbf16, #tpu.memory_space<vmem>>, %arg11: memref<1x32xf32, #tpu.memory_space<vmem>>, %arg12: memref<1x32xf32, #tpu.memory_space<vmem>>, %arg13: memref<32x64xbf16, #tpu.memory_space<vmem>>, %arg14: memref<256x1024xbf16, #tpu.memory_space<vmem>>, %arg15: memref<256x16xbf16, #tpu.memory_space<vmem>>, %arg16: memref<16x256xbf16, #tpu.memory_space<vmem>>, %arg17: memref<1x16xf32, #tpu.memory_space<vmem>>, %arg18: memref<1x16xf32, #tpu.memory_space<vmem>>, %arg19: memref<64x128xbf16, #tpu.memory_space<vmem>>, %arg20: memref<256x1024xbf16, #tpu.memory_space<vmem>>, %arg21: memref<256x8xbf16, #tpu.memory_space<vmem>>, %arg22: memref<8x256xbf16, #tpu.memory_space<vmem>>, %arg23: memref<1x8xf32, #tpu.memory_space<vmem>>, %arg24: memref<1x8xf32, #tpu.memory_space<vmem>>, %arg25: memref<128x256xbf16, #tpu.memory_space<vmem>>, %arg26: memref<256x1024xbf16, #tpu.memory_space<vmem>>, %arg27: memref<256x4xbf16, #tpu.memory_space<vmem>>, %arg28: memref<4x256xbf16, #tpu.memory_space<vmem>>, %arg29: memref<1x4xf32, #tpu.memory_space<vmem>>, %arg30: memref<1x4xf32, #tpu.memory_space<vmem>>, %arg31: memref<256x512xbf16, #tpu.memory_space<vmem>>, %arg32: memref<256x512xbf16, #tpu.memory_space<vmem>>, %arg33: memref<256x128xf32, #tpu.memory_space<vmem>>) attributes {dimension_semantics = [#tpu.dimension_semantics<arbitrary>], iteration_bounds = array<i64: 1>, scalar_prefetch = 0 : i64, scratch_operands = 0 : i64, tpu.core_type = #tpu.core_type<tc>, window_params = [{pipeline_mode = #tpu.pipeline_mode<synchronous>, transform_indices = @transform_0, window_bounds = array<i64: 2, 8>}, {pipeline_mode = #tpu.pipeline_mode<synchronous>, transform_indices = @transform_1, window_bounds = array<i64: 8, 1024>}, {pipeline_mode = #tpu.pipeline_mode<synchronous>, transform_indices = @transform_2, window_bounds = array<i64: 256, 64>}, {pipeline_mode = #tpu.pipeline_mode<synchronous>, transform_indices = @transform_3, window_bounds = array<i64: 64, 256>}, {pipeline_mode = #tpu.pipeline_mode<synchronous>, transform_indices = @transform_4, window_bounds = array<i64: 1, 64>}, {pipeline_mode = #tpu.pipeline_mode<synchronous>, transform_indices = @transform_5, window_bounds = array<i64: 1, 64>}, {pipeline_mode = #tpu.pipeline_mode<synchronous>, transform_indices = @transform_6, window_bounds = array<i64: 16, 32>}, {pipeline_mode = #tpu.pipeline_mode<synchronous>, transform_indices = @transform_7, window_bounds = array<i64: 256, 1024>}, {pipeline_mode = #tpu.pipeline_mode<synchronous>, transform_indices = @transform_8, window_bounds = array<i64: 256, 32>}, {pipeline_mode = #tpu.pipeline_mode<synchronous>, transform_indices = @transform_9, window_bounds = array<i64: 32, 256>}, {pipeline_mode = #tpu.pipeline_mode<synchronous>, transform_indices = @transform_10, window_bounds = array<i64: 1, 32>}, {pipeline_mode = #tpu.pipeline_mode<synchronous>, transform_indices = @transform_11, window_bounds = array<i64: 1, 32>}, {pipeline_mode = #tpu.pipeline_mode<synchronous>, transform_indices = @transform_12, window_bounds = array<i64: 32, 64>}, {pipeline_mode = #tpu.pipeline_mode<synchronous>, transform_indices = @transform_13, window_bounds = array<i64: 256, 1024>}, {pipeline_mode = #tpu.pipeline_mode<synchronous>, transform_indices = @transform_14, window_bounds = array<i64: 256, 16>}, {pipeline_mode = #tpu.pipeline_mode<synchronous>, transform_indices = @transform_15, window_bounds = array<i64: 16, 256>}, {pipeline_mode = #tpu.pipeline_mode<synchronous>, transform_indices = @transform_16, window_bounds = array<i64: 1, 16>}, {pipeline_mode = #tpu.pipeline_mode<synchronous>, transform_indices = @transform_17, window_bounds = array<i64: 1, 16>}, {pipeline_mode = #tpu.pipeline_mode<synchronous>, transform_indices = @transform_18, window_bounds = array<i64: 64, 128>}, {pipeline_mode = #tpu.pipeline_mode<synchronous>, transform_indices = @transform_19, window_bounds = array<i64: 256, 1024>}, {pipeline_mode = #tpu.pipeline_mode<synchronous>, transform_indices = @transform_20, window_bounds = array<i64: 256, 8>}, {pipeline_mode = #tpu.pipeline_mode<synchronous>, transform_indices = @transform_21, window_bounds = array<i64: 8, 256>}, {pipeline_mode = #tpu.pipeline_mode<synchronous>, transform_indices = @transform_22, window_bounds = array<i64: 1, 8>}, {pipeline_mode = #tpu.pipeline_mode<synchronous>, transform_indices = @transform_23, window_bounds = array<i64: 1, 8>}, {pipeline_mode = #tpu.pipeline_mode<synchronous>, transform_indices = @transform_24, window_bounds = array<i64: 128, 256>}, {pipeline_mode = #tpu.pipeline_mode<synchronous>, transform_indices = @transform_25, window_bounds = array<i64: 256, 1024>}, {pipeline_mode = #tpu.pipeline_mode<synchronous>, transform_indices = @transform_26, window_bounds = array<i64: 256, 4>}, {pipeline_mode = #tpu.pipeline_mode<synchronous>, transform_indices = @transform_27, window_bounds = array<i64: 4, 256>}, {pipeline_mode = #tpu.pipeline_mode<synchronous>, transform_indices = @transform_28, window_bounds = array<i64: 1, 4>}, {pipeline_mode = #tpu.pipeline_mode<synchronous>, transform_indices = @transform_29, window_bounds = array<i64: 1, 4>}, {pipeline_mode = #tpu.pipeline_mode<synchronous>, transform_indices = @transform_30, window_bounds = array<i64: 256, 512>}, {pipeline_mode = #tpu.pipeline_mode<synchronous>, transform_indices = @transform_31, window_bounds = array<i64: 256, 512>}, {pipeline_mode = #tpu.pipeline_mode<synchronous>, transform_indices = @transform_32, window_bounds = array<i64: 256, 128>}]} {
    %c0 = arith.constant 0 : index
    %c0_0 = arith.constant 0 : index
    %0 = vector.load %arg1[%c0, %c0_0] : memref<2x8xf32, #tpu.memory_space<vmem>>, vector<2x8xf32>
    %1 = arith.truncf %0 : vector<2x8xf32> to vector<2x8xbf16>
    %c0_1 = arith.constant 0 : index
    %c0_2 = arith.constant 0 : index
    %2 = vector.load %arg2[%c0_1, %c0_2] : memref<8x1024xbf16, #tpu.memory_space<vmem>>, vector<8x1024xbf16>
    %cst = arith.constant dense<0.000000e+00> : vector<2x1024xf32>
    %3 = tpu.matmul %1, %2, %cst {dimension_numbers = #tpu.dot_dimension_numbers<[1], [0], [0], [1], [0, 0, 1, 1], [], []>} : vector<2x8xbf16>, vector<8x1024xbf16>, vector<2x1024xf32> -> vector<2x1024xf32>
    %4 = vector.extract_strided_slice %3 {offsets = [0, 0], sizes = [2, 256], strides = [1, 1]} : vector<2x1024xf32> to vector<2x256xf32>
    %5 = vector.extract_strided_slice %3 {offsets = [0, 256], sizes = [2, 256], strides = [1, 1]} : vector<2x1024xf32> to vector<2x256xf32>
    %6 = vector.extract_strided_slice %3 {offsets = [0, 512], sizes = [2, 256], strides = [1, 1]} : vector<2x1024xf32> to vector<2x256xf32>
    %7 = vector.extract_strided_slice %3 {offsets = [0, 768], sizes = [2, 256], strides = [1, 1]} : vector<2x1024xf32> to vector<2x256xf32>
    %8 = tpu.concatenate %4, %5, %6, %7 in 0 : vector<2x256xf32>, vector<2x256xf32>, vector<2x256xf32>, vector<2x256xf32> -> vector<8x256xf32>
    %cst_3 = arith.constant dense<0.000000e+00> : vector<256xf32>
    %9 = vector.multi_reduction <add>, %8, %cst_3 [0] : vector<8x256xf32> to vector<256xf32>
    %10 = vector.shape_cast %9 : vector<256xf32> to vector<1x256xf32>
    %11 = arith.mulf %8, %8 : vector<8x256xf32>
    %cst_4 = arith.constant dense<0.000000e+00> : vector<256xf32>
    %12 = vector.multi_reduction <add>, %11, %cst_4 [0] : vector<8x256xf32> to vector<256xf32>
    %13 = vector.shape_cast %12 : vector<256xf32> to vector<1x256xf32>
    %14 = tpu.concatenate %10, %13 in 0 : vector<1x256xf32>, vector<1x256xf32> -> vector<2x256xf32>
    %c0_5 = arith.constant 0 : index
    %c0_6 = arith.constant 0 : index
    %15 = vector.load %arg3[%c0_5, %c0_6] : memref<256x64xbf16, #tpu.memory_space<vmem>>, vector<256x64xbf16>
    %16 = arith.extf %15 : vector<256x64xbf16> to vector<256x64xf32>
    %cst_7 = arith.constant dense<0.000000e+00> : vector<2x64xf32>
    %17 = tpu.matmul %14, %16, %cst_7 {dimension_numbers = #tpu.dot_dimension_numbers<[1], [0], [0], [1], [0, 0, 1, 1], [], []>} : vector<2x256xf32>, vector<256x64xf32>, vector<2x64xf32> -> vector<2x64xf32>
    %cst_8 = arith.constant 3.125000e-02 : f32
    %18 = vector.broadcast %cst_8 : f32 to vector<2x64xf32>
    %19 = arith.mulf %17, %18 : vector<2x64xf32>
    %20 = vector.extract_strided_slice %19 {offsets = [0, 0], sizes = [1, 64], strides = [1, 1]} : vector<2x64xf32> to vector<1x64xf32>
    %21 = vector.extract_strided_slice %19 {offsets = [1, 0], sizes = [1, 64], strides = [1, 1]} : vector<2x64xf32> to vector<1x64xf32>
    %22 = arith.mulf %20, %20 : vector<1x64xf32>
    %23 = arith.subf %21, %22 : vector<1x64xf32>
    %cst_9 = arith.constant 9.99999974E-6 : f32
    %24 = vector.broadcast %cst_9 : f32 to vector<1x64xf32>
    %25 = arith.addf %23, %24 : vector<1x64xf32>
    %26 = math.rsqrt %25 : vector<1x64xf32>
    %c0_10 = arith.constant 0 : index
    %c0_11 = arith.constant 0 : index
    %27 = vector.load %arg5[%c0_10, %c0_11] : memref<1x64xf32, #tpu.memory_space<vmem>>, vector<1x64xf32>
    %28 = arith.mulf %26, %27 : vector<1x64xf32>
    %c0_12 = arith.constant 0 : index
    %c0_13 = arith.constant 0 : index
    %29 = vector.load %arg6[%c0_12, %c0_13] : memref<1x64xf32, #tpu.memory_space<vmem>>, vector<1x64xf32>
    %30 = arith.mulf %20, %28 : vector<1x64xf32>
    %31 = arith.subf %29, %30 : vector<1x64xf32>
    %32 = tpu.concatenate %28, %31 in 0 : vector<1x64xf32>, vector<1x64xf32> -> vector<2x64xf32>
    %c0_14 = arith.constant 0 : index
    %c0_15 = arith.constant 0 : index
    %33 = vector.load %arg4[%c0_14, %c0_15] : memref<64x256xbf16, #tpu.memory_space<vmem>>, vector<64x256xbf16>
    %34 = arith.extf %33 : vector<64x256xbf16> to vector<64x256xf32>
    %cst_16 = arith.constant dense<0.000000e+00> : vector<2x256xf32>
    %35 = tpu.matmul %32, %34, %cst_16 {dimension_numbers = #tpu.dot_dimension_numbers<[1], [0], [0], [1], [0, 0, 1, 1], [], []>} : vector<2x64xf32>, vector<64x256xf32>, vector<2x256xf32> -> vector<2x256xf32>
    %36 = vector.extract_strided_slice %35 {offsets = [0, 0], sizes = [1, 256], strides = [1, 1]} : vector<2x256xf32> to vector<1x256xf32>
    %37 = vector.broadcast %36 : vector<1x256xf32> to vector<8x256xf32>
    %38 = arith.mulf %8, %37 : vector<8x256xf32>
    %39 = vector.extract_strided_slice %35 {offsets = [1, 0], sizes = [1, 256], strides = [1, 1]} : vector<2x256xf32> to vector<1x256xf32>
    %40 = vector.broadcast %39 : vector<1x256xf32> to vector<8x256xf32>
    %41 = arith.addf %38, %40 : vector<8x256xf32>
    %cst_17 = arith.constant 0.000000e+00 : f32
    %42 = vector.broadcast %cst_17 : f32 to vector<8x256xf32>
    %43 = arith.maximumf %41, %42 : vector<8x256xf32>
    %44 = arith.truncf %43 : vector<8x256xf32> to vector<8x256xbf16>
    %c0_18 = arith.constant 0 : index
    %c0_19 = arith.constant 0 : index
    %45 = vector.load %arg8[%c0_18, %c0_19] : memref<256x1024xbf16, #tpu.memory_space<vmem>>, vector<256x1024xbf16>
    %cst_20 = arith.constant dense<0.000000e+00> : vector<8x1024xf32>
    %46 = tpu.matmul %44, %45, %cst_20 {dimension_numbers = #tpu.dot_dimension_numbers<[1], [0], [0], [1], [0, 0, 1, 1], [], []>} : vector<8x256xbf16>, vector<256x1024xbf16>, vector<8x1024xf32> -> vector<8x1024xf32>
    %47 = vector.extract_strided_slice %46 {offsets = [0, 0], sizes = [8, 256], strides = [1, 1]} : vector<8x1024xf32> to vector<8x256xf32>
    %48 = vector.extract_strided_slice %46 {offsets = [0, 256], sizes = [8, 256], strides = [1, 1]} : vector<8x1024xf32> to vector<8x256xf32>
    %49 = vector.extract_strided_slice %46 {offsets = [0, 512], sizes = [8, 256], strides = [1, 1]} : vector<8x1024xf32> to vector<8x256xf32>
    %50 = vector.extract_strided_slice %46 {offsets = [0, 768], sizes = [8, 256], strides = [1, 1]} : vector<8x1024xf32> to vector<8x256xf32>
    %51 = tpu.concatenate %47, %48, %49, %50 in 0 : vector<8x256xf32>, vector<8x256xf32>, vector<8x256xf32>, vector<8x256xf32> -> vector<32x256xf32>
    %c0_21 = arith.constant 0 : index
    %c0_22 = arith.constant 0 : index
    %52 = vector.load %arg7[%c0_21, %c0_22] : memref<16x32xbf16, #tpu.memory_space<vmem>>, vector<16x32xbf16>
    %53 = arith.truncf %51 : vector<32x256xf32> to vector<32x256xbf16>
    %cst_23 = arith.constant dense<0.000000e+00> : vector<16x256xf32>
    %54 = tpu.matmul %52, %53, %cst_23 {dimension_numbers = #tpu.dot_dimension_numbers<[1], [0], [0], [1], [0, 0, 1, 1], [], []>} : vector<16x32xbf16>, vector<32x256xbf16>, vector<16x256xf32> -> vector<16x256xf32>
    %cst_24 = arith.constant dense<0.000000e+00> : vector<256xf32>
    %55 = vector.multi_reduction <add>, %54, %cst_24 [0] : vector<16x256xf32> to vector<256xf32>
    %56 = vector.shape_cast %55 : vector<256xf32> to vector<1x256xf32>
    %57 = arith.mulf %54, %54 : vector<16x256xf32>
    %cst_25 = arith.constant dense<0.000000e+00> : vector<256xf32>
    %58 = vector.multi_reduction <add>, %57, %cst_25 [0] : vector<16x256xf32> to vector<256xf32>
    %59 = vector.shape_cast %58 : vector<256xf32> to vector<1x256xf32>
    %60 = tpu.concatenate %56, %59 in 0 : vector<1x256xf32>, vector<1x256xf32> -> vector<2x256xf32>
    %c0_26 = arith.constant 0 : index
    %c0_27 = arith.constant 0 : index
    %61 = vector.load %arg9[%c0_26, %c0_27] : memref<256x32xbf16, #tpu.memory_space<vmem>>, vector<256x32xbf16>
    %62 = arith.extf %61 : vector<256x32xbf16> to vector<256x32xf32>
    %cst_28 = arith.constant dense<0.000000e+00> : vector<2x32xf32>
    %63 = tpu.matmul %60, %62, %cst_28 {dimension_numbers = #tpu.dot_dimension_numbers<[1], [0], [0], [1], [0, 0, 1, 1], [], []>} : vector<2x256xf32>, vector<256x32xf32>, vector<2x32xf32> -> vector<2x32xf32>
    %cst_29 = arith.constant 7.812500e-03 : f32
    %64 = vector.broadcast %cst_29 : f32 to vector<2x32xf32>
    %65 = arith.mulf %63, %64 : vector<2x32xf32>
    %66 = vector.extract_strided_slice %65 {offsets = [0, 0], sizes = [1, 32], strides = [1, 1]} : vector<2x32xf32> to vector<1x32xf32>
    %67 = vector.extract_strided_slice %65 {offsets = [1, 0], sizes = [1, 32], strides = [1, 1]} : vector<2x32xf32> to vector<1x32xf32>
    %68 = arith.mulf %66, %66 : vector<1x32xf32>
    %69 = arith.subf %67, %68 : vector<1x32xf32>
    %cst_30 = arith.constant 9.99999974E-6 : f32
    %70 = vector.broadcast %cst_30 : f32 to vector<1x32xf32>
    %71 = arith.addf %69, %70 : vector<1x32xf32>
    %72 = math.rsqrt %71 : vector<1x32xf32>
    %c0_31 = arith.constant 0 : index
    %c0_32 = arith.constant 0 : index
    %73 = vector.load %arg11[%c0_31, %c0_32] : memref<1x32xf32, #tpu.memory_space<vmem>>, vector<1x32xf32>
    %74 = arith.mulf %72, %73 : vector<1x32xf32>
    %c0_33 = arith.constant 0 : index
    %c0_34 = arith.constant 0 : index
    %75 = vector.load %arg12[%c0_33, %c0_34] : memref<1x32xf32, #tpu.memory_space<vmem>>, vector<1x32xf32>
    %76 = arith.mulf %66, %74 : vector<1x32xf32>
    %77 = arith.subf %75, %76 : vector<1x32xf32>
    %78 = tpu.concatenate %74, %77 in 0 : vector<1x32xf32>, vector<1x32xf32> -> vector<2x32xf32>
    %c0_35 = arith.constant 0 : index
    %c0_36 = arith.constant 0 : index
    %79 = vector.load %arg10[%c0_35, %c0_36] : memref<32x256xbf16, #tpu.memory_space<vmem>>, vector<32x256xbf16>
    %80 = arith.extf %79 : vector<32x256xbf16> to vector<32x256xf32>
    %cst_37 = arith.constant dense<0.000000e+00> : vector<2x256xf32>
    %81 = tpu.matmul %78, %80, %cst_37 {dimension_numbers = #tpu.dot_dimension_numbers<[1], [0], [0], [1], [0, 0, 1, 1], [], []>} : vector<2x32xf32>, vector<32x256xf32>, vector<2x256xf32> -> vector<2x256xf32>
    %82 = vector.extract_strided_slice %81 {offsets = [0, 0], sizes = [1, 256], strides = [1, 1]} : vector<2x256xf32> to vector<1x256xf32>
    %83 = vector.broadcast %82 : vector<1x256xf32> to vector<16x256xf32>
    %84 = arith.mulf %54, %83 : vector<16x256xf32>
    %85 = vector.extract_strided_slice %81 {offsets = [1, 0], sizes = [1, 256], strides = [1, 1]} : vector<2x256xf32> to vector<1x256xf32>
    %86 = vector.broadcast %85 : vector<1x256xf32> to vector<16x256xf32>
    %87 = arith.addf %84, %86 : vector<16x256xf32>
    %cst_38 = arith.constant 0.000000e+00 : f32
    %88 = vector.broadcast %cst_38 : f32 to vector<16x256xf32>
    %89 = arith.maximumf %87, %88 : vector<16x256xf32>
    %90 = arith.truncf %89 : vector<16x256xf32> to vector<16x256xbf16>
    %c0_39 = arith.constant 0 : index
    %c0_40 = arith.constant 0 : index
    %91 = vector.load %arg14[%c0_39, %c0_40] : memref<256x1024xbf16, #tpu.memory_space<vmem>>, vector<256x1024xbf16>
    %cst_41 = arith.constant dense<0.000000e+00> : vector<16x1024xf32>
    %92 = tpu.matmul %90, %91, %cst_41 {dimension_numbers = #tpu.dot_dimension_numbers<[1], [0], [0], [1], [0, 0, 1, 1], [], []>} : vector<16x256xbf16>, vector<256x1024xbf16>, vector<16x1024xf32> -> vector<16x1024xf32>
    %93 = vector.extract_strided_slice %92 {offsets = [0, 0], sizes = [16, 256], strides = [1, 1]} : vector<16x1024xf32> to vector<16x256xf32>
    %94 = vector.extract_strided_slice %92 {offsets = [0, 256], sizes = [16, 256], strides = [1, 1]} : vector<16x1024xf32> to vector<16x256xf32>
    %95 = vector.extract_strided_slice %92 {offsets = [0, 512], sizes = [16, 256], strides = [1, 1]} : vector<16x1024xf32> to vector<16x256xf32>
    %96 = vector.extract_strided_slice %92 {offsets = [0, 768], sizes = [16, 256], strides = [1, 1]} : vector<16x1024xf32> to vector<16x256xf32>
    %97 = tpu.concatenate %93, %94, %95, %96 in 0 : vector<16x256xf32>, vector<16x256xf32>, vector<16x256xf32>, vector<16x256xf32> -> vector<64x256xf32>
    %c0_42 = arith.constant 0 : index
    %c0_43 = arith.constant 0 : index
    %98 = vector.load %arg13[%c0_42, %c0_43] : memref<32x64xbf16, #tpu.memory_space<vmem>>, vector<32x64xbf16>
    %99 = arith.truncf %97 : vector<64x256xf32> to vector<64x256xbf16>
    %cst_44 = arith.constant dense<0.000000e+00> : vector<32x256xf32>
    %100 = tpu.matmul %98, %99, %cst_44 {dimension_numbers = #tpu.dot_dimension_numbers<[1], [0], [0], [1], [0, 0, 1, 1], [], []>} : vector<32x64xbf16>, vector<64x256xbf16>, vector<32x256xf32> -> vector<32x256xf32>
    %cst_45 = arith.constant dense<0.000000e+00> : vector<256xf32>
    %101 = vector.multi_reduction <add>, %100, %cst_45 [0] : vector<32x256xf32> to vector<256xf32>
    %102 = vector.shape_cast %101 : vector<256xf32> to vector<1x256xf32>
    %103 = arith.mulf %100, %100 : vector<32x256xf32>
    %cst_46 = arith.constant dense<0.000000e+00> : vector<256xf32>
    %104 = vector.multi_reduction <add>, %103, %cst_46 [0] : vector<32x256xf32> to vector<256xf32>
    %105 = vector.shape_cast %104 : vector<256xf32> to vector<1x256xf32>
    %106 = tpu.concatenate %102, %105 in 0 : vector<1x256xf32>, vector<1x256xf32> -> vector<2x256xf32>
    %c0_47 = arith.constant 0 : index
    %c0_48 = arith.constant 0 : index
    %107 = vector.load %arg15[%c0_47, %c0_48] : memref<256x16xbf16, #tpu.memory_space<vmem>>, vector<256x16xbf16>
    %108 = arith.extf %107 : vector<256x16xbf16> to vector<256x16xf32>
    %cst_49 = arith.constant dense<0.000000e+00> : vector<2x16xf32>
    %109 = tpu.matmul %106, %108, %cst_49 {dimension_numbers = #tpu.dot_dimension_numbers<[1], [0], [0], [1], [0, 0, 1, 1], [], []>} : vector<2x256xf32>, vector<256x16xf32>, vector<2x16xf32> -> vector<2x16xf32>
    %cst_50 = arith.constant 0.001953125 : f32
    %110 = vector.broadcast %cst_50 : f32 to vector<2x16xf32>
    %111 = arith.mulf %109, %110 : vector<2x16xf32>
    %112 = vector.extract_strided_slice %111 {offsets = [0, 0], sizes = [1, 16], strides = [1, 1]} : vector<2x16xf32> to vector<1x16xf32>
    %113 = vector.extract_strided_slice %111 {offsets = [1, 0], sizes = [1, 16], strides = [1, 1]} : vector<2x16xf32> to vector<1x16xf32>
    %114 = arith.mulf %112, %112 : vector<1x16xf32>
    %115 = arith.subf %113, %114 : vector<1x16xf32>
    %cst_51 = arith.constant 9.99999974E-6 : f32
    %116 = vector.broadcast %cst_51 : f32 to vector<1x16xf32>
    %117 = arith.addf %115, %116 : vector<1x16xf32>
    %118 = math.rsqrt %117 : vector<1x16xf32>
    %c0_52 = arith.constant 0 : index
    %c0_53 = arith.constant 0 : index
    %119 = vector.load %arg17[%c0_52, %c0_53] : memref<1x16xf32, #tpu.memory_space<vmem>>, vector<1x16xf32>
    %120 = arith.mulf %118, %119 : vector<1x16xf32>
    %c0_54 = arith.constant 0 : index
    %c0_55 = arith.constant 0 : index
    %121 = vector.load %arg18[%c0_54, %c0_55] : memref<1x16xf32, #tpu.memory_space<vmem>>, vector<1x16xf32>
    %122 = arith.mulf %112, %120 : vector<1x16xf32>
    %123 = arith.subf %121, %122 : vector<1x16xf32>
    %124 = tpu.concatenate %120, %123 in 0 : vector<1x16xf32>, vector<1x16xf32> -> vector<2x16xf32>
    %c0_56 = arith.constant 0 : index
    %c0_57 = arith.constant 0 : index
    %125 = vector.load %arg16[%c0_56, %c0_57] : memref<16x256xbf16, #tpu.memory_space<vmem>>, vector<16x256xbf16>
    %126 = arith.extf %125 : vector<16x256xbf16> to vector<16x256xf32>
    %cst_58 = arith.constant dense<0.000000e+00> : vector<2x256xf32>
    %127 = tpu.matmul %124, %126, %cst_58 {dimension_numbers = #tpu.dot_dimension_numbers<[1], [0], [0], [1], [0, 0, 1, 1], [], []>} : vector<2x16xf32>, vector<16x256xf32>, vector<2x256xf32> -> vector<2x256xf32>
    %128 = vector.extract_strided_slice %127 {offsets = [0, 0], sizes = [1, 256], strides = [1, 1]} : vector<2x256xf32> to vector<1x256xf32>
    %129 = vector.broadcast %128 : vector<1x256xf32> to vector<32x256xf32>
    %130 = arith.mulf %100, %129 : vector<32x256xf32>
    %131 = vector.extract_strided_slice %127 {offsets = [1, 0], sizes = [1, 256], strides = [1, 1]} : vector<2x256xf32> to vector<1x256xf32>
    %132 = vector.broadcast %131 : vector<1x256xf32> to vector<32x256xf32>
    %133 = arith.addf %130, %132 : vector<32x256xf32>
    %cst_59 = arith.constant 0.000000e+00 : f32
    %134 = vector.broadcast %cst_59 : f32 to vector<32x256xf32>
    %135 = arith.maximumf %133, %134 : vector<32x256xf32>
    %136 = arith.truncf %135 : vector<32x256xf32> to vector<32x256xbf16>
    %c0_60 = arith.constant 0 : index
    %c0_61 = arith.constant 0 : index
    %137 = vector.load %arg20[%c0_60, %c0_61] : memref<256x1024xbf16, #tpu.memory_space<vmem>>, vector<256x1024xbf16>
    %cst_62 = arith.constant dense<0.000000e+00> : vector<32x1024xf32>
    %138 = tpu.matmul %136, %137, %cst_62 {dimension_numbers = #tpu.dot_dimension_numbers<[1], [0], [0], [1], [0, 0, 1, 1], [], []>} : vector<32x256xbf16>, vector<256x1024xbf16>, vector<32x1024xf32> -> vector<32x1024xf32>
    %139 = vector.extract_strided_slice %138 {offsets = [0, 0], sizes = [32, 256], strides = [1, 1]} : vector<32x1024xf32> to vector<32x256xf32>
    %140 = vector.extract_strided_slice %138 {offsets = [0, 256], sizes = [32, 256], strides = [1, 1]} : vector<32x1024xf32> to vector<32x256xf32>
    %141 = vector.extract_strided_slice %138 {offsets = [0, 512], sizes = [32, 256], strides = [1, 1]} : vector<32x1024xf32> to vector<32x256xf32>
    %142 = vector.extract_strided_slice %138 {offsets = [0, 768], sizes = [32, 256], strides = [1, 1]} : vector<32x1024xf32> to vector<32x256xf32>
    %143 = tpu.concatenate %139, %140, %141, %142 in 0 : vector<32x256xf32>, vector<32x256xf32>, vector<32x256xf32>, vector<32x256xf32> -> vector<128x256xf32>
    %c0_63 = arith.constant 0 : index
    %c0_64 = arith.constant 0 : index
    %144 = vector.load %arg19[%c0_63, %c0_64] : memref<64x128xbf16, #tpu.memory_space<vmem>>, vector<64x128xbf16>
    %145 = arith.truncf %143 : vector<128x256xf32> to vector<128x256xbf16>
    %cst_65 = arith.constant dense<0.000000e+00> : vector<64x256xf32>
    %146 = tpu.matmul %144, %145, %cst_65 {dimension_numbers = #tpu.dot_dimension_numbers<[1], [0], [0], [1], [0, 0, 1, 1], [], []>} : vector<64x128xbf16>, vector<128x256xbf16>, vector<64x256xf32> -> vector<64x256xf32>
    %cst_66 = arith.constant dense<0.000000e+00> : vector<256xf32>
    %147 = vector.multi_reduction <add>, %146, %cst_66 [0] : vector<64x256xf32> to vector<256xf32>
    %148 = vector.shape_cast %147 : vector<256xf32> to vector<1x256xf32>
    %149 = arith.mulf %146, %146 : vector<64x256xf32>
    %cst_67 = arith.constant dense<0.000000e+00> : vector<256xf32>
    %150 = vector.multi_reduction <add>, %149, %cst_67 [0] : vector<64x256xf32> to vector<256xf32>
    %151 = vector.shape_cast %150 : vector<256xf32> to vector<1x256xf32>
    %152 = tpu.concatenate %148, %151 in 0 : vector<1x256xf32>, vector<1x256xf32> -> vector<2x256xf32>
    %c0_68 = arith.constant 0 : index
    %c0_69 = arith.constant 0 : index
    %153 = vector.load %arg21[%c0_68, %c0_69] : memref<256x8xbf16, #tpu.memory_space<vmem>>, vector<256x8xbf16>
    %154 = arith.extf %153 : vector<256x8xbf16> to vector<256x8xf32>
    %cst_70 = arith.constant dense<0.000000e+00> : vector<2x8xf32>
    %155 = tpu.matmul %152, %154, %cst_70 {dimension_numbers = #tpu.dot_dimension_numbers<[1], [0], [0], [1], [0, 0, 1, 1], [], []>} : vector<2x256xf32>, vector<256x8xf32>, vector<2x8xf32> -> vector<2x8xf32>
    %cst_71 = arith.constant 4.8828125E-4 : f32
    %156 = vector.broadcast %cst_71 : f32 to vector<2x8xf32>
    %157 = arith.mulf %155, %156 : vector<2x8xf32>
    %158 = vector.extract_strided_slice %157 {offsets = [0, 0], sizes = [1, 8], strides = [1, 1]} : vector<2x8xf32> to vector<1x8xf32>
    %159 = vector.extract_strided_slice %157 {offsets = [1, 0], sizes = [1, 8], strides = [1, 1]} : vector<2x8xf32> to vector<1x8xf32>
    %160 = arith.mulf %158, %158 : vector<1x8xf32>
    %161 = arith.subf %159, %160 : vector<1x8xf32>
    %cst_72 = arith.constant 9.99999974E-6 : f32
    %162 = vector.broadcast %cst_72 : f32 to vector<1x8xf32>
    %163 = arith.addf %161, %162 : vector<1x8xf32>
    %164 = math.rsqrt %163 : vector<1x8xf32>
    %c0_73 = arith.constant 0 : index
    %c0_74 = arith.constant 0 : index
    %165 = vector.load %arg23[%c0_73, %c0_74] : memref<1x8xf32, #tpu.memory_space<vmem>>, vector<1x8xf32>
    %166 = arith.mulf %164, %165 : vector<1x8xf32>
    %c0_75 = arith.constant 0 : index
    %c0_76 = arith.constant 0 : index
    %167 = vector.load %arg24[%c0_75, %c0_76] : memref<1x8xf32, #tpu.memory_space<vmem>>, vector<1x8xf32>
    %168 = arith.mulf %158, %166 : vector<1x8xf32>
    %169 = arith.subf %167, %168 : vector<1x8xf32>
    %170 = tpu.concatenate %166, %169 in 0 : vector<1x8xf32>, vector<1x8xf32> -> vector<2x8xf32>
    %c0_77 = arith.constant 0 : index
    %c0_78 = arith.constant 0 : index
    %171 = vector.load %arg22[%c0_77, %c0_78] : memref<8x256xbf16, #tpu.memory_space<vmem>>, vector<8x256xbf16>
    %172 = arith.extf %171 : vector<8x256xbf16> to vector<8x256xf32>
    %cst_79 = arith.constant dense<0.000000e+00> : vector<2x256xf32>
    %173 = tpu.matmul %170, %172, %cst_79 {dimension_numbers = #tpu.dot_dimension_numbers<[1], [0], [0], [1], [0, 0, 1, 1], [], []>} : vector<2x8xf32>, vector<8x256xf32>, vector<2x256xf32> -> vector<2x256xf32>
    %174 = vector.extract_strided_slice %173 {offsets = [0, 0], sizes = [1, 256], strides = [1, 1]} : vector<2x256xf32> to vector<1x256xf32>
    %175 = vector.broadcast %174 : vector<1x256xf32> to vector<64x256xf32>
    %176 = arith.mulf %146, %175 : vector<64x256xf32>
    %177 = vector.extract_strided_slice %173 {offsets = [1, 0], sizes = [1, 256], strides = [1, 1]} : vector<2x256xf32> to vector<1x256xf32>
    %178 = vector.broadcast %177 : vector<1x256xf32> to vector<64x256xf32>
    %179 = arith.addf %176, %178 : vector<64x256xf32>
    %cst_80 = arith.constant 0.000000e+00 : f32
    %180 = vector.broadcast %cst_80 : f32 to vector<64x256xf32>
    %181 = arith.maximumf %179, %180 : vector<64x256xf32>
    %182 = arith.truncf %181 : vector<64x256xf32> to vector<64x256xbf16>
    %c0_81 = arith.constant 0 : index
    %c0_82 = arith.constant 0 : index
    %183 = vector.load %arg26[%c0_81, %c0_82] : memref<256x1024xbf16, #tpu.memory_space<vmem>>, vector<256x1024xbf16>
    %cst_83 = arith.constant dense<0.000000e+00> : vector<64x1024xf32>
    %184 = tpu.matmul %182, %183, %cst_83 {dimension_numbers = #tpu.dot_dimension_numbers<[1], [0], [0], [1], [0, 0, 1, 1], [], []>} : vector<64x256xbf16>, vector<256x1024xbf16>, vector<64x1024xf32> -> vector<64x1024xf32>
    %185 = vector.extract_strided_slice %184 {offsets = [0, 0], sizes = [64, 256], strides = [1, 1]} : vector<64x1024xf32> to vector<64x256xf32>
    %186 = vector.extract_strided_slice %184 {offsets = [0, 256], sizes = [64, 256], strides = [1, 1]} : vector<64x1024xf32> to vector<64x256xf32>
    %187 = vector.extract_strided_slice %184 {offsets = [0, 512], sizes = [64, 256], strides = [1, 1]} : vector<64x1024xf32> to vector<64x256xf32>
    %188 = vector.extract_strided_slice %184 {offsets = [0, 768], sizes = [64, 256], strides = [1, 1]} : vector<64x1024xf32> to vector<64x256xf32>
    %189 = tpu.concatenate %185, %186, %187, %188 in 0 : vector<64x256xf32>, vector<64x256xf32>, vector<64x256xf32>, vector<64x256xf32> -> vector<256x256xf32>
    %c0_84 = arith.constant 0 : index
    %c0_85 = arith.constant 0 : index
    %190 = vector.load %arg25[%c0_84, %c0_85] : memref<128x256xbf16, #tpu.memory_space<vmem>>, vector<128x256xbf16>
    %191 = arith.truncf %189 : vector<256x256xf32> to vector<256x256xbf16>
    %cst_86 = arith.constant dense<0.000000e+00> : vector<128x256xf32>
    %192 = tpu.matmul %190, %191, %cst_86 {dimension_numbers = #tpu.dot_dimension_numbers<[1], [0], [0], [1], [0, 0, 1, 1], [], []>} : vector<128x256xbf16>, vector<256x256xbf16>, vector<128x256xf32> -> vector<128x256xf32>
    %cst_87 = arith.constant dense<0.000000e+00> : vector<256xf32>
    %193 = vector.multi_reduction <add>, %192, %cst_87 [0] : vector<128x256xf32> to vector<256xf32>
    %194 = vector.shape_cast %193 : vector<256xf32> to vector<1x256xf32>
    %195 = arith.mulf %192, %192 : vector<128x256xf32>
    %cst_88 = arith.constant dense<0.000000e+00> : vector<256xf32>
    %196 = vector.multi_reduction <add>, %195, %cst_88 [0] : vector<128x256xf32> to vector<256xf32>
    %197 = vector.shape_cast %196 : vector<256xf32> to vector<1x256xf32>
    %198 = tpu.concatenate %194, %197 in 0 : vector<1x256xf32>, vector<1x256xf32> -> vector<2x256xf32>
    %c0_89 = arith.constant 0 : index
    %c0_90 = arith.constant 0 : index
    %199 = vector.load %arg27[%c0_89, %c0_90] : memref<256x4xbf16, #tpu.memory_space<vmem>>, vector<256x4xbf16>
    %200 = arith.extf %199 : vector<256x4xbf16> to vector<256x4xf32>
    %cst_91 = arith.constant dense<0.000000e+00> : vector<2x4xf32>
    %201 = tpu.matmul %198, %200, %cst_91 {dimension_numbers = #tpu.dot_dimension_numbers<[1], [0], [0], [1], [0, 0, 1, 1], [], []>} : vector<2x256xf32>, vector<256x4xf32>, vector<2x4xf32> -> vector<2x4xf32>
    %cst_92 = arith.constant 1.22070313E-4 : f32
    %202 = vector.broadcast %cst_92 : f32 to vector<2x4xf32>
    %203 = arith.mulf %201, %202 : vector<2x4xf32>
    %204 = vector.extract_strided_slice %203 {offsets = [0, 0], sizes = [1, 4], strides = [1, 1]} : vector<2x4xf32> to vector<1x4xf32>
    %205 = vector.extract_strided_slice %203 {offsets = [1, 0], sizes = [1, 4], strides = [1, 1]} : vector<2x4xf32> to vector<1x4xf32>
    %206 = arith.mulf %204, %204 : vector<1x4xf32>
    %207 = arith.subf %205, %206 : vector<1x4xf32>
    %cst_93 = arith.constant 9.99999974E-6 : f32
    %208 = vector.broadcast %cst_93 : f32 to vector<1x4xf32>
    %209 = arith.addf %207, %208 : vector<1x4xf32>
    %210 = math.rsqrt %209 : vector<1x4xf32>
    %c0_94 = arith.constant 0 : index
    %c0_95 = arith.constant 0 : index
    %211 = vector.load %arg29[%c0_94, %c0_95] : memref<1x4xf32, #tpu.memory_space<vmem>>, vector<1x4xf32>
    %212 = arith.mulf %210, %211 : vector<1x4xf32>
    %c0_96 = arith.constant 0 : index
    %c0_97 = arith.constant 0 : index
    %213 = vector.load %arg30[%c0_96, %c0_97] : memref<1x4xf32, #tpu.memory_space<vmem>>, vector<1x4xf32>
    %214 = arith.mulf %204, %212 : vector<1x4xf32>
    %215 = arith.subf %213, %214 : vector<1x4xf32>
    %216 = tpu.concatenate %212, %215 in 0 : vector<1x4xf32>, vector<1x4xf32> -> vector<2x4xf32>
    %c0_98 = arith.constant 0 : index
    %c0_99 = arith.constant 0 : index
    %217 = vector.load %arg28[%c0_98, %c0_99] : memref<4x256xbf16, #tpu.memory_space<vmem>>, vector<4x256xbf16>
    %218 = arith.extf %217 : vector<4x256xbf16> to vector<4x256xf32>
    %cst_100 = arith.constant dense<0.000000e+00> : vector<2x256xf32>
    %219 = tpu.matmul %216, %218, %cst_100 {dimension_numbers = #tpu.dot_dimension_numbers<[1], [0], [0], [1], [0, 0, 1, 1], [], []>} : vector<2x4xf32>, vector<4x256xf32>, vector<2x256xf32> -> vector<2x256xf32>
    %220 = vector.extract_strided_slice %219 {offsets = [0, 0], sizes = [1, 256], strides = [1, 1]} : vector<2x256xf32> to vector<1x256xf32>
    %221 = vector.broadcast %220 : vector<1x256xf32> to vector<128x256xf32>
    %222 = arith.mulf %192, %221 : vector<128x256xf32>
    %223 = vector.extract_strided_slice %219 {offsets = [1, 0], sizes = [1, 256], strides = [1, 1]} : vector<2x256xf32> to vector<1x256xf32>
    %224 = vector.broadcast %223 : vector<1x256xf32> to vector<128x256xf32>
    %225 = arith.addf %222, %224 : vector<128x256xf32>
    %cst_101 = arith.constant 0.000000e+00 : f32
    %226 = vector.broadcast %cst_101 : f32 to vector<128x256xf32>
    %227 = arith.maximumf %225, %226 : vector<128x256xf32>
    %228 = arith.truncf %227 : vector<128x256xf32> to vector<128x256xbf16>
    %c0_102 = arith.constant 0 : index
    %c0_103 = arith.constant 0 : index
    %229 = vector.load %arg32[%c0_102, %c0_103] : memref<256x512xbf16, #tpu.memory_space<vmem>>, vector<256x512xbf16>
    %cst_104 = arith.constant dense<0.000000e+00> : vector<128x512xf32>
    %230 = tpu.matmul %228, %229, %cst_104 {dimension_numbers = #tpu.dot_dimension_numbers<[1], [0], [0], [1], [0, 0, 1, 1], [], []>} : vector<128x256xbf16>, vector<256x512xbf16>, vector<128x512xf32> -> vector<128x512xf32>
    %231 = vector.extract_strided_slice %230 {offsets = [0, 0], sizes = [128, 128], strides = [1, 1]} : vector<128x512xf32> to vector<128x128xf32>
    %232 = vector.extract_strided_slice %230 {offsets = [0, 128], sizes = [128, 128], strides = [1, 1]} : vector<128x512xf32> to vector<128x128xf32>
    %233 = vector.extract_strided_slice %230 {offsets = [0, 256], sizes = [128, 128], strides = [1, 1]} : vector<128x512xf32> to vector<128x128xf32>
    %234 = vector.extract_strided_slice %230 {offsets = [0, 384], sizes = [128, 128], strides = [1, 1]} : vector<128x512xf32> to vector<128x128xf32>
    %235 = tpu.concatenate %231, %232, %233, %234 in 0 : vector<128x128xf32>, vector<128x128xf32>, vector<128x128xf32>, vector<128x128xf32> -> vector<512x128xf32>
    %c0_105 = arith.constant 0 : index
    %c0_106 = arith.constant 0 : index
    %236 = vector.load %arg31[%c0_105, %c0_106] : memref<256x512xbf16, #tpu.memory_space<vmem>>, vector<256x512xbf16>
    %237 = arith.truncf %235 : vector<512x128xf32> to vector<512x128xbf16>
    %cst_107 = arith.constant dense<0.000000e+00> : vector<256x128xf32>
    %238 = tpu.matmul %236, %237, %cst_107 {dimension_numbers = #tpu.dot_dimension_numbers<[1], [0], [0], [1], [0, 0, 1, 1], [], []>} : vector<256x512xbf16>, vector<512x128xbf16>, vector<256x128xf32> -> vector<256x128xf32>
    %239 = math.tanh %238 : vector<256x128xf32>
    %c0_108 = arith.constant 0 : index
    %c0_109 = arith.constant 0 : index
    %240 = vector.load %arg33[%c0_108, %c0_109] : memref<256x128xf32, #tpu.memory_space<vmem>>, vector<256x128xf32>
    tpu.vector_store %arg33[%c0_108, %c0_109], %239 {strides = array<i32>} : memref<256x128xf32, #tpu.memory_space<vmem>>, vector<256x128xf32>,
    return
  }
  func.func @transform_0(%arg0: i32) -> (i32, i32) {
    %c0_i32 = arith.constant 0 : i32
    %c0_i32_0 = arith.constant 0 : i32
    %c0_i32_1 = arith.constant 0 : i32
    return %c0_i32, %c0_i32_0 : i32, i32
  }
  func.func @transform_1(%arg0: i32) -> (i32, i32) {
    %c0_i32 = arith.constant 0 : i32
    %c0_i32_0 = arith.constant 0 : i32
    %c0_i32_1 = arith.constant 0 : i32
    return %c0_i32, %c0_i32_0 : i32, i32
  }
  func.func @transform_2(%arg0: i32) -> (i32, i32) {
    %c0_i32 = arith.constant 0 : i32
    %c0_i32_0 = arith.constant 0 : i32
    %c0_i32_1 = arith.constant 0 : i32
    return %c0_i32, %c0_i32_0 : i32, i32
  }
  func.func @transform_3(%arg0: i32) -> (i32, i32) {
    %c0_i32 = arith.constant 0 : i32
    %c0_i32_0 = arith.constant 0 : i32
    %c0_i32_1 = arith.constant 0 : i32
    return %c0_i32, %c0_i32_0 : i32, i32
  }
  func.func @transform_4(%arg0: i32) -> (i32, i32) {
    %c0_i32 = arith.constant 0 : i32
    %c0_i32_0 = arith.constant 0 : i32
    %c0_i32_1 = arith.constant 0 : i32
    return %c0_i32, %c0_i32_0 : i32, i32
  }
  func.func @transform_5(%arg0: i32) -> (i32, i32) {
    %c0_i32 = arith.constant 0 : i32
    %c0_i32_0 = arith.constant 0 : i32
    %c0_i32_1 = arith.constant 0 : i32
    return %c0_i32, %c0_i32_0 : i32, i32
  }
  func.func @transform_6(%arg0: i32) -> (i32, i32) {
    %c0_i32 = arith.constant 0 : i32
    %c0_i32_0 = arith.constant 0 : i32
    %c0_i32_1 = arith.constant 0 : i32
    return %c0_i32, %c0_i32_0 : i32, i32
  }
  func.func @transform_7(%arg0: i32) -> (i32, i32) {
    %c0_i32 = arith.constant 0 : i32
    %c0_i32_0 = arith.constant 0 : i32
    %c0_i32_1 = arith.constant 0 : i32
    return %c0_i32, %c0_i32_0 : i32, i32
  }
  func.func @transform_8(%arg0: i32) -> (i32, i32) {
    %c0_i32 = arith.constant 0 : i32
    %c0_i32_0 = arith.constant 0 : i32
    %c0_i32_1 = arith.constant 0 : i32
    return %c0_i32, %c0_i32_0 : i32, i32
  }
  func.func @transform_9(%arg0: i32) -> (i32, i32) {
    %c0_i32 = arith.constant 0 : i32
    %c0_i32_0 = arith.constant 0 : i32
    %c0_i32_1 = arith.constant 0 : i32
    return %c0_i32, %c0_i32_0 : i32, i32
  }
  func.func @transform_10(%arg0: i32) -> (i32, i32) {
    %c0_i32 = arith.constant 0 : i32
    %c0_i32_0 = arith.constant 0 : i32
    %c0_i32_1 = arith.constant 0 : i32
    return %c0_i32, %c0_i32_0 : i32, i32
  }
  func.func @transform_11(%arg0: i32) -> (i32, i32) {
    %c0_i32 = arith.constant 0 : i32
    %c0_i32_0 = arith.constant 0 : i32
    %c0_i32_1 = arith.constant 0 : i32
    return %c0_i32, %c0_i32_0 : i32, i32
  }
  func.func @transform_12(%arg0: i32) -> (i32, i32) {
    %c0_i32 = arith.constant 0 : i32
    %c0_i32_0 = arith.constant 0 : i32
    %c0_i32_1 = arith.constant 0 : i32
    return %c0_i32, %c0_i32_0 : i32, i32
  }
  func.func @transform_13(%arg0: i32) -> (i32, i32) {
    %c0_i32 = arith.constant 0 : i32
    %c0_i32_0 = arith.constant 0 : i32
    %c0_i32_1 = arith.constant 0 : i32
    return %c0_i32, %c0_i32_0 : i32, i32
  }
  func.func @transform_14(%arg0: i32) -> (i32, i32) {
    %c0_i32 = arith.constant 0 : i32
    %c0_i32_0 = arith.constant 0 : i32
    %c0_i32_1 = arith.constant 0 : i32
    return %c0_i32, %c0_i32_0 : i32, i32
  }
  func.func @transform_15(%arg0: i32) -> (i32, i32) {
    %c0_i32 = arith.constant 0 : i32
    %c0_i32_0 = arith.constant 0 : i32
    %c0_i32_1 = arith.constant 0 : i32
    return %c0_i32, %c0_i32_0 : i32, i32
  }
  func.func @transform_16(%arg0: i32) -> (i32, i32) {
    %c0_i32 = arith.constant 0 : i32
    %c0_i32_0 = arith.constant 0 : i32
    %c0_i32_1 = arith.constant 0 : i32
    return %c0_i32, %c0_i32_0 : i32, i32
  }
  func.func @transform_17(%arg0: i32) -> (i32, i32) {
    %c0_i32 = arith.constant 0 : i32
    %c0_i32_0 = arith.constant 0 : i32
    %c0_i32_1 = arith.constant 0 : i32
    return %c0_i32, %c0_i32_0 : i32, i32
  }
  func.func @transform_18(%arg0: i32) -> (i32, i32) {
    %c0_i32 = arith.constant 0 : i32
    %c0_i32_0 = arith.constant 0 : i32
    %c0_i32_1 = arith.constant 0 : i32
    return %c0_i32, %c0_i32_0 : i32, i32
  }
  func.func @transform_19(%arg0: i32) -> (i32, i32) {
    %c0_i32 = arith.constant 0 : i32
    %c0_i32_0 = arith.constant 0 : i32
    %c0_i32_1 = arith.constant 0 : i32
    return %c0_i32, %c0_i32_0 : i32, i32
  }
  func.func @transform_20(%arg0: i32) -> (i32, i32) {
    %c0_i32 = arith.constant 0 : i32
    %c0_i32_0 = arith.constant 0 : i32
    %c0_i32_1 = arith.constant 0 : i32
    return %c0_i32, %c0_i32_0 : i32, i32
  }
  func.func @transform_21(%arg0: i32) -> (i32, i32) {
    %c0_i32 = arith.constant 0 : i32
    %c0_i32_0 = arith.constant 0 : i32
    %c0_i32_1 = arith.constant 0 : i32
    return %c0_i32, %c0_i32_0 : i32, i32
  }
  func.func @transform_22(%arg0: i32) -> (i32, i32) {
    %c0_i32 = arith.constant 0 : i32
    %c0_i32_0 = arith.constant 0 : i32
    %c0_i32_1 = arith.constant 0 : i32
    return %c0_i32, %c0_i32_0 : i32, i32
  }
  func.func @transform_23(%arg0: i32) -> (i32, i32) {
    %c0_i32 = arith.constant 0 : i32
    %c0_i32_0 = arith.constant 0 : i32
    %c0_i32_1 = arith.constant 0 : i32
    return %c0_i32, %c0_i32_0 : i32, i32
  }
  func.func @transform_24(%arg0: i32) -> (i32, i32) {
    %c0_i32 = arith.constant 0 : i32
    %c0_i32_0 = arith.constant 0 : i32
    %c0_i32_1 = arith.constant 0 : i32
    return %c0_i32, %c0_i32_0 : i32, i32
  }
  func.func @transform_25(%arg0: i32) -> (i32, i32) {
    %c0_i32 = arith.constant 0 : i32
    %c0_i32_0 = arith.constant 0 : i32
    %c0_i32_1 = arith.constant 0 : i32
    return %c0_i32, %c0_i32_0 : i32, i32
  }
  func.func @transform_26(%arg0: i32) -> (i32, i32) {
    %c0_i32 = arith.constant 0 : i32
    %c0_i32_0 = arith.constant 0 : i32
    %c0_i32_1 = arith.constant 0 : i32
    return %c0_i32, %c0_i32_0 : i32, i32
  }
  func.func @transform_27(%arg0: i32) -> (i32, i32) {
    %c0_i32 = arith.constant 0 : i32
    %c0_i32_0 = arith.constant 0 : i32
    %c0_i32_1 = arith.constant 0 : i32
    return %c0_i32, %c0_i32_0 : i32, i32
  }
  func.func @transform_28(%arg0: i32) -> (i32, i32) {
    %c0_i32 = arith.constant 0 : i32
    %c0_i32_0 = arith.constant 0 : i32
    %c0_i32_1 = arith.constant 0 : i32
    return %c0_i32, %c0_i32_0 : i32, i32
  }
  func.func @transform_29(%arg0: i32) -> (i32, i32) {
    %c0_i32 = arith.constant 0 : i32
    %c0_i32_0 = arith.constant 0 : i32
    %c0_i32_1 = arith.constant 0 : i32
    return %c0_i32, %c0_i32_0 : i32, i32
  }
  func.func @transform_30(%arg0: i32) -> (i32, i32) {
    %c0_i32 = arith.constant 0 : i32
    %c0_i32_0 = arith.constant 0 : i32
    %c0_i32_1 = arith.constant 0 : i32
    return %c0_i32, %c0_i32_0 : i32, i32
  }
  func.func @transform_31(%arg0: i32) -> (i32, i32) {
    %c0_i32 = arith.constant 0 : i32
    %c0_i32_0 = arith.constant 0 : i32
    %c0_i32_1 = arith.constant 0 : i32
    return %c0_i32, %c0_i32_0 : i32, i32
  }
  func.func @transform_32(%arg0: i32) -> (i32, i32) {
    %c0_i32 = arith.constant 0 : i32
    %c0_i32_0 = arith.constant 0 : i32
    %c0_i32_1 = arith.constant 0 : i32
    return %c0_i32, %c0_i32_0 : i32, i32
  }
}

</mosaic_0001>

<llo_original>
// kernel: netG_forward.1
$region0: #{netG_forward.1}
  #allocation0 [shape = 'u32[]', space=smem, size = 0x4, offset = 0x4, fixed_abs, tag = 'smem constant byte address 0x4 - core index']
  #allocation1 [shape = 'u32[144,128]{1,0:T(1,128)}', space=vmem, size = 0x12000, scoped, tag = 'internal scratch']
  %s0 = inlined_call_operand.smem [shape: u32[33], index: -1, kind: input, shape index: {}]
  %s1 = sld [smem:[%s0]]
  %s2 = scalar_lea.smem %s0, 1
  %s3 = sld [smem:[%s2]]
  %s4 = scalar_lea.smem %s0, 2
  %s5 = sld [smem:[%s4]]
  %s6 = scalar_lea.smem %s0, 3
  %s7 = sld [smem:[%s6]]
  %s8 = scalar_lea.smem %s0, 4
  %s9 = sld [smem:[%s8]]
  %s10 = scalar_lea.smem %s0, 5
  %s11 = sld [smem:[%s10]]
  %s12 = scalar_lea.smem %s0, 6
  %s13 = sld [smem:[%s12]]
  %s14 = scalar_lea.smem %s0, 7
  %s15 = sld [smem:[%s14]]
  %s16 = scalar_lea.smem %s0, 8
  %s17 = sld [smem:[%s16]]
  %s18 = scalar_lea.smem %s0, 9
  %s19 = sld [smem:[%s18]]
  %s20 = scalar_lea.smem %s0, 10
  %s21 = sld [smem:[%s20]]
  %s22 = scalar_lea.smem %s0, 11
  %s23 = sld [smem:[%s22]]
  %s24 = scalar_lea.smem %s0, 12
  %s25 = sld [smem:[%s24]]
  %s26 = scalar_lea.smem %s0, 13
  %s27 = sld [smem:[%s26]]
  %s28 = scalar_lea.smem %s0, 14
  %s29 = sld [smem:[%s28]]
  %s30 = scalar_lea.smem %s0, 15
  %s31 = sld [smem:[%s30]]
  %s32 = scalar_lea.smem %s0, 16
  %s33 = sld [smem:[%s32]]
  %s34 = scalar_lea.smem %s0, 17
  %s35 = sld [smem:[%s34]]
  %s36 = scalar_lea.smem %s0, 18
  %s37 = sld [smem:[%s36]]
  %s38 = scalar_lea.smem %s0, 19
  %s39 = sld [smem:[%s38]]
  %s40 = scalar_lea.smem %s0, 20
  %s41 = sld [smem:[%s40]]
  %s42 = scalar_lea.smem %s0, 21
  %s43 = sld [smem:[%s42]]
  %s44 = scalar_lea.smem %s0, 22
  %s45 = sld [smem:[%s44]]
  %s46 = scalar_lea.smem %s0, 23
  %s47 = sld [smem:[%s46]]
  %s48 = scalar_lea.smem %s0, 24
  %s49 = sld [smem:[%s48]]
  %s50 = scalar_lea.smem %s0, 25
  %s51 = sld [smem:[%s50]]
  %s52 = scalar_lea.smem %s0, 26
  %s53 = sld [smem:[%s52]]
  %s54 = scalar_lea.smem %s0, 27
  %s55 = sld [smem:[%s54]]
  %s56 = scalar_lea.smem %s0, 28
  %s57 = sld [smem:[%s56]]
  %s58 = scalar_lea.smem %s0, 29
  %s59 = sld [smem:[%s58]]
  %s60 = scalar_lea.smem %s0, 30
  %s61 = sld [smem:[%s60]]
  %s62 = scalar_lea.smem %s0, 31
  %s63 = sld [smem:[%s62]]
  %s64 = scalar_lea.smem %s0, 32
  %s65 = sld [smem:[%s64]]
  %s66 = sld [smem:[#allocation0]]
  $region158: #{netG_forward.1} parent=0
    _
  %s68 = ssub.s32 1, %s66
  %s69 = scalar_select 0, %s68, %s66
  $region1: #{netG_forward.1} parent=0
    #allocation2 [shape = 'u8[524288]{0}', space=vmem, size = 0x80000, scoped, tag = 'input window, operand 7, single buffered']
    #allocation3 [shape = 's32[1]{0}', space=sflag, size = 0x4, scoped, tag = 'scoped memory for netG_forward.1']
    #allocation4 [shape = 'u8[524288]{0}', space=vmem, size = 0x80000, scoped, tag = 'input window, operand 13, single buffered']
    #allocation5 [shape = 's32[1]{0}', space=sflag, size = 0x4, scoped, tag = 'scoped memory for netG_forward.1']
    #allocation6 [shape = 'u8[524288]{0}', space=vmem, size = 0x80000, scoped, tag = 'input window, operand 19, single buffered']
    #allocation7 [shape = 'u8[524288]{0}', space=vmem, size = 0x80000, scoped, tag = 'input window, operand 25, single buffered']
    #allocation8 [shape = 's32[1]{0}', space=sflag, size = 0x4, scoped, tag = 'scoped memory for netG_forward.1']
    #allocation9 [shape = 'u8[262144]{0}', space=vmem, size = 0x40000, scoped, tag = 'input window, operand 31, single buffered']
    %70 = vsyncpa [#allocation3], 0
    %71 = vsyncpa [#allocation5], 0
    %72 = vsyncpa [#allocation8], 0
    // Predicated region
    $region2: #{netG_forward.1} parent=1 // pred_check
      _
    $region3: #{netG_forward.1} parent=1 // pred_check_branch
      %74 = sbr.rel (0) target = $region5
    $region4: #{netG_forward.1} parent=1 // pred_region
      _
    $region5: #{netG_forward.1} parent=1 // pred_fallthru
      _
    // Predicated region
    $region6: #{netG_forward.1} parent=1 // pred_check
      _
    $region7: #{netG_forward.1} parent=1 // pred_check_branch
      %76 = sbr.rel (0) target = $region9
    $region8: #{netG_forward.1} parent=1 // pred_region
      _
    $region9: #{netG_forward.1} parent=1 // pred_fallthru
      _
    // Predicated region
    $region10: #{netG_forward.1} parent=1 // pred_check
      _
    $region11: #{netG_forward.1} parent=1 // pred_check_branch
      %78 = sbr.rel (0) target = $region13
    $region12: #{netG_forward.1} parent=1 // pred_region
      _
    $region13: #{netG_forward.1} parent=1 // pred_fallthru
      _
    // Predicated region
    $region14: #{netG_forward.1} parent=1 // pred_check
      _
    $region15: #{netG_forward.1} parent=1 // pred_check_branch
      %80 = sbr.rel (0) target = $region17
    $region16: #{netG_forward.1} parent=1 // pred_region
      _
    $region17: #{netG_forward.1} parent=1 // pred_fallthru
      _
    // Predicated region
    $region18: #{netG_forward.1} parent=1 // pred_check
      _
    $region19: #{netG_forward.1} parent=1 // pred_check_branch
      %82 = sbr.rel (0) target = $region21
    $region20: #{netG_forward.1} parent=1 // pred_region
      _
    $region21: #{netG_forward.1} parent=1 // pred_fallthru
      _
    // Predicated region
    $region22: #{netG_forward.1} parent=1 // pred_check
      _
    $region23: #{netG_forward.1} parent=1 // pred_check_branch
      %84 = sbr.rel (0) target = $region25
    $region24: #{netG_forward.1} parent=1 // pred_region
      _
    $region25: #{netG_forward.1} parent=1 // pred_fallthru
      _
    // Predicated region
    $region26: #{netG_forward.1} parent=1 // pred_check
      _
    $region27: #{netG_forward.1} parent=1 // pred_check_branch
      %86 = sbr.rel (0) target = $region29
    $region28: #{netG_forward.1} parent=1 // pred_region
      _
    $region29: #{netG_forward.1} parent=1 // pred_fallthru
      _
    // Predicated region
    $region30: #{netG_forward.1} parent=1 // pred_check
      _
    $region31: #{netG_forward.1} parent=1 // pred_check_branch
      %88 = sbr.rel (0) target = $region33
    $region32: #{netG_forward.1} parent=1 // pred_region
      %s90 = ssub.s32 16384, 16384
      %91 = vsyncadd [#allocation3], %s90
      %s92 = sshll.u32 [#allocation2], 4
      %s93 = int_to_ptr.vmem [resolvable:$true] %s92
      %98 = dma.hbm_to_vmem [thread:$0]  %s15, 16384, %s93, [#allocation3], 512, 512, 32
    $region33: #{netG_forward.1} parent=1 // pred_fallthru
      _
    // Predicated region
    $region34: #{netG_forward.1} parent=1 // pred_check
      _
    $region35: #{netG_forward.1} parent=1 // pred_check_branch
      %100 = sbr.rel (0) target = $region37
    $region36: #{netG_forward.1} parent=1 // pred_region
      _
    $region37: #{netG_forward.1} parent=1 // pred_fallthru
      _
    // Predicated region
    $region38: #{netG_forward.1} parent=1 // pred_check
      _
    $region39: #{netG_forward.1} parent=1 // pred_check_branch
      %102 = sbr.rel (0) target = $region41
    $region40: #{netG_forward.1} parent=1 // pred_region
      _
    $region41: #{netG_forward.1} parent=1 // pred_fallthru
      _
    // Predicated region
    $region42: #{netG_forward.1} parent=1 // pred_check
      _
    $region43: #{netG_forward.1} parent=1 // pred_check_branch
      %104 = sbr.rel (0) target = $region45
    $region44: #{netG_forward.1} parent=1 // pred_region
      _
    $region45: #{netG_forward.1} parent=1 // pred_fallthru
      _
    // Predicated region
    $region46: #{netG_forward.1} parent=1 // pred_check
      _
    $region47: #{netG_forward.1} parent=1 // pred_check_branch
      %106 = sbr.rel (0) target = $region49
    $region48: #{netG_forward.1} parent=1 // pred_region
      _
    $region49: #{netG_forward.1} parent=1 // pred_fallthru
      _
    // Predicated region
    $region50: #{netG_forward.1} parent=1 // pred_check
      _
    $region51: #{netG_forward.1} parent=1 // pred_check_branch
      %108 = sbr.rel (0) target = $region53
    $region52: #{netG_forward.1} parent=1 // pred_region
      _
    $region53: #{netG_forward.1} parent=1 // pred_fallthru
      _
    // Predicated region
    $region54: #{netG_forward.1} parent=1 // pred_check
      _
    $region55: #{netG_forward.1} parent=1 // pred_check_branch
      %110 = sbr.rel (0) target = $region57
    $region56: #{netG_forward.1} parent=1 // pred_region
      %s112 = ssub.s32 16384, 16384
      %113 = vsyncadd [#allocation5], %s112
      %s114 = sshll.u32 [#allocation4], 4
      %s115 = int_to_ptr.vmem [resolvable:$true] %s114
      %120 = dma.hbm_to_vmem [thread:$0]  %s27, 16384, %s115, [#allocation5], 512, 512, 32
    $region57: #{netG_forward.1} parent=1 // pred_fallthru
      _
    // Predicated region
    $region58: #{netG_forward.1} parent=1 // pred_check
      _
    $region59: #{netG_forward.1} parent=1 // pred_check_branch
      %122 = sbr.rel (0) target = $region61
    $region60: #{netG_forward.1} parent=1 // pred_region
      _
    $region61: #{netG_forward.1} parent=1 // pred_fallthru
      _
    // Predicated region
    $region62: #{netG_forward.1} parent=1 // pred_check
      _
    $region63: #{netG_forward.1} parent=1 // pred_check_branch
      %124 = sbr.rel (0) target = $region65
    $region64: #{netG_forward.1} parent=1 // pred_region
      _
    $region65: #{netG_forward.1} parent=1 // pred_fallthru
      _
    // Predicated region
    $region66: #{netG_forward.1} parent=1 // pred_check
      _
    $region67: #{netG_forward.1} parent=1 // pred_check_branch
      %126 = sbr.rel (0) target = $region69
    $region68: #{netG_forward.1} parent=1 // pred_region
      _
    $region69: #{netG_forward.1} parent=1 // pred_fallthru
      _
    // Predicated region
    $region70: #{netG_forward.1} parent=1 // pred_check
      _
    $region71: #{netG_forward.1} parent=1 // pred_check_branch
      %128 = sbr.rel (0) target = $region73
    $region72: #{netG_forward.1} parent=1 // pred_region
      _
    $region73: #{netG_forward.1} parent=1 // pred_fallthru
      _
    // Predicated region
    $region74: #{netG_forward.1} parent=1 // pred_check
      _
    $region75: #{netG_forward.1} parent=1 // pred_check_branch
      %130 = sbr.rel (0) target = $region77
    $region76: #{netG_forward.1} parent=1 // pred_region
      _
    $region77: #{netG_forward.1} parent=1 // pred_fallthru
      _
    // Predicated region
    $region78: #{netG_forward.1} parent=1 // pred_check
      _
    $region79: #{netG_forward.1} parent=1 // pred_check_branch
      %132 = sbr.rel (0) target = $region81
    $region80: #{netG_forward.1} parent=1 // pred_region
      %s134 = ssub.s32 16384, 16384
      %135 = vsyncadd [#allocation5], %s134
      %s136 = sshll.u32 [#allocation6], 4
      %s137 = int_to_ptr.vmem [resolvable:$true] %s136
      %142 = dma.hbm_to_vmem [thread:$0]  %s39, 16384, %s137, [#allocation5], 512, 512, 32
    $region81: #{netG_forward.1} parent=1 // pred_fallthru
      _
    // Predicated region
    $region82: #{netG_forward.1} parent=1 // pred_check
      _
    $region83: #{netG_forward.1} parent=1 // pred_check_branch
      %144 = sbr.rel (0) target = $region85
    $region84: #{netG_forward.1} parent=1 // pred_region
      _
    $region85: #{netG_forward.1} parent=1 // pred_fallthru
      _
    // Predicated region
    $region86: #{netG_forward.1} parent=1 // pred_check
      _
    $region87: #{netG_forward.1} parent=1 // pred_check_branch
      %146 = sbr.rel (0) target = $region89
    $region88: #{netG_forward.1} parent=1 // pred_region
      _
    $region89: #{netG_forward.1} parent=1 // pred_fallthru
      _
    // Predicated region
    $region90: #{netG_forward.1} parent=1 // pred_check
      _
    $region91: #{netG_forward.1} parent=1 // pred_check_branch
      %148 = sbr.rel (0) target = $region93
    $region92: #{netG_forward.1} parent=1 // pred_region
      _
    $region93: #{netG_forward.1} parent=1 // pred_fallthru
      _
    // Predicated region
    $region94: #{netG_forward.1} parent=1 // pred_check
      _
    $region95: #{netG_forward.1} parent=1 // pred_check_branch
      %150 = sbr.rel (0) target = $region97
    $region96: #{netG_forward.1} parent=1 // pred_region
      _
    $region97: #{netG_forward.1} parent=1 // pred_fallthru
      _
    // Predicated region
    $region98: #{netG_forward.1} parent=1 // pred_check
      _
    $region99: #{netG_forward.1} parent=1 // pred_check_branch
      %152 = sbr.rel (0) target = $region101
    $region100: #{netG_forward.1} parent=1 // pred_region
      _
    $region101: #{netG_forward.1} parent=1 // pred_fallthru
      _
    // Predicated region
    $region102: #{netG_forward.1} parent=1 // pred_check
      _
    $region103: #{netG_forward.1} parent=1 // pred_check_branch
      %154 = sbr.rel (0) target = $region105
    $region104: #{netG_forward.1} parent=1 // pred_region
      %s156 = ssub.s32 16384, 16384
      %157 = vsyncadd [#allocation8], %s156
      %s158 = sshll.u32 [#allocation7], 4
      %s159 = int_to_ptr.vmem [resolvable:$true] %s158
      %164 = dma.hbm_to_vmem [thread:$0]  %s51, 16384, %s159, [#allocation8], 512, 512, 32
    $region105: #{netG_forward.1} parent=1 // pred_fallthru
      _
    // Predicated region
    $region106: #{netG_forward.1} parent=1 // pred_check
      _
    $region107: #{netG_forward.1} parent=1 // pred_check_branch
      %166 = sbr.rel (0) target = $region109
    $region108: #{netG_forward.1} parent=1 // pred_region
      _
    $region109: #{netG_forward.1} parent=1 // pred_fallthru
      _
    // Predicated region
    $region110: #{netG_forward.1} parent=1 // pred_check
      _
    $region111: #{netG_forward.1} parent=1 // pred_check_branch
      %168 = sbr.rel (0) target = $region113
    $region112: #{netG_forward.1} parent=1 // pred_region
      _
    $region113: #{netG_forward.1} parent=1 // pred_fallthru
      _
    // Predicated region
    $region114: #{netG_forward.1} parent=1 // pred_check
      _
    $region115: #{netG_forward.1} parent=1 // pred_check_branch
      %170 = sbr.rel (0) target = $region117
    $region116: #{netG_forward.1} parent=1 // pred_region
      _
    $region117: #{netG_forward.1} parent=1 // pred_fallthru
      _
    // Predicated region
    $region118: #{netG_forward.1} parent=1 // pred_check
      _
    $region119: #{netG_forward.1} parent=1 // pred_check_branch
      %172 = sbr.rel (0) target = $region121
    $region120: #{netG_forward.1} parent=1 // pred_region
      _
    $region121: #{netG_forward.1} parent=1 // pred_fallthru
      _
    // Predicated region
    $region122: #{netG_forward.1} parent=1 // pred_check
      _
    $region123: #{netG_forward.1} parent=1 // pred_check_branch
      %174 = sbr.rel (0) target = $region125
    $region124: #{netG_forward.1} parent=1 // pred_region
      _
    $region125: #{netG_forward.1} parent=1 // pred_fallthru
      _
    // Predicated region
    $region126: #{netG_forward.1} parent=1 // pred_check
      _
    $region127: #{netG_forward.1} parent=1 // pred_check_branch
      %176 = sbr.rel (0) target = $region129
    $region128: #{netG_forward.1} parent=1 // pred_region
      %s178 = ssub.s32 8192, 8192
      %179 = vsyncadd [#allocation8], %s178
      %s180 = sshll.u32 [#allocation9], 4
      %s181 = int_to_ptr.vmem [resolvable:$true] %s180
      %186 = dma.hbm_to_vmem [thread:$0]  %s63, 8192, %s181, [#allocation8], 256, 256, 16
    $region129: #{netG_forward.1} parent=1 // pred_fallthru
      _
    // Predicated region
    $region130: #{netG_forward.1} parent=1 // pred_check
      _
    $region131: #{netG_forward.1} parent=1 // pred_check_branch
      %188 = sbr.rel (0) target = $region133
    $region132: #{netG_forward.1} parent=1 // pred_region
      %189 = dma.done [#allocation3], 16384
    $region133: #{netG_forward.1} parent=1 // pred_fallthru
      _
    // Predicated region
    $region134: #{netG_forward.1} parent=1 // pred_check
      _
    $region135: #{netG_forward.1} parent=1 // pred_check_branch
      %191 = sbr.rel (0) target = $region137
    $region136: #{netG_forward.1} parent=1 // pred_region
      %192 = dma.done [#allocation5], 16384
    $region137: #{netG_forward.1} parent=1 // pred_fallthru
      _
    // Predicated region
    $region138: #{netG_forward.1} parent=1 // pred_check
      _
    $region139: #{netG_forward.1} parent=1 // pred_check_branch
      %194 = sbr.rel (0) target = $region141
    $region140: #{netG_forward.1} parent=1 // pred_region
      %195 = dma.done [#allocation5], 16384
    $region141: #{netG_forward.1} parent=1 // pred_fallthru
      _
    // Predicated region
    $region142: #{netG_forward.1} parent=1 // pred_check
      _
    $region143: #{netG_forward.1} parent=1 // pred_check_branch
      %197 = sbr.rel (0) target = $region145
    $region144: #{netG_forward.1} parent=1 // pred_region
      %198 = dma.done [#allocation8], 16384
    $region145: #{netG_forward.1} parent=1 // pred_fallthru
      _
    // Predicated region
    $region146: #{netG_forward.1} parent=1 // pred_check
      _
    $region147: #{netG_forward.1} parent=1 // pred_check_branch
      %200 = sbr.rel (0) target = $region149
    $region148: #{netG_forward.1} parent=1 // pred_region
      %201 = dma.done [#allocation8], 8192
    $region149: #{netG_forward.1} parent=1 // pred_fallthru
      _
    %v203 = vld [vmem:[%s1] sm:$0x3]
    %v204 = vpack.c.bf16 %v203, %v203
    %v205 = vld [vmem:[%s3] sm:$0xff]
    %v206 = vld [vmem:[%s3 + $0x8] sm:$0xff]
    %v207 = vld [vmem:[%s3 + $0x10] sm:$0xff]
    %v208 = vld [vmem:[%s3 + $0x18] sm:$0xff]
    %v213 = vunpack.c.l.b16 %v205
    %v214 = vunpack.c.h.b16 %v205
    %v215 = vunpack.c.l.b16 %v206
    %v216 = vunpack.c.h.b16 %v206
    %v217 = vunpack.c.l.b16 %v207
    %v218 = vunpack.c.h.b16 %v207
    %v219 = vunpack.c.l.b16 %v208
    %v220 = vunpack.c.h.b16 %v208
    %v221 = vpack.c.b16 %v213, %v213
    %v222 = vpack.c.b16 %v214, %v214
    %v223 = vpack.c.b16 %v215, %v215
    %v224 = vpack.c.b16 %v216, %v216
    %v225 = vpack.c.b16 %v217, %v217
    %v226 = vpack.c.b16 %v218, %v218
    %v227 = vpack.c.b16 %v219, %v219
    %v228 = vpack.c.b16 %v220, %v220
    %vm229 = vcmask 64512
    %v231 = vsel %vm229, %v204, 0
    %vm233 = vcmask 1043456
    %v235 = vsel %vm233, %v221, 0
    %v238 = vsel %vm233, %v222, 0
    %v241 = vsel %vm233, %v223, 0
    %v244 = vsel %vm233, %v224, 0
    %v247 = vsel %vm233, %v225, 0
    %v250 = vsel %vm233, %v226, 0
    %v253 = vsel %vm233, %v227, 0
    %v256 = vsel %vm233, %v228, 0
    %258 = vmatprep.subr.bf16.mxu0 %v238
    %259 = vmatpush1.bf16.msra.mxu0 %v235
    %260 = vmatprep.subr.bf16.mxu0 0
    %261 = vmatpush1.bf16.msra.mxu0 0
    %262 = vmatprep.subr.bf16.mxu0 0
    %263 = vmatpush1.bf16.msra.mxu0 0
    %264 = vmatprep.subr.bf16.mxu0 0
    %265 = vmatpush1.bf16.msra.mxu0 0
    %266 = vmatprep.subr.bf16.mxu0 0
    %267 = vmatpush1.bf16.msra.mxu0 0
    %268 = vmatprep.subr.bf16.mxu0 0
    %269 = vmatpush1.bf16.msra.mxu0 0
    %270 = vmatprep.subr.bf16.mxu0 0
    %271 = vmatpush1.bf16.msra.mxu0 0
    %272 = vmatprep.subr.bf16.mxu0 0
    %273 = vmatpush1.bf16.msra.mxu0 0
    %274 = vmatprep.subr.bf16.mxu0 0
    %275 = vmatpush1.bf16.msra.mxu0 0
    %276 = vmatprep.subr.bf16.mxu0 0
    %277 = vmatpush1.bf16.msra.mxu0 0
    %278 = vmatprep.subr.bf16.mxu0 0
    %279 = vmatpush1.bf16.msra.mxu0 0
    %280 = vmatprep.subr.bf16.mxu0 0
    %281 = vmatpush1.bf16.msra.mxu0 0
    %282 = vmatprep.subr.bf16.mxu0 0
    %283 = vmatpush1.bf16.msra.mxu0 0
    %284 = vmatprep.subr.bf16.mxu0 0
    %285 = vmatpush1.bf16.msra.mxu0 0
    %286 = vmatprep.subr.bf16.mxu0 0
    %287 = vmatpush1.bf16.msra.mxu0 0
    %288 = vmatprep.subr.bf16.mxu0 0
    %289 = vmatpush1.bf16.msra.mxu0 0
    %290 = vmatprep.mubr.bf16.mxu0 0
    %291 = vmatmul.mubr.bf16.gmra.mrb[0].mxu0 %v231
    %v292 = vpop.f32.mrb[0].mxu0
    %v293 = vadd.f32 0.0, %v292
    %v294 = vpop.f32.mrb[0].mxu0
    %v295 = vadd.f32 0.0, %v294
    %v296 = vpop.f32.mrb[0].mxu0
    %v297 = vpop.f32.mrb[0].mxu0
    %298 = vdwg.mxu0
    %299 = vmatprep.subr.bf16.mxu0 %v244
    %300 = vmatpush1.bf16.msra.mxu0 %v241
    %301 = vmatprep.subr.bf16.mxu0 0
    %302 = vmatpush1.bf16.msra.mxu0 0
    %303 = vmatprep.subr.bf16.mxu0 0
    %304 = vmatpush1.bf16.msra.mxu0 0
    %305 = vmatprep.subr.bf16.mxu0 0
    %306 = vmatpush1.bf16.msra.mxu0 0
    %307 = vmatprep.subr.bf16.mxu0 0
    %308 = vmatpush1.bf16.msra.mxu0 0
    %309 = vmatprep.subr.bf16.mxu0 0
    %310 = vmatpush1.bf16.msra.mxu0 0
    %311 = vmatprep.subr.bf16.mxu0 0
    %312 = vmatpush1.bf16.msra.mxu0 0
    %313 = vmatprep.subr.bf16.mxu0 0
    %314 = vmatpush1.bf16.msra.mxu0 0
    %315 = vmatprep.subr.bf16.mxu0 0
    %316 = vmatpush1.bf16.msra.mxu0 0
    %317 = vmatprep.subr.bf16.mxu0 0
    %318 = vmatpush1.bf16.msra.mxu0 0
    %319 = vmatprep.subr.bf16.mxu0 0
    %320 = vmatpush1.bf16.msra.mxu0 0
    %321 = vmatprep.subr.bf16.mxu0 0
    %322 = vmatpush1.bf16.msra.mxu0 0
    %323 = vmatprep.subr.bf16.mxu0 0
    %324 = vmatpush1.bf16.msra.mxu0 0
    %325 = vmatprep.subr.bf16.mxu0 0
    %326 = vmatpush1.bf16.msra.mxu0 0
    %327 = vmatprep.subr.bf16.mxu0 0
    %328 = vmatpush1.bf16.msra.mxu0 0
    %329 = vmatprep.subr.bf16.mxu0 0
    %330 = vmatpush1.bf16.msra.mxu0 0
    %331 = vmatprep.mubr.bf16.mxu0 0
    %332 = vmatmul.mubr.bf16.gmra.mrb[0].mxu0 %v231
    %v333 = vpop.f32.mrb[0].mxu0
    %v334 = vadd.f32 0.0, %v333
    %v335 = vpop.f32.mrb[0].mxu0
    %v336 = vadd.f32 0.0, %v335
    %v337 = vpop.f32.mrb[0].mxu0
    %v338 = vpop.f32.mrb[0].mxu0
    %339 = vdwg.mxu0
    %340 = vmatprep.subr.bf16.mxu0 %v250
    %341 = vmatpush1.bf16.msra.mxu0 %v247
    %342 = vmatprep.subr.bf16.mxu0 0
    %343 = vmatpush1.bf16.msra.mxu0 0
    %344 = vmatprep.subr.bf16.mxu0 0
    %345 = vmatpush1.bf16.msra.mxu0 0
    %346 = vmatprep.subr.bf16.mxu0 0
    %347 = vmatpush1.bf16.msra.mxu0 0
    %348 = vmatprep.subr.bf16.mxu0 0
    %349 = vmatpush1.bf16.msra.mxu0 0
    %350 = vmatprep.subr.bf16.mxu0 0
    %351 = vmatpush1.bf16.msra.mxu0 0
    %352 = vmatprep.subr.bf16.mxu0 0
    %353 = vmatpush1.bf16.msra.mxu0 0
    %354 = vmatprep.subr.bf16.mxu0 0
    %355 = vmatpush1.bf16.msra.mxu0 0
    %356 = vmatprep.subr.bf16.mxu0 0
    %357 = vmatpush1.bf16.msra.mxu0 0
    %358 = vmatprep.subr.bf16.mxu0 0
    %359 = vmatpush1.bf16.msra.mxu0 0
    %360 = vmatprep.subr.bf16.mxu0 0
    %361 = vmatpush1.bf16.msra.mxu0 0
    %362 = vmatprep.subr.bf16.mxu0 0
    %363 = vmatpush1.bf16.msra.mxu0 0
    %364 = vmatprep.subr.bf16.mxu0 0
    %365 = vmatpush1.bf16.msra.mxu0 0
    %366 = vmatprep.subr.bf16.mxu0 0
    %367 = vmatpush1.bf16.msra.mxu0 0
    %368 = vmatprep.subr.bf16.mxu0 0
    %369 = vmatpush1.bf16.msra.mxu0 0
    %370 = vmatprep.subr.bf16.mxu0 0
    %371 = vmatpush1.bf16.msra.mxu0 0
    %372 = vmatprep.mubr.bf16.mxu0 0
    %373 = vmatmul.mubr.bf16.gmra.mrb[0].mxu0 %v231
    %v374 = vpop.f32.mrb[0].mxu0
    %v375 = vadd.f32 0.0, %v374
    %v376 = vpop.f32.mrb[0].mxu0
    %v377 = vadd.f32 0.0, %v376
    %v378 = vpop.f32.mrb[0].mxu0
    %v379 = vpop.f32.mrb[0].mxu0
    %380 = vdwg.mxu0
    %381 = vmatprep.subr.bf16.mxu0 %v256
    %382 = vmatpush1.bf16.msra.mxu0 %v253
    %383 = vmatprep.subr.bf16.mxu0 0
    %384 = vmatpush1.bf16.msra.mxu0 0
    %385 = vmatprep.subr.bf16.mxu0 0
    %386 = vmatpush1.bf16.msra.mxu0 0
    %387 = vmatprep.subr.bf16.mxu0 0
    %388 = vmatpush1.bf16.msra.mxu0 0
    %389 = vmatprep.subr.bf16.mxu0 0
    %390 = vmatpush1.bf16.msra.mxu0 0
    %391 = vmatprep.subr.bf16.mxu0 0
    %392 = vmatpush1.bf16.msra.mxu0 0
    %393 = vmatprep.subr.bf16.mxu0 0
    %394 = vmatpush1.bf16.msra.mxu0 0
    %395 = vmatprep.subr.bf16.mxu0 0
    %396 = vmatpush1.bf16.msra.mxu0 0
    %397 = vmatprep.subr.bf16.mxu0 0
    %398 = vmatpush1.bf16.msra.mxu0 0
    %399 = vmatprep.subr.bf16.mxu0 0
    %400 = vmatpush1.bf16.msra.mxu0 0
    %401 = vmatprep.subr.bf16.mxu0 0
    %402 = vmatpush1.bf16.msra.mxu0 0
    %403 = vmatprep.subr.bf16.mxu0 0
    %404 = vmatpush1.bf16.msra.mxu0 0
    %405 = vmatprep.subr.bf16.mxu0 0
    %406 = vmatpush1.bf16.msra.mxu0 0
    %407 = vmatprep.subr.bf16.mxu0 0
    %408 = vmatpush1.bf16.msra.mxu0 0
    %409 = vmatprep.subr.bf16.mxu0 0
    %410 = vmatpush1.bf16.msra.mxu0 0
    %411 = vmatprep.subr.bf16.mxu0 0
    %412 = vmatpush1.bf16.msra.mxu0 0
    %413 = vmatprep.mubr.bf16.mxu0 0
    %414 = vmatmul.mubr.bf16.gmra.mrb[0].mxu0 %v231
    %v415 = vpop.f32.mrb[0].mxu0
    %v416 = vadd.f32 0.0, %v415
    %v417 = vpop.f32.mrb[0].mxu0
    %v418 = vadd.f32 0.0, %v417
    %v419 = vpop.f32.mrb[0].mxu0
    %v420 = vpop.f32.mrb[0].mxu0
    %421 = vdwg.mxu0
    %v424 = vrot.slane %v334, 6
    %v425 = vrot.slane %v336, 6
    %v430 = vrot.slane %v375, 4
    %v431 = vrot.slane %v377, 4
    %v436 = vrot.slane %v416, 2
    %v437 = vrot.slane %v418, 2
    %vm440 = vcmask 1041408
    %v441 = vsel %vm440, %v293, %v424
    %v442 = vsel %vm440, %v295, %v425
    %v443 = vsel %vm233, %v441, %v430
    %v444 = vsel %vm233, %v442, %v431
    %vm445 = vcmask 1045504
    %v446 = vsel %vm445, %v443, %v436
    %v447 = vsel %vm445, %v444, %v437
    %v448 = vrot.slane %v446, 4
    %v449 = vadd.f32 %v446, %v448
    %v450 = vrot.slane %v449, 2
    %v451 = vadd.f32 %v449, %v450
    %v452 = vrot.slane %v451, 1
    %v453 = vadd.f32 %v451, %v452
    %v454 = vrot.slane %v447, 4
    %v455 = vadd.f32 %v447, %v454
    %v456 = vrot.slane %v455, 2
    %v457 = vadd.f32 %v455, %v456
    %v458 = vrot.slane %v457, 1
    %v459 = vadd.f32 %v457, %v458
    %v460 = vmul.f32 %v446, %v446
    %v461 = vmul.f32 %v447, %v447
    %v462 = vrot.slane %v460, 4
    %v463 = vadd.f32 %v460, %v462
    %v464 = vrot.slane %v463, 2
    %v465 = vadd.f32 %v463, %v464
    %v466 = vrot.slane %v465, 1
    %v467 = vadd.f32 %v465, %v466
    %v468 = vrot.slane %v461, 4
    %v469 = vadd.f32 %v461, %v468
    %v470 = vrot.slane %v469, 2
    %v471 = vadd.f32 %v469, %v470
    %v472 = vrot.slane %v471, 1
    %v473 = vadd.f32 %v471, %v472
    %vm474 = vcmask 1040384
    %v475 = vsel %vm474, %v453, %v467
    %v476 = vsel %vm474, %v459, %v473
    %v477 = vld [vmem:[%s5] sm:$0xf]
    %v478 = vld [vmem:[%s5 + $0x4] sm:$0xf]
    %v479 = vld [vmem:[%s5 + $0x8] sm:$0xf]
    %v480 = vld [vmem:[%s5 + $0xc] sm:$0xf]
    %v481 = vld [vmem:[%s5 + $0x10] sm:$0xf]
    %v482 = vld [vmem:[%s5 + $0x14] sm:$0xf]
    %v483 = vld [vmem:[%s5 + $0x18] sm:$0xf]
    %v484 = vld [vmem:[%s5 + $0x1c] sm:$0xf]
    %v485 = vld [vmem:[%s5 + $0x20] sm:$0xf]
    %v486 = vld [vmem:[%s5 + $0x24] sm:$0xf]
    %v487 = vld [vmem:[%s5 + $0x28] sm:$0xf]
    %v488 = vld [vmem:[%s5 + $0x2c] sm:$0xf]
    %v489 = vld [vmem:[%s5 + $0x30] sm:$0xf]
    %v490 = vld [vmem:[%s5 + $0x34] sm:$0xf]
    %v491 = vld [vmem:[%s5 + $0x38] sm:$0xf]
    %v492 = vld [vmem:[%s5 + $0x3c] sm:$0xf]
    %v493 = vld [vmem:[%s5 + $0x40] sm:$0xf]
    %v494 = vld [vmem:[%s5 + $0x44] sm:$0xf]
    %v495 = vld [vmem:[%s5 + $0x48] sm:$0xf]
    %v496 = vld [vmem:[%s5 + $0x4c] sm:$0xf]
    %v497 = vld [vmem:[%s5 + $0x50] sm:$0xf]
    %v498 = vld [vmem:[%s5 + $0x54] sm:$0xf]
    %v499 = vld [vmem:[%s5 + $0x58] sm:$0xf]
    %v500 = vld [vmem:[%s5 + $0x5c] sm:$0xf]
    %v501 = vld [vmem:[%s5 + $0x60] sm:$0xf]
    %v502 = vld [vmem:[%s5 + $0x64] sm:$0xf]
    %v503 = vld [vmem:[%s5 + $0x68] sm:$0xf]
    %v504 = vld [vmem:[%s5 + $0x6c] sm:$0xf]
    %v505 = vld [vmem:[%s5 + $0x70] sm:$0xf]
    %v506 = vld [vmem:[%s5 + $0x74] sm:$0xf]
    %v507 = vld [vmem:[%s5 + $0x78] sm:$0xf]
    %v508 = vld [vmem:[%s5 + $0x7c] sm:$0xf]
    %v509 = vunpack.c.l.bf16 %v477
    %v510 = vunpack.c.l.bf16 %v478
    %v511 = vunpack.c.l.bf16 %v479
    %v512 = vunpack.c.l.bf16 %v480
    %v513 = vunpack.c.l.bf16 %v481
    %v514 = vunpack.c.l.bf16 %v482
    %v515 = vunpack.c.l.bf16 %v483
    %v516 = vunpack.c.l.bf16 %v484
    %v517 = vunpack.c.l.bf16 %v485
    %v518 = vunpack.c.l.bf16 %v486
    %v519 = vunpack.c.l.bf16 %v487
    %v520 = vunpack.c.l.bf16 %v488
    %v521 = vunpack.c.l.bf16 %v489
    %v522 = vunpack.c.l.bf16 %v490
    %v523 = vunpack.c.l.bf16 %v491
    %v524 = vunpack.c.l.bf16 %v492
    %v525 = vunpack.c.l.bf16 %v493
    %v526 = vunpack.c.l.bf16 %v494
    %v527 = vunpack.c.l.bf16 %v495
    %v528 = vunpack.c.l.bf16 %v496
    %v529 = vunpack.c.l.bf16 %v497
    %v530 = vunpack.c.l.bf16 %v498
    %v531 = vunpack.c.l.bf16 %v499
    %v532 = vunpack.c.l.bf16 %v500
    %v533 = vunpack.c.l.bf16 %v501
    %v534 = vunpack.c.l.bf16 %v502
    %v535 = vunpack.c.l.bf16 %v503
    %v536 = vunpack.c.l.bf16 %v504
    %v537 = vunpack.c.l.bf16 %v505
    %v538 = vunpack.c.l.bf16 %v506
    %v539 = vunpack.c.l.bf16 %v507
    %v540 = vunpack.c.l.bf16 %v508
    %541 = vmatprep.subr.mxu0 0.0
    %542 = vmatpush1.msra.mxu0 %v509
    %543 = vmatprep.subr.mxu0 0.0
    %544 = vmatpush1.msra.mxu0 %v510
    %545 = vmatprep.subr.mxu0 0.0
    %546 = vmatpush1.msra.mxu0 %v511
    %547 = vmatprep.subr.mxu0 0.0
    %548 = vmatpush1.msra.mxu0 %v512
    %549 = vmatprep.subr.mxu0 0.0
    %550 = vmatpush1.msra.mxu0 %v513
    %551 = vmatprep.subr.mxu0 0.0
    %552 = vmatpush1.msra.mxu0 %v514
    %553 = vmatprep.subr.mxu0 0.0
    %554 = vmatpush1.msra.mxu0 %v515
    %555 = vmatprep.subr.mxu0 0.0
    %556 = vmatpush1.msra.mxu0 %v516
    %557 = vmatprep.subr.mxu0 0.0
    %558 = vmatpush1.msra.mxu0 %v517
    %559 = vmatprep.subr.mxu0 0.0
    %560 = vmatpush1.msra.mxu0 %v518
    %561 = vmatprep.subr.mxu0 0.0
    %562 = vmatpush1.msra.mxu0 %v519
    %563 = vmatprep.subr.mxu0 0.0
    %564 = vmatpush1.msra.mxu0 %v520
    %565 = vmatprep.subr.mxu0 0.0
    %566 = vmatpush1.msra.mxu0 %v521
    %567 = vmatprep.subr.mxu0 0.0
    %568 = vmatpush1.msra.mxu0 %v522
    %569 = vmatprep.subr.mxu0 0.0
    %570 = vmatpush1.msra.mxu0 %v523
    %571 = vmatprep.subr.mxu0 0.0
    %572 = vmatpush1.msra.mxu0 %v524
    %573 = vmatprep.subr.mxu0 0.0
    %574 = vmatpush1.msra.mxu0 %v525
    %575 = vmatprep.subr.mxu0 0.0
    %576 = vmatpush1.msra.mxu0 %v526
    %577 = vmatprep.subr.mxu0 0.0
    %578 = vmatpush1.msra.mxu0 %v527
    %579 = vmatprep.subr.mxu0 0.0
    %580 = vmatpush1.msra.mxu0 %v528
    %581 = vmatprep.subr.mxu0 0.0
    %582 = vmatpush1.msra.mxu0 %v529
    %583 = vmatprep.subr.mxu0 0.0
    %584 = vmatpush1.msra.mxu0 %v530
    %585 = vmatprep.subr.mxu0 0.0
    %586 = vmatpush1.msra.mxu0 %v531
    %587 = vmatprep.subr.mxu0 0.0
    %588 = vmatpush1.msra.mxu0 %v532
    %589 = vmatprep.subr.mxu0 0.0
    %590 = vmatpush1.msra.mxu0 %v533
    %591 = vmatprep.subr.mxu0 0.0
    %592 = vmatpush1.msra.mxu0 %v534
    %593 = vmatprep.subr.mxu0 0.0
    %594 = vmatpush1.msra.mxu0 %v535
    %595 = vmatprep.subr.mxu0 0.0
    %596 = vmatpush1.msra.mxu0 %v536
    %597 = vmatprep.subr.mxu0 0.0
    %598 = vmatpush1.msra.mxu0 %v537
    %599 = vmatprep.subr.mxu0 0.0
    %600 = vmatpush1.msra.mxu0 %v538
    %601 = vmatprep.subr.mxu0 0.0
    %602 = vmatpush1.msra.mxu0 %v539
    %603 = vmatprep.subr.mxu0 0.0
    %604 = vmatpush1.msra.mxu0 %v540
    %605 = vmatprep.mubr.f32.mxu0 %v476
    %606 = vmatmul.mubr.f32.gmra.mrb[0].mxu0 %v475
    %v607 = vpop.f32.mrb[0].mxu0
    %v608 = vadd.f32 0.0, %v607
    %v609 = vpop.f32.mrb[0].mxu0
    %610 = vdwg.mxu0
    %v611 = vmul.f32 %v608, 0.03125
    %v612 = vmul.f32 %v611, %v611
    %v614 = vrot.slane %v612, 7
    %v616 = vsub.f32 %v611, %v614
    %v617 = vadd.f32 %v616, 1e-05
    %v618 = vrsqrt.pop %v617
    %v619 = vld [vmem:[%s9] sm:$0x1]
    %v621 = vlaneseq
    %v622 = vshrl.u32 %v621, 7
    %v623 = vsub.s32 0, %v622
    %v624 = vrot.slane %v619, %v623
    %v626 = vmul.f32 %v618, %v624
    %v627 = vld [vmem:[%s11] sm:$0x1]
    %v629 = vrot.slane %v626, 1
    %v631 = vmul.f32 %v611, %v629
    %v632 = vsub.f32 %v627, %v631
    %v634 = vlaneseq
    %v635 = vshrl.u32 %v634, 7
    %v636 = vsub.s32 0, %v635
    %v637 = vrot.slane %v632, %v636
    %v639 = vsel %vm474, %v629, %v637
    %v640 = vld [vmem:[%s7] sm:$0xff]
    %v641 = vld [vmem:[%s7 + $0x8] sm:$0xff]
    %v642 = vld [vmem:[%s7 + $0x10] sm:$0xff]
    %v643 = vld [vmem:[%s7 + $0x18] sm:$0xff]
    %v644 = vld [vmem:[%s7 + $0x20] sm:$0xff]
    %v645 = vld [vmem:[%s7 + $0x28] sm:$0xff]
    %v646 = vld [vmem:[%s7 + $0x30] sm:$0xff]
    %v647 = vld [vmem:[%s7 + $0x38] sm:$0xff]
    %v648 = vunpack.c.l.bf16 %v640
    %v649 = vunpack.c.h.bf16 %v640
    %v650 = vunpack.c.l.bf16 %v641
    %v651 = vunpack.c.h.bf16 %v641
    %v652 = vunpack.c.l.bf16 %v642
    %v653 = vunpack.c.h.bf16 %v642
    %v654 = vunpack.c.l.bf16 %v643
    %v655 = vunpack.c.h.bf16 %v643
    %v656 = vunpack.c.l.bf16 %v644
    %v657 = vunpack.c.h.bf16 %v644
    %v658 = vunpack.c.l.bf16 %v645
    %v659 = vunpack.c.h.bf16 %v645
    %v660 = vunpack.c.l.bf16 %v646
    %v661 = vunpack.c.h.bf16 %v646
    %v662 = vunpack.c.l.bf16 %v647
    %v663 = vunpack.c.h.bf16 %v647
    %vm664 = vcmask 523264
    %v666 = vsel %vm664, %v639, 0
    %668 = vmatprep.subr.mxu0 %v649
    %669 = vmatpush1.msra.mxu0 %v648
    %670 = vmatprep.subr.mxu0 %v651
    %671 = vmatpush1.msra.mxu0 %v650
    %672 = vmatprep.subr.mxu0 %v653
    %673 = vmatpush1.msra.mxu0 %v652
    %674 = vmatprep.subr.mxu0 %v655
    %675 = vmatpush1.msra.mxu0 %v654
    %676 = vmatprep.subr.mxu0 %v657
    %677 = vmatpush1.msra.mxu0 %v656
    %678 = vmatprep.subr.mxu0 %v659
    %679 = vmatpush1.msra.mxu0 %v658
    %680 = vmatprep.subr.mxu0 %v661
    %681 = vmatpush1.msra.mxu0 %v660
    %682 = vmatprep.subr.mxu0 %v663
    %683 = vmatpush1.msra.mxu0 %v662
    %684 = vmatprep.subr.mxu0 0.0
    %685 = vmatpush1.msra.mxu0 0.0
    %686 = vmatprep.subr.mxu0 0.0
    %687 = vmatpush1.msra.mxu0 0.0
    %688 = vmatprep.subr.mxu0 0.0
    %689 = vmatpush1.msra.mxu0 0.0
    %690 = vmatprep.subr.mxu0 0.0
    %691 = vmatpush1.msra.mxu0 0.0
    %692 = vmatprep.subr.mxu0 0.0
    %693 = vmatpush1.msra.mxu0 0.0
    %694 = vmatprep.subr.mxu0 0.0
    %695 = vmatpush1.msra.mxu0 0.0
    %696 = vmatprep.subr.mxu0 0.0
    %697 = vmatpush1.msra.mxu0 0.0
    %698 = vmatprep.subr.mxu0 0.0
    %699 = vmatpush1.msra.mxu0 0.0
    %700 = vmatprep.subr.mxu0 0.0
    %701 = vmatpush1.msra.mxu0 0.0
    %702 = vmatprep.subr.mxu0 0.0
    %703 = vmatpush1.msra.mxu0 0.0
    %704 = vmatprep.subr.mxu0 0.0
    %705 = vmatpush1.msra.mxu0 0.0
    %706 = vmatprep.subr.mxu0 0.0
    %707 = vmatpush1.msra.mxu0 0.0
    %708 = vmatprep.subr.mxu0 0.0
    %709 = vmatpush1.msra.mxu0 0.0
    %710 = vmatprep.subr.mxu0 0.0
    %711 = vmatpush1.msra.mxu0 0.0
    %712 = vmatprep.subr.mxu0 0.0
    %713 = vmatpush1.msra.mxu0 0.0
    %714 = vmatprep.subr.mxu0 0.0
    %715 = vmatpush1.msra.mxu0 0.0
    %716 = vmatprep.subr.mxu0 0.0
    %717 = vmatpush1.msra.mxu0 0.0
    %718 = vmatprep.subr.mxu0 0.0
    %719 = vmatpush1.msra.mxu0 0.0
    %720 = vmatprep.subr.mxu0 0.0
    %721 = vmatpush1.msra.mxu0 0.0
    %722 = vmatprep.subr.mxu0 0.0
    %723 = vmatpush1.msra.mxu0 0.0
    %724 = vmatprep.subr.mxu0 0.0
    %725 = vmatpush1.msra.mxu0 0.0
    %726 = vmatprep.subr.mxu0 0.0
    %727 = vmatpush1.msra.mxu0 0.0
    %728 = vmatprep.subr.mxu0 0.0
    %729 = vmatpush1.msra.mxu0 0.0
    %730 = vmatprep.subr.mxu0 0.0
    %731 = vmatpush1.msra.mxu0 0.0
    %732 = vmatprep.mubr.f32.mxu0 0.0
    %733 = vmatmul.mubr.f32.gmra.mrb[0].mxu0 %v666
    %v734 = vpop.f32.mrb[0].mxu0
    %v735 = vadd.f32 0.0, %v734
    %v736 = vpop.f32.mrb[0].mxu0
    %v737 = vadd.f32 0.0, %v736
    %738 = vdwg.mxu0
    %v739 = vlaneseq
    %v740 = vshrl.u32 %v739, 7
    %v741 = vsub.s32 0, %v740
    %v742 = vrot.slane %v735, %v741
    %v743 = vlaneseq
    %v744 = vshrl.u32 %v743, 7
    %v745 = vsub.s32 0, %v744
    %v746 = vrot.slane %v737, %v745
    %v747 = vmul.f32 %v446, %v742
    %v748 = vmul.f32 %v447, %v746
    %v749 = vlaneseq
    %v750 = vshrl.u32 %v749, 7
    %v751 = vsub.s32 1, %v750
    %v752 = vrot.slane %v735, %v751
    %v753 = vlaneseq
    %v754 = vshrl.u32 %v753, 7
    %v755 = vsub.s32 1, %v754
    %v756 = vrot.slane %v737, %v755
    %v757 = vadd.f32 %v747, %v752
    %v758 = vadd.f32 %v748, %v756
    %v759 = vmax.f32 %v757, 0.0
    %v760 = vmax.f32 %v758, 0.0
    %v761 = vpack.c.bf16 %v759, %v759
    %v762 = vpack.c.bf16 %v760, %v760
    %v763 = vld [vmem:[#allocation2] sm:$0xff]
    %v764 = vld [vmem:[#allocation2 + $0x8] sm:$0xff]
    %v765 = vld [vmem:[#allocation2 + $0x10] sm:$0xff]
    %v766 = vld [vmem:[#allocation2 + $0x18] sm:$0xff]
    %v767 = vld [vmem:[#allocation2 + $0x20] sm:$0xff]
    %v768 = vld [vmem:[#allocation2 + $0x28] sm:$0xff]
    %v769 = vld [vmem:[#allocation2 + $0x30] sm:$0xff]
    %v770 = vld [vmem:[#allocation2 + $0x38] sm:$0xff]
    %v771 = vld [vmem:[#allocation2 + $0x40] sm:$0xff]
    %v772 = vld [vmem:[#allocation2 + $0x48] sm:$0xff]
    %v773 = vld [vmem:[#allocation2 + $0x50] sm:$0xff]
    %v774 = vld [vmem:[#allocation2 + $0x58] sm:$0xff]
    %v775 = vld [vmem:[#allocation2 + $0x60] sm:$0xff]
    %v776 = vld [vmem:[#allocation2 + $0x68] sm:$0xff]
    %v777 = vld [vmem:[#allocation2 + $0x70] sm:$0xff]
    %v778 = vld [vmem:[#allocation2 + $0x78] sm:$0xff]
    %v779 = vld [vmem:[#allocation2 + $0x80] sm:$0xff]
    %v780 = vld [vmem:[#allocation2 + $0x88] sm:$0xff]
    %v781 = vld [vmem:[#allocation2 + $0x90] sm:$0xff]
    %v782 = vld [vmem:[#allocation2 + $0x98] sm:$0xff]
    %v783 = vld [vmem:[#allocation2 + $0xa0] sm:$0xff]
    %v784 = vld [vmem:[#allocation2 + $0xa8] sm:$0xff]
    %v785 = vld [vmem:[#allocation2 + $0xb0] sm:$0xff]
    %v786 = vld [vmem:[#allocation2 + $0xb8] sm:$0xff]
    %v787 = vld [vmem:[#allocation2 + $0xc0] sm:$0xff]
    %v788 = vld [vmem:[#allocation2 + $0xc8] sm:$0xff]
    %v789 = vld [vmem:[#allocation2 + $0xd0] sm:$0xff]
    %v790 = vld [vmem:[#allocation2 + $0xd8] sm:$0xff]
    %v791 = vld [vmem:[#allocation2 + $0xe0] sm:$0xff]
    %v792 = vld [vmem:[#allocation2 + $0xe8] sm:$0xff]
    %v793 = vld [vmem:[#allocation2 + $0xf0] sm:$0xff]
    %v794 = vld [vmem:[#allocation2 + $0xf8] sm:$0xff]
    %v795 = vld [vmem:[#allocation2 + $0x100] sm:$0xff]
    %v796 = vld [vmem:[#allocation2 + $0x108] sm:$0xff]
    %v797 = vld [vmem:[#allocation2 + $0x110] sm:$0xff]
    %v798 = vld [vmem:[#allocation2 + $0x118] sm:$0xff]
    %v799 = vld [vmem:[#allocation2 + $0x120] sm:$0xff]
    %v800 = vld [vmem:[#allocation2 + $0x128] sm:$0xff]
    %v801 = vld [vmem:[#allocation2 + $0x130] sm:$0xff]
    %v802 = vld [vmem:[#allocation2 + $0x138] sm:$0xff]
    %v803 = vld [vmem:[#allocation2 + $0x140] sm:$0xff]
    %v804 = vld [vmem:[#allocation2 + $0x148] sm:$0xff]
    %v805 = vld [vmem:[#allocation2 + $0x150] sm:$0xff]
    %v806 = vld [vmem:[#allocation2 + $0x158] sm:$0xff]
    %v807 = vld [vmem:[#allocation2 + $0x160] sm:$0xff]
    %v808 = vld [vmem:[#allocation2 + $0x168] sm:$0xff]
    %v809 = vld [vmem:[#allocation2 + $0x170] sm:$0xff]
    %v810 = vld [vmem:[#allocation2 + $0x178] sm:$0xff]
    %v811 = vld [vmem:[#allocation2 + $0x180] sm:$0xff]
    %v812 = vld [vmem:[#allocation2 + $0x188] sm:$0xff]
    %v813 = vld [vmem:[#allocation2 + $0x190] sm:$0xff]
    %v814 = vld [vmem:[#allocation2 + $0x198] sm:$0xff]
    %v815 = vld [vmem:[#allocation2 + $0x1a0] sm:$0xff]
    %v816 = vld [vmem:[#allocation2 + $0x1a8] sm:$0xff]
    %v817 = vld [vmem:[#allocation2 + $0x1b0] sm:$0xff]
    %v818 = vld [vmem:[#allocation2 + $0x1b8] sm:$0xff]
    %v819 = vld [vmem:[#allocation2 + $0x1c0] sm:$0xff]
    %v820 = vld [vmem:[#allocation2 + $0x1c8] sm:$0xff]
    %v821 = vld [vmem:[#allocation2 + $0x1d0] sm:$0xff]
    %v822 = vld [vmem:[#allocation2 + $0x1d8] sm:$0xff]
    %v823 = vld [vmem:[#allocation2 + $0x1e0] sm:$0xff]
    %v824 = vld [vmem:[#allocation2 + $0x1e8] sm:$0xff]
    %v825 = vld [vmem:[#allocation2 + $0x1f0] sm:$0xff]
    %v826 = vld [vmem:[#allocation2 + $0x1f8] sm:$0xff]
    %v827 = vld [vmem:[#allocation2 + $0x200] sm:$0xff]
    %v828 = vld [vmem:[#allocation2 + $0x208] sm:$0xff]
    %v829 = vld [vmem:[#allocation2 + $0x210] sm:$0xff]
    %v830 = vld [vmem:[#allocation2 + $0x218] sm:$0xff]
    %v831 = vld [vmem:[#allocation2 + $0x220] sm:$0xff]
    %v832 = vld [vmem:[#allocation2 + $0x228] sm:$0xff]
    %v833 = vld [vmem:[#allocation2 + $0x230] sm:$0xff]
    %v834 = vld [vmem:[#allocation2 + $0x238] sm:$0xff]
    %v835 = vld [vmem:[#allocation2 + $0x240] sm:$0xff]
    %v836 = vld [vmem:[#allocation2 + $0x248] sm:$0xff]
    %v837 = vld [vmem:[#allocation2 + $0x250] sm:$0xff]
    %v838 = vld [vmem:[#allocation2 + $0x258] sm:$0xff]
    %v839 = vld [vmem:[#allocation2 + $0x260] sm:$0xff]
    %v840 = vld [vmem:[#allocation2 + $0x268] sm:$0xff]
    %v841 = vld [vmem:[#allocation2 + $0x270] sm:$0xff]
    %v842 = vld [vmem:[#allocation2 + $0x278] sm:$0xff]
    %v843 = vld [vmem:[#allocation2 + $0x280] sm:$0xff]
    %v844 = vld [vmem:[#allocation2 + $0x288] sm:$0xff]
    %v845 = vld [vmem:[#allocation2 + $0x290] sm:$0xff]
    %v846 = vld [vmem:[#allocation2 + $0x298] sm:$0xff]
    %v847 = vld [vmem:[#allocation2 + $0x2a0] sm:$0xff]
    %v848 = vld [vmem:[#allocation2 + $0x2a8] sm:$0xff]
    %v849 = vld [vmem:[#allocation2 + $0x2b0] sm:$0xff]
    %v850 = vld [vmem:[#allocation2 + $0x2b8] sm:$0xff]
    %v851 = vld [vmem:[#allocation2 + $0x2c0] sm:$0xff]
    %v852 = vld [vmem:[#allocation2 + $0x2c8] sm:$0xff]
    %v853 = vld [vmem:[#allocation2 + $0x2d0] sm:$0xff]
    %v854 = vld [vmem:[#allocation2 + $0x2d8] sm:$0xff]
    %v855 = vld [vmem:[#allocation2 + $0x2e0] sm:$0xff]
    %v856 = vld [vmem:[#allocation2 + $0x2e8] sm:$0xff]
    %v857 = vld [vmem:[#allocation2 + $0x2f0] sm:$0xff]
    %v858 = vld [vmem:[#allocation2 + $0x2f8] sm:$0xff]
    %v859 = vld [vmem:[#allocation2 + $0x300] sm:$0xff]
    %v860 = vld [vmem:[#allocation2 + $0x308] sm:$0xff]
    %v861 = vld [vmem:[#allocation2 + $0x310] sm:$0xff]
    %v862 = vld [vmem:[#allocation2 + $0x318] sm:$0xff]
    %v863 = vld [vmem:[#allocation2 + $0x320] sm:$0xff]
    %v864 = vld [vmem:[#allocation2 + $0x328] sm:$0xff]
    %v865 = vld [vmem:[#allocation2 + $0x330] sm:$0xff]
    %v866 = vld [vmem:[#allocation2 + $0x338] sm:$0xff]
    %v867 = vld [vmem:[#allocation2 + $0x340] sm:$0xff]
    %v868 = vld [vmem:[#allocation2 + $0x348] sm:$0xff]
    %v869 = vld [vmem:[#allocation2 + $0x350] sm:$0xff]
    %v870 = vld [vmem:[#allocation2 + $0x358] sm:$0xff]
    %v871 = vld [vmem:[#allocation2 + $0x360] sm:$0xff]
    %v872 = vld [vmem:[#allocation2 + $0x368] sm:$0xff]
    %v873 = vld [vmem:[#allocation2 + $0x370] sm:$0xff]
    %v874 = vld [vmem:[#allocation2 + $0x378] sm:$0xff]
    %v875 = vld [vmem:[#allocation2 + $0x380] sm:$0xff]
    %v876 = vld [vmem:[#allocation2 + $0x388] sm:$0xff]
    %v877 = vld [vmem:[#allocation2 + $0x390] sm:$0xff]
    %v878 = vld [vmem:[#allocation2 + $0x398] sm:$0xff]
    %v879 = vld [vmem:[#allocation2 + $0x3a0] sm:$0xff]
    %v880 = vld [vmem:[#allocation2 + $0x3a8] sm:$0xff]
    %v881 = vld [vmem:[#allocation2 + $0x3b0] sm:$0xff]
    %v882 = vld [vmem:[#allocation2 + $0x3b8] sm:$0xff]
    %v883 = vld [vmem:[#allocation2 + $0x3c0] sm:$0xff]
    %v884 = vld [vmem:[#allocation2 + $0x3c8] sm:$0xff]
    %v885 = vld [vmem:[#allocation2 + $0x3d0] sm:$0xff]
    %v886 = vld [vmem:[#allocation2 + $0x3d8] sm:$0xff]
    %v887 = vld [vmem:[#allocation2 + $0x3e0] sm:$0xff]
    %v888 = vld [vmem:[#allocation2 + $0x3e8] sm:$0xff]
    %v889 = vld [vmem:[#allocation2 + $0x3f0] sm:$0xff]
    %v890 = vld [vmem:[#allocation2 + $0x3f8] sm:$0xff]
    %v1019 = vunpack.c.l.b16 %v763
    %v1020 = vunpack.c.h.b16 %v763
    %v1021 = vunpack.c.l.b16 %v764
    %v1022 = vunpack.c.h.b16 %v764
    %v1023 = vunpack.c.l.b16 %v765
    %v1024 = vunpack.c.h.b16 %v765
    %v1025 = vunpack.c.l.b16 %v766
    %v1026 = vunpack.c.h.b16 %v766
    %v1027 = vunpack.c.l.b16 %v767
    %v1028 = vunpack.c.h.b16 %v767
    %v1029 = vunpack.c.l.b16 %v768
    %v1030 = vunpack.c.h.b16 %v768
    %v1031 = vunpack.c.l.b16 %v769
    %v1032 = vunpack.c.h.b16 %v769
    %v1033 = vunpack.c.l.b16 %v770
    %v1034 = vunpack.c.h.b16 %v770
    %v1035 = vunpack.c.l.b16 %v771
    %v1036 = vunpack.c.h.b16 %v771
    %v1037 = vunpack.c.l.b16 %v772
    %v1038 = vunpack.c.h.b16 %v772
    %v1039 = vunpack.c.l.b16 %v773
    %v1040 = vunpack.c.h.b16 %v773
    %v1041 = vunpack.c.l.b16 %v774
    %v1042 = vunpack.c.h.b16 %v774
    %v1043 = vunpack.c.l.b16 %v775
    %v1044 = vunpack.c.h.b16 %v775
    %v1045 = vunpack.c.l.b16 %v776
    %v1046 = vunpack.c.h.b16 %v776
    %v1047 = vunpack.c.l.b16 %v777
    %v1048 = vunpack.c.h.b16 %v777
    %v1049 = vunpack.c.l.b16 %v778
    %v1050 = vunpack.c.h.b16 %v778
    %v1051 = vunpack.c.l.b16 %v779
    %v1052 = vunpack.c.h.b16 %v779
    %v1053 = vunpack.c.l.b16 %v780
    %v1054 = vunpack.c.h.b16 %v780
    %v1055 = vunpack.c.l.b16 %v781
    %v1056 = vunpack.c.h.b16 %v781
    %v1057 = vunpack.c.l.b16 %v782
    %v1058 = vunpack.c.h.b16 %v782
    %v1059 = vunpack.c.l.b16 %v783
    %v1060 = vunpack.c.h.b16 %v783
    %v1061 = vunpack.c.l.b16 %v784
    %v1062 = vunpack.c.h.b16 %v784
    %v1063 = vunpack.c.l.b16 %v785
    %v1064 = vunpack.c.h.b16 %v785
    %v1065 = vunpack.c.l.b16 %v786
    %v1066 = vunpack.c.h.b16 %v786
    %v1067 = vunpack.c.l.b16 %v787
    %v1068 = vunpack.c.h.b16 %v787
    %v1069 = vunpack.c.l.b16 %v788
    %v1070 = vunpack.c.h.b16 %v788
    %v1071 = vunpack.c.l.b16 %v789
    %v1072 = vunpack.c.h.b16 %v789
    %v1073 = vunpack.c.l.b16 %v790
    %v1074 = vunpack.c.h.b16 %v790
    %v1075 = vunpack.c.l.b16 %v791
    %v1076 = vunpack.c.h.b16 %v791
    %v1077 = vunpack.c.l.b16 %v792
    %v1078 = vunpack.c.h.b16 %v792
    %v1079 = vunpack.c.l.b16 %v793
    %v1080 = vunpack.c.h.b16 %v793
    %v1081 = vunpack.c.l.b16 %v794
    %v1082 = vunpack.c.h.b16 %v794
    %v1083 = vunpack.c.l.b16 %v795
    %v1084 = vunpack.c.h.b16 %v795
    %v1085 = vunpack.c.l.b16 %v796
    %v1086 = vunpack.c.h.b16 %v796
    %v1087 = vunpack.c.l.b16 %v797
    %v1088 = vunpack.c.h.b16 %v797
    %v1089 = vunpack.c.l.b16 %v798
    %v1090 = vunpack.c.h.b16 %v798
    %v1091 = vunpack.c.l.b16 %v799
    %v1092 = vunpack.c.h.b16 %v799
    %v1093 = vunpack.c.l.b16 %v800
    %v1094 = vunpack.c.h.b16 %v800
    %v1095 = vunpack.c.l.b16 %v801
    %v1096 = vunpack.c.h.b16 %v801
    %v1097 = vunpack.c.l.b16 %v802
    %v1098 = vunpack.c.h.b16 %v802
    %v1099 = vunpack.c.l.b16 %v803
    %v1100 = vunpack.c.h.b16 %v803
    %v1101 = vunpack.c.l.b16 %v804
    %v1102 = vunpack.c.h.b16 %v804
    %v1103 = vunpack.c.l.b16 %v805
    %v1104 = vunpack.c.h.b16 %v805
    %v1105 = vunpack.c.l.b16 %v806
    %v1106 = vunpack.c.h.b16 %v806
    %v1107 = vunpack.c.l.b16 %v807
    %v1108 = vunpack.c.h.b16 %v807
    %v1109 = vunpack.c.l.b16 %v808
    %v1110 = vunpack.c.h.b16 %v808
    %v1111 = vunpack.c.l.b16 %v809
    %v1112 = vunpack.c.h.b16 %v809
    %v1113 = vunpack.c.l.b16 %v810
    %v1114 = vunpack.c.h.b16 %v810
    %v1115 = vunpack.c.l.b16 %v811
    %v1116 = vunpack.c.h.b16 %v811
    %v1117 = vunpack.c.l.b16 %v812
    %v1118 = vunpack.c.h.b16 %v812
    %v1119 = vunpack.c.l.b16 %v813
    %v1120 = vunpack.c.h.b16 %v813
    %v1121 = vunpack.c.l.b16 %v814
    %v1122 = vunpack.c.h.b16 %v814
    %v1123 = vunpack.c.l.b16 %v815
    %v1124 = vunpack.c.h.b16 %v815
    %v1125 = vunpack.c.l.b16 %v816
    %v1126 = vunpack.c.h.b16 %v816
    %v1127 = vunpack.c.l.b16 %v817
    %v1128 = vunpack.c.h.b16 %v817
    %v1129 = vunpack.c.l.b16 %v818
    %v1130 = vunpack.c.h.b16 %v818
    %v1131 = vunpack.c.l.b16 %v819
    %v1132 = vunpack.c.h.b16 %v819
    %v1133 = vunpack.c.l.b16 %v820
    %v1134 = vunpack.c.h.b16 %v820
    %v1135 = vunpack.c.l.b16 %v821
    %v1136 = vunpack.c.h.b16 %v821
    %v1137 = vunpack.c.l.b16 %v822
    %v1138 = vunpack.c.h.b16 %v822
    %v1139 = vunpack.c.l.b16 %v823
    %v1140 = vunpack.c.h.b16 %v823
    %v1141 = vunpack.c.l.b16 %v824
    %v1142 = vunpack.c.h.b16 %v824
    %v1143 = vunpack.c.l.b16 %v825
    %v1144 = vunpack.c.h.b16 %v825
    %v1145 = vunpack.c.l.b16 %v826
    %v1146 = vunpack.c.h.b16 %v826
    %v1147 = vunpack.c.l.b16 %v827
    %v1148 = vunpack.c.h.b16 %v827
    %v1149 = vunpack.c.l.b16 %v828
    %v1150 = vunpack.c.h.b16 %v828
    %v1151 = vunpack.c.l.b16 %v829
    %v1152 = vunpack.c.h.b16 %v829
    %v1153 = vunpack.c.l.b16 %v830
    %v1154 = vunpack.c.h.b16 %v830
    %v1155 = vunpack.c.l.b16 %v831
    %v1156 = vunpack.c.h.b16 %v831
    %v1157 = vunpack.c.l.b16 %v832
    %v1158 = vunpack.c.h.b16 %v832
    %v1159 = vunpack.c.l.b16 %v833
    %v1160 = vunpack.c.h.b16 %v833
    %v1161 = vunpack.c.l.b16 %v834
    %v1162 = vunpack.c.h.b16 %v834
    %v1163 = vunpack.c.l.b16 %v835
    %v1164 = vunpack.c.h.b16 %v835
    %v1165 = vunpack.c.l.b16 %v836
    %v1166 = vunpack.c.h.b16 %v836
    %v1167 = vunpack.c.l.b16 %v837
    %v1168 = vunpack.c.h.b16 %v837
    %v1169 = vunpack.c.l.b16 %v838
    %v1170 = vunpack.c.h.b16 %v838
    %v1171 = vunpack.c.l.b16 %v839
    %v1172 = vunpack.c.h.b16 %v839
    %v1173 = vunpack.c.l.b16 %v840
    %v1174 = vunpack.c.h.b16 %v840
    %v1175 = vunpack.c.l.b16 %v841
    %v1176 = vunpack.c.h.b16 %v841
    %v1177 = vunpack.c.l.b16 %v842
    %v1178 = vunpack.c.h.b16 %v842
    %v1179 = vunpack.c.l.b16 %v843
    %v1180 = vunpack.c.h.b16 %v843
    %v1181 = vunpack.c.l.b16 %v844
    %v1182 = vunpack.c.h.b16 %v844
    %v1183 = vunpack.c.l.b16 %v845
    %v1184 = vunpack.c.h.b16 %v845
    %v1185 = vunpack.c.l.b16 %v846
    %v1186 = vunpack.c.h.b16 %v846
    %v1187 = vunpack.c.l.b16 %v847
    %v1188 = vunpack.c.h.b16 %v847
    %v1189 = vunpack.c.l.b16 %v848
    %v1190 = vunpack.c.h.b16 %v848
    %v1191 = vunpack.c.l.b16 %v849
    %v1192 = vunpack.c.h.b16 %v849
    %v1193 = vunpack.c.l.b16 %v850
    %v1194 = vunpack.c.h.b16 %v850
    %v1195 = vunpack.c.l.b16 %v851
    %v1196 = vunpack.c.h.b16 %v851
    %v1197 = vunpack.c.l.b16 %v852
    %v1198 = vunpack.c.h.b16 %v852
    %v1199 = vunpack.c.l.b16 %v853
    %v1200 = vunpack.c.h.b16 %v853
    %v1201 = vunpack.c.l.b16 %v854
    %v1202 = vunpack.c.h.b16 %v854
    %v1203 = vunpack.c.l.b16 %v855
    %v1204 = vunpack.c.h.b16 %v855
    %v1205 = vunpack.c.l.b16 %v856
    %v1206 = vunpack.c.h.b16 %v856
    %v1207 = vunpack.c.l.b16 %v857
    %v1208 = vunpack.c.h.b16 %v857
    %v1209 = vunpack.c.l.b16 %v858
    %v1210 = vunpack.c.h.b16 %v858
    %v1211 = vunpack.c.l.b16 %v859
    %v1212 = vunpack.c.h.b16 %v859
    %v1213 = vunpack.c.l.b16 %v860
    %v1214 = vunpack.c.h.b16 %v860
    %v1215 = vunpack.c.l.b16 %v861
    %v1216 = vunpack.c.h.b16 %v861
    %v1217 = vunpack.c.l.b16 %v862
    %v1218 = vunpack.c.h.b16 %v862
    %v1219 = vunpack.c.l.b16 %v863
    %v1220 = vunpack.c.h.b16 %v863
    %v1221 = vunpack.c.l.b16 %v864
    %v1222 = vunpack.c.h.b16 %v864
    %v1223 = vunpack.c.l.b16 %v865
    %v1224 = vunpack.c.h.b16 %v865
    %v1225 = vunpack.c.l.b16 %v866
    %v1226 = vunpack.c.h.b16 %v866
    %v1227 = vunpack.c.l.b16 %v867
    %v1228 = vunpack.c.h.b16 %v867
    %v1229 = vunpack.c.l.b16 %v868
    %v1230 = vunpack.c.h.b16 %v868
    %v1231 = vunpack.c.l.b16 %v869
    %v1232 = vunpack.c.h.b16 %v869
    %v1233 = vunpack.c.l.b16 %v870
    %v1234 = vunpack.c.h.b16 %v870
    %v1235 = vunpack.c.l.b16 %v871
    %v1236 = vunpack.c.h.b16 %v871
    %v1237 = vunpack.c.l.b16 %v872
    %v1238 = vunpack.c.h.b16 %v872
    %v1239 = vunpack.c.l.b16 %v873
    %v1240 = vunpack.c.h.b16 %v873
    %v1241 = vunpack.c.l.b16 %v874
    %v1242 = vunpack.c.h.b16 %v874
    %v1243 = vunpack.c.l.b16 %v875
    %v1244 = vunpack.c.h.b16 %v875
    %v1245 = vunpack.c.l.b16 %v876
    %v1246 = vunpack.c.h.b16 %v876
    %v1247 = vunpack.c.l.b16 %v877
    %v1248 = vunpack.c.h.b16 %v877
    %v1249 = vunpack.c.l.b16 %v878
    %v1250 = vunpack.c.h.b16 %v878
    %v1251 = vunpack.c.l.b16 %v879
    %v1252 = vunpack.c.h.b16 %v879
    %v1253 = vunpack.c.l.b16 %v880
    %v1254 = vunpack.c.h.b16 %v880
    %v1255 = vunpack.c.l.b16 %v881
    %v1256 = vunpack.c.h.b16 %v881
    %v1257 = vunpack.c.l.b16 %v882
    %v1258 = vunpack.c.h.b16 %v882
    %v1259 = vunpack.c.l.b16 %v883
    %v1260 = vunpack.c.h.b16 %v883
    %v1261 = vunpack.c.l.b16 %v884
    %v1262 = vunpack.c.h.b16 %v884
    %v1263 = vunpack.c.l.b16 %v885
    %v1264 = vunpack.c.h.b16 %v885
    %v1265 = vunpack.c.l.b16 %v886
    %v1266 = vunpack.c.h.b16 %v886
    %v1267 = vunpack.c.l.b16 %v887
    %v1268 = vunpack.c.h.b16 %v887
    %v1269 = vunpack.c.l.b16 %v888
    %v1270 = vunpack.c.h.b16 %v888
    %v1271 = vunpack.c.l.b16 %v889
    %v1272 = vunpack.c.h.b16 %v889
    %v1273 = vunpack.c.l.b16 %v890
    %v1274 = vunpack.c.h.b16 %v890
    %v1275 = vpack.c.b16 %v1027, %v1019
    %v1276 = vpack.c.b16 %v1028, %v1020
    %v1277 = vpack.c.b16 %v1029, %v1021
    %v1278 = vpack.c.b16 %v1030, %v1022
    %v1279 = vpack.c.b16 %v1031, %v1023
    %v1280 = vpack.c.b16 %v1032, %v1024
    %v1281 = vpack.c.b16 %v1033, %v1025
    %v1282 = vpack.c.b16 %v1034, %v1026
    %v1283 = vpack.c.b16 %v1043, %v1035
    %v1284 = vpack.c.b16 %v1044, %v1036
    %v1285 = vpack.c.b16 %v1045, %v1037
    %v1286 = vpack.c.b16 %v1046, %v1038
    %v1287 = vpack.c.b16 %v1047, %v1039
    %v1288 = vpack.c.b16 %v1048, %v1040
    %v1289 = vpack.c.b16 %v1049, %v1041
    %v1290 = vpack.c.b16 %v1050, %v1042
    %v1291 = vpack.c.b16 %v1059, %v1051
    %v1292 = vpack.c.b16 %v1060, %v1052
    %v1293 = vpack.c.b16 %v1061, %v1053
    %v1294 = vpack.c.b16 %v1062, %v1054
    %v1295 = vpack.c.b16 %v1063, %v1055
    %v1296 = vpack.c.b16 %v1064, %v1056
    %v1297 = vpack.c.b16 %v1065, %v1057
    %v1298 = vpack.c.b16 %v1066, %v1058
    %v1299 = vpack.c.b16 %v1075, %v1067
    %v1300 = vpack.c.b16 %v1076, %v1068
    %v1301 = vpack.c.b16 %v1077, %v1069
    %v1302 = vpack.c.b16 %v1078, %v1070
    %v1303 = vpack.c.b16 %v1079, %v1071
    %v1304 = vpack.c.b16 %v1080, %v1072
    %v1305 = vpack.c.b16 %v1081, %v1073
    %v1306 = vpack.c.b16 %v1082, %v1074
    %v1307 = vpack.c.b16 %v1091, %v1083
    %v1308 = vpack.c.b16 %v1092, %v1084
    %v1309 = vpack.c.b16 %v1093, %v1085
    %v1310 = vpack.c.b16 %v1094, %v1086
    %v1311 = vpack.c.b16 %v1095, %v1087
    %v1312 = vpack.c.b16 %v1096, %v1088
    %v1313 = vpack.c.b16 %v1097, %v1089
    %v1314 = vpack.c.b16 %v1098, %v1090
    %v1315 = vpack.c.b16 %v1107, %v1099
    %v1316 = vpack.c.b16 %v1108, %v1100
    %v1317 = vpack.c.b16 %v1109, %v1101
    %v1318 = vpack.c.b16 %v1110, %v1102
    %v1319 = vpack.c.b16 %v1111, %v1103
    %v1320 = vpack.c.b16 %v1112, %v1104
    %v1321 = vpack.c.b16 %v1113, %v1105
    %v1322 = vpack.c.b16 %v1114, %v1106
    %v1323 = vpack.c.b16 %v1123, %v1115
    %v1324 = vpack.c.b16 %v1124, %v1116
    %v1325 = vpack.c.b16 %v1125, %v1117
    %v1326 = vpack.c.b16 %v1126, %v1118
    %v1327 = vpack.c.b16 %v1127, %v1119
    %v1328 = vpack.c.b16 %v1128, %v1120
    %v1329 = vpack.c.b16 %v1129, %v1121
    %v1330 = vpack.c.b16 %v1130, %v1122
    %v1331 = vpack.c.b16 %v1139, %v1131
    %v1332 = vpack.c.b16 %v1140, %v1132
    %v1333 = vpack.c.b16 %v1141, %v1133
    %v1334 = vpack.c.b16 %v1142, %v1134
    %v1335 = vpack.c.b16 %v1143, %v1135
    %v1336 = vpack.c.b16 %v1144, %v1136
    %v1337 = vpack.c.b16 %v1145, %v1137
    %v1338 = vpack.c.b16 %v1146, %v1138
    %v1339 = vpack.c.b16 %v1155, %v1147
    %v1340 = vpack.c.b16 %v1156, %v1148
    %v1341 = vpack.c.b16 %v1157, %v1149
    %v1342 = vpack.c.b16 %v1158, %v1150
    %v1343 = vpack.c.b16 %v1159, %v1151
    %v1344 = vpack.c.b16 %v1160, %v1152
    %v1345 = vpack.c.b16 %v1161, %v1153
    %v1346 = vpack.c.b16 %v1162, %v1154
    %v1347 = vpack.c.b16 %v1171, %v1163
    %v1348 = vpack.c.b16 %v1172, %v1164
    %v1349 = vpack.c.b16 %v1173, %v1165
    %v1350 = vpack.c.b16 %v1174, %v1166
    %v1351 = vpack.c.b16 %v1175, %v1167
    %v1352 = vpack.c.b16 %v1176, %v1168
    %v1353 = vpack.c.b16 %v1177, %v1169
    %v1354 = vpack.c.b16 %v1178, %v1170
    %v1355 = vpack.c.b16 %v1187, %v1179
    %v1356 = vpack.c.b16 %v1188, %v1180
    %v1357 = vpack.c.b16 %v1189, %v1181
    %v1358 = vpack.c.b16 %v1190, %v1182
    %v1359 = vpack.c.b16 %v1191, %v1183
    %v1360 = vpack.c.b16 %v1192, %v1184
    %v1361 = vpack.c.b16 %v1193, %v1185
    %v1362 = vpack.c.b16 %v1194, %v1186
    %v1363 = vpack.c.b16 %v1203, %v1195
    %v1364 = vpack.c.b16 %v1204, %v1196
    %v1365 = vpack.c.b16 %v1205, %v1197
    %v1366 = vpack.c.b16 %v1206, %v1198
    %v1367 = vpack.c.b16 %v1207, %v1199
    %v1368 = vpack.c.b16 %v1208, %v1200
    %v1369 = vpack.c.b16 %v1209, %v1201
    %v1370 = vpack.c.b16 %v1210, %v1202
    %v1371 = vpack.c.b16 %v1219, %v1211
    %v1372 = vpack.c.b16 %v1220, %v1212
    %v1373 = vpack.c.b16 %v1221, %v1213
    %v1374 = vpack.c.b16 %v1222, %v1214
    %v1375 = vpack.c.b16 %v1223, %v1215
    %v1376 = vpack.c.b16 %v1224, %v1216
    %v1377 = vpack.c.b16 %v1225, %v1217
    %v1378 = vpack.c.b16 %v1226, %v1218
    %v1379 = vpack.c.b16 %v1235, %v1227
    %v1380 = vpack.c.b16 %v1236, %v1228
    %v1381 = vpack.c.b16 %v1237, %v1229
    %v1382 = vpack.c.b16 %v1238, %v1230
    %v1383 = vpack.c.b16 %v1239, %v1231
    %v1384 = vpack.c.b16 %v1240, %v1232
    %v1385 = vpack.c.b16 %v1241, %v1233
    %v1386 = vpack.c.b16 %v1242, %v1234
    %v1387 = vpack.c.b16 %v1251, %v1243
    %v1388 = vpack.c.b16 %v1252, %v1244
    %v1389 = vpack.c.b16 %v1253, %v1245
    %v1390 = vpack.c.b16 %v1254, %v1246
    %v1391 = vpack.c.b16 %v1255, %v1247
    %v1392 = vpack.c.b16 %v1256, %v1248
    %v1393 = vpack.c.b16 %v1257, %v1249
    %v1394 = vpack.c.b16 %v1258, %v1250
    %v1395 = vpack.c.b16 %v1267, %v1259
    %v1396 = vpack.c.b16 %v1268, %v1260
    %v1397 = vpack.c.b16 %v1269, %v1261
    %v1398 = vpack.c.b16 %v1270, %v1262
    %v1399 = vpack.c.b16 %v1271, %v1263
    %v1400 = vpack.c.b16 %v1272, %v1264
    %v1401 = vpack.c.b16 %v1273, %v1265
    %v1402 = vpack.c.b16 %v1274, %v1266
    %1531 = vmatprep.subr.bf16.mxu0 %v1276
    %1532 = vmatpush1.bf16.msra.mxu0 %v1275
    %1533 = vmatprep.subr.bf16.mxu0 %v1284
    %1534 = vmatpush1.bf16.msra.mxu0 %v1283
    %1535 = vmatprep.subr.bf16.mxu0 %v1292
    %1536 = vmatpush1.bf16.msra.mxu0 %v1291
    %1537 = vmatprep.subr.bf16.mxu0 %v1300
    %1538 = vmatpush1.bf16.msra.mxu0 %v1299
    %1539 = vmatprep.subr.bf16.mxu0 %v1308
    %1540 = vmatpush1.bf16.msra.mxu0 %v1307
    %1541 = vmatprep.subr.bf16.mxu0 %v1316
    %1542 = vmatpush1.bf16.msra.mxu0 %v1315
    %1543 = vmatprep.subr.bf16.mxu0 %v1324
    %1544 = vmatpush1.bf16.msra.mxu0 %v1323
    %1545 = vmatprep.subr.bf16.mxu0 %v1332
    %1546 = vmatpush1.bf16.msra.mxu0 %v1331
    %1547 = vmatprep.subr.bf16.mxu0 %v1340
    %1548 = vmatpush1.bf16.msra.mxu0 %v1339
    %1549 = vmatprep.subr.bf16.mxu0 %v1348
    %1550 = vmatpush1.bf16.msra.mxu0 %v1347
    %1551 = vmatprep.subr.bf16.mxu0 %v1356
    %1552 = vmatpush1.bf16.msra.mxu0 %v1355
    %1553 = vmatprep.subr.bf16.mxu0 %v1364
    %1554 = vmatpush1.bf16.msra.mxu0 %v1363
    %1555 = vmatprep.subr.bf16.mxu0 %v1372
    %1556 = vmatpush1.bf16.msra.mxu0 %v1371
    %1557 = vmatprep.subr.bf16.mxu0 %v1380
    %1558 = vmatpush1.bf16.msra.mxu0 %v1379
    %1559 = vmatprep.subr.bf16.mxu0 %v1388
    %1560 = vmatpush1.bf16.msra.mxu0 %v1387
    %1561 = vmatprep.subr.bf16.mxu0 %v1396
    %1562 = vmatpush1.bf16.msra.mxu0 %v1395
    %1563 = vmatprep.mubr.bf16.mxu0 %v762
    %1564 = vmatmul.mubr.bf16.gmra.mrb[0].mxu0 %v761
    %v1565 = vpop.f32.mrb[0].mxu0
    %v1566 = vadd.f32 0.0, %v1565
    %v1567 = vpop.f32.mrb[0].mxu0
    %v1568 = vadd.f32 0.0, %v1567
    %v1569 = vpop.f32.mrb[0].mxu0
    %v1570 = vpop.f32.mrb[0].mxu0
    %1571 = vdwg.mxu0
    %1572 = vmatprep.subr.bf16.mxu0 %v1278
    %1573 = vmatpush1.bf16.msra.mxu0 %v1277
    %1574 = vmatprep.subr.bf16.mxu0 %v1286
    %1575 = vmatpush1.bf16.msra.mxu0 %v1285
    %1576 = vmatprep.subr.bf16.mxu0 %v1294
    %1577 = vmatpush1.bf16.msra.mxu0 %v1293
    %1578 = vmatprep.subr.bf16.mxu0 %v1302
    %1579 = vmatpush1.bf16.msra.mxu0 %v1301
    %1580 = vmatprep.subr.bf16.mxu0 %v1310
    %1581 = vmatpush1.bf16.msra.mxu0 %v1309
    %1582 = vmatprep.subr.bf16.mxu0 %v1318
    %1583 = vmatpush1.bf16.msra.mxu0 %v1317
    %1584 = vmatprep.subr.bf16.mxu0 %v1326
    %1585 = vmatpush1.bf16.msra.mxu0 %v1325
    %1586 = vmatprep.subr.bf16.mxu0 %v1334
    %1587 = vmatpush1.bf16.msra.mxu0 %v1333
    %1588 = vmatprep.subr.bf16.mxu0 %v1342
    %1589 = vmatpush1.bf16.msra.mxu0 %v1341
    %1590 = vmatprep.subr.bf16.mxu0 %v1350
    %1591 = vmatpush1.bf16.msra.mxu0 %v1349
    %1592 = vmatprep.subr.bf16.mxu0 %v1358
    %1593 = vmatpush1.bf16.msra.mxu0 %v1357
    %1594 = vmatprep.subr.bf16.mxu0 %v1366
    %1595 = vmatpush1.bf16.msra.mxu0 %v1365
    %1596 = vmatprep.subr.bf16.mxu0 %v1374
    %1597 = vmatpush1.bf16.msra.mxu0 %v1373
    %1598 = vmatprep.subr.bf16.mxu0 %v1382
    %1599 = vmatpush1.bf16.msra.mxu0 %v1381
    %1600 = vmatprep.subr.bf16.mxu0 %v1390
    %1601 = vmatpush1.bf16.msra.mxu0 %v1389
    %1602 = vmatprep.subr.bf16.mxu0 %v1398
    %1603 = vmatpush1.bf16.msra.mxu0 %v1397
    %1604 = vmatprep.mubr.bf16.mxu0 %v762
    %1605 = vmatmul.mubr.bf16.gmra.mrb[0].mxu0 %v761
    %v1606 = vpop.f32.mrb[0].mxu0
    %v1607 = vadd.f32 0.0, %v1606
    %v1608 = vpop.f32.mrb[0].mxu0
    %v1609 = vadd.f32 0.0, %v1608
    %v1610 = vpop.f32.mrb[0].mxu0
    %v1611 = vpop.f32.mrb[0].mxu0
    %1612 = vdwg.mxu0
    %1613 = vmatprep.subr.bf16.mxu0 %v1280
    %1614 = vmatpush1.bf16.msra.mxu0 %v1279
    %1615 = vmatprep.subr.bf16.mxu0 %v1288
    %1616 = vmatpush1.bf16.msra.mxu0 %v1287
    %1617 = vmatprep.subr.bf16.mxu0 %v1296
    %1618 = vmatpush1.bf16.msra.mxu0 %v1295
    %1619 = vmatprep.subr.bf16.mxu0 %v1304
    %1620 = vmatpush1.bf16.msra.mxu0 %v1303
    %1621 = vmatprep.subr.bf16.mxu0 %v1312
    %1622 = vmatpush1.bf16.msra.mxu0 %v1311
    %1623 = vmatprep.subr.bf16.mxu0 %v1320
    %1624 = vmatpush1.bf16.msra.mxu0 %v1319
    %1625 = vmatprep.subr.bf16.mxu0 %v1328
    %1626 = vmatpush1.bf16.msra.mxu0 %v1327
    %1627 = vmatprep.subr.bf16.mxu0 %v1336
    %1628 = vmatpush1.bf16.msra.mxu0 %v1335
    %1629 = vmatprep.subr.bf16.mxu0 %v1344
    %1630 = vmatpush1.bf16.msra.mxu0 %v1343
    %1631 = vmatprep.subr.bf16.mxu0 %v1352
    %1632 = vmatpush1.bf16.msra.mxu0 %v1351
    %1633 = vmatprep.subr.bf16.mxu0 %v1360
    %1634 = vmatpush1.bf16.msra.mxu0 %v1359
    %1635 = vmatprep.subr.bf16.mxu0 %v1368
    %1636 = vmatpush1.bf16.msra.mxu0 %v1367
    %1637 = vmatprep.subr.bf16.mxu0 %v1376
    %1638 = vmatpush1.bf16.msra.mxu0 %v1375
    %1639 = vmatprep.subr.bf16.mxu0 %v1384
    %1640 = vmatpush1.bf16.msra.mxu0 %v1383
    %1641 = vmatprep.subr.bf16.mxu0 %v1392
    %1642 = vmatpush1.bf16.msra.mxu0 %v1391
    %1643 = vmatprep.subr.bf16.mxu0 %v1400
    %1644 = vmatpush1.bf16.msra.mxu0 %v1399
    %1645 = vmatprep.mubr.bf16.mxu0 %v762
    %1646 = vmatmul.mubr.bf16.gmra.mrb[0].mxu0 %v761
    %v1647 = vpop.f32.mrb[0].mxu0
    %v1648 = vadd.f32 0.0, %v1647
    %v1649 = vpop.f32.mrb[0].mxu0
    %v1650 = vadd.f32 0.0, %v1649
    %v1651 = vpop.f32.mrb[0].mxu0
    %v1652 = vpop.f32.mrb[0].mxu0
    %1653 = vdwg.mxu0
    %1654 = vmatprep.subr.bf16.mxu0 %v1282
    %1655 = vmatpush1.bf16.msra.mxu0 %v1281
    %1656 = vmatprep.subr.bf16.mxu0 %v1290
    %1657 = vmatpush1.bf16.msra.mxu0 %v1289
    %1658 = vmatprep.subr.bf16.mxu0 %v1298
    %1659 = vmatpush1.bf16.msra.mxu0 %v1297
    %1660 = vmatprep.subr.bf16.mxu0 %v1306
    %1661 = vmatpush1.bf16.msra.mxu0 %v1305
    %1662 = vmatprep.subr.bf16.mxu0 %v1314
    %1663 = vmatpush1.bf16.msra.mxu0 %v1313
    %1664 = vmatprep.subr.bf16.mxu0 %v1322
    %1665 = vmatpush1.bf16.msra.mxu0 %v1321
    %1666 = vmatprep.subr.bf16.mxu0 %v1330
    %1667 = vmatpush1.bf16.msra.mxu0 %v1329
    %1668 = vmatprep.subr.bf16.mxu0 %v1338
    %1669 = vmatpush1.bf16.msra.mxu0 %v1337
    %1670 = vmatprep.subr.bf16.mxu0 %v1346
    %1671 = vmatpush1.bf16.msra.mxu0 %v1345
    %1672 = vmatprep.subr.bf16.mxu0 %v1354
    %1673 = vmatpush1.bf16.msra.mxu0 %v1353
    %1674 = vmatprep.subr.bf16.mxu0 %v1362
    %1675 = vmatpush1.bf16.msra.mxu0 %v1361
    %1676 = vmatprep.subr.bf16.mxu0 %v1370
    %1677 = vmatpush1.bf16.msra.mxu0 %v1369
    %1678 = vmatprep.subr.bf16.mxu0 %v1378
    %1679 = vmatpush1.bf16.msra.mxu0 %v1377
    %1680 = vmatprep.subr.bf16.mxu0 %v1386
    %1681 = vmatpush1.bf16.msra.mxu0 %v1385
    %1682 = vmatprep.subr.bf16.mxu0 %v1394
    %1683 = vmatpush1.bf16.msra.mxu0 %v1393
    %1684 = vmatprep.subr.bf16.mxu0 %v1402
    %1685 = vmatpush1.bf16.msra.mxu0 %v1401
    %1686 = vmatprep.mubr.bf16.mxu0 %v762
    %1687 = vmatmul.mubr.bf16.gmra.mrb[0].mxu0 %v761
    %v1688 = vpop.f32.mrb[0].mxu0
    %v1689 = vadd.f32 0.0, %v1688
    %v1690 = vpop.f32.mrb[0].mxu0
    %v1691 = vadd.f32 0.0, %v1690
    %v1692 = vpop.f32.mrb[0].mxu0
    %v1693 = vpop.f32.mrb[0].mxu0
    %1694 = vdwg.mxu0
    %v1695 = vld [vmem:[%s13] sm:$0xf]
    %v1696 = vld [vmem:[%s13 + $0x4] sm:$0xf]
    %v1697 = vpack.c.bf16 %v1607, %v1566
    %v1698 = vpack.c.bf16 %v1609, %v1568
    %v1699 = vpack.c.bf16 %v1689, %v1648
    %v1700 = vpack.c.bf16 %v1691, %v1650
    %v1703 = vunpack.c.l.b16 %v1695
    %v1704 = vunpack.c.l.b16 %v1696
    %v1705 = vpack.c.b16 %v1704, %v1703
    %vm1706 = vcmask 261120
    %v1708 = vsel %vm1706, %v1705, 0
    %1710 = vmatprep.subr.bf16.mxu0 %v1698
    %1711 = vmatpush1.bf16.msra.mxu0 %v1697
    %1712 = vmatprep.subr.bf16.mxu0 %v1700
    %1713 = vmatpush1.bf16.msra.mxu0 %v1699
    %1714 = vmatprep.subr.bf16.mxu0 0
    %1715 = vmatpush1.bf16.msra.mxu0 0
    %1716 = vmatprep.subr.bf16.mxu0 0
    %1717 = vmatpush1.bf16.msra.mxu0 0
    %1718 = vmatprep.subr.bf16.mxu0 0
    %1719 = vmatpush1.bf16.msra.mxu0 0
    %1720 = vmatprep.subr.bf16.mxu0 0
    %1721 = vmatpush1.bf16.msra.mxu0 0
    %1722 = vmatprep.subr.bf16.mxu0 0
    %1723 = vmatpush1.bf16.msra.mxu0 0
    %1724 = vmatprep.subr.bf16.mxu0 0
    %1725 = vmatpush1.bf16.msra.mxu0 0
    %1726 = vmatprep.subr.bf16.mxu0 0
    %1727 = vmatpush1.bf16.msra.mxu0 0
    %1728 = vmatprep.subr.bf16.mxu0 0
    %1729 = vmatpush1.bf16.msra.mxu0 0
    %1730 = vmatprep.subr.bf16.mxu0 0
    %1731 = vmatpush1.bf16.msra.mxu0 0
    %1732 = vmatprep.subr.bf16.mxu0 0
    %1733 = vmatpush1.bf16.msra.mxu0 0
    %1734 = vmatprep.subr.bf16.mxu0 0
    %1735 = vmatpush1.bf16.msra.mxu0 0
    %1736 = vmatprep.subr.bf16.mxu0 0
    %1737 = vmatpush1.bf16.msra.mxu0 0
    %1738 = vmatprep.subr.bf16.mxu0 0
    %1739 = vmatpush1.bf16.msra.mxu0 0
    %1740 = vmatprep.subr.bf16.mxu0 0
    %1741 = vmatpush1.bf16.msra.mxu0 0
    %1742 = vmatprep.mubr.bf16.mxu0 0
    %1743 = vmatmul.mubr.bf16.gmra.mrb[0].mxu0 %v1708
    %v1744 = vpop.f32.mrb[0].mxu0
    %v1745 = vadd.f32 0.0, %v1744
    %v1746 = vpop.f32.mrb[0].mxu0
    %v1747 = vadd.f32 0.0, %v1746
    %v1748 = vpop.f32.mrb[0].mxu0
    %v1749 = vadd.f32 0.0, %v1748
    %v1750 = vpop.f32.mrb[0].mxu0
    %v1751 = vadd.f32 0.0, %v1750
    %1752 = vdwg.mxu0
    %v1753 = vadd.f32 %v1745, %v1749
    %v1754 = vrot.slane %v1753, 4
    %v1755 = vadd.f32 %v1753, %v1754
    %v1756 = vrot.slane %v1755, 2
    %v1757 = vadd.f32 %v1755, %v1756
    %v1758 = vrot.slane %v1757, 1
    %v1759 = vadd.f32 %v1757, %v1758
    %v1760 = vadd.f32 %v1747, %v1751
    %v1761 = vrot.slane %v1760, 4
    %v1762 = vadd.f32 %v1760, %v1761
    %v1763 = vrot.slane %v1762, 2
    %v1764 = vadd.f32 %v1762, %v1763
    %v1765 = vrot.slane %v1764, 1
    %v1766 = vadd.f32 %v1764, %v1765
    %v1767 = vmul.f32 %v1745, %v1745
    %v1768 = vmul.f32 %v1747, %v1747
    %v1769 = vmul.f32 %v1749, %v1749
    %v1770 = vmul.f32 %v1751, %v1751
    %v1771 = vadd.f32 %v1767, %v1769
    %v1772 = vrot.slane %v1771, 4
    %v1773 = vadd.f32 %v1771, %v1772
    %v1774 = vrot.slane %v1773, 2
    %v1775 = vadd.f32 %v1773, %v1774
    %v1776 = vrot.slane %v1775, 1
    %v1777 = vadd.f32 %v1775, %v1776
    %v1778 = vadd.f32 %v1768, %v1770
    %v1779 = vrot.slane %v1778, 4
    %v1780 = vadd.f32 %v1778, %v1779
    %v1781 = vrot.slane %v1780, 2
    %v1782 = vadd.f32 %v1780, %v1781
    %v1783 = vrot.slane %v1782, 1
    %v1784 = vadd.f32 %v1782, %v1783
    %v1785 = vsel %vm474, %v1759, %v1777
    %v1786 = vsel %vm474, %v1766, %v1784
    %v1787 = vld [vmem:[%s17] sm:$0xf]
    %v1788 = vld [vmem:[%s17 + $0x4] sm:$0xf]
    %v1789 = vld [vmem:[%s17 + $0x8] sm:$0xf]
    %v1790 = vld [vmem:[%s17 + $0xc] sm:$0xf]
    %v1791 = vld [vmem:[%s17 + $0x10] sm:$0xf]
    %v1792 = vld [vmem:[%s17 + $0x14] sm:$0xf]
    %v1793 = vld [vmem:[%s17 + $0x18] sm:$0xf]
    %v1794 = vld [vmem:[%s17 + $0x1c] sm:$0xf]
    %v1795 = vld [vmem:[%s17 + $0x20] sm:$0xf]
    %v1796 = vld [vmem:[%s17 + $0x24] sm:$0xf]
    %v1797 = vld [vmem:[%s17 + $0x28] sm:$0xf]
    %v1798 = vld [vmem:[%s17 + $0x2c] sm:$0xf]
    %v1799 = vld [vmem:[%s17 + $0x30] sm:$0xf]
    %v1800 = vld [vmem:[%s17 + $0x34] sm:$0xf]
    %v1801 = vld [vmem:[%s17 + $0x38] sm:$0xf]
    %v1802 = vld [vmem:[%s17 + $0x3c] sm:$0xf]
    %v1803 = vld [vmem:[%s17 + $0x40] sm:$0xf]
    %v1804 = vld [vmem:[%s17 + $0x44] sm:$0xf]
    %v1805 = vld [vmem:[%s17 + $0x48] sm:$0xf]
    %v1806 = vld [vmem:[%s17 + $0x4c] sm:$0xf]
    %v1807 = vld [vmem:[%s17 + $0x50] sm:$0xf]
    %v1808 = vld [vmem:[%s17 + $0x54] sm:$0xf]
    %v1809 = vld [vmem:[%s17 + $0x58] sm:$0xf]
    %v1810 = vld [vmem:[%s17 + $0x5c] sm:$0xf]
    %v1811 = vld [vmem:[%s17 + $0x60] sm:$0xf]
    %v1812 = vld [vmem:[%s17 + $0x64] sm:$0xf]
    %v1813 = vld [vmem:[%s17 + $0x68] sm:$0xf]
    %v1814 = vld [vmem:[%s17 + $0x6c] sm:$0xf]
    %v1815 = vld [vmem:[%s17 + $0x70] sm:$0xf]
    %v1816 = vld [vmem:[%s17 + $0x74] sm:$0xf]
    %v1817 = vld [vmem:[%s17 + $0x78] sm:$0xf]
    %v1818 = vld [vmem:[%s17 + $0x7c] sm:$0xf]
    %v1819 = vunpack.c.l.bf16 %v1787
    %v1820 = vunpack.c.l.bf16 %v1788
    %v1821 = vunpack.c.l.bf16 %v1789
    %v1822 = vunpack.c.l.bf16 %v1790
    %v1823 = vunpack.c.l.bf16 %v1791
    %v1824 = vunpack.c.l.bf16 %v1792
    %v1825 = vunpack.c.l.bf16 %v1793
    %v1826 = vunpack.c.l.bf16 %v1794
    %v1827 = vunpack.c.l.bf16 %v1795
    %v1828 = vunpack.c.l.bf16 %v1796
    %v1829 = vunpack.c.l.bf16 %v1797
    %v1830 = vunpack.c.l.bf16 %v1798
    %v1831 = vunpack.c.l.bf16 %v1799
    %v1832 = vunpack.c.l.bf16 %v1800
    %v1833 = vunpack.c.l.bf16 %v1801
    %v1834 = vunpack.c.l.bf16 %v1802
    %v1835 = vunpack.c.l.bf16 %v1803
    %v1836 = vunpack.c.l.bf16 %v1804
    %v1837 = vunpack.c.l.bf16 %v1805
    %v1838 = vunpack.c.l.bf16 %v1806
    %v1839 = vunpack.c.l.bf16 %v1807
    %v1840 = vunpack.c.l.bf16 %v1808
    %v1841 = vunpack.c.l.bf16 %v1809
    %v1842 = vunpack.c.l.bf16 %v1810
    %v1843 = vunpack.c.l.bf16 %v1811
    %v1844 = vunpack.c.l.bf16 %v1812
    %v1845 = vunpack.c.l.bf16 %v1813
    %v1846 = vunpack.c.l.bf16 %v1814
    %v1847 = vunpack.c.l.bf16 %v1815
    %v1848 = vunpack.c.l.bf16 %v1816
    %v1849 = vunpack.c.l.bf16 %v1817
    %v1850 = vunpack.c.l.bf16 %v1818
    %1851 = vmatprep.subr.mxu0 0.0
    %1852 = vmatpush1.msra.mxu0 %v1819
    %1853 = vmatprep.subr.mxu0 0.0
    %1854 = vmatpush1.msra.mxu0 %v1820
    %1855 = vmatprep.subr.mxu0 0.0
    %1856 = vmatpush1.msra.mxu0 %v1821
    %1857 = vmatprep.subr.mxu0 0.0
    %1858 = vmatpush1.msra.mxu0 %v1822
    %1859 = vmatprep.subr.mxu0 0.0
    %1860 = vmatpush1.msra.mxu0 %v1823
    %1861 = vmatprep.subr.mxu0 0.0
    %1862 = vmatpush1.msra.mxu0 %v1824
    %1863 = vmatprep.subr.mxu0 0.0
    %1864 = vmatpush1.msra.mxu0 %v1825
    %1865 = vmatprep.subr.mxu0 0.0
    %1866 = vmatpush1.msra.mxu0 %v1826
    %1867 = vmatprep.subr.mxu0 0.0
    %1868 = vmatpush1.msra.mxu0 %v1827
    %1869 = vmatprep.subr.mxu0 0.0
    %1870 = vmatpush1.msra.mxu0 %v1828
    %1871 = vmatprep.subr.mxu0 0.0
    %1872 = vmatpush1.msra.mxu0 %v1829
    %1873 = vmatprep.subr.mxu0 0.0
    %1874 = vmatpush1.msra.mxu0 %v1830
    %1875 = vmatprep.subr.mxu0 0.0
    %1876 = vmatpush1.msra.mxu0 %v1831
    %1877 = vmatprep.subr.mxu0 0.0
    %1878 = vmatpush1.msra.mxu0 %v1832
    %1879 = vmatprep.subr.mxu0 0.0
    %1880 = vmatpush1.msra.mxu0 %v1833
    %1881 = vmatprep.subr.mxu0 0.0
    %1882 = vmatpush1.msra.mxu0 %v1834
    %1883 = vmatprep.subr.mxu0 0.0
    %1884 = vmatpush1.msra.mxu0 %v1835
    %1885 = vmatprep.subr.mxu0 0.0
    %1886 = vmatpush1.msra.mxu0 %v1836
    %1887 = vmatprep.subr.mxu0 0.0
    %1888 = vmatpush1.msra.mxu0 %v1837
    %1889 = vmatprep.subr.mxu0 0.0
    %1890 = vmatpush1.msra.mxu0 %v1838
    %1891 = vmatprep.subr.mxu0 0.0
    %1892 = vmatpush1.msra.mxu0 %v1839
    %1893 = vmatprep.subr.mxu0 0.0
    %1894 = vmatpush1.msra.mxu0 %v1840
    %1895 = vmatprep.subr.mxu0 0.0
    %1896 = vmatpush1.msra.mxu0 %v1841
    %1897 = vmatprep.subr.mxu0 0.0
    %1898 = vmatpush1.msra.mxu0 %v1842
    %1899 = vmatprep.subr.mxu0 0.0
    %1900 = vmatpush1.msra.mxu0 %v1843
    %1901 = vmatprep.subr.mxu0 0.0
    %1902 = vmatpush1.msra.mxu0 %v1844
    %1903 = vmatprep.subr.mxu0 0.0
    %1904 = vmatpush1.msra.mxu0 %v1845
    %1905 = vmatprep.subr.mxu0 0.0
    %1906 = vmatpush1.msra.mxu0 %v1846
    %1907 = vmatprep.subr.mxu0 0.0
    %1908 = vmatpush1.msra.mxu0 %v1847
    %1909 = vmatprep.subr.mxu0 0.0
    %1910 = vmatpush1.msra.mxu0 %v1848
    %1911 = vmatprep.subr.mxu0 0.0
    %1912 = vmatpush1.msra.mxu0 %v1849
    %1913 = vmatprep.subr.mxu0 0.0
    %1914 = vmatpush1.msra.mxu0 %v1850
    %1915 = vmatprep.mubr.f32.mxu0 %v1786
    %1916 = vmatmul.mubr.f32.gmra.mrb[0].mxu0 %v1785
    %v1917 = vpop.f32.mrb[0].mxu0
    %v1918 = vadd.f32 0.0, %v1917
    %v1919 = vpop.f32.mrb[0].mxu0
    %1920 = vdwg.mxu0
    %v1921 = vmul.f32 %v1918, 0.0078125
    %v1922 = vmul.f32 %v1921, %v1921
    %v1924 = vrot.slane %v1922, 7
    %v1926 = vsub.f32 %v1921, %v1924
    %v1927 = vadd.f32 %v1926, 1e-05
    %v1928 = vrsqrt.pop %v1927
    %v1929 = vld [vmem:[%s21] sm:$0x1]
    %v1931 = vlaneseq
    %v1932 = vshrl.u32 %v1931, 7
    %v1933 = vsub.s32 0, %v1932
    %v1934 = vrot.slane %v1929, %v1933
    %v1936 = vmul.f32 %v1928, %v1934
    %v1937 = vld [vmem:[%s23] sm:$0x1]
    %v1939 = vrot.slane %v1936, 1
    %v1941 = vmul.f32 %v1921, %v1939
    %v1942 = vsub.f32 %v1937, %v1941
    %v1944 = vlaneseq
    %v1945 = vshrl.u32 %v1944, 7
    %v1946 = vsub.s32 0, %v1945
    %v1947 = vrot.slane %v1942, %v1946
    %v1949 = vsel %vm474, %v1939, %v1947
    %v1950 = vld [vmem:[%s19] sm:$0xff]
    %v1951 = vld [vmem:[%s19 + $0x8] sm:$0xff]
    %v1952 = vld [vmem:[%s19 + $0x10] sm:$0xff]
    %v1953 = vld [vmem:[%s19 + $0x18] sm:$0xff]
    %v1954 = vunpack.c.l.bf16 %v1950
    %v1955 = vunpack.c.h.bf16 %v1950
    %v1956 = vunpack.c.l.bf16 %v1951
    %v1957 = vunpack.c.h.bf16 %v1951
    %v1958 = vunpack.c.l.bf16 %v1952
    %v1959 = vunpack.c.h.bf16 %v1952
    %v1960 = vunpack.c.l.bf16 %v1953
    %v1961 = vunpack.c.h.bf16 %v1953
    %v1963 = vsel %vm1706, %v1949, 0
    %1965 = vmatprep.subr.mxu0 %v1955
    %1966 = vmatpush1.msra.mxu0 %v1954
    %1967 = vmatprep.subr.mxu0 %v1957
    %1968 = vmatpush1.msra.mxu0 %v1956
    %1969 = vmatprep.subr.mxu0 %v1959
    %1970 = vmatpush1.msra.mxu0 %v1958
    %1971 = vmatprep.subr.mxu0 %v1961
    %1972 = vmatpush1.msra.mxu0 %v1960
    %1973 = vmatprep.subr.mxu0 0.0
    %1974 = vmatpush1.msra.mxu0 0.0
    %1975 = vmatprep.subr.mxu0 0.0
    %1976 = vmatpush1.msra.mxu0 0.0
    %1977 = vmatprep.subr.mxu0 0.0
    %1978 = vmatpush1.msra.mxu0 0.0
    %1979 = vmatprep.subr.mxu0 0.0
    %1980 = vmatpush1.msra.mxu0 0.0
    %1981 = vmatprep.subr.mxu0 0.0
    %1982 = vmatpush1.msra.mxu0 0.0
    %1983 = vmatprep.subr.mxu0 0.0
    %1984 = vmatpush1.msra.mxu0 0.0
    %1985 = vmatprep.subr.mxu0 0.0
    %1986 = vmatpush1.msra.mxu0 0.0
    %1987 = vmatprep.subr.mxu0 0.0
    %1988 = vmatpush1.msra.mxu0 0.0
    %1989 = vmatprep.subr.mxu0 0.0
    %1990 = vmatpush1.msra.mxu0 0.0
    %1991 = vmatprep.subr.mxu0 0.0
    %1992 = vmatpush1.msra.mxu0 0.0
    %1993 = vmatprep.subr.mxu0 0.0
    %1994 = vmatpush1.msra.mxu0 0.0
    %1995 = vmatprep.subr.mxu0 0.0
    %1996 = vmatpush1.msra.mxu0 0.0
    %1997 = vmatprep.subr.mxu0 0.0
    %1998 = vmatpush1.msra.mxu0 0.0
    %1999 = vmatprep.subr.mxu0 0.0
    %2000 = vmatpush1.msra.mxu0 0.0
    %2001 = vmatprep.subr.mxu0 0.0
    %2002 = vmatpush1.msra.mxu0 0.0
    %2003 = vmatprep.subr.mxu0 0.0
    %2004 = vmatpush1.msra.mxu0 0.0
    %2005 = vmatprep.subr.mxu0 0.0
    %2006 = vmatpush1.msra.mxu0 0.0
    %2007 = vmatprep.subr.mxu0 0.0
    %2008 = vmatpush1.msra.mxu0 0.0
    %2009 = vmatprep.subr.mxu0 0.0
    %2010 = vmatpush1.msra.mxu0 0.0
    %2011 = vmatprep.subr.mxu0 0.0
    %2012 = vmatpush1.msra.mxu0 0.0
    %2013 = vmatprep.subr.mxu0 0.0
    %2014 = vmatpush1.msra.mxu0 0.0
    %2015 = vmatprep.subr.mxu0 0.0
    %2016 = vmatpush1.msra.mxu0 0.0
    %2017 = vmatprep.subr.mxu0 0.0
    %2018 = vmatpush1.msra.mxu0 0.0
    %2019 = vmatprep.subr.mxu0 0.0
    %2020 = vmatpush1.msra.mxu0 0.0
    %2021 = vmatprep.subr.mxu0 0.0
    %2022 = vmatpush1.msra.mxu0 0.0
    %2023 = vmatprep.subr.mxu0 0.0
    %2024 = vmatpush1.msra.mxu0 0.0
    %2025 = vmatprep.subr.mxu0 0.0
    %2026 = vmatpush1.msra.mxu0 0.0
    %2027 = vmatprep.subr.mxu0 0.0
    %2028 = vmatpush1.msra.mxu0 0.0
    %2029 = vmatprep.mubr.f32.mxu0 0.0
    %2030 = vmatmul.mubr.f32.gmra.mrb[0].mxu0 %v1963
    %v2031 = vpop.f32.mrb[0].mxu0
    %v2032 = vadd.f32 0.0, %v2031
    %v2033 = vpop.f32.mrb[0].mxu0
    %v2034 = vadd.f32 0.0, %v2033
    %2035 = vdwg.mxu0
    %v2036 = vlaneseq
    %v2037 = vshrl.u32 %v2036, 7
    %v2038 = vsub.s32 0, %v2037
    %v2039 = vrot.slane %v2032, %v2038
    %v2040 = vlaneseq
    %v2041 = vshrl.u32 %v2040, 7
    %v2042 = vsub.s32 0, %v2041
    %v2043 = vrot.slane %v2034, %v2042
    %v2044 = vmul.f32 %v1745, %v2039
    %v2045 = vmul.f32 %v1747, %v2043
    %v2046 = vmul.f32 %v1749, %v2039
    %v2047 = vmul.f32 %v1751, %v2043
    %v2048 = vlaneseq
    %v2049 = vshrl.u32 %v2048, 7
    %v2050 = vsub.s32 1, %v2049
    %v2051 = vrot.slane %v2032, %v2050
    %v2052 = vlaneseq
    %v2053 = vshrl.u32 %v2052, 7
    %v2054 = vsub.s32 1, %v2053
    %v2055 = vrot.slane %v2034, %v2054
    %v2056 = vadd.f32 %v2044, %v2051
    %v2057 = vadd.f32 %v2045, %v2055
    %v2058 = vadd.f32 %v2046, %v2051
    %v2059 = vadd.f32 %v2047, %v2055
    %v2060 = vmax.f32 %v2056, 0.0
    %v2061 = vmax.f32 %v2057, 0.0
    %v2062 = vmax.f32 %v2058, 0.0
    %v2063 = vmax.f32 %v2059, 0.0
    %v2064 = vpack.c.bf16 %v2062, %v2060
    %v2065 = vpack.c.bf16 %v2063, %v2061
    %v2066 = vld [vmem:[#allocation4] sm:$0xff]
    %v2067 = vld [vmem:[#allocation4 + $0x8] sm:$0xff]
    %v2068 = vld [vmem:[#allocation4 + $0x10] sm:$0xff]
    %v2069 = vld [vmem:[#allocation4 + $0x18] sm:$0xff]
    %v2070 = vld [vmem:[#allocation4 + $0x20] sm:$0xff]
    %v2071 = vld [vmem:[#allocation4 + $0x28] sm:$0xff]
    %v2072 = vld [vmem:[#allocation4 + $0x30] sm:$0xff]
    %v2073 = vld [vmem:[#allocation4 + $0x38] sm:$0xff]
    %v2074 = vld [vmem:[#allocation4 + $0x40] sm:$0xff]
    %v2075 = vld [vmem:[#allocation4 + $0x48] sm:$0xff]
    %v2076 = vld [vmem:[#allocation4 + $0x50] sm:$0xff]
    %v2077 = vld [vmem:[#allocation4 + $0x58] sm:$0xff]
    %v2078 = vld [vmem:[#allocation4 + $0x60] sm:$0xff]
    %v2079 = vld [vmem:[#allocation4 + $0x68] sm:$0xff]
    %v2080 = vld [vmem:[#allocation4 + $0x70] sm:$0xff]
    %v2081 = vld [vmem:[#allocation4 + $0x78] sm:$0xff]
    %v2082 = vld [vmem:[#allocation4 + $0x80] sm:$0xff]
    %v2083 = vld [vmem:[#allocation4 + $0x88] sm:$0xff]
    %v2084 = vld [vmem:[#allocation4 + $0x90] sm:$0xff]
    %v2085 = vld [vmem:[#allocation4 + $0x98] sm:$0xff]
    %v2086 = vld [vmem:[#allocation4 + $0xa0] sm:$0xff]
    %v2087 = vld [vmem:[#allocation4 + $0xa8] sm:$0xff]
    %v2088 = vld [vmem:[#allocation4 + $0xb0] sm:$0xff]
    %v2089 = vld [vmem:[#allocation4 + $0xb8] sm:$0xff]
    %v2090 = vld [vmem:[#allocation4 + $0xc0] sm:$0xff]
    %v2091 = vld [vmem:[#allocation4 + $0xc8] sm:$0xff]
    %v2092 = vld [vmem:[#allocation4 + $0xd0] sm:$0xff]
    %v2093 = vld [vmem:[#allocation4 + $0xd8] sm:$0xff]
    %v2094 = vld [vmem:[#allocation4 + $0xe0] sm:$0xff]
    %v2095 = vld [vmem:[#allocation4 + $0xe8] sm:$0xff]
    %v2096 = vld [vmem:[#allocation4 + $0xf0] sm:$0xff]
    %v2097 = vld [vmem:[#allocation4 + $0xf8] sm:$0xff]
    %v2098 = vld [vmem:[#allocation4 + $0x100] sm:$0xff]
    %v2099 = vld [vmem:[#allocation4 + $0x108] sm:$0xff]
    %v2100 = vld [vmem:[#allocation4 + $0x110] sm:$0xff]
    %v2101 = vld [vmem:[#allocation4 + $0x118] sm:$0xff]
    %v2102 = vld [vmem:[#allocation4 + $0x120] sm:$0xff]
    %v2103 = vld [vmem:[#allocation4 + $0x128] sm:$0xff]
    %v2104 = vld [vmem:[#allocation4 + $0x130] sm:$0xff]
    %v2105 = vld [vmem:[#allocation4 + $0x138] sm:$0xff]
    %v2106 = vld [vmem:[#allocation4 + $0x140] sm:$0xff]
    %v2107 = vld [vmem:[#allocation4 + $0x148] sm:$0xff]
    %v2108 = vld [vmem:[#allocation4 + $0x150] sm:$0xff]
    %v2109 = vld [vmem:[#allocation4 + $0x158] sm:$0xff]
    %v2110 = vld [vmem:[#allocation4 + $0x160] sm:$0xff]
    %v2111 = vld [vmem:[#allocation4 + $0x168] sm:$0xff]
    %v2112 = vld [vmem:[#allocation4 + $0x170] sm:$0xff]
    %v2113 = vld [vmem:[#allocation4 + $0x178] sm:$0xff]
    %v2114 = vld [vmem:[#allocation4 + $0x180] sm:$0xff]
    %v2115 = vld [vmem:[#allocation4 + $0x188] sm:$0xff]
    %v2116 = vld [vmem:[#allocation4 + $0x190] sm:$0xff]
    %v2117 = vld [vmem:[#allocation4 + $0x198] sm:$0xff]
    %v2118 = vld [vmem:[#allocation4 + $0x1a0] sm:$0xff]
    %v2119 = vld [vmem:[#allocation4 + $0x1a8] sm:$0xff]
    %v2120 = vld [vmem:[#allocation4 + $0x1b0] sm:$0xff]
    %v2121 = vld [vmem:[#allocation4 + $0x1b8] sm:$0xff]
    %v2122 = vld [vmem:[#allocation4 + $0x1c0] sm:$0xff]
    %v2123 = vld [vmem:[#allocation4 + $0x1c8] sm:$0xff]
    %v2124 = vld [vmem:[#allocation4 + $0x1d0] sm:$0xff]
    %v2125 = vld [vmem:[#allocation4 + $0x1d8] sm:$0xff]
    %v2126 = vld [vmem:[#allocation4 + $0x1e0] sm:$0xff]
    %v2127 = vld [vmem:[#allocation4 + $0x1e8] sm:$0xff]
    %v2128 = vld [vmem:[#allocation4 + $0x1f0] sm:$0xff]
    %v2129 = vld [vmem:[#allocation4 + $0x1f8] sm:$0xff]
    %v2130 = vld [vmem:[#allocation4 + $0x200] sm:$0xff]
    %v2131 = vld [vmem:[#allocation4 + $0x208] sm:$0xff]
    %v2132 = vld [vmem:[#allocation4 + $0x210] sm:$0xff]
    %v2133 = vld [vmem:[#allocation4 + $0x218] sm:$0xff]
    %v2134 = vld [vmem:[#allocation4 + $0x220] sm:$0xff]
    %v2135 = vld [vmem:[#allocation4 + $0x228] sm:$0xff]
    %v2136 = vld [vmem:[#allocation4 + $0x230] sm:$0xff]
    %v2137 = vld [vmem:[#allocation4 + $0x238] sm:$0xff]
    %v2138 = vld [vmem:[#allocation4 + $0x240] sm:$0xff]
    %v2139 = vld [vmem:[#allocation4 + $0x248] sm:$0xff]
    %v2140 = vld [vmem:[#allocation4 + $0x250] sm:$0xff]
    %v2141 = vld [vmem:[#allocation4 + $0x258] sm:$0xff]
    %v2142 = vld [vmem:[#allocation4 + $0x260] sm:$0xff]
    %v2143 = vld [vmem:[#allocation4 + $0x268] sm:$0xff]
    %v2144 = vld [vmem:[#allocation4 + $0x270] sm:$0xff]
    %v2145 = vld [vmem:[#allocation4 + $0x278] sm:$0xff]
    %v2146 = vld [vmem:[#allocation4 + $0x280] sm:$0xff]
    %v2147 = vld [vmem:[#allocation4 + $0x288] sm:$0xff]
    %v2148 = vld [vmem:[#allocation4 + $0x290] sm:$0xff]
    %v2149 = vld [vmem:[#allocation4 + $0x298] sm:$0xff]
    %v2150 = vld [vmem:[#allocation4 + $0x2a0] sm:$0xff]
    %v2151 = vld [vmem:[#allocation4 + $0x2a8] sm:$0xff]
    %v2152 = vld [vmem:[#allocation4 + $0x2b0] sm:$0xff]
    %v2153 = vld [vmem:[#allocation4 + $0x2b8] sm:$0xff]
    %v2154 = vld [vmem:[#allocation4 + $0x2c0] sm:$0xff]
    %v2155 = vld [vmem:[#allocation4 + $0x2c8] sm:$0xff]
    %v2156 = vld [vmem:[#allocation4 + $0x2d0] sm:$0xff]
    %v2157 = vld [vmem:[#allocation4 + $0x2d8] sm:$0xff]
    %v2158 = vld [vmem:[#allocation4 + $0x2e0] sm:$0xff]
    %v2159 = vld [vmem:[#allocation4 + $0x2e8] sm:$0xff]
    %v2160 = vld [vmem:[#allocation4 + $0x2f0] sm:$0xff]
    %v2161 = vld [vmem:[#allocation4 + $0x2f8] sm:$0xff]
    %v2162 = vld [vmem:[#allocation4 + $0x300] sm:$0xff]
    %v2163 = vld [vmem:[#allocation4 + $0x308] sm:$0xff]
    %v2164 = vld [vmem:[#allocation4 + $0x310] sm:$0xff]
    %v2165 = vld [vmem:[#allocation4 + $0x318] sm:$0xff]
    %v2166 = vld [vmem:[#allocation4 + $0x320] sm:$0xff]
    %v2167 = vld [vmem:[#allocation4 + $0x328] sm:$0xff]
    %v2168 = vld [vmem:[#allocation4 + $0x330] sm:$0xff]
    %v2169 = vld [vmem:[#allocation4 + $0x338] sm:$0xff]
    %v2170 = vld [vmem:[#allocation4 + $0x340] sm:$0xff]
    %v2171 = vld [vmem:[#allocation4 + $0x348] sm:$0xff]
    %v2172 = vld [vmem:[#allocation4 + $0x350] sm:$0xff]
    %v2173 = vld [vmem:[#allocation4 + $0x358] sm:$0xff]
    %v2174 = vld [vmem:[#allocation4 + $0x360] sm:$0xff]
    %v2175 = vld [vmem:[#allocation4 + $0x368] sm:$0xff]
    %v2176 = vld [vmem:[#allocation4 + $0x370] sm:$0xff]
    %v2177 = vld [vmem:[#allocation4 + $0x378] sm:$0xff]
    %v2178 = vld [vmem:[#allocation4 + $0x380] sm:$0xff]
    %v2179 = vld [vmem:[#allocation4 + $0x388] sm:$0xff]
    %v2180 = vld [vmem:[#allocation4 + $0x390] sm:$0xff]
    %v2181 = vld [vmem:[#allocation4 + $0x398] sm:$0xff]
    %v2182 = vld [vmem:[#allocation4 + $0x3a0] sm:$0xff]
    %v2183 = vld [vmem:[#allocation4 + $0x3a8] sm:$0xff]
    %v2184 = vld [vmem:[#allocation4 + $0x3b0] sm:$0xff]
    %v2185 = vld [vmem:[#allocation4 + $0x3b8] sm:$0xff]
    %v2186 = vld [vmem:[#allocation4 + $0x3c0] sm:$0xff]
    %v2187 = vld [vmem:[#allocation4 + $0x3c8] sm:$0xff]
    %v2188 = vld [vmem:[#allocation4 + $0x3d0] sm:$0xff]
    %v2189 = vld [vmem:[#allocation4 + $0x3d8] sm:$0xff]
    %v2190 = vld [vmem:[#allocation4 + $0x3e0] sm:$0xff]
    %v2191 = vld [vmem:[#allocation4 + $0x3e8] sm:$0xff]
    %v2192 = vld [vmem:[#allocation4 + $0x3f0] sm:$0xff]
    %v2193 = vld [vmem:[#allocation4 + $0x3f8] sm:$0xff]
    %v2322 = vunpack.c.l.b16 %v2066
    %v2323 = vunpack.c.h.b16 %v2066
    %v2324 = vunpack.c.l.b16 %v2067
    %v2325 = vunpack.c.h.b16 %v2067
    %v2326 = vunpack.c.l.b16 %v2068
    %v2327 = vunpack.c.h.b16 %v2068
    %v2328 = vunpack.c.l.b16 %v2069
    %v2329 = vunpack.c.h.b16 %v2069
    %v2330 = vunpack.c.l.b16 %v2070
    %v2331 = vunpack.c.h.b16 %v2070
    %v2332 = vunpack.c.l.b16 %v2071
    %v2333 = vunpack.c.h.b16 %v2071
    %v2334 = vunpack.c.l.b16 %v2072
    %v2335 = vunpack.c.h.b16 %v2072
    %v2336 = vunpack.c.l.b16 %v2073
    %v2337 = vunpack.c.h.b16 %v2073
    %v2338 = vunpack.c.l.b16 %v2074
    %v2339 = vunpack.c.h.b16 %v2074
    %v2340 = vunpack.c.l.b16 %v2075
    %v2341 = vunpack.c.h.b16 %v2075
    %v2342 = vunpack.c.l.b16 %v2076
    %v2343 = vunpack.c.h.b16 %v2076
    %v2344 = vunpack.c.l.b16 %v2077
    %v2345 = vunpack.c.h.b16 %v2077
    %v2346 = vunpack.c.l.b16 %v2078
    %v2347 = vunpack.c.h.b16 %v2078
    %v2348 = vunpack.c.l.b16 %v2079
    %v2349 = vunpack.c.h.b16 %v2079
    %v2350 = vunpack.c.l.b16 %v2080
    %v2351 = vunpack.c.h.b16 %v2080
    %v2352 = vunpack.c.l.b16 %v2081
    %v2353 = vunpack.c.h.b16 %v2081
    %v2354 = vunpack.c.l.b16 %v2082
    %v2355 = vunpack.c.h.b16 %v2082
    %v2356 = vunpack.c.l.b16 %v2083
    %v2357 = vunpack.c.h.b16 %v2083
    %v2358 = vunpack.c.l.b16 %v2084
    %v2359 = vunpack.c.h.b16 %v2084
    %v2360 = vunpack.c.l.b16 %v2085
    %v2361 = vunpack.c.h.b16 %v2085
    %v2362 = vunpack.c.l.b16 %v2086
    %v2363 = vunpack.c.h.b16 %v2086
    %v2364 = vunpack.c.l.b16 %v2087
    %v2365 = vunpack.c.h.b16 %v2087
    %v2366 = vunpack.c.l.b16 %v2088
    %v2367 = vunpack.c.h.b16 %v2088
    %v2368 = vunpack.c.l.b16 %v2089
    %v2369 = vunpack.c.h.b16 %v2089
    %v2370 = vunpack.c.l.b16 %v2090
    %v2371 = vunpack.c.h.b16 %v2090
    %v2372 = vunpack.c.l.b16 %v2091
    %v2373 = vunpack.c.h.b16 %v2091
    %v2374 = vunpack.c.l.b16 %v2092
    %v2375 = vunpack.c.h.b16 %v2092
    %v2376 = vunpack.c.l.b16 %v2093
    %v2377 = vunpack.c.h.b16 %v2093
    %v2378 = vunpack.c.l.b16 %v2094
    %v2379 = vunpack.c.h.b16 %v2094
    %v2380 = vunpack.c.l.b16 %v2095
    %v2381 = vunpack.c.h.b16 %v2095
    %v2382 = vunpack.c.l.b16 %v2096
    %v2383 = vunpack.c.h.b16 %v2096
    %v2384 = vunpack.c.l.b16 %v2097
    %v2385 = vunpack.c.h.b16 %v2097
    %v2386 = vunpack.c.l.b16 %v2098
    %v2387 = vunpack.c.h.b16 %v2098
    %v2388 = vunpack.c.l.b16 %v2099
    %v2389 = vunpack.c.h.b16 %v2099
    %v2390 = vunpack.c.l.b16 %v2100
    %v2391 = vunpack.c.h.b16 %v2100
    %v2392 = vunpack.c.l.b16 %v2101
    %v2393 = vunpack.c.h.b16 %v2101
    %v2394 = vunpack.c.l.b16 %v2102
    %v2395 = vunpack.c.h.b16 %v2102
    %v2396 = vunpack.c.l.b16 %v2103
    %v2397 = vunpack.c.h.b16 %v2103
    %v2398 = vunpack.c.l.b16 %v2104
    %v2399 = vunpack.c.h.b16 %v2104
    %v2400 = vunpack.c.l.b16 %v2105
    %v2401 = vunpack.c.h.b16 %v2105
    %v2402 = vunpack.c.l.b16 %v2106
    %v2403 = vunpack.c.h.b16 %v2106
    %v2404 = vunpack.c.l.b16 %v2107
    %v2405 = vunpack.c.h.b16 %v2107
    %v2406 = vunpack.c.l.b16 %v2108
    %v2407 = vunpack.c.h.b16 %v2108
    %v2408 = vunpack.c.l.b16 %v2109
    %v2409 = vunpack.c.h.b16 %v2109
    %v2410 = vunpack.c.l.b16 %v2110
    %v2411 = vunpack.c.h.b16 %v2110
    %v2412 = vunpack.c.l.b16 %v2111
    %v2413 = vunpack.c.h.b16 %v2111
    %v2414 = vunpack.c.l.b16 %v2112
    %v2415 = vunpack.c.h.b16 %v2112
    %v2416 = vunpack.c.l.b16 %v2113
    %v2417 = vunpack.c.h.b16 %v2113
    %v2418 = vunpack.c.l.b16 %v2114
    %v2419 = vunpack.c.h.b16 %v2114
    %v2420 = vunpack.c.l.b16 %v2115
    %v2421 = vunpack.c.h.b16 %v2115
    %v2422 = vunpack.c.l.b16 %v2116
    %v2423 = vunpack.c.h.b16 %v2116
    %v2424 = vunpack.c.l.b16 %v2117
    %v2425 = vunpack.c.h.b16 %v2117
    %v2426 = vunpack.c.l.b16 %v2118
    %v2427 = vunpack.c.h.b16 %v2118
    %v2428 = vunpack.c.l.b16 %v2119
    %v2429 = vunpack.c.h.b16 %v2119
    %v2430 = vunpack.c.l.b16 %v2120
    %v2431 = vunpack.c.h.b16 %v2120
    %v2432 = vunpack.c.l.b16 %v2121
    %v2433 = vunpack.c.h.b16 %v2121
    %v2434 = vunpack.c.l.b16 %v2122
    %v2435 = vunpack.c.h.b16 %v2122
    %v2436 = vunpack.c.l.b16 %v2123
    %v2437 = vunpack.c.h.b16 %v2123
    %v2438 = vunpack.c.l.b16 %v2124
    %v2439 = vunpack.c.h.b16 %v2124
    %v2440 = vunpack.c.l.b16 %v2125
    %v2441 = vunpack.c.h.b16 %v2125
    %v2442 = vunpack.c.l.b16 %v2126
    %v2443 = vunpack.c.h.b16 %v2126
    %v2444 = vunpack.c.l.b16 %v2127
    %v2445 = vunpack.c.h.b16 %v2127
    %v2446 = vunpack.c.l.b16 %v2128
    %v2447 = vunpack.c.h.b16 %v2128
    %v2448 = vunpack.c.l.b16 %v2129
    %v2449 = vunpack.c.h.b16 %v2129
    %v2450 = vunpack.c.l.b16 %v2130
    %v2451 = vunpack.c.h.b16 %v2130
    %v2452 = vunpack.c.l.b16 %v2131
    %v2453 = vunpack.c.h.b16 %v2131
    %v2454 = vunpack.c.l.b16 %v2132
    %v2455 = vunpack.c.h.b16 %v2132
    %v2456 = vunpack.c.l.b16 %v2133
    %v2457 = vunpack.c.h.b16 %v2133
    %v2458 = vunpack.c.l.b16 %v2134
    %v2459 = vunpack.c.h.b16 %v2134
    %v2460 = vunpack.c.l.b16 %v2135
    %v2461 = vunpack.c.h.b16 %v2135
    %v2462 = vunpack.c.l.b16 %v2136
    %v2463 = vunpack.c.h.b16 %v2136
    %v2464 = vunpack.c.l.b16 %v2137
    %v2465 = vunpack.c.h.b16 %v2137
    %v2466 = vunpack.c.l.b16 %v2138
    %v2467 = vunpack.c.h.b16 %v2138
    %v2468 = vunpack.c.l.b16 %v2139
    %v2469 = vunpack.c.h.b16 %v2139
    %v2470 = vunpack.c.l.b16 %v2140
    %v2471 = vunpack.c.h.b16 %v2140
    %v2472 = vunpack.c.l.b16 %v2141
    %v2473 = vunpack.c.h.b16 %v2141
    %v2474 = vunpack.c.l.b16 %v2142
    %v2475 = vunpack.c.h.b16 %v2142
    %v2476 = vunpack.c.l.b16 %v2143
    %v2477 = vunpack.c.h.b16 %v2143
    %v2478 = vunpack.c.l.b16 %v2144
    %v2479 = vunpack.c.h.b16 %v2144
    %v2480 = vunpack.c.l.b16 %v2145
    %v2481 = vunpack.c.h.b16 %v2145
    %v2482 = vunpack.c.l.b16 %v2146
    %v2483 = vunpack.c.h.b16 %v2146
    %v2484 = vunpack.c.l.b16 %v2147
    %v2485 = vunpack.c.h.b16 %v2147
    %v2486 = vunpack.c.l.b16 %v2148
    %v2487 = vunpack.c.h.b16 %v2148
    %v2488 = vunpack.c.l.b16 %v2149
    %v2489 = vunpack.c.h.b16 %v2149
    %v2490 = vunpack.c.l.b16 %v2150
    %v2491 = vunpack.c.h.b16 %v2150
    %v2492 = vunpack.c.l.b16 %v2151
    %v2493 = vunpack.c.h.b16 %v2151
    %v2494 = vunpack.c.l.b16 %v2152
    %v2495 = vunpack.c.h.b16 %v2152
    %v2496 = vunpack.c.l.b16 %v2153
    %v2497 = vunpack.c.h.b16 %v2153
    %v2498 = vunpack.c.l.b16 %v2154
    %v2499 = vunpack.c.h.b16 %v2154
    %v2500 = vunpack.c.l.b16 %v2155
    %v2501 = vunpack.c.h.b16 %v2155
    %v2502 = vunpack.c.l.b16 %v2156
    %v2503 = vunpack.c.h.b16 %v2156
    %v2504 = vunpack.c.l.b16 %v2157
    %v2505 = vunpack.c.h.b16 %v2157
    %v2506 = vunpack.c.l.b16 %v2158
    %v2507 = vunpack.c.h.b16 %v2158
    %v2508 = vunpack.c.l.b16 %v2159
    %v2509 = vunpack.c.h.b16 %v2159
    %v2510 = vunpack.c.l.b16 %v2160
    %v2511 = vunpack.c.h.b16 %v2160
    %v2512 = vunpack.c.l.b16 %v2161
    %v2513 = vunpack.c.h.b16 %v2161
    %v2514 = vunpack.c.l.b16 %v2162
    %v2515 = vunpack.c.h.b16 %v2162
    %v2516 = vunpack.c.l.b16 %v2163
    %v2517 = vunpack.c.h.b16 %v2163
    %v2518 = vunpack.c.l.b16 %v2164
    %v2519 = vunpack.c.h.b16 %v2164
    %v2520 = vunpack.c.l.b16 %v2165
    %v2521 = vunpack.c.h.b16 %v2165
    %v2522 = vunpack.c.l.b16 %v2166
    %v2523 = vunpack.c.h.b16 %v2166
    %v2524 = vunpack.c.l.b16 %v2167
    %v2525 = vunpack.c.h.b16 %v2167
    %v2526 = vunpack.c.l.b16 %v2168
    %v2527 = vunpack.c.h.b16 %v2168
    %v2528 = vunpack.c.l.b16 %v2169
    %v2529 = vunpack.c.h.b16 %v2169
    %v2530 = vunpack.c.l.b16 %v2170
    %v2531 = vunpack.c.h.b16 %v2170
    %v2532 = vunpack.c.l.b16 %v2171
    %v2533 = vunpack.c.h.b16 %v2171
    %v2534 = vunpack.c.l.b16 %v2172
    %v2535 = vunpack.c.h.b16 %v2172
    %v2536 = vunpack.c.l.b16 %v2173
    %v2537 = vunpack.c.h.b16 %v2173
    %v2538 = vunpack.c.l.b16 %v2174
    %v2539 = vunpack.c.h.b16 %v2174
    %v2540 = vunpack.c.l.b16 %v2175
    %v2541 = vunpack.c.h.b16 %v2175
    %v2542 = vunpack.c.l.b16 %v2176
    %v2543 = vunpack.c.h.b16 %v2176
    %v2544 = vunpack.c.l.b16 %v2177
    %v2545 = vunpack.c.h.b16 %v2177
    %v2546 = vunpack.c.l.b16 %v2178
    %v2547 = vunpack.c.h.b16 %v2178
    %v2548 = vunpack.c.l.b16 %v2179
    %v2549 = vunpack.c.h.b16 %v2179
    %v2550 = vunpack.c.l.b16 %v2180
    %v2551 = vunpack.c.h.b16 %v2180
    %v2552 = vunpack.c.l.b16 %v2181
    %v2553 = vunpack.c.h.b16 %v2181
    %v2554 = vunpack.c.l.b16 %v2182
    %v2555 = vunpack.c.h.b16 %v2182
    %v2556 = vunpack.c.l.b16 %v2183
    %v2557 = vunpack.c.h.b16 %v2183
    %v2558 = vunpack.c.l.b16 %v2184
    %v2559 = vunpack.c.h.b16 %v2184
    %v2560 = vunpack.c.l.b16 %v2185
    %v2561 = vunpack.c.h.b16 %v2185
    %v2562 = vunpack.c.l.b16 %v2186
    %v2563 = vunpack.c.h.b16 %v2186
    %v2564 = vunpack.c.l.b16 %v2187
    %v2565 = vunpack.c.h.b16 %v2187
    %v2566 = vunpack.c.l.b16 %v2188
    %v2567 = vunpack.c.h.b16 %v2188
    %v2568 = vunpack.c.l.b16 %v2189
    %v2569 = vunpack.c.h.b16 %v2189
    %v2570 = vunpack.c.l.b16 %v2190
    %v2571 = vunpack.c.h.b16 %v2190
    %v2572 = vunpack.c.l.b16 %v2191
    %v2573 = vunpack.c.h.b16 %v2191
    %v2574 = vunpack.c.l.b16 %v2192
    %v2575 = vunpack.c.h.b16 %v2192
    %v2576 = vunpack.c.l.b16 %v2193
    %v2577 = vunpack.c.h.b16 %v2193
    %v2578 = vpack.c.b16 %v2330, %v2322
    %v2579 = vpack.c.b16 %v2331, %v2323
    %v2580 = vpack.c.b16 %v2332, %v2324
    %v2581 = vpack.c.b16 %v2333, %v2325
    %v2582 = vpack.c.b16 %v2334, %v2326
    %v2583 = vpack.c.b16 %v2335, %v2327
    %v2584 = vpack.c.b16 %v2336, %v2328
    %v2585 = vpack.c.b16 %v2337, %v2329
    %v2586 = vpack.c.b16 %v2346, %v2338
    %v2587 = vpack.c.b16 %v2347, %v2339
    %v2588 = vpack.c.b16 %v2348, %v2340
    %v2589 = vpack.c.b16 %v2349, %v2341
    %v2590 = vpack.c.b16 %v2350, %v2342
    %v2591 = vpack.c.b16 %v2351, %v2343
    %v2592 = vpack.c.b16 %v2352, %v2344
    %v2593 = vpack.c.b16 %v2353, %v2345
    %v2594 = vpack.c.b16 %v2362, %v2354
    %v2595 = vpack.c.b16 %v2363, %v2355
    %v2596 = vpack.c.b16 %v2364, %v2356
    %v2597 = vpack.c.b16 %v2365, %v2357
    %v2598 = vpack.c.b16 %v2366, %v2358
    %v2599 = vpack.c.b16 %v2367, %v2359
    %v2600 = vpack.c.b16 %v2368, %v2360
    %v2601 = vpack.c.b16 %v2369, %v2361
    %v2602 = vpack.c.b16 %v2378, %v2370
    %v2603 = vpack.c.b16 %v2379, %v2371
    %v2604 = vpack.c.b16 %v2380, %v2372
    %v2605 = vpack.c.b16 %v2381, %v2373
    %v2606 = vpack.c.b16 %v2382, %v2374
    %v2607 = vpack.c.b16 %v2383, %v2375
    %v2608 = vpack.c.b16 %v2384, %v2376
    %v2609 = vpack.c.b16 %v2385, %v2377
    %v2610 = vpack.c.b16 %v2394, %v2386
    %v2611 = vpack.c.b16 %v2395, %v2387
    %v2612 = vpack.c.b16 %v2396, %v2388
    %v2613 = vpack.c.b16 %v2397, %v2389
    %v2614 = vpack.c.b16 %v2398, %v2390
    %v2615 = vpack.c.b16 %v2399, %v2391
    %v2616 = vpack.c.b16 %v2400, %v2392
    %v2617 = vpack.c.b16 %v2401, %v2393
    %v2618 = vpack.c.b16 %v2410, %v2402
    %v2619 = vpack.c.b16 %v2411, %v2403
    %v2620 = vpack.c.b16 %v2412, %v2404
    %v2621 = vpack.c.b16 %v2413, %v2405
    %v2622 = vpack.c.b16 %v2414, %v2406
    %v2623 = vpack.c.b16 %v2415, %v2407
    %v2624 = vpack.c.b16 %v2416, %v2408
    %v2625 = vpack.c.b16 %v2417, %v2409
    %v2626 = vpack.c.b16 %v2426, %v2418
    %v2627 = vpack.c.b16 %v2427, %v2419
    %v2628 = vpack.c.b16 %v2428, %v2420
    %v2629 = vpack.c.b16 %v2429, %v2421
    %v2630 = vpack.c.b16 %v2430, %v2422
    %v2631 = vpack.c.b16 %v2431, %v2423
    %v2632 = vpack.c.b16 %v2432, %v2424
    %v2633 = vpack.c.b16 %v2433, %v2425
    %v2634 = vpack.c.b16 %v2442, %v2434
    %v2635 = vpack.c.b16 %v2443, %v2435
    %v2636 = vpack.c.b16 %v2444, %v2436
    %v2637 = vpack.c.b16 %v2445, %v2437
    %v2638 = vpack.c.b16 %v2446, %v2438
    %v2639 = vpack.c.b16 %v2447, %v2439
    %v2640 = vpack.c.b16 %v2448, %v2440
    %v2641 = vpack.c.b16 %v2449, %v2441
    %v2642 = vpack.c.b16 %v2458, %v2450
    %v2643 = vpack.c.b16 %v2459, %v2451
    %v2644 = vpack.c.b16 %v2460, %v2452
    %v2645 = vpack.c.b16 %v2461, %v2453
    %v2646 = vpack.c.b16 %v2462, %v2454
    %v2647 = vpack.c.b16 %v2463, %v2455
    %v2648 = vpack.c.b16 %v2464, %v2456
    %v2649 = vpack.c.b16 %v2465, %v2457
    %v2650 = vpack.c.b16 %v2474, %v2466
    %v2651 = vpack.c.b16 %v2475, %v2467
    %v2652 = vpack.c.b16 %v2476, %v2468
    %v2653 = vpack.c.b16 %v2477, %v2469
    %v2654 = vpack.c.b16 %v2478, %v2470
    %v2655 = vpack.c.b16 %v2479, %v2471
    %v2656 = vpack.c.b16 %v2480, %v2472
    %v2657 = vpack.c.b16 %v2481, %v2473
    %v2658 = vpack.c.b16 %v2490, %v2482
    %v2659 = vpack.c.b16 %v2491, %v2483
    %v2660 = vpack.c.b16 %v2492, %v2484
    %v2661 = vpack.c.b16 %v2493, %v2485
    %v2662 = vpack.c.b16 %v2494, %v2486
    %v2663 = vpack.c.b16 %v2495, %v2487
    %v2664 = vpack.c.b16 %v2496, %v2488
    %v2665 = vpack.c.b16 %v2497, %v2489
    %v2666 = vpack.c.b16 %v2506, %v2498
    %v2667 = vpack.c.b16 %v2507, %v2499
    %v2668 = vpack.c.b16 %v2508, %v2500
    %v2669 = vpack.c.b16 %v2509, %v2501
    %v2670 = vpack.c.b16 %v2510, %v2502
    %v2671 = vpack.c.b16 %v2511, %v2503
    %v2672 = vpack.c.b16 %v2512, %v2504
    %v2673 = vpack.c.b16 %v2513, %v2505
    %v2674 = vpack.c.b16 %v2522, %v2514
    %v2675 = vpack.c.b16 %v2523, %v2515
    %v2676 = vpack.c.b16 %v2524, %v2516
    %v2677 = vpack.c.b16 %v2525, %v2517
    %v2678 = vpack.c.b16 %v2526, %v2518
    %v2679 = vpack.c.b16 %v2527, %v2519
    %v2680 = vpack.c.b16 %v2528, %v2520
    %v2681 = vpack.c.b16 %v2529, %v2521
    %v2682 = vpack.c.b16 %v2538, %v2530
    %v2683 = vpack.c.b16 %v2539, %v2531
    %v2684 = vpack.c.b16 %v2540, %v2532
    %v2685 = vpack.c.b16 %v2541, %v2533
    %v2686 = vpack.c.b16 %v2542, %v2534
    %v2687 = vpack.c.b16 %v2543, %v2535
    %v2688 = vpack.c.b16 %v2544, %v2536
    %v2689 = vpack.c.b16 %v2545, %v2537
    %v2690 = vpack.c.b16 %v2554, %v2546
    %v2691 = vpack.c.b16 %v2555, %v2547
    %v2692 = vpack.c.b16 %v2556, %v2548
    %v2693 = vpack.c.b16 %v2557, %v2549
    %v2694 = vpack.c.b16 %v2558, %v2550
    %v2695 = vpack.c.b16 %v2559, %v2551
    %v2696 = vpack.c.b16 %v2560, %v2552
    %v2697 = vpack.c.b16 %v2561, %v2553
    %v2698 = vpack.c.b16 %v2570, %v2562
    %v2699 = vpack.c.b16 %v2571, %v2563
    %v2700 = vpack.c.b16 %v2572, %v2564
    %v2701 = vpack.c.b16 %v2573, %v2565
    %v2702 = vpack.c.b16 %v2574, %v2566
    %v2703 = vpack.c.b16 %v2575, %v2567
    %v2704 = vpack.c.b16 %v2576, %v2568
    %v2705 = vpack.c.b16 %v2577, %v2569
    %2834 = vmatprep.subr.bf16.mxu0 %v2579
    %2835 = vmatpush1.bf16.msra.mxu0 %v2578
    %2836 = vmatprep.subr.bf16.mxu0 %v2587
    %2837 = vmatpush1.bf16.msra.mxu0 %v2586
    %2838 = vmatprep.subr.bf16.mxu0 %v2595
    %2839 = vmatpush1.bf16.msra.mxu0 %v2594
    %2840 = vmatprep.subr.bf16.mxu0 %v2603
    %2841 = vmatpush1.bf16.msra.mxu0 %v2602
    %2842 = vmatprep.subr.bf16.mxu0 %v2611
    %2843 = vmatpush1.bf16.msra.mxu0 %v2610
    %2844 = vmatprep.subr.bf16.mxu0 %v2619
    %2845 = vmatpush1.bf16.msra.mxu0 %v2618
    %2846 = vmatprep.subr.bf16.mxu0 %v2627
    %2847 = vmatpush1.bf16.msra.mxu0 %v2626
    %2848 = vmatprep.subr.bf16.mxu0 %v2635
    %2849 = vmatpush1.bf16.msra.mxu0 %v2634
    %2850 = vmatprep.subr.bf16.mxu0 %v2643
    %2851 = vmatpush1.bf16.msra.mxu0 %v2642
    %2852 = vmatprep.subr.bf16.mxu0 %v2651
    %2853 = vmatpush1.bf16.msra.mxu0 %v2650
    %2854 = vmatprep.subr.bf16.mxu0 %v2659
    %2855 = vmatpush1.bf16.msra.mxu0 %v2658
    %2856 = vmatprep.subr.bf16.mxu0 %v2667
    %2857 = vmatpush1.bf16.msra.mxu0 %v2666
    %2858 = vmatprep.subr.bf16.mxu0 %v2675
    %2859 = vmatpush1.bf16.msra.mxu0 %v2674
    %2860 = vmatprep.subr.bf16.mxu0 %v2683
    %2861 = vmatpush1.bf16.msra.mxu0 %v2682
    %2862 = vmatprep.subr.bf16.mxu0 %v2691
    %2863 = vmatpush1.bf16.msra.mxu0 %v2690
    %2864 = vmatprep.subr.bf16.mxu0 %v2699
    %2865 = vmatpush1.bf16.msra.mxu0 %v2698
    %2866 = vmatprep.mubr.bf16.mxu0 %v2065
    %2867 = vmatmul.mubr.bf16.gmra.mrb[0].mxu0 %v2064
    %v2868 = vpop.f32.mrb[0].mxu0
    %v2869 = vadd.f32 0.0, %v2868
    %v2870 = vpop.f32.mrb[0].mxu0
    %v2871 = vadd.f32 0.0, %v2870
    %v2872 = vpop.f32.mrb[0].mxu0
    %v2873 = vadd.f32 0.0, %v2872
    %v2874 = vpop.f32.mrb[0].mxu0
    %v2875 = vadd.f32 0.0, %v2874
    %2876 = vdwg.mxu0
    %2877 = vmatprep.subr.bf16.mxu0 %v2581
    %2878 = vmatpush1.bf16.msra.mxu0 %v2580
    %2879 = vmatprep.subr.bf16.mxu0 %v2589
    %2880 = vmatpush1.bf16.msra.mxu0 %v2588
    %2881 = vmatprep.subr.bf16.mxu0 %v2597
    %2882 = vmatpush1.bf16.msra.mxu0 %v2596
    %2883 = vmatprep.subr.bf16.mxu0 %v2605
    %2884 = vmatpush1.bf16.msra.mxu0 %v2604
    %2885 = vmatprep.subr.bf16.mxu0 %v2613
    %2886 = vmatpush1.bf16.msra.mxu0 %v2612
    %2887 = vmatprep.subr.bf16.mxu0 %v2621
    %2888 = vmatpush1.bf16.msra.mxu0 %v2620
    %2889 = vmatprep.subr.bf16.mxu0 %v2629
    %2890 = vmatpush1.bf16.msra.mxu0 %v2628
    %2891 = vmatprep.subr.bf16.mxu0 %v2637
    %2892 = vmatpush1.bf16.msra.mxu0 %v2636
    %2893 = vmatprep.subr.bf16.mxu0 %v2645
    %2894 = vmatpush1.bf16.msra.mxu0 %v2644
    %2895 = vmatprep.subr.bf16.mxu0 %v2653
    %2896 = vmatpush1.bf16.msra.mxu0 %v2652
    %2897 = vmatprep.subr.bf16.mxu0 %v2661
    %2898 = vmatpush1.bf16.msra.mxu0 %v2660
    %2899 = vmatprep.subr.bf16.mxu0 %v2669
    %2900 = vmatpush1.bf16.msra.mxu0 %v2668
    %2901 = vmatprep.subr.bf16.mxu0 %v2677
    %2902 = vmatpush1.bf16.msra.mxu0 %v2676
    %2903 = vmatprep.subr.bf16.mxu0 %v2685
    %2904 = vmatpush1.bf16.msra.mxu0 %v2684
    %2905 = vmatprep.subr.bf16.mxu0 %v2693
    %2906 = vmatpush1.bf16.msra.mxu0 %v2692
    %2907 = vmatprep.subr.bf16.mxu0 %v2701
    %2908 = vmatpush1.bf16.msra.mxu0 %v2700
    %2909 = vmatprep.mubr.bf16.mxu0 %v2065
    %2910 = vmatmul.mubr.bf16.gmra.mrb[0].mxu0 %v2064
    %v2911 = vpop.f32.mrb[0].mxu0
    %v2912 = vadd.f32 0.0, %v2911
    %v2913 = vpop.f32.mrb[0].mxu0
    %v2914 = vadd.f32 0.0, %v2913
    %v2915 = vpop.f32.mrb[0].mxu0
    %v2916 = vadd.f32 0.0, %v2915
    %v2917 = vpop.f32.mrb[0].mxu0
    %v2918 = vadd.f32 0.0, %v2917
    %2919 = vdwg.mxu0
    %2920 = vmatprep.subr.bf16.mxu0 %v2583
    %2921 = vmatpush1.bf16.msra.mxu0 %v2582
    %2922 = vmatprep.subr.bf16.mxu0 %v2591
    %2923 = vmatpush1.bf16.msra.mxu0 %v2590
    %2924 = vmatprep.subr.bf16.mxu0 %v2599
    %2925 = vmatpush1.bf16.msra.mxu0 %v2598
    %2926 = vmatprep.subr.bf16.mxu0 %v2607
    %2927 = vmatpush1.bf16.msra.mxu0 %v2606
    %2928 = vmatprep.subr.bf16.mxu0 %v2615
    %2929 = vmatpush1.bf16.msra.mxu0 %v2614
    %2930 = vmatprep.subr.bf16.mxu0 %v2623
    %2931 = vmatpush1.bf16.msra.mxu0 %v2622
    %2932 = vmatprep.subr.bf16.mxu0 %v2631
    %2933 = vmatpush1.bf16.msra.mxu0 %v2630
    %2934 = vmatprep.subr.bf16.mxu0 %v2639
    %2935 = vmatpush1.bf16.msra.mxu0 %v2638
    %2936 = vmatprep.subr.bf16.mxu0 %v2647
    %2937 = vmatpush1.bf16.msra.mxu0 %v2646
    %2938 = vmatprep.subr.bf16.mxu0 %v2655
    %2939 = vmatpush1.bf16.msra.mxu0 %v2654
    %2940 = vmatprep.subr.bf16.mxu0 %v2663
    %2941 = vmatpush1.bf16.msra.mxu0 %v2662
    %2942 = vmatprep.subr.bf16.mxu0 %v2671
    %2943 = vmatpush1.bf16.msra.mxu0 %v2670
    %2944 = vmatprep.subr.bf16.mxu0 %v2679
    %2945 = vmatpush1.bf16.msra.mxu0 %v2678
    %2946 = vmatprep.subr.bf16.mxu0 %v2687
    %2947 = vmatpush1.bf16.msra.mxu0 %v2686
    %2948 = vmatprep.subr.bf16.mxu0 %v2695
    %2949 = vmatpush1.bf16.msra.mxu0 %v2694
    %2950 = vmatprep.subr.bf16.mxu0 %v2703
    %2951 = vmatpush1.bf16.msra.mxu0 %v2702
    %2952 = vmatprep.mubr.bf16.mxu0 %v2065
    %2953 = vmatmul.mubr.bf16.gmra.mrb[0].mxu0 %v2064
    %v2954 = vpop.f32.mrb[0].mxu0
    %v2955 = vadd.f32 0.0, %v2954
    %v2956 = vpop.f32.mrb[0].mxu0
    %v2957 = vadd.f32 0.0, %v2956
    %v2958 = vpop.f32.mrb[0].mxu0
    %v2959 = vadd.f32 0.0, %v2958
    %v2960 = vpop.f32.mrb[0].mxu0
    %v2961 = vadd.f32 0.0, %v2960
    %2962 = vdwg.mxu0
    %2963 = vmatprep.subr.bf16.mxu0 %v2585
    %2964 = vmatpush1.bf16.msra.mxu0 %v2584
    %2965 = vmatprep.subr.bf16.mxu0 %v2593
    %2966 = vmatpush1.bf16.msra.mxu0 %v2592
    %2967 = vmatprep.subr.bf16.mxu0 %v2601
    %2968 = vmatpush1.bf16.msra.mxu0 %v2600
    %2969 = vmatprep.subr.bf16.mxu0 %v2609
    %2970 = vmatpush1.bf16.msra.mxu0 %v2608
    %2971 = vmatprep.subr.bf16.mxu0 %v2617
    %2972 = vmatpush1.bf16.msra.mxu0 %v2616
    %2973 = vmatprep.subr.bf16.mxu0 %v2625
    %2974 = vmatpush1.bf16.msra.mxu0 %v2624
    %2975 = vmatprep.subr.bf16.mxu0 %v2633
    %2976 = vmatpush1.bf16.msra.mxu0 %v2632
    %2977 = vmatprep.subr.bf16.mxu0 %v2641
    %2978 = vmatpush1.bf16.msra.mxu0 %v2640
    %2979 = vmatprep.subr.bf16.mxu0 %v2649
    %2980 = vmatpush1.bf16.msra.mxu0 %v2648
    %2981 = vmatprep.subr.bf16.mxu0 %v2657
    %2982 = vmatpush1.bf16.msra.mxu0 %v2656
    %2983 = vmatprep.subr.bf16.mxu0 %v2665
    %2984 = vmatpush1.bf16.msra.mxu0 %v2664
    %2985 = vmatprep.subr.bf16.mxu0 %v2673
    %2986 = vmatpush1.bf16.msra.mxu0 %v2672
    %2987 = vmatprep.subr.bf16.mxu0 %v2681
    %2988 = vmatpush1.bf16.msra.mxu0 %v2680
    %2989 = vmatprep.subr.bf16.mxu0 %v2689
    %2990 = vmatpush1.bf16.msra.mxu0 %v2688
    %2991 = vmatprep.subr.bf16.mxu0 %v2697
    %2992 = vmatpush1.bf16.msra.mxu0 %v2696
    %2993 = vmatprep.subr.bf16.mxu0 %v2705
    %2994 = vmatpush1.bf16.msra.mxu0 %v2704
    %2995 = vmatprep.mubr.bf16.mxu0 %v2065
    %2996 = vmatmul.mubr.bf16.gmra.mrb[0].mxu0 %v2064
    %v2997 = vpop.f32.mrb[0].mxu0
    %v2998 = vadd.f32 0.0, %v2997
    %v2999 = vpop.f32.mrb[0].mxu0
    %v3000 = vadd.f32 0.0, %v2999
    %v3001 = vpop.f32.mrb[0].mxu0
    %v3002 = vadd.f32 0.0, %v3001
    %v3003 = vpop.f32.mrb[0].mxu0
    %v3004 = vadd.f32 0.0, %v3003
    %3005 = vdwg.mxu0
    %v3006 = vld [vmem:[%s25] sm:$0xf]
    %v3007 = vld [vmem:[%s25 + $0x4] sm:$0xf]
    %v3008 = vld [vmem:[%s25 + $0x8] sm:$0xf]
    %v3009 = vld [vmem:[%s25 + $0xc] sm:$0xf]
    %v3010 = vpack.c.bf16 %v2873, %v2869
    %v3011 = vpack.c.bf16 %v2875, %v2871
    %v3012 = vpack.c.bf16 %v2916, %v2912
    %v3013 = vpack.c.bf16 %v2918, %v2914
    %v3014 = vpack.c.bf16 %v2959, %v2955
    %v3015 = vpack.c.bf16 %v2961, %v2957
    %v3016 = vpack.c.bf16 %v3002, %v2998
    %v3017 = vpack.c.bf16 %v3004, %v3000
    %v3022 = vunpack.c.l.b16 %v3006
    %v3023 = vunpack.c.l.b16 %v3007
    %v3024 = vunpack.c.l.b16 %v3008
    %v3025 = vunpack.c.l.b16 %v3009
    %v3026 = vpack.c.b16 %v3023, %v3022
    %v3027 = vpack.c.b16 %v3025, %v3024
    %v3029 = vsel %vm664, %v3026, 0
    %v3032 = vsel %vm664, %v3027, 0
    %3034 = vmatprep.subr.bf16.mxu0 %v3011
    %3035 = vmatpush1.bf16.msra.mxu0 %v3010
    %3036 = vmatprep.subr.bf16.mxu0 %v3013
    %3037 = vmatpush1.bf16.msra.mxu0 %v3012
    %3038 = vmatprep.subr.bf16.mxu0 %v3015
    %3039 = vmatpush1.bf16.msra.mxu0 %v3014
    %3040 = vmatprep.subr.bf16.mxu0 %v3017
    %3041 = vmatpush1.bf16.msra.mxu0 %v3016
    %3042 = vmatprep.subr.bf16.mxu0 0
    %3043 = vmatpush1.bf16.msra.mxu0 0
    %3044 = vmatprep.subr.bf16.mxu0 0
    %3045 = vmatpush1.bf16.msra.mxu0 0
    %3046 = vmatprep.subr.bf16.mxu0 0
    %3047 = vmatpush1.bf16.msra.mxu0 0
    %3048 = vmatprep.subr.bf16.mxu0 0
    %3049 = vmatpush1.bf16.msra.mxu0 0
    %3050 = vmatprep.subr.bf16.mxu0 0
    %3051 = vmatpush1.bf16.msra.mxu0 0
    %3052 = vmatprep.subr.bf16.mxu0 0
    %3053 = vmatpush1.bf16.msra.mxu0 0
    %3054 = vmatprep.subr.bf16.mxu0 0
    %3055 = vmatpush1.bf16.msra.mxu0 0
    %3056 = vmatprep.subr.bf16.mxu0 0
    %3057 = vmatpush1.bf16.msra.mxu0 0
    %3058 = vmatprep.subr.bf16.mxu0 0
    %3059 = vmatpush1.bf16.msra.mxu0 0
    %3060 = vmatprep.subr.bf16.mxu0 0
    %3061 = vmatpush1.bf16.msra.mxu0 0
    %3062 = vmatprep.subr.bf16.mxu0 0
    %3063 = vmatpush1.bf16.msra.mxu0 0
    %3064 = vmatprep.subr.bf16.mxu0 0
    %3065 = vmatpush1.bf16.msra.mxu0 0
    %3066 = vmatprep.mubr.bf16.mxu0 0
    %3067 = vmatmul.mubr.bf16.gmra.mrb[0].mxu0 %v3029
    %v3068 = vpop.f32.mrb[0].mxu0
    %v3069 = vadd.f32 0.0, %v3068
    %v3070 = vpop.f32.mrb[0].mxu0
    %v3071 = vadd.f32 0.0, %v3070
    %v3072 = vpop.f32.mrb[0].mxu0
    %v3073 = vadd.f32 0.0, %v3072
    %v3074 = vpop.f32.mrb[0].mxu0
    %v3075 = vadd.f32 0.0, %v3074
    %3076 = vmatprep.mubr.bf16.mxu0 0
    %3077 = vmatmul.mubr.bf16.gmra.mrb[0].mxu0 %v3032
    %v3078 = vpop.f32.mrb[0].mxu0
    %v3079 = vadd.f32 0.0, %v3078
    %v3080 = vpop.f32.mrb[0].mxu0
    %v3081 = vadd.f32 0.0, %v3080
    %v3082 = vpop.f32.mrb[0].mxu0
    %v3083 = vadd.f32 0.0, %v3082
    %v3084 = vpop.f32.mrb[0].mxu0
    %v3085 = vadd.f32 0.0, %v3084
    %3086 = vdwg.mxu0
    %v3087 = vadd.f32 %v3069, %v3073
    %v3088 = vadd.f32 %v3087, %v3079
    %v3089 = vadd.f32 %v3088, %v3083
    %v3090 = vrot.slane %v3089, 4
    %v3091 = vadd.f32 %v3089, %v3090
    %v3092 = vrot.slane %v3091, 2
    %v3093 = vadd.f32 %v3091, %v3092
    %v3094 = vrot.slane %v3093, 1
    %v3095 = vadd.f32 %v3093, %v3094
    %v3096 = vadd.f32 %v3071, %v3075
    %v3097 = vadd.f32 %v3096, %v3081
    %v3098 = vadd.f32 %v3097, %v3085
    %v3099 = vrot.slane %v3098, 4
    %v3100 = vadd.f32 %v3098, %v3099
    %v3101 = vrot.slane %v3100, 2
    %v3102 = vadd.f32 %v3100, %v3101
    %v3103 = vrot.slane %v3102, 1
    %v3104 = vadd.f32 %v3102, %v3103
    %v3105 = vmul.f32 %v3069, %v3069
    %v3106 = vmul.f32 %v3071, %v3071
    %v3107 = vmul.f32 %v3073, %v3073
    %v3108 = vmul.f32 %v3075, %v3075
    %v3109 = vmul.f32 %v3079, %v3079
    %v3110 = vmul.f32 %v3081, %v3081
    %v3111 = vmul.f32 %v3083, %v3083
    %v3112 = vmul.f32 %v3085, %v3085
    %v3113 = vadd.f32 %v3105, %v3107
    %v3114 = vadd.f32 %v3113, %v3109
    %v3115 = vadd.f32 %v3114, %v3111
    %v3116 = vrot.slane %v3115, 4
    %v3117 = vadd.f32 %v3115, %v3116
    %v3118 = vrot.slane %v3117, 2
    %v3119 = vadd.f32 %v3117, %v3118
    %v3120 = vrot.slane %v3119, 1
    %v3121 = vadd.f32 %v3119, %v3120
    %v3122 = vadd.f32 %v3106, %v3108
    %v3123 = vadd.f32 %v3122, %v3110
    %v3124 = vadd.f32 %v3123, %v3112
    %v3125 = vrot.slane %v3124, 4
    %v3126 = vadd.f32 %v3124, %v3125
    %v3127 = vrot.slane %v3126, 2
    %v3128 = vadd.f32 %v3126, %v3127
    %v3129 = vrot.slane %v3128, 1
    %v3130 = vadd.f32 %v3128, %v3129
    %v3131 = vsel %vm474, %v3095, %v3121
    %v3132 = vsel %vm474, %v3104, %v3130
    %v3133 = vld [vmem:[%s29] sm:$0xf]
    %v3134 = vld [vmem:[%s29 + $0x4] sm:$0xf]
    %v3135 = vld [vmem:[%s29 + $0x8] sm:$0xf]
    %v3136 = vld [vmem:[%s29 + $0xc] sm:$0xf]
    %v3137 = vld [vmem:[%s29 + $0x10] sm:$0xf]
    %v3138 = vld [vmem:[%s29 + $0x14] sm:$0xf]
    %v3139 = vld [vmem:[%s29 + $0x18] sm:$0xf]
    %v3140 = vld [vmem:[%s29 + $0x1c] sm:$0xf]
    %v3141 = vld [vmem:[%s29 + $0x20] sm:$0xf]
    %v3142 = vld [vmem:[%s29 + $0x24] sm:$0xf]
    %v3143 = vld [vmem:[%s29 + $0x28] sm:$0xf]
    %v3144 = vld [vmem:[%s29 + $0x2c] sm:$0xf]
    %v3145 = vld [vmem:[%s29 + $0x30] sm:$0xf]
    %v3146 = vld [vmem:[%s29 + $0x34] sm:$0xf]
    %v3147 = vld [vmem:[%s29 + $0x38] sm:$0xf]
    %v3148 = vld [vmem:[%s29 + $0x3c] sm:$0xf]
    %v3149 = vld [vmem:[%s29 + $0x40] sm:$0xf]
    %v3150 = vld [vmem:[%s29 + $0x44] sm:$0xf]
    %v3151 = vld [vmem:[%s29 + $0x48] sm:$0xf]
    %v3152 = vld [vmem:[%s29 + $0x4c] sm:$0xf]
    %v3153 = vld [vmem:[%s29 + $0x50] sm:$0xf]
    %v3154 = vld [vmem:[%s29 + $0x54] sm:$0xf]
    %v3155 = vld [vmem:[%s29 + $0x58] sm:$0xf]
    %v3156 = vld [vmem:[%s29 + $0x5c] sm:$0xf]
    %v3157 = vld [vmem:[%s29 + $0x60] sm:$0xf]
    %v3158 = vld [vmem:[%s29 + $0x64] sm:$0xf]
    %v3159 = vld [vmem:[%s29 + $0x68] sm:$0xf]
    %v3160 = vld [vmem:[%s29 + $0x6c] sm:$0xf]
    %v3161 = vld [vmem:[%s29 + $0x70] sm:$0xf]
    %v3162 = vld [vmem:[%s29 + $0x74] sm:$0xf]
    %v3163 = vld [vmem:[%s29 + $0x78] sm:$0xf]
    %v3164 = vld [vmem:[%s29 + $0x7c] sm:$0xf]
    %v3165 = vunpack.c.l.bf16 %v3133
    %v3166 = vunpack.c.l.bf16 %v3134
    %v3167 = vunpack.c.l.bf16 %v3135
    %v3168 = vunpack.c.l.bf16 %v3136
    %v3169 = vunpack.c.l.bf16 %v3137
    %v3170 = vunpack.c.l.bf16 %v3138
    %v3171 = vunpack.c.l.bf16 %v3139
    %v3172 = vunpack.c.l.bf16 %v3140
    %v3173 = vunpack.c.l.bf16 %v3141
    %v3174 = vunpack.c.l.bf16 %v3142
    %v3175 = vunpack.c.l.bf16 %v3143
    %v3176 = vunpack.c.l.bf16 %v3144
    %v3177 = vunpack.c.l.bf16 %v3145
    %v3178 = vunpack.c.l.bf16 %v3146
    %v3179 = vunpack.c.l.bf16 %v3147
    %v3180 = vunpack.c.l.bf16 %v3148
    %v3181 = vunpack.c.l.bf16 %v3149
    %v3182 = vunpack.c.l.bf16 %v3150
    %v3183 = vunpack.c.l.bf16 %v3151
    %v3184 = vunpack.c.l.bf16 %v3152
    %v3185 = vunpack.c.l.bf16 %v3153
    %v3186 = vunpack.c.l.bf16 %v3154
    %v3187 = vunpack.c.l.bf16 %v3155
    %v3188 = vunpack.c.l.bf16 %v3156
    %v3189 = vunpack.c.l.bf16 %v3157
    %v3190 = vunpack.c.l.bf16 %v3158
    %v3191 = vunpack.c.l.bf16 %v3159
    %v3192 = vunpack.c.l.bf16 %v3160
    %v3193 = vunpack.c.l.bf16 %v3161
    %v3194 = vunpack.c.l.bf16 %v3162
    %v3195 = vunpack.c.l.bf16 %v3163
    %v3196 = vunpack.c.l.bf16 %v3164
    %3197 = vmatprep.subr.mxu0 0.0
    %3198 = vmatpush1.msra.mxu0 %v3165
    %3199 = vmatprep.subr.mxu0 0.0
    %3200 = vmatpush1.msra.mxu0 %v3166
    %3201 = vmatprep.subr.mxu0 0.0
    %3202 = vmatpush1.msra.mxu0 %v3167
    %3203 = vmatprep.subr.mxu0 0.0
    %3204 = vmatpush1.msra.mxu0 %v3168
    %3205 = vmatprep.subr.mxu0 0.0
    %3206 = vmatpush1.msra.mxu0 %v3169
    %3207 = vmatprep.subr.mxu0 0.0
    %3208 = vmatpush1.msra.mxu0 %v3170
    %3209 = vmatprep.subr.mxu0 0.0
    %3210 = vmatpush1.msra.mxu0 %v3171
    %3211 = vmatprep.subr.mxu0 0.0
    %3212 = vmatpush1.msra.mxu0 %v3172
    %3213 = vmatprep.subr.mxu0 0.0
    %3214 = vmatpush1.msra.mxu0 %v3173
    %3215 = vmatprep.subr.mxu0 0.0
    %3216 = vmatpush1.msra.mxu0 %v3174
    %3217 = vmatprep.subr.mxu0 0.0
    %3218 = vmatpush1.msra.mxu0 %v3175
    %3219 = vmatprep.subr.mxu0 0.0
    %3220 = vmatpush1.msra.mxu0 %v3176
    %3221 = vmatprep.subr.mxu0 0.0
    %3222 = vmatpush1.msra.mxu0 %v3177
    %3223 = vmatprep.subr.mxu0 0.0
    %3224 = vmatpush1.msra.mxu0 %v3178
    %3225 = vmatprep.subr.mxu0 0.0
    %3226 = vmatpush1.msra.mxu0 %v3179
    %3227 = vmatprep.subr.mxu0 0.0
    %3228 = vmatpush1.msra.mxu0 %v3180
    %3229 = vmatprep.subr.mxu0 0.0
    %3230 = vmatpush1.msra.mxu0 %v3181
    %3231 = vmatprep.subr.mxu0 0.0
    %3232 = vmatpush1.msra.mxu0 %v3182
    %3233 = vmatprep.subr.mxu0 0.0
    %3234 = vmatpush1.msra.mxu0 %v3183
    %3235 = vmatprep.subr.mxu0 0.0
    %3236 = vmatpush1.msra.mxu0 %v3184
    %3237 = vmatprep.subr.mxu0 0.0
    %3238 = vmatpush1.msra.mxu0 %v3185
    %3239 = vmatprep.subr.mxu0 0.0
    %3240 = vmatpush1.msra.mxu0 %v3186
    %3241 = vmatprep.subr.mxu0 0.0
    %3242 = vmatpush1.msra.mxu0 %v3187
    %3243 = vmatprep.subr.mxu0 0.0
    %3244 = vmatpush1.msra.mxu0 %v3188
    %3245 = vmatprep.subr.mxu0 0.0
    %3246 = vmatpush1.msra.mxu0 %v3189
    %3247 = vmatprep.subr.mxu0 0.0
    %3248 = vmatpush1.msra.mxu0 %v3190
    %3249 = vmatprep.subr.mxu0 0.0
    %3250 = vmatpush1.msra.mxu0 %v3191
    %3251 = vmatprep.subr.mxu0 0.0
    %3252 = vmatpush1.msra.mxu0 %v3192
    %3253 = vmatprep.subr.mxu0 0.0
    %3254 = vmatpush1.msra.mxu0 %v3193
    %3255 = vmatprep.subr.mxu0 0.0
    %3256 = vmatpush1.msra.mxu0 %v3194
    %3257 = vmatprep.subr.mxu0 0.0
    %3258 = vmatpush1.msra.mxu0 %v3195
    %3259 = vmatprep.subr.mxu0 0.0
    %3260 = vmatpush1.msra.mxu0 %v3196
    %3261 = vmatprep.mubr.f32.mxu0 %v3132
    %3262 = vmatmul.mubr.f32.gmra.mrb[0].mxu0 %v3131
    %v3263 = vpop.f32.mrb[0].mxu0
    %v3264 = vadd.f32 0.0, %v3263
    %v3265 = vpop.f32.mrb[0].mxu0
    %3266 = vdwg.mxu0
    %v3267 = vmul.f32 %v3264, 0.001953125
    %v3268 = vmul.f32 %v3267, %v3267
    %v3270 = vrot.slane %v3268, 7
    %v3272 = vsub.f32 %v3267, %v3270
    %v3273 = vadd.f32 %v3272, 1e-05
    %v3274 = vrsqrt.pop %v3273
    %v3275 = vld [vmem:[%s33] sm:$0x1]
    %v3277 = vlaneseq
    %v3278 = vshrl.u32 %v3277, 7
    %v3279 = vsub.s32 0, %v3278
    %v3280 = vrot.slane %v3275, %v3279
    %v3282 = vmul.f32 %v3274, %v3280
    %v3283 = vld [vmem:[%s35] sm:$0x1]
    %v3285 = vrot.slane %v3282, 1
    %v3287 = vmul.f32 %v3267, %v3285
    %v3288 = vsub.f32 %v3283, %v3287
    %v3290 = vlaneseq
    %v3291 = vshrl.u32 %v3290, 7
    %v3292 = vsub.s32 0, %v3291
    %v3293 = vrot.slane %v3288, %v3292
    %v3295 = vsel %vm474, %v3285, %v3293
    %v3296 = vld [vmem:[%s31] sm:$0xff]
    %v3297 = vld [vmem:[%s31 + $0x8] sm:$0xff]
    %v3298 = vunpack.c.l.bf16 %v3296
    %v3299 = vunpack.c.h.bf16 %v3296
    %v3300 = vunpack.c.l.bf16 %v3297
    %v3301 = vunpack.c.h.bf16 %v3297
    %vm3302 = vcmask 130048
    %v3304 = vsel %vm3302, %v3295, 0
    %3306 = vmatprep.subr.mxu0 %v3299
    %3307 = vmatpush1.msra.mxu0 %v3298
    %3308 = vmatprep.subr.mxu0 %v3301
    %3309 = vmatpush1.msra.mxu0 %v3300
    %3310 = vmatprep.subr.mxu0 0.0
    %3311 = vmatpush1.msra.mxu0 0.0
    %3312 = vmatprep.subr.mxu0 0.0
    %3313 = vmatpush1.msra.mxu0 0.0
    %3314 = vmatprep.subr.mxu0 0.0
    %3315 = vmatpush1.msra.mxu0 0.0
    %3316 = vmatprep.subr.mxu0 0.0
    %3317 = vmatpush1.msra.mxu0 0.0
    %3318 = vmatprep.subr.mxu0 0.0
    %3319 = vmatpush1.msra.mxu0 0.0
    %3320 = vmatprep.subr.mxu0 0.0
    %3321 = vmatpush1.msra.mxu0 0.0
    %3322 = vmatprep.subr.mxu0 0.0
    %3323 = vmatpush1.msra.mxu0 0.0
    %3324 = vmatprep.subr.mxu0 0.0
    %3325 = vmatpush1.msra.mxu0 0.0
    %3326 = vmatprep.subr.mxu0 0.0
    %3327 = vmatpush1.msra.mxu0 0.0
    %3328 = vmatprep.subr.mxu0 0.0
    %3329 = vmatpush1.msra.mxu0 0.0
    %3330 = vmatprep.subr.mxu0 0.0
    %3331 = vmatpush1.msra.mxu0 0.0
    %3332 = vmatprep.subr.mxu0 0.0
    %3333 = vmatpush1.msra.mxu0 0.0
    %3334 = vmatprep.subr.mxu0 0.0
    %3335 = vmatpush1.msra.mxu0 0.0
    %3336 = vmatprep.subr.mxu0 0.0
    %3337 = vmatpush1.msra.mxu0 0.0
    %3338 = vmatprep.subr.mxu0 0.0
    %3339 = vmatpush1.msra.mxu0 0.0
    %3340 = vmatprep.subr.mxu0 0.0
    %3341 = vmatpush1.msra.mxu0 0.0
    %3342 = vmatprep.subr.mxu0 0.0
    %3343 = vmatpush1.msra.mxu0 0.0
    %3344 = vmatprep.subr.mxu0 0.0
    %3345 = vmatpush1.msra.mxu0 0.0
    %3346 = vmatprep.subr.mxu0 0.0
    %3347 = vmatpush1.msra.mxu0 0.0
    %3348 = vmatprep.subr.mxu0 0.0
    %3349 = vmatpush1.msra.mxu0 0.0
    %3350 = vmatprep.subr.mxu0 0.0
    %3351 = vmatpush1.msra.mxu0 0.0
    %3352 = vmatprep.subr.mxu0 0.0
    %3353 = vmatpush1.msra.mxu0 0.0
    %3354 = vmatprep.subr.mxu0 0.0
    %3355 = vmatpush1.msra.mxu0 0.0
    %3356 = vmatprep.subr.mxu0 0.0
    %3357 = vmatpush1.msra.mxu0 0.0
    %3358 = vmatprep.subr.mxu0 0.0
    %3359 = vmatpush1.msra.mxu0 0.0
    %3360 = vmatprep.subr.mxu0 0.0
    %3361 = vmatpush1.msra.mxu0 0.0
    %3362 = vmatprep.subr.mxu0 0.0
    %3363 = vmatpush1.msra.mxu0 0.0
    %3364 = vmatprep.subr.mxu0 0.0
    %3365 = vmatpush1.msra.mxu0 0.0
    %3366 = vmatprep.subr.mxu0 0.0
    %3367 = vmatpush1.msra.mxu0 0.0
    %3368 = vmatprep.subr.mxu0 0.0
    %3369 = vmatpush1.msra.mxu0 0.0
    %3370 = vmatprep.mubr.f32.mxu0 0.0
    %3371 = vmatmul.mubr.f32.gmra.mrb[0].mxu0 %v3304
    %v3372 = vpop.f32.mrb[0].mxu0
    %v3373 = vadd.f32 0.0, %v3372
    %v3374 = vpop.f32.mrb[0].mxu0
    %v3375 = vadd.f32 0.0, %v3374
    %3376 = vdwg.mxu0
    %v3377 = vlaneseq
    %v3378 = vshrl.u32 %v3377, 7
    %v3379 = vsub.s32 0, %v3378
    %v3380 = vrot.slane %v3373, %v3379
    %v3381 = vlaneseq
    %v3382 = vshrl.u32 %v3381, 7
    %v3383 = vsub.s32 0, %v3382
    %v3384 = vrot.slane %v3375, %v3383
    %v3385 = vmul.f32 %v3069, %v3380
    %v3386 = vmul.f32 %v3071, %v3384
    %v3387 = vmul.f32 %v3073, %v3380
    %v3388 = vmul.f32 %v3075, %v3384
    %v3389 = vmul.f32 %v3079, %v3380
    %v3390 = vmul.f32 %v3081, %v3384
    %v3391 = vmul.f32 %v3083, %v3380
    %v3392 = vmul.f32 %v3085, %v3384
    %v3393 = vlaneseq
    %v3394 = vshrl.u32 %v3393, 7
    %v3395 = vsub.s32 1, %v3394
    %v3396 = vrot.slane %v3373, %v3395
    %v3397 = vlaneseq
    %v3398 = vshrl.u32 %v3397, 7
    %v3399 = vsub.s32 1, %v3398
    %v3400 = vrot.slane %v3375, %v3399
    %v3401 = vadd.f32 %v3385, %v3396
    %v3402 = vadd.f32 %v3386, %v3400
    %v3403 = vadd.f32 %v3387, %v3396
    %v3404 = vadd.f32 %v3388, %v3400
    %v3405 = vadd.f32 %v3389, %v3396
    %v3406 = vadd.f32 %v3390, %v3400
    %v3407 = vadd.f32 %v3391, %v3396
    %v3408 = vadd.f32 %v3392, %v3400
    %v3409 = vmax.f32 %v3401, 0.0
    %v3410 = vmax.f32 %v3402, 0.0
    %v3411 = vmax.f32 %v3403, 0.0
    %v3412 = vmax.f32 %v3404, 0.0
    %v3413 = vmax.f32 %v3405, 0.0
    %v3414 = vmax.f32 %v3406, 0.0
    %v3415 = vmax.f32 %v3407, 0.0
    %v3416 = vmax.f32 %v3408, 0.0
    %v3417 = vpack.c.bf16 %v3411, %v3409
    %v3418 = vpack.c.bf16 %v3412, %v3410
    %v3419 = vpack.c.bf16 %v3415, %v3413
    %v3420 = vpack.c.bf16 %v3416, %v3414
    %v3421 = vld [vmem:[#allocation6] sm:$0xff]
    %v3422 = vld [vmem:[#allocation6 + $0x8] sm:$0xff]
    %v3423 = vld [vmem:[#allocation6 + $0x10] sm:$0xff]
    %v3424 = vld [vmem:[#allocation6 + $0x18] sm:$0xff]
    %v3425 = vld [vmem:[#allocation6 + $0x20] sm:$0xff]
    %v3426 = vld [vmem:[#allocation6 + $0x28] sm:$0xff]
    %v3427 = vld [vmem:[#allocation6 + $0x30] sm:$0xff]
    %v3428 = vld [vmem:[#allocation6 + $0x38] sm:$0xff]
    %v3429 = vld [vmem:[#allocation6 + $0x40] sm:$0xff]
    %v3430 = vld [vmem:[#allocation6 + $0x48] sm:$0xff]
    %v3431 = vld [vmem:[#allocation6 + $0x50] sm:$0xff]
    %v3432 = vld [vmem:[#allocation6 + $0x58] sm:$0xff]
    %v3433 = vld [vmem:[#allocation6 + $0x60] sm:$0xff]
    %v3434 = vld [vmem:[#allocation6 + $0x68] sm:$0xff]
    %v3435 = vld [vmem:[#allocation6 + $0x70] sm:$0xff]
    %v3436 = vld [vmem:[#allocation6 + $0x78] sm:$0xff]
    %v3437 = vld [vmem:[#allocation6 + $0x80] sm:$0xff]
    %v3438 = vld [vmem:[#allocation6 + $0x88] sm:$0xff]
    %v3439 = vld [vmem:[#allocation6 + $0x90] sm:$0xff]
    %v3440 = vld [vmem:[#allocation6 + $0x98] sm:$0xff]
    %v3441 = vld [vmem:[#allocation6 + $0xa0] sm:$0xff]
    %v3442 = vld [vmem:[#allocation6 + $0xa8] sm:$0xff]
    %v3443 = vld [vmem:[#allocation6 + $0xb0] sm:$0xff]
    %v3444 = vld [vmem:[#allocation6 + $0xb8] sm:$0xff]
    %v3445 = vld [vmem:[#allocation6 + $0xc0] sm:$0xff]
    %v3446 = vld [vmem:[#allocation6 + $0xc8] sm:$0xff]
    %v3447 = vld [vmem:[#allocation6 + $0xd0] sm:$0xff]
    %v3448 = vld [vmem:[#allocation6 + $0xd8] sm:$0xff]
    %v3449 = vld [vmem:[#allocation6 + $0xe0] sm:$0xff]
    %v3450 = vld [vmem:[#allocation6 + $0xe8] sm:$0xff]
    %v3451 = vld [vmem:[#allocation6 + $0xf0] sm:$0xff]
    %v3452 = vld [vmem:[#allocation6 + $0xf8] sm:$0xff]
    %v3453 = vld [vmem:[#allocation6 + $0x100] sm:$0xff]
    %v3454 = vld [vmem:[#allocation6 + $0x108] sm:$0xff]
    %v3455 = vld [vmem:[#allocation6 + $0x110] sm:$0xff]
    %v3456 = vld [vmem:[#allocation6 + $0x118] sm:$0xff]
    %v3457 = vld [vmem:[#allocation6 + $0x120] sm:$0xff]
    %v3458 = vld [vmem:[#allocation6 + $0x128] sm:$0xff]
    %v3459 = vld [vmem:[#allocation6 + $0x130] sm:$0xff]
    %v3460 = vld [vmem:[#allocation6 + $0x138] sm:$0xff]
    %v3461 = vld [vmem:[#allocation6 + $0x140] sm:$0xff]
    %v3462 = vld [vmem:[#allocation6 + $0x148] sm:$0xff]
    %v3463 = vld [vmem:[#allocation6 + $0x150] sm:$0xff]
    %v3464 = vld [vmem:[#allocation6 + $0x158] sm:$0xff]
    %v3465 = vld [vmem:[#allocation6 + $0x160] sm:$0xff]
    %v3466 = vld [vmem:[#allocation6 + $0x168] sm:$0xff]
    %v3467 = vld [vmem:[#allocation6 + $0x170] sm:$0xff]
    %v3468 = vld [vmem:[#allocation6 + $0x178] sm:$0xff]
    %v3469 = vld [vmem:[#allocation6 + $0x180] sm:$0xff]
    %v3470 = vld [vmem:[#allocation6 + $0x188] sm:$0xff]
    %v3471 = vld [vmem:[#allocation6 + $0x190] sm:$0xff]
    %v3472 = vld [vmem:[#allocation6 + $0x198] sm:$0xff]
    %v3473 = vld [vmem:[#allocation6 + $0x1a0] sm:$0xff]
    %v3474 = vld [vmem:[#allocation6 + $0x1a8] sm:$0xff]
    %v3475 = vld [vmem:[#allocation6 + $0x1b0] sm:$0xff]
    %v3476 = vld [vmem:[#allocation6 + $0x1b8] sm:$0xff]
    %v3477 = vld [vmem:[#allocation6 + $0x1c0] sm:$0xff]
    %v3478 = vld [vmem:[#allocation6 + $0x1c8] sm:$0xff]
    %v3479 = vld [vmem:[#allocation6 + $0x1d0] sm:$0xff]
    %v3480 = vld [vmem:[#allocation6 + $0x1d8] sm:$0xff]
    %v3481 = vld [vmem:[#allocation6 + $0x1e0] sm:$0xff]
    %v3482 = vld [vmem:[#allocation6 + $0x1e8] sm:$0xff]
    %v3483 = vld [vmem:[#allocation6 + $0x1f0] sm:$0xff]
    %v3484 = vld [vmem:[#allocation6 + $0x1f8] sm:$0xff]
    %v3485 = vld [vmem:[#allocation6 + $0x200] sm:$0xff]
    %v3486 = vld [vmem:[#allocation6 + $0x208] sm:$0xff]
    %v3487 = vld [vmem:[#allocation6 + $0x210] sm:$0xff]
    %v3488 = vld [vmem:[#allocation6 + $0x218] sm:$0xff]
    %v3489 = vld [vmem:[#allocation6 + $0x220] sm:$0xff]
    %v3490 = vld [vmem:[#allocation6 + $0x228] sm:$0xff]
    %v3491 = vld [vmem:[#allocation6 + $0x230] sm:$0xff]
    %v3492 = vld [vmem:[#allocation6 + $0x238] sm:$0xff]
    %v3493 = vld [vmem:[#allocation6 + $0x240] sm:$0xff]
    %v3494 = vld [vmem:[#allocation6 + $0x248] sm:$0xff]
    %v3495 = vld [vmem:[#allocation6 + $0x250] sm:$0xff]
    %v3496 = vld [vmem:[#allocation6 + $0x258] sm:$0xff]
    %v3497 = vld [vmem:[#allocation6 + $0x260] sm:$0xff]
    %v3498 = vld [vmem:[#allocation6 + $0x268] sm:$0xff]
    %v3499 = vld [vmem:[#allocation6 + $0x270] sm:$0xff]
    %v3500 = vld [vmem:[#allocation6 + $0x278] sm:$0xff]
    %v3501 = vld [vmem:[#allocation6 + $0x280] sm:$0xff]
    %v3502 = vld [vmem:[#allocation6 + $0x288] sm:$0xff]
    %v3503 = vld [vmem:[#allocation6 + $0x290] sm:$0xff]
    %v3504 = vld [vmem:[#allocation6 + $0x298] sm:$0xff]
    %v3505 = vld [vmem:[#allocation6 + $0x2a0] sm:$0xff]
    %v3506 = vld [vmem:[#allocation6 + $0x2a8] sm:$0xff]
    %v3507 = vld [vmem:[#allocation6 + $0x2b0] sm:$0xff]
    %v3508 = vld [vmem:[#allocation6 + $0x2b8] sm:$0xff]
    %v3509 = vld [vmem:[#allocation6 + $0x2c0] sm:$0xff]
    %v3510 = vld [vmem:[#allocation6 + $0x2c8] sm:$0xff]
    %v3511 = vld [vmem:[#allocation6 + $0x2d0] sm:$0xff]
    %v3512 = vld [vmem:[#allocation6 + $0x2d8] sm:$0xff]
    %v3513 = vld [vmem:[#allocation6 + $0x2e0] sm:$0xff]
    %v3514 = vld [vmem:[#allocation6 + $0x2e8] sm:$0xff]
    %v3515 = vld [vmem:[#allocation6 + $0x2f0] sm:$0xff]
    %v3516 = vld [vmem:[#allocation6 + $0x2f8] sm:$0xff]
    %v3517 = vld [vmem:[#allocation6 + $0x300] sm:$0xff]
    %v3518 = vld [vmem:[#allocation6 + $0x308] sm:$0xff]
    %v3519 = vld [vmem:[#allocation6 + $0x310] sm:$0xff]
    %v3520 = vld [vmem:[#allocation6 + $0x318] sm:$0xff]
    %v3521 = vld [vmem:[#allocation6 + $0x320] sm:$0xff]
    %v3522 = vld [vmem:[#allocation6 + $0x328] sm:$0xff]
    %v3523 = vld [vmem:[#allocation6 + $0x330] sm:$0xff]
    %v3524 = vld [vmem:[#allocation6 + $0x338] sm:$0xff]
    %v3525 = vld [vmem:[#allocation6 + $0x340] sm:$0xff]
    %v3526 = vld [vmem:[#allocation6 + $0x348] sm:$0xff]
    %v3527 = vld [vmem:[#allocation6 + $0x350] sm:$0xff]
    %v3528 = vld [vmem:[#allocation6 + $0x358] sm:$0xff]
    %v3529 = vld [vmem:[#allocation6 + $0x360] sm:$0xff]
    %v3530 = vld [vmem:[#allocation6 + $0x368] sm:$0xff]
    %v3531 = vld [vmem:[#allocation6 + $0x370] sm:$0xff]
    %v3532 = vld [vmem:[#allocation6 + $0x378] sm:$0xff]
    %v3533 = vld [vmem:[#allocation6 + $0x380] sm:$0xff]
    %v3534 = vld [vmem:[#allocation6 + $0x388] sm:$0xff]
    %v3535 = vld [vmem:[#allocation6 + $0x390] sm:$0xff]
    %v3536 = vld [vmem:[#allocation6 + $0x398] sm:$0xff]
    %v3537 = vld [vmem:[#allocation6 + $0x3a0] sm:$0xff]
    %v3538 = vld [vmem:[#allocation6 + $0x3a8] sm:$0xff]
    %v3539 = vld [vmem:[#allocation6 + $0x3b0] sm:$0xff]
    %v3540 = vld [vmem:[#allocation6 + $0x3b8] sm:$0xff]
    %v3541 = vld [vmem:[#allocation6 + $0x3c0] sm:$0xff]
    %v3542 = vld [vmem:[#allocation6 + $0x3c8] sm:$0xff]
    %v3543 = vld [vmem:[#allocation6 + $0x3d0] sm:$0xff]
    %v3544 = vld [vmem:[#allocation6 + $0x3d8] sm:$0xff]
    %v3545 = vld [vmem:[#allocation6 + $0x3e0] sm:$0xff]
    %v3546 = vld [vmem:[#allocation6 + $0x3e8] sm:$0xff]
    %v3547 = vld [vmem:[#allocation6 + $0x3f0] sm:$0xff]
    %v3548 = vld [vmem:[#allocation6 + $0x3f8] sm:$0xff]
    %v3677 = vunpack.c.l.b16 %v3421
    %v3678 = vunpack.c.h.b16 %v3421
    %v3679 = vunpack.c.l.b16 %v3422
    %v3680 = vunpack.c.h.b16 %v3422
    %v3681 = vunpack.c.l.b16 %v3423
    %v3682 = vunpack.c.h.b16 %v3423
    %v3683 = vunpack.c.l.b16 %v3424
    %v3684 = vunpack.c.h.b16 %v3424
    %v3685 = vunpack.c.l.b16 %v3425
    %v3686 = vunpack.c.h.b16 %v3425
    %v3687 = vunpack.c.l.b16 %v3426
    %v3688 = vunpack.c.h.b16 %v3426
    %v3689 = vunpack.c.l.b16 %v3427
    %v3690 = vunpack.c.h.b16 %v3427
    %v3691 = vunpack.c.l.b16 %v3428
    %v3692 = vunpack.c.h.b16 %v3428
    %v3693 = vunpack.c.l.b16 %v3429
    %v3694 = vunpack.c.h.b16 %v3429
    %v3695 = vunpack.c.l.b16 %v3430
    %v3696 = vunpack.c.h.b16 %v3430
    %v3697 = vunpack.c.l.b16 %v3431
    %v3698 = vunpack.c.h.b16 %v3431
    %v3699 = vunpack.c.l.b16 %v3432
    %v3700 = vunpack.c.h.b16 %v3432
    %v3701 = vunpack.c.l.b16 %v3433
    %v3702 = vunpack.c.h.b16 %v3433
    %v3703 = vunpack.c.l.b16 %v3434
    %v3704 = vunpack.c.h.b16 %v3434
    %v3705 = vunpack.c.l.b16 %v3435
    %v3706 = vunpack.c.h.b16 %v3435
    %v3707 = vunpack.c.l.b16 %v3436
    %v3708 = vunpack.c.h.b16 %v3436
    %v3709 = vunpack.c.l.b16 %v3437
    %v3710 = vunpack.c.h.b16 %v3437
    %v3711 = vunpack.c.l.b16 %v3438
    %v3712 = vunpack.c.h.b16 %v3438
    %v3713 = vunpack.c.l.b16 %v3439
    %v3714 = vunpack.c.h.b16 %v3439
    %v3715 = vunpack.c.l.b16 %v3440
    %v3716 = vunpack.c.h.b16 %v3440
    %v3717 = vunpack.c.l.b16 %v3441
    %v3718 = vunpack.c.h.b16 %v3441
    %v3719 = vunpack.c.l.b16 %v3442
    %v3720 = vunpack.c.h.b16 %v3442
    %v3721 = vunpack.c.l.b16 %v3443
    %v3722 = vunpack.c.h.b16 %v3443
    %v3723 = vunpack.c.l.b16 %v3444
    %v3724 = vunpack.c.h.b16 %v3444
    %v3725 = vunpack.c.l.b16 %v3445
    %v3726 = vunpack.c.h.b16 %v3445
    %v3727 = vunpack.c.l.b16 %v3446
    %v3728 = vunpack.c.h.b16 %v3446
    %v3729 = vunpack.c.l.b16 %v3447
    %v3730 = vunpack.c.h.b16 %v3447
    %v3731 = vunpack.c.l.b16 %v3448
    %v3732 = vunpack.c.h.b16 %v3448
    %v3733 = vunpack.c.l.b16 %v3449
    %v3734 = vunpack.c.h.b16 %v3449
    %v3735 = vunpack.c.l.b16 %v3450
    %v3736 = vunpack.c.h.b16 %v3450
    %v3737 = vunpack.c.l.b16 %v3451
    %v3738 = vunpack.c.h.b16 %v3451
    %v3739 = vunpack.c.l.b16 %v3452
    %v3740 = vunpack.c.h.b16 %v3452
    %v3741 = vunpack.c.l.b16 %v3453
    %v3742 = vunpack.c.h.b16 %v3453
    %v3743 = vunpack.c.l.b16 %v3454
    %v3744 = vunpack.c.h.b16 %v3454
    %v3745 = vunpack.c.l.b16 %v3455
    %v3746 = vunpack.c.h.b16 %v3455
    %v3747 = vunpack.c.l.b16 %v3456
    %v3748 = vunpack.c.h.b16 %v3456
    %v3749 = vunpack.c.l.b16 %v3457
    %v3750 = vunpack.c.h.b16 %v3457
    %v3751 = vunpack.c.l.b16 %v3458
    %v3752 = vunpack.c.h.b16 %v3458
    %v3753 = vunpack.c.l.b16 %v3459
    %v3754 = vunpack.c.h.b16 %v3459
    %v3755 = vunpack.c.l.b16 %v3460
    %v3756 = vunpack.c.h.b16 %v3460
    %v3757 = vunpack.c.l.b16 %v3461
    %v3758 = vunpack.c.h.b16 %v3461
    %v3759 = vunpack.c.l.b16 %v3462
    %v3760 = vunpack.c.h.b16 %v3462
    %v3761 = vunpack.c.l.b16 %v3463
    %v3762 = vunpack.c.h.b16 %v3463
    %v3763 = vunpack.c.l.b16 %v3464
    %v3764 = vunpack.c.h.b16 %v3464
    %v3765 = vunpack.c.l.b16 %v3465
    %v3766 = vunpack.c.h.b16 %v3465
    %v3767 = vunpack.c.l.b16 %v3466
    %v3768 = vunpack.c.h.b16 %v3466
    %v3769 = vunpack.c.l.b16 %v3467
    %v3770 = vunpack.c.h.b16 %v3467
    %v3771 = vunpack.c.l.b16 %v3468
    %v3772 = vunpack.c.h.b16 %v3468
    %v3773 = vunpack.c.l.b16 %v3469
    %v3774 = vunpack.c.h.b16 %v3469
    %v3775 = vunpack.c.l.b16 %v3470
    %v3776 = vunpack.c.h.b16 %v3470
    %v3777 = vunpack.c.l.b16 %v3471
    %v3778 = vunpack.c.h.b16 %v3471
    %v3779 = vunpack.c.l.b16 %v3472
    %v3780 = vunpack.c.h.b16 %v3472
    %v3781 = vunpack.c.l.b16 %v3473
    %v3782 = vunpack.c.h.b16 %v3473
    %v3783 = vunpack.c.l.b16 %v3474
    %v3784 = vunpack.c.h.b16 %v3474
    %v3785 = vunpack.c.l.b16 %v3475
    %v3786 = vunpack.c.h.b16 %v3475
    %v3787 = vunpack.c.l.b16 %v3476
    %v3788 = vunpack.c.h.b16 %v3476
    %v3789 = vunpack.c.l.b16 %v3477
    %v3790 = vunpack.c.h.b16 %v3477
    %v3791 = vunpack.c.l.b16 %v3478
    %v3792 = vunpack.c.h.b16 %v3478
    %v3793 = vunpack.c.l.b16 %v3479
    %v3794 = vunpack.c.h.b16 %v3479
    %v3795 = vunpack.c.l.b16 %v3480
    %v3796 = vunpack.c.h.b16 %v3480
    %v3797 = vunpack.c.l.b16 %v3481
    %v3798 = vunpack.c.h.b16 %v3481
    %v3799 = vunpack.c.l.b16 %v3482
    %v3800 = vunpack.c.h.b16 %v3482
    %v3801 = vunpack.c.l.b16 %v3483
    %v3802 = vunpack.c.h.b16 %v3483
    %v3803 = vunpack.c.l.b16 %v3484
    %v3804 = vunpack.c.h.b16 %v3484
    %v3805 = vunpack.c.l.b16 %v3485
    %v3806 = vunpack.c.h.b16 %v3485
    %v3807 = vunpack.c.l.b16 %v3486
    %v3808 = vunpack.c.h.b16 %v3486
    %v3809 = vunpack.c.l.b16 %v3487
    %v3810 = vunpack.c.h.b16 %v3487
    %v3811 = vunpack.c.l.b16 %v3488
    %v3812 = vunpack.c.h.b16 %v3488
    %v3813 = vunpack.c.l.b16 %v3489
    %v3814 = vunpack.c.h.b16 %v3489
    %v3815 = vunpack.c.l.b16 %v3490
    %v3816 = vunpack.c.h.b16 %v3490
    %v3817 = vunpack.c.l.b16 %v3491
    %v3818 = vunpack.c.h.b16 %v3491
    %v3819 = vunpack.c.l.b16 %v3492
    %v3820 = vunpack.c.h.b16 %v3492
    %v3821 = vunpack.c.l.b16 %v3493
    %v3822 = vunpack.c.h.b16 %v3493
    %v3823 = vunpack.c.l.b16 %v3494
    %v3824 = vunpack.c.h.b16 %v3494
    %v3825 = vunpack.c.l.b16 %v3495
    %v3826 = vunpack.c.h.b16 %v3495
    %v3827 = vunpack.c.l.b16 %v3496
    %v3828 = vunpack.c.h.b16 %v3496
    %v3829 = vunpack.c.l.b16 %v3497
    %v3830 = vunpack.c.h.b16 %v3497
    %v3831 = vunpack.c.l.b16 %v3498
    %v3832 = vunpack.c.h.b16 %v3498
    %v3833 = vunpack.c.l.b16 %v3499
    %v3834 = vunpack.c.h.b16 %v3499
    %v3835 = vunpack.c.l.b16 %v3500
    %v3836 = vunpack.c.h.b16 %v3500
    %v3837 = vunpack.c.l.b16 %v3501
    %v3838 = vunpack.c.h.b16 %v3501
    %v3839 = vunpack.c.l.b16 %v3502
    %v3840 = vunpack.c.h.b16 %v3502
    %v3841 = vunpack.c.l.b16 %v3503
    %v3842 = vunpack.c.h.b16 %v3503
    %v3843 = vunpack.c.l.b16 %v3504
    %v3844 = vunpack.c.h.b16 %v3504
    %v3845 = vunpack.c.l.b16 %v3505
    %v3846 = vunpack.c.h.b16 %v3505
    %v3847 = vunpack.c.l.b16 %v3506
    %v3848 = vunpack.c.h.b16 %v3506
    %v3849 = vunpack.c.l.b16 %v3507
    %v3850 = vunpack.c.h.b16 %v3507
    %v3851 = vunpack.c.l.b16 %v3508
    %v3852 = vunpack.c.h.b16 %v3508
    %v3853 = vunpack.c.l.b16 %v3509
    %v3854 = vunpack.c.h.b16 %v3509
    %v3855 = vunpack.c.l.b16 %v3510
    %v3856 = vunpack.c.h.b16 %v3510
    %v3857 = vunpack.c.l.b16 %v3511
    %v3858 = vunpack.c.h.b16 %v3511
    %v3859 = vunpack.c.l.b16 %v3512
    %v3860 = vunpack.c.h.b16 %v3512
    %v3861 = vunpack.c.l.b16 %v3513
    %v3862 = vunpack.c.h.b16 %v3513
    %v3863 = vunpack.c.l.b16 %v3514
    %v3864 = vunpack.c.h.b16 %v3514
    %v3865 = vunpack.c.l.b16 %v3515
    %v3866 = vunpack.c.h.b16 %v3515
    %v3867 = vunpack.c.l.b16 %v3516
    %v3868 = vunpack.c.h.b16 %v3516
    %v3869 = vunpack.c.l.b16 %v3517
    %v3870 = vunpack.c.h.b16 %v3517
    %v3871 = vunpack.c.l.b16 %v3518
    %v3872 = vunpack.c.h.b16 %v3518
    %v3873 = vunpack.c.l.b16 %v3519
    %v3874 = vunpack.c.h.b16 %v3519
    %v3875 = vunpack.c.l.b16 %v3520
    %v3876 = vunpack.c.h.b16 %v3520
    %v3877 = vunpack.c.l.b16 %v3521
    %v3878 = vunpack.c.h.b16 %v3521
    %v3879 = vunpack.c.l.b16 %v3522
    %v3880 = vunpack.c.h.b16 %v3522
    %v3881 = vunpack.c.l.b16 %v3523
    %v3882 = vunpack.c.h.b16 %v3523
    %v3883 = vunpack.c.l.b16 %v3524
    %v3884 = vunpack.c.h.b16 %v3524
    %v3885 = vunpack.c.l.b16 %v3525
    %v3886 = vunpack.c.h.b16 %v3525
    %v3887 = vunpack.c.l.b16 %v3526
    %v3888 = vunpack.c.h.b16 %v3526
    %v3889 = vunpack.c.l.b16 %v3527
    %v3890 = vunpack.c.h.b16 %v3527
    %v3891 = vunpack.c.l.b16 %v3528
    %v3892 = vunpack.c.h.b16 %v3528
    %v3893 = vunpack.c.l.b16 %v3529
    %v3894 = vunpack.c.h.b16 %v3529
    %v3895 = vunpack.c.l.b16 %v3530
    %v3896 = vunpack.c.h.b16 %v3530
    %v3897 = vunpack.c.l.b16 %v3531
    %v3898 = vunpack.c.h.b16 %v3531
    %v3899 = vunpack.c.l.b16 %v3532
    %v3900 = vunpack.c.h.b16 %v3532
    %v3901 = vunpack.c.l.b16 %v3533
    %v3902 = vunpack.c.h.b16 %v3533
    %v3903 = vunpack.c.l.b16 %v3534
    %v3904 = vunpack.c.h.b16 %v3534
    %v3905 = vunpack.c.l.b16 %v3535
    %v3906 = vunpack.c.h.b16 %v3535
    %v3907 = vunpack.c.l.b16 %v3536
    %v3908 = vunpack.c.h.b16 %v3536
    %v3909 = vunpack.c.l.b16 %v3537
    %v3910 = vunpack.c.h.b16 %v3537
    %v3911 = vunpack.c.l.b16 %v3538
    %v3912 = vunpack.c.h.b16 %v3538
    %v3913 = vunpack.c.l.b16 %v3539
    %v3914 = vunpack.c.h.b16 %v3539
    %v3915 = vunpack.c.l.b16 %v3540
    %v3916 = vunpack.c.h.b16 %v3540
    %v3917 = vunpack.c.l.b16 %v3541
    %v3918 = vunpack.c.h.b16 %v3541
    %v3919 = vunpack.c.l.b16 %v3542
    %v3920 = vunpack.c.h.b16 %v3542
    %v3921 = vunpack.c.l.b16 %v3543
    %v3922 = vunpack.c.h.b16 %v3543
    %v3923 = vunpack.c.l.b16 %v3544
    %v3924 = vunpack.c.h.b16 %v3544
    %v3925 = vunpack.c.l.b16 %v3545
    %v3926 = vunpack.c.h.b16 %v3545
    %v3927 = vunpack.c.l.b16 %v3546
    %v3928 = vunpack.c.h.b16 %v3546
    %v3929 = vunpack.c.l.b16 %v3547
    %v3930 = vunpack.c.h.b16 %v3547
    %v3931 = vunpack.c.l.b16 %v3548
    %v3932 = vunpack.c.h.b16 %v3548
    %v3933 = vpack.c.b16 %v3685, %v3677
    %v3934 = vpack.c.b16 %v3686, %v3678
    %v3935 = vpack.c.b16 %v3687, %v3679
    %v3936 = vpack.c.b16 %v3688, %v3680
    %v3937 = vpack.c.b16 %v3689, %v3681
    %v3938 = vpack.c.b16 %v3690, %v3682
    %v3939 = vpack.c.b16 %v3691, %v3683
    %v3940 = vpack.c.b16 %v3692, %v3684
    %v3941 = vpack.c.b16 %v3701, %v3693
    %v3942 = vpack.c.b16 %v3702, %v3694
    %v3943 = vpack.c.b16 %v3703, %v3695
    %v3944 = vpack.c.b16 %v3704, %v3696
    %v3945 = vpack.c.b16 %v3705, %v3697
    %v3946 = vpack.c.b16 %v3706, %v3698
    %v3947 = vpack.c.b16 %v3707, %v3699
    %v3948 = vpack.c.b16 %v3708, %v3700
    %v3949 = vpack.c.b16 %v3717, %v3709
    %v3950 = vpack.c.b16 %v3718, %v3710
    %v3951 = vpack.c.b16 %v3719, %v3711
    %v3952 = vpack.c.b16 %v3720, %v3712
    %v3953 = vpack.c.b16 %v3721, %v3713
    %v3954 = vpack.c.b16 %v3722, %v3714
    %v3955 = vpack.c.b16 %v3723, %v3715
    %v3956 = vpack.c.b16 %v3724, %v3716
    %v3957 = vpack.c.b16 %v3733, %v3725
    %v3958 = vpack.c.b16 %v3734, %v3726
    %v3959 = vpack.c.b16 %v3735, %v3727
    %v3960 = vpack.c.b16 %v3736, %v3728
    %v3961 = vpack.c.b16 %v3737, %v3729
    %v3962 = vpack.c.b16 %v3738, %v3730
    %v3963 = vpack.c.b16 %v3739, %v3731
    %v3964 = vpack.c.b16 %v3740, %v3732
    %v3965 = vpack.c.b16 %v3749, %v3741
    %v3966 = vpack.c.b16 %v3750, %v3742
    %v3967 = vpack.c.b16 %v3751, %v3743
    %v3968 = vpack.c.b16 %v3752, %v3744
    %v3969 = vpack.c.b16 %v3753, %v3745
    %v3970 = vpack.c.b16 %v3754, %v3746
    %v3971 = vpack.c.b16 %v3755, %v3747
    %v3972 = vpack.c.b16 %v3756, %v3748
    %v3973 = vpack.c.b16 %v3765, %v3757
    %v3974 = vpack.c.b16 %v3766, %v3758
    %v3975 = vpack.c.b16 %v3767, %v3759
    %v3976 = vpack.c.b16 %v3768, %v3760
    %v3977 = vpack.c.b16 %v3769, %v3761
    %v3978 = vpack.c.b16 %v3770, %v3762
    %v3979 = vpack.c.b16 %v3771, %v3763
    %v3980 = vpack.c.b16 %v3772, %v3764
    %v3981 = vpack.c.b16 %v3781, %v3773
    %v3982 = vpack.c.b16 %v3782, %v3774
    %v3983 = vpack.c.b16 %v3783, %v3775
    %v3984 = vpack.c.b16 %v3784, %v3776
    %v3985 = vpack.c.b16 %v3785, %v3777
    %v3986 = vpack.c.b16 %v3786, %v3778
    %v3987 = vpack.c.b16 %v3787, %v3779
    %v3988 = vpack.c.b16 %v3788, %v3780
    %v3989 = vpack.c.b16 %v3797, %v3789
    %v3990 = vpack.c.b16 %v3798, %v3790
    %v3991 = vpack.c.b16 %v3799, %v3791
    %v3992 = vpack.c.b16 %v3800, %v3792
    %v3993 = vpack.c.b16 %v3801, %v3793
    %v3994 = vpack.c.b16 %v3802, %v3794
    %v3995 = vpack.c.b16 %v3803, %v3795
    %v3996 = vpack.c.b16 %v3804, %v3796
    %v3997 = vpack.c.b16 %v3813, %v3805
    %v3998 = vpack.c.b16 %v3814, %v3806
    %v3999 = vpack.c.b16 %v3815, %v3807
    %v4000 = vpack.c.b16 %v3816, %v3808
    %v4001 = vpack.c.b16 %v3817, %v3809
    %v4002 = vpack.c.b16 %v3818, %v3810
    %v4003 = vpack.c.b16 %v3819, %v3811
    %v4004 = vpack.c.b16 %v3820, %v3812
    %v4005 = vpack.c.b16 %v3829, %v3821
    %v4006 = vpack.c.b16 %v3830, %v3822
    %v4007 = vpack.c.b16 %v3831, %v3823
    %v4008 = vpack.c.b16 %v3832, %v3824
    %v4009 = vpack.c.b16 %v3833, %v3825
    %v4010 = vpack.c.b16 %v3834, %v3826
    %v4011 = vpack.c.b16 %v3835, %v3827
    %v4012 = vpack.c.b16 %v3836, %v3828
    %v4013 = vpack.c.b16 %v3845, %v3837
    %v4014 = vpack.c.b16 %v3846, %v3838
    %v4015 = vpack.c.b16 %v3847, %v3839
    %v4016 = vpack.c.b16 %v3848, %v3840
    %v4017 = vpack.c.b16 %v3849, %v3841
    %v4018 = vpack.c.b16 %v3850, %v3842
    %v4019 = vpack.c.b16 %v3851, %v3843
    %v4020 = vpack.c.b16 %v3852, %v3844
    %v4021 = vpack.c.b16 %v3861, %v3853
    %v4022 = vpack.c.b16 %v3862, %v3854
    %v4023 = vpack.c.b16 %v3863, %v3855
    %v4024 = vpack.c.b16 %v3864, %v3856
    %v4025 = vpack.c.b16 %v3865, %v3857
    %v4026 = vpack.c.b16 %v3866, %v3858
    %v4027 = vpack.c.b16 %v3867, %v3859
    %v4028 = vpack.c.b16 %v3868, %v3860
    %v4029 = vpack.c.b16 %v3877, %v3869
    %v4030 = vpack.c.b16 %v3878, %v3870
    %v4031 = vpack.c.b16 %v3879, %v3871
    %v4032 = vpack.c.b16 %v3880, %v3872
    %v4033 = vpack.c.b16 %v3881, %v3873
    %v4034 = vpack.c.b16 %v3882, %v3874
    %v4035 = vpack.c.b16 %v3883, %v3875
    %v4036 = vpack.c.b16 %v3884, %v3876
    %v4037 = vpack.c.b16 %v3893, %v3885
    %v4038 = vpack.c.b16 %v3894, %v3886
    %v4039 = vpack.c.b16 %v3895, %v3887
    %v4040 = vpack.c.b16 %v3896, %v3888
    %v4041 = vpack.c.b16 %v3897, %v3889
    %v4042 = vpack.c.b16 %v3898, %v3890
    %v4043 = vpack.c.b16 %v3899, %v3891
    %v4044 = vpack.c.b16 %v3900, %v3892
    %v4045 = vpack.c.b16 %v3909, %v3901
    %v4046 = vpack.c.b16 %v3910, %v3902
    %v4047 = vpack.c.b16 %v3911, %v3903
    %v4048 = vpack.c.b16 %v3912, %v3904
    %v4049 = vpack.c.b16 %v3913, %v3905
    %v4050 = vpack.c.b16 %v3914, %v3906
    %v4051 = vpack.c.b16 %v3915, %v3907
    %v4052 = vpack.c.b16 %v3916, %v3908
    %v4053 = vpack.c.b16 %v3925, %v3917
    %v4054 = vpack.c.b16 %v3926, %v3918
    %v4055 = vpack.c.b16 %v3927, %v3919
    %v4056 = vpack.c.b16 %v3928, %v3920
    %v4057 = vpack.c.b16 %v3929, %v3921
    %v4058 = vpack.c.b16 %v3930, %v3922
    %v4059 = vpack.c.b16 %v3931, %v3923
    %v4060 = vpack.c.b16 %v3932, %v3924
    %4189 = vmatprep.subr.bf16.mxu0 %v3934
    %4190 = vmatpush1.bf16.msra.mxu0 %v3933
    %4191 = vmatprep.subr.bf16.mxu0 %v3942
    %4192 = vmatpush1.bf16.msra.mxu0 %v3941
    %4193 = vmatprep.subr.bf16.mxu0 %v3950
    %4194 = vmatpush1.bf16.msra.mxu0 %v3949
    %4195 = vmatprep.subr.bf16.mxu0 %v3958
    %4196 = vmatpush1.bf16.msra.mxu0 %v3957
    %4197 = vmatprep.subr.bf16.mxu0 %v3966
    %4198 = vmatpush1.bf16.msra.mxu0 %v3965
    %4199 = vmatprep.subr.bf16.mxu0 %v3974
    %4200 = vmatpush1.bf16.msra.mxu0 %v3973
    %4201 = vmatprep.subr.bf16.mxu0 %v3982
    %4202 = vmatpush1.bf16.msra.mxu0 %v3981
    %4203 = vmatprep.subr.bf16.mxu0 %v3990
    %4204 = vmatpush1.bf16.msra.mxu0 %v3989
    %4205 = vmatprep.subr.bf16.mxu0 %v3998
    %4206 = vmatpush1.bf16.msra.mxu0 %v3997
    %4207 = vmatprep.subr.bf16.mxu0 %v4006
    %4208 = vmatpush1.bf16.msra.mxu0 %v4005
    %4209 = vmatprep.subr.bf16.mxu0 %v4014
    %4210 = vmatpush1.bf16.msra.mxu0 %v4013
    %4211 = vmatprep.subr.bf16.mxu0 %v4022
    %4212 = vmatpush1.bf16.msra.mxu0 %v4021
    %4213 = vmatprep.subr.bf16.mxu0 %v4030
    %4214 = vmatpush1.bf16.msra.mxu0 %v4029
    %4215 = vmatprep.subr.bf16.mxu0 %v4038
    %4216 = vmatpush1.bf16.msra.mxu0 %v4037
    %4217 = vmatprep.subr.bf16.mxu0 %v4046
    %4218 = vmatpush1.bf16.msra.mxu0 %v4045
    %4219 = vmatprep.subr.bf16.mxu0 %v4054
    %4220 = vmatpush1.bf16.msra.mxu0 %v4053
    %4221 = vmatprep.mubr.bf16.mxu0 %v3418
    %4222 = vmatmul.mubr.bf16.gmra.mrb[0].mxu0 %v3417
    %v4223 = vpop.f32.mrb[0].mxu0
    %v4224 = vadd.f32 0.0, %v4223
    %v4225 = vpop.f32.mrb[0].mxu0
    %v4226 = vadd.f32 0.0, %v4225
    %v4227 = vpop.f32.mrb[0].mxu0
    %v4228 = vadd.f32 0.0, %v4227
    %v4229 = vpop.f32.mrb[0].mxu0
    %v4230 = vadd.f32 0.0, %v4229
    %4231 = vmatprep.mubr.bf16.mxu0 %v3420
    %4232 = vmatmul.mubr.bf16.gmra.mrb[0].mxu0 %v3419
    %v4233 = vpop.f32.mrb[0].mxu0
    %v4234 = vadd.f32 0.0, %v4233
    %v4235 = vpop.f32.mrb[0].mxu0
    %v4236 = vadd.f32 0.0, %v4235
    %v4237 = vpop.f32.mrb[0].mxu0
    %v4238 = vadd.f32 0.0, %v4237
    %v4239 = vpop.f32.mrb[0].mxu0
    %v4240 = vadd.f32 0.0, %v4239
    %4241 = vdwg.mxu0
    %4242 = vmatprep.subr.bf16.mxu0 %v3936
    %4243 = vmatpush1.bf16.msra.mxu0 %v3935
    %4244 = vmatprep.subr.bf16.mxu0 %v3944
    %4245 = vmatpush1.bf16.msra.mxu0 %v3943
    %4246 = vmatprep.subr.bf16.mxu0 %v3952
    %4247 = vmatpush1.bf16.msra.mxu0 %v3951
    %4248 = vmatprep.subr.bf16.mxu0 %v3960
    %4249 = vmatpush1.bf16.msra.mxu0 %v3959
    %4250 = vmatprep.subr.bf16.mxu0 %v3968
    %4251 = vmatpush1.bf16.msra.mxu0 %v3967
    %4252 = vmatprep.subr.bf16.mxu0 %v3976
    %4253 = vmatpush1.bf16.msra.mxu0 %v3975
    %4254 = vmatprep.subr.bf16.mxu0 %v3984
    %4255 = vmatpush1.bf16.msra.mxu0 %v3983
    %4256 = vmatprep.subr.bf16.mxu0 %v3992
    %4257 = vmatpush1.bf16.msra.mxu0 %v3991
    %4258 = vmatprep.subr.bf16.mxu0 %v4000
    %4259 = vmatpush1.bf16.msra.mxu0 %v3999
    %4260 = vmatprep.subr.bf16.mxu0 %v4008
    %4261 = vmatpush1.bf16.msra.mxu0 %v4007
    %4262 = vmatprep.subr.bf16.mxu0 %v4016
    %4263 = vmatpush1.bf16.msra.mxu0 %v4015
    %4264 = vmatprep.subr.bf16.mxu0 %v4024
    %4265 = vmatpush1.bf16.msra.mxu0 %v4023
    %4266 = vmatprep.subr.bf16.mxu0 %v4032
    %4267 = vmatpush1.bf16.msra.mxu0 %v4031
    %4268 = vmatprep.subr.bf16.mxu0 %v4040
    %4269 = vmatpush1.bf16.msra.mxu0 %v4039
    %4270 = vmatprep.subr.bf16.mxu0 %v4048
    %4271 = vmatpush1.bf16.msra.mxu0 %v4047
    %4272 = vmatprep.subr.bf16.mxu0 %v4056
    %4273 = vmatpush1.bf16.msra.mxu0 %v4055
    %4274 = vmatprep.mubr.bf16.mxu0 %v3418
    %4275 = vmatmul.mubr.bf16.gmra.mrb[0].mxu0 %v3417
    %v4276 = vpop.f32.mrb[0].mxu0
    %v4277 = vadd.f32 0.0, %v4276
    %v4278 = vpop.f32.mrb[0].mxu0
    %v4279 = vadd.f32 0.0, %v4278
    %v4280 = vpop.f32.mrb[0].mxu0
    %v4281 = vadd.f32 0.0, %v4280
    %v4282 = vpop.f32.mrb[0].mxu0
    %v4283 = vadd.f32 0.0, %v4282
    %4284 = vmatprep.mubr.bf16.mxu0 %v3420
    %4285 = vmatmul.mubr.bf16.gmra.mrb[0].mxu0 %v3419
    %v4286 = vpop.f32.mrb[0].mxu0
    %v4287 = vadd.f32 0.0, %v4286
    %v4288 = vpop.f32.mrb[0].mxu0
    %v4289 = vadd.f32 0.0, %v4288
    %v4290 = vpop.f32.mrb[0].mxu0
    %v4291 = vadd.f32 0.0, %v4290
    %v4292 = vpop.f32.mrb[0].mxu0
    %v4293 = vadd.f32 0.0, %v4292
    %4294 = vdwg.mxu0
    %4295 = vmatprep.subr.bf16.mxu0 %v3938
    %4296 = vmatpush1.bf16.msra.mxu0 %v3937
    %4297 = vmatprep.subr.bf16.mxu0 %v3946
    %4298 = vmatpush1.bf16.msra.mxu0 %v3945
    %4299 = vmatprep.subr.bf16.mxu0 %v3954
    %4300 = vmatpush1.bf16.msra.mxu0 %v3953
    %4301 = vmatprep.subr.bf16.mxu0 %v3962
    %4302 = vmatpush1.bf16.msra.mxu0 %v3961
    %4303 = vmatprep.subr.bf16.mxu0 %v3970
    %4304 = vmatpush1.bf16.msra.mxu0 %v3969
    %4305 = vmatprep.subr.bf16.mxu0 %v3978
    %4306 = vmatpush1.bf16.msra.mxu0 %v3977
    %4307 = vmatprep.subr.bf16.mxu0 %v3986
    %4308 = vmatpush1.bf16.msra.mxu0 %v3985
    %4309 = vmatprep.subr.bf16.mxu0 %v3994
    %4310 = vmatpush1.bf16.msra.mxu0 %v3993
    %4311 = vmatprep.subr.bf16.mxu0 %v4002
    %4312 = vmatpush1.bf16.msra.mxu0 %v4001
    %4313 = vmatprep.subr.bf16.mxu0 %v4010
    %4314 = vmatpush1.bf16.msra.mxu0 %v4009
    %4315 = vmatprep.subr.bf16.mxu0 %v4018
    %4316 = vmatpush1.bf16.msra.mxu0 %v4017
    %4317 = vmatprep.subr.bf16.mxu0 %v4026
    %4318 = vmatpush1.bf16.msra.mxu0 %v4025
    %4319 = vmatprep.subr.bf16.mxu0 %v4034
    %4320 = vmatpush1.bf16.msra.mxu0 %v4033
    %4321 = vmatprep.subr.bf16.mxu0 %v4042
    %4322 = vmatpush1.bf16.msra.mxu0 %v4041
    %4323 = vmatprep.subr.bf16.mxu0 %v4050
    %4324 = vmatpush1.bf16.msra.mxu0 %v4049
    %4325 = vmatprep.subr.bf16.mxu0 %v4058
    %4326 = vmatpush1.bf16.msra.mxu0 %v4057
    %4327 = vmatprep.mubr.bf16.mxu0 %v3418
    %4328 = vmatmul.mubr.bf16.gmra.mrb[0].mxu0 %v3417
    %v4329 = vpop.f32.mrb[0].mxu0
    %v4330 = vadd.f32 0.0, %v4329
    %v4331 = vpop.f32.mrb[0].mxu0
    %v4332 = vadd.f32 0.0, %v4331
    %v4333 = vpop.f32.mrb[0].mxu0
    %v4334 = vadd.f32 0.0, %v4333
    %v4335 = vpop.f32.mrb[0].mxu0
    %v4336 = vadd.f32 0.0, %v4335
    %4337 = vmatprep.mubr.bf16.mxu0 %v3420
    %4338 = vmatmul.mubr.bf16.gmra.mrb[0].mxu0 %v3419
    %v4339 = vpop.f32.mrb[0].mxu0
    %v4340 = vadd.f32 0.0, %v4339
    %v4341 = vpop.f32.mrb[0].mxu0
    %v4342 = vadd.f32 0.0, %v4341
    %v4343 = vpop.f32.mrb[0].mxu0
    %v4344 = vadd.f32 0.0, %v4343
    %v4345 = vpop.f32.mrb[0].mxu0
    %v4346 = vadd.f32 0.0, %v4345
    %4347 = vdwg.mxu0
    %4348 = vmatprep.subr.bf16.mxu0 %v3940
    %4349 = vmatpush1.bf16.msra.mxu0 %v3939
    %4350 = vmatprep.subr.bf16.mxu0 %v3948
    %4351 = vmatpush1.bf16.msra.mxu0 %v3947
    %4352 = vmatprep.subr.bf16.mxu0 %v3956
    %4353 = vmatpush1.bf16.msra.mxu0 %v3955
    %4354 = vmatprep.subr.bf16.mxu0 %v3964
    %4355 = vmatpush1.bf16.msra.mxu0 %v3963
    %4356 = vmatprep.subr.bf16.mxu0 %v3972
    %4357 = vmatpush1.bf16.msra.mxu0 %v3971
    %4358 = vmatprep.subr.bf16.mxu0 %v3980
    %4359 = vmatpush1.bf16.msra.mxu0 %v3979
    %4360 = vmatprep.subr.bf16.mxu0 %v3988
    %4361 = vmatpush1.bf16.msra.mxu0 %v3987
    %4362 = vmatprep.subr.bf16.mxu0 %v3996
    %4363 = vmatpush1.bf16.msra.mxu0 %v3995
    %4364 = vmatprep.subr.bf16.mxu0 %v4004
    %4365 = vmatpush1.bf16.msra.mxu0 %v4003
    %4366 = vmatprep.subr.bf16.mxu0 %v4012
    %4367 = vmatpush1.bf16.msra.mxu0 %v4011
    %4368 = vmatprep.subr.bf16.mxu0 %v4020
    %4369 = vmatpush1.bf16.msra.mxu0 %v4019
    %4370 = vmatprep.subr.bf16.mxu0 %v4028
    %4371 = vmatpush1.bf16.msra.mxu0 %v4027
    %4372 = vmatprep.subr.bf16.mxu0 %v4036
    %4373 = vmatpush1.bf16.msra.mxu0 %v4035
    %4374 = vmatprep.subr.bf16.mxu0 %v4044
    %4375 = vmatpush1.bf16.msra.mxu0 %v4043
    %4376 = vmatprep.subr.bf16.mxu0 %v4052
    %4377 = vmatpush1.bf16.msra.mxu0 %v4051
    %4378 = vmatprep.subr.bf16.mxu0 %v4060
    %4379 = vmatpush1.bf16.msra.mxu0 %v4059
    %4380 = vmatprep.mubr.bf16.mxu0 %v3418
    %4381 = vmatmul.mubr.bf16.gmra.mrb[0].mxu0 %v3417
    %v4382 = vpop.f32.mrb[0].mxu0
    %v4383 = vadd.f32 0.0, %v4382
    %v4384 = vpop.f32.mrb[0].mxu0
    %v4385 = vadd.f32 0.0, %v4384
    %v4386 = vpop.f32.mrb[0].mxu0
    %v4387 = vadd.f32 0.0, %v4386
    %v4388 = vpop.f32.mrb[0].mxu0
    %v4389 = vadd.f32 0.0, %v4388
    %4390 = vmatprep.mubr.bf16.mxu0 %v3420
    %4391 = vmatmul.mubr.bf16.gmra.mrb[0].mxu0 %v3419
    %v4392 = vpop.f32.mrb[0].mxu0
    %v4393 = vadd.f32 0.0, %v4392
    %v4394 = vpop.f32.mrb[0].mxu0
    %v4395 = vadd.f32 0.0, %v4394
    %v4396 = vpop.f32.mrb[0].mxu0
    %v4397 = vadd.f32 0.0, %v4396
    %v4398 = vpop.f32.mrb[0].mxu0
    %v4399 = vadd.f32 0.0, %v4398
    %4400 = vdwg.mxu0
    %v4401 = vld [vmem:[%s37] sm:$0xf]
    %v4402 = vld [vmem:[%s37 + $0x4] sm:$0xf]
    %v4403 = vld [vmem:[%s37 + $0x8] sm:$0xf]
    %v4404 = vld [vmem:[%s37 + $0xc] sm:$0xf]
    %v4405 = vld [vmem:[%s37 + $0x10] sm:$0xf]
    %v4406 = vld [vmem:[%s37 + $0x14] sm:$0xf]
    %v4407 = vld [vmem:[%s37 + $0x18] sm:$0xf]
    %v4408 = vld [vmem:[%s37 + $0x1c] sm:$0xf]
    %v4409 = vpack.c.bf16 %v4228, %v4224
    %v4410 = vpack.c.bf16 %v4230, %v4226
    %v4411 = vpack.c.bf16 %v4238, %v4234
    %v4412 = vpack.c.bf16 %v4240, %v4236
    %v4413 = vpack.c.bf16 %v4281, %v4277
    %v4414 = vpack.c.bf16 %v4283, %v4279
    %v4415 = vpack.c.bf16 %v4291, %v4287
    %v4416 = vpack.c.bf16 %v4293, %v4289
    %v4417 = vpack.c.bf16 %v4334, %v4330
    %v4418 = vpack.c.bf16 %v4336, %v4332
    %v4419 = vpack.c.bf16 %v4344, %v4340
    %v4420 = vpack.c.bf16 %v4346, %v4342
    %v4421 = vpack.c.bf16 %v4387, %v4383
    %v4422 = vpack.c.bf16 %v4389, %v4385
    %v4423 = vpack.c.bf16 %v4397, %v4393
    %v4424 = vpack.c.bf16 %v4399, %v4395
    %v4433 = vunpack.c.l.b16 %v4401
    %v4434 = vunpack.c.l.b16 %v4402
    %v4435 = vunpack.c.l.b16 %v4403
    %v4436 = vunpack.c.l.b16 %v4404
    %v4437 = vunpack.c.l.b16 %v4405
    %v4438 = vunpack.c.l.b16 %v4406
    %v4439 = vunpack.c.l.b16 %v4407
    %v4440 = vunpack.c.l.b16 %v4408
    %v4441 = vpack.c.b16 %v4434, %v4433
    %v4442 = vpack.c.b16 %v4436, %v4435
    %v4443 = vpack.c.b16 %v4438, %v4437
    %v4444 = vpack.c.b16 %v4440, %v4439
    %4449 = vmatprep.subr.bf16.mxu0 %v4410
    %4450 = vmatpush1.bf16.msra.mxu0 %v4409
    %4451 = vmatprep.subr.bf16.mxu0 %v4412
    %4452 = vmatpush1.bf16.msra.mxu0 %v4411
    %4453 = vmatprep.subr.bf16.mxu0 %v4414
    %4454 = vmatpush1.bf16.msra.mxu0 %v4413
    %4455 = vmatprep.subr.bf16.mxu0 %v4416
    %4456 = vmatpush1.bf16.msra.mxu0 %v4415
    %4457 = vmatprep.subr.bf16.mxu0 %v4418
    %4458 = vmatpush1.bf16.msra.mxu0 %v4417
    %4459 = vmatprep.subr.bf16.mxu0 %v4420
    %4460 = vmatpush1.bf16.msra.mxu0 %v4419
    %4461 = vmatprep.subr.bf16.mxu0 %v4422
    %4462 = vmatpush1.bf16.msra.mxu0 %v4421
    %4463 = vmatprep.subr.bf16.mxu0 %v4424
    %4464 = vmatpush1.bf16.msra.mxu0 %v4423
    %4465 = vmatprep.subr.bf16.mxu0 0
    %4466 = vmatpush1.bf16.msra.mxu0 0
    %4467 = vmatprep.subr.bf16.mxu0 0
    %4468 = vmatpush1.bf16.msra.mxu0 0
    %4469 = vmatprep.subr.bf16.mxu0 0
    %4470 = vmatpush1.bf16.msra.mxu0 0
    %4471 = vmatprep.subr.bf16.mxu0 0
    %4472 = vmatpush1.bf16.msra.mxu0 0
    %4473 = vmatprep.subr.bf16.mxu0 0
    %4474 = vmatpush1.bf16.msra.mxu0 0
    %4475 = vmatprep.subr.bf16.mxu0 0
    %4476 = vmatpush1.bf16.msra.mxu0 0
    %4477 = vmatprep.subr.bf16.mxu0 0
    %4478 = vmatpush1.bf16.msra.mxu0 0
    %4479 = vmatprep.subr.bf16.mxu0 0
    %4480 = vmatpush1.bf16.msra.mxu0 0
    %4481 = vmatprep.mubr.bf16.mxu0 0
    %4482 = vmatmul.mubr.bf16.gmra.mrb[0].mxu0 %v4441
    %v4483 = vpop.f32.mrb[0].mxu0
    %v4484 = vadd.f32 0.0, %v4483
    %v4485 = vpop.f32.mrb[0].mxu0
    %v4486 = vadd.f32 0.0, %v4485
    %v4487 = vpop.f32.mrb[0].mxu0
    %v4488 = vadd.f32 0.0, %v4487
    %v4489 = vpop.f32.mrb[0].mxu0
    %v4490 = vadd.f32 0.0, %v4489
    %4491 = vmatprep.mubr.bf16.mxu0 0
    %4492 = vmatmul.mubr.bf16.gmra.mrb[0].mxu0 %v4442
    %v4493 = vpop.f32.mrb[0].mxu0
    %v4494 = vadd.f32 0.0, %v4493
    %v4495 = vpop.f32.mrb[0].mxu0
    %v4496 = vadd.f32 0.0, %v4495
    %v4497 = vpop.f32.mrb[0].mxu0
    %v4498 = vadd.f32 0.0, %v4497
    %v4499 = vpop.f32.mrb[0].mxu0
    %v4500 = vadd.f32 0.0, %v4499
    %4501 = vmatprep.mubr.bf16.mxu0 0
    %4502 = vmatmul.mubr.bf16.gmra.mrb[0].mxu0 %v4443
    %v4503 = vpop.f32.mrb[0].mxu0
    %v4504 = vadd.f32 0.0, %v4503
    %v4505 = vpop.f32.mrb[0].mxu0
    %v4506 = vadd.f32 0.0, %v4505
    %v4507 = vpop.f32.mrb[0].mxu0
    %v4508 = vadd.f32 0.0, %v4507
    %v4509 = vpop.f32.mrb[0].mxu0
    %v4510 = vadd.f32 0.0, %v4509
    %4511 = vmatprep.mubr.bf16.mxu0 0
    %4512 = vmatmul.mubr.bf16.gmra.mrb[0].mxu0 %v4444
    %v4513 = vpop.f32.mrb[0].mxu0
    %v4514 = vadd.f32 0.0, %v4513
    %v4515 = vpop.f32.mrb[0].mxu0
    %v4516 = vadd.f32 0.0, %v4515
    %v4517 = vpop.f32.mrb[0].mxu0
    %v4518 = vadd.f32 0.0, %v4517
    %v4519 = vpop.f32.mrb[0].mxu0
    %v4520 = vadd.f32 0.0, %v4519
    %4521 = vdwg.mxu0
    %v4522 = vadd.f32 %v4484, %v4488
    %v4523 = vadd.f32 %v4522, %v4494
    %v4524 = vadd.f32 %v4523, %v4498
    %v4525 = vadd.f32 %v4524, %v4504
    %v4526 = vadd.f32 %v4525, %v4508
    %v4527 = vadd.f32 %v4526, %v4514
    %v4528 = vadd.f32 %v4527, %v4518
    %v4529 = vrot.slane %v4528, 4
    %v4530 = vadd.f32 %v4528, %v4529
    %v4531 = vrot.slane %v4530, 2
    %v4532 = vadd.f32 %v4530, %v4531
    %v4533 = vrot.slane %v4532, 1
    %v4534 = vadd.f32 %v4532, %v4533
    %v4535 = vadd.f32 %v4486, %v4490
    %v4536 = vadd.f32 %v4535, %v4496
    %v4537 = vadd.f32 %v4536, %v4500
    %v4538 = vadd.f32 %v4537, %v4506
    %v4539 = vadd.f32 %v4538, %v4510
    %v4540 = vadd.f32 %v4539, %v4516
    %v4541 = vadd.f32 %v4540, %v4520
    %v4542 = vrot.slane %v4541, 4
    %v4543 = vadd.f32 %v4541, %v4542
    %v4544 = vrot.slane %v4543, 2
    %v4545 = vadd.f32 %v4543, %v4544
    %v4546 = vrot.slane %v4545, 1
    %v4547 = vadd.f32 %v4545, %v4546
    %v4548 = vmul.f32 %v4484, %v4484
    %v4549 = vmul.f32 %v4486, %v4486
    %v4550 = vmul.f32 %v4488, %v4488
    %v4551 = vmul.f32 %v4490, %v4490
    %v4552 = vmul.f32 %v4494, %v4494
    %v4553 = vmul.f32 %v4496, %v4496
    %v4554 = vmul.f32 %v4498, %v4498
    %v4555 = vmul.f32 %v4500, %v4500
    %v4556 = vmul.f32 %v4504, %v4504
    %v4557 = vmul.f32 %v4506, %v4506
    %v4558 = vmul.f32 %v4508, %v4508
    %v4559 = vmul.f32 %v4510, %v4510
    %v4560 = vmul.f32 %v4514, %v4514
    %v4561 = vmul.f32 %v4516, %v4516
    %v4562 = vmul.f32 %v4518, %v4518
    %v4563 = vmul.f32 %v4520, %v4520
    %v4564 = vadd.f32 %v4548, %v4550
    %v4565 = vadd.f32 %v4564, %v4552
    %v4566 = vadd.f32 %v4565, %v4554
    %v4567 = vadd.f32 %v4566, %v4556
    %v4568 = vadd.f32 %v4567, %v4558
    %v4569 = vadd.f32 %v4568, %v4560
    %v4570 = vadd.f32 %v4569, %v4562
    %v4571 = vrot.slane %v4570, 4
    %v4572 = vadd.f32 %v4570, %v4571
    %v4573 = vrot.slane %v4572, 2
    %v4574 = vadd.f32 %v4572, %v4573
    %v4575 = vrot.slane %v4574, 1
    %v4576 = vadd.f32 %v4574, %v4575
    %v4577 = vadd.f32 %v4549, %v4551
    %v4578 = vadd.f32 %v4577, %v4553
    %v4579 = vadd.f32 %v4578, %v4555
    %v4580 = vadd.f32 %v4579, %v4557
    %v4581 = vadd.f32 %v4580, %v4559
    %v4582 = vadd.f32 %v4581, %v4561
    %v4583 = vadd.f32 %v4582, %v4563
    %v4584 = vrot.slane %v4583, 4
    %v4585 = vadd.f32 %v4583, %v4584
    %v4586 = vrot.slane %v4585, 2
    %v4587 = vadd.f32 %v4585, %v4586
    %v4588 = vrot.slane %v4587, 1
    %v4589 = vadd.f32 %v4587, %v4588
    %v4590 = vsel %vm474, %v4534, %v4576
    %v4591 = vsel %vm474, %v4547, %v4589
    %v4592 = vld [vmem:[%s41] sm:$0xf]
    %v4593 = vld [vmem:[%s41 + $0x4] sm:$0xf]
    %v4594 = vld [vmem:[%s41 + $0x8] sm:$0xf]
    %v4595 = vld [vmem:[%s41 + $0xc] sm:$0xf]
    %v4596 = vld [vmem:[%s41 + $0x10] sm:$0xf]
    %v4597 = vld [vmem:[%s41 + $0x14] sm:$0xf]
    %v4598 = vld [vmem:[%s41 + $0x18] sm:$0xf]
    %v4599 = vld [vmem:[%s41 + $0x1c] sm:$0xf]
    %v4600 = vld [vmem:[%s41 + $0x20] sm:$0xf]
    %v4601 = vld [vmem:[%s41 + $0x24] sm:$0xf]
    %v4602 = vld [vmem:[%s41 + $0x28] sm:$0xf]
    %v4603 = vld [vmem:[%s41 + $0x2c] sm:$0xf]
    %v4604 = vld [vmem:[%s41 + $0x30] sm:$0xf]
    %v4605 = vld [vmem:[%s41 + $0x34] sm:$0xf]
    %v4606 = vld [vmem:[%s41 + $0x38] sm:$0xf]
    %v4607 = vld [vmem:[%s41 + $0x3c] sm:$0xf]
    %v4608 = vld [vmem:[%s41 + $0x40] sm:$0xf]
    %v4609 = vld [vmem:[%s41 + $0x44] sm:$0xf]
    %v4610 = vld [vmem:[%s41 + $0x48] sm:$0xf]
    %v4611 = vld [vmem:[%s41 + $0x4c] sm:$0xf]
    %v4612 = vld [vmem:[%s41 + $0x50] sm:$0xf]
    %v4613 = vld [vmem:[%s41 + $0x54] sm:$0xf]
    %v4614 = vld [vmem:[%s41 + $0x58] sm:$0xf]
    %v4615 = vld [vmem:[%s41 + $0x5c] sm:$0xf]
    %v4616 = vld [vmem:[%s41 + $0x60] sm:$0xf]
    %v4617 = vld [vmem:[%s41 + $0x64] sm:$0xf]
    %v4618 = vld [vmem:[%s41 + $0x68] sm:$0xf]
    %v4619 = vld [vmem:[%s41 + $0x6c] sm:$0xf]
    %v4620 = vld [vmem:[%s41 + $0x70] sm:$0xf]
    %v4621 = vld [vmem:[%s41 + $0x74] sm:$0xf]
    %v4622 = vld [vmem:[%s41 + $0x78] sm:$0xf]
    %v4623 = vld [vmem:[%s41 + $0x7c] sm:$0xf]
    %v4624 = vunpack.c.l.bf16 %v4592
    %v4625 = vunpack.c.l.bf16 %v4593
    %v4626 = vunpack.c.l.bf16 %v4594
    %v4627 = vunpack.c.l.bf16 %v4595
    %v4628 = vunpack.c.l.bf16 %v4596
    %v4629 = vunpack.c.l.bf16 %v4597
    %v4630 = vunpack.c.l.bf16 %v4598
    %v4631 = vunpack.c.l.bf16 %v4599
    %v4632 = vunpack.c.l.bf16 %v4600
    %v4633 = vunpack.c.l.bf16 %v4601
    %v4634 = vunpack.c.l.bf16 %v4602
    %v4635 = vunpack.c.l.bf16 %v4603
    %v4636 = vunpack.c.l.bf16 %v4604
    %v4637 = vunpack.c.l.bf16 %v4605
    %v4638 = vunpack.c.l.bf16 %v4606
    %v4639 = vunpack.c.l.bf16 %v4607
    %v4640 = vunpack.c.l.bf16 %v4608
    %v4641 = vunpack.c.l.bf16 %v4609
    %v4642 = vunpack.c.l.bf16 %v4610
    %v4643 = vunpack.c.l.bf16 %v4611
    %v4644 = vunpack.c.l.bf16 %v4612
    %v4645 = vunpack.c.l.bf16 %v4613
    %v4646 = vunpack.c.l.bf16 %v4614
    %v4647 = vunpack.c.l.bf16 %v4615
    %v4648 = vunpack.c.l.bf16 %v4616
    %v4649 = vunpack.c.l.bf16 %v4617
    %v4650 = vunpack.c.l.bf16 %v4618
    %v4651 = vunpack.c.l.bf16 %v4619
    %v4652 = vunpack.c.l.bf16 %v4620
    %v4653 = vunpack.c.l.bf16 %v4621
    %v4654 = vunpack.c.l.bf16 %v4622
    %v4655 = vunpack.c.l.bf16 %v4623
    %4656 = vmatprep.subr.mxu0 0.0
    %4657 = vmatpush1.msra.mxu0 %v4624
    %4658 = vmatprep.subr.mxu0 0.0
    %4659 = vmatpush1.msra.mxu0 %v4625
    %4660 = vmatprep.subr.mxu0 0.0
    %4661 = vmatpush1.msra.mxu0 %v4626
    %4662 = vmatprep.subr.mxu0 0.0
    %4663 = vmatpush1.msra.mxu0 %v4627
    %4664 = vmatprep.subr.mxu0 0.0
    %4665 = vmatpush1.msra.mxu0 %v4628
    %4666 = vmatprep.subr.mxu0 0.0
    %4667 = vmatpush1.msra.mxu0 %v4629
    %4668 = vmatprep.subr.mxu0 0.0
    %4669 = vmatpush1.msra.mxu0 %v4630
    %4670 = vmatprep.subr.mxu0 0.0
    %4671 = vmatpush1.msra.mxu0 %v4631
    %4672 = vmatprep.subr.mxu0 0.0
    %4673 = vmatpush1.msra.mxu0 %v4632
    %4674 = vmatprep.subr.mxu0 0.0
    %4675 = vmatpush1.msra.mxu0 %v4633
    %4676 = vmatprep.subr.mxu0 0.0
    %4677 = vmatpush1.msra.mxu0 %v4634
    %4678 = vmatprep.subr.mxu0 0.0
    %4679 = vmatpush1.msra.mxu0 %v4635
    %4680 = vmatprep.subr.mxu0 0.0
    %4681 = vmatpush1.msra.mxu0 %v4636
    %4682 = vmatprep.subr.mxu0 0.0
    %4683 = vmatpush1.msra.mxu0 %v4637
    %4684 = vmatprep.subr.mxu0 0.0
    %4685 = vmatpush1.msra.mxu0 %v4638
    %4686 = vmatprep.subr.mxu0 0.0
    %4687 = vmatpush1.msra.mxu0 %v4639
    %4688 = vmatprep.subr.mxu0 0.0
    %4689 = vmatpush1.msra.mxu0 %v4640
    %4690 = vmatprep.subr.mxu0 0.0
    %4691 = vmatpush1.msra.mxu0 %v4641
    %4692 = vmatprep.subr.mxu0 0.0
    %4693 = vmatpush1.msra.mxu0 %v4642
    %4694 = vmatprep.subr.mxu0 0.0
    %4695 = vmatpush1.msra.mxu0 %v4643
    %4696 = vmatprep.subr.mxu0 0.0
    %4697 = vmatpush1.msra.mxu0 %v4644
    %4698 = vmatprep.subr.mxu0 0.0
    %4699 = vmatpush1.msra.mxu0 %v4645
    %4700 = vmatprep.subr.mxu0 0.0
    %4701 = vmatpush1.msra.mxu0 %v4646
    %4702 = vmatprep.subr.mxu0 0.0
    %4703 = vmatpush1.msra.mxu0 %v4647
    %4704 = vmatprep.subr.mxu0 0.0
    %4705 = vmatpush1.msra.mxu0 %v4648
    %4706 = vmatprep.subr.mxu0 0.0
    %4707 = vmatpush1.msra.mxu0 %v4649
    %4708 = vmatprep.subr.mxu0 0.0
    %4709 = vmatpush1.msra.mxu0 %v4650
    %4710 = vmatprep.subr.mxu0 0.0
    %4711 = vmatpush1.msra.mxu0 %v4651
    %4712 = vmatprep.subr.mxu0 0.0
    %4713 = vmatpush1.msra.mxu0 %v4652
    %4714 = vmatprep.subr.mxu0 0.0
    %4715 = vmatpush1.msra.mxu0 %v4653
    %4716 = vmatprep.subr.mxu0 0.0
    %4717 = vmatpush1.msra.mxu0 %v4654
    %4718 = vmatprep.subr.mxu0 0.0
    %4719 = vmatpush1.msra.mxu0 %v4655
    %4720 = vmatprep.mubr.f32.mxu0 %v4591
    %4721 = vmatmul.mubr.f32.gmra.mrb[0].mxu0 %v4590
    %v4722 = vpop.f32.mrb[0].mxu0
    %v4723 = vadd.f32 0.0, %v4722
    %v4724 = vpop.f32.mrb[0].mxu0
    %4725 = vdwg.mxu0
    %v4726 = vmul.f32 %v4723, 0.00048828125
    %v4727 = vmul.f32 %v4726, %v4726
    %v4729 = vrot.slane %v4727, 7
    %v4731 = vsub.f32 %v4726, %v4729
    %v4732 = vadd.f32 %v4731, 1e-05
    %v4733 = vrsqrt.pop %v4732
    %v4734 = vld [vmem:[%s45] sm:$0x1]
    %v4736 = vlaneseq
    %v4737 = vshrl.u32 %v4736, 7
    %v4738 = vsub.s32 0, %v4737
    %v4739 = vrot.slane %v4734, %v4738
    %v4741 = vmul.f32 %v4733, %v4739
    %v4742 = vld [vmem:[%s47] sm:$0x1]
    %v4744 = vrot.slane %v4741, 1
    %v4746 = vmul.f32 %v4726, %v4744
    %v4747 = vsub.f32 %v4742, %v4746
    %v4749 = vlaneseq
    %v4750 = vshrl.u32 %v4749, 7
    %v4751 = vsub.s32 0, %v4750
    %v4752 = vrot.slane %v4747, %v4751
    %v4754 = vsel %vm474, %v4744, %v4752
    %v4755 = vld [vmem:[%s43] sm:$0xff]
    %v4756 = vunpack.c.l.bf16 %v4755
    %v4757 = vunpack.c.h.bf16 %v4755
    %v4759 = vsel %vm229, %v4754, 0
    %4761 = vmatprep.subr.mxu0 %v4757
    %4762 = vmatpush1.msra.mxu0 %v4756
    %4763 = vmatprep.subr.mxu0 0.0
    %4764 = vmatpush1.msra.mxu0 0.0
    %4765 = vmatprep.subr.mxu0 0.0
    %4766 = vmatpush1.msra.mxu0 0.0
    %4767 = vmatprep.subr.mxu0 0.0
    %4768 = vmatpush1.msra.mxu0 0.0
    %4769 = vmatprep.subr.mxu0 0.0
    %4770 = vmatpush1.msra.mxu0 0.0
    %4771 = vmatprep.subr.mxu0 0.0
    %4772 = vmatpush1.msra.mxu0 0.0
    %4773 = vmatprep.subr.mxu0 0.0
    %4774 = vmatpush1.msra.mxu0 0.0
    %4775 = vmatprep.subr.mxu0 0.0
    %4776 = vmatpush1.msra.mxu0 0.0
    %4777 = vmatprep.subr.mxu0 0.0
    %4778 = vmatpush1.msra.mxu0 0.0
    %4779 = vmatprep.subr.mxu0 0.0
    %4780 = vmatpush1.msra.mxu0 0.0
    %4781 = vmatprep.subr.mxu0 0.0
    %4782 = vmatpush1.msra.mxu0 0.0
    %4783 = vmatprep.subr.mxu0 0.0
    %4784 = vmatpush1.msra.mxu0 0.0
    %4785 = vmatprep.subr.mxu0 0.0
    %4786 = vmatpush1.msra.mxu0 0.0
    %4787 = vmatprep.subr.mxu0 0.0
    %4788 = vmatpush1.msra.mxu0 0.0
    %4789 = vmatprep.subr.mxu0 0.0
    %4790 = vmatpush1.msra.mxu0 0.0
    %4791 = vmatprep.subr.mxu0 0.0
    %4792 = vmatpush1.msra.mxu0 0.0
    %4793 = vmatprep.subr.mxu0 0.0
    %4794 = vmatpush1.msra.mxu0 0.0
    %4795 = vmatprep.subr.mxu0 0.0
    %4796 = vmatpush1.msra.mxu0 0.0
    %4797 = vmatprep.subr.mxu0 0.0
    %4798 = vmatpush1.msra.mxu0 0.0
    %4799 = vmatprep.subr.mxu0 0.0
    %4800 = vmatpush1.msra.mxu0 0.0
    %4801 = vmatprep.subr.mxu0 0.0
    %4802 = vmatpush1.msra.mxu0 0.0
    %4803 = vmatprep.subr.mxu0 0.0
    %4804 = vmatpush1.msra.mxu0 0.0
    %4805 = vmatprep.subr.mxu0 0.0
    %4806 = vmatpush1.msra.mxu0 0.0
    %4807 = vmatprep.subr.mxu0 0.0
    %4808 = vmatpush1.msra.mxu0 0.0
    %4809 = vmatprep.subr.mxu0 0.0
    %4810 = vmatpush1.msra.mxu0 0.0
    %4811 = vmatprep.subr.mxu0 0.0
    %4812 = vmatpush1.msra.mxu0 0.0
    %4813 = vmatprep.subr.mxu0 0.0
    %4814 = vmatpush1.msra.mxu0 0.0
    %4815 = vmatprep.subr.mxu0 0.0
    %4816 = vmatpush1.msra.mxu0 0.0
    %4817 = vmatprep.subr.mxu0 0.0
    %4818 = vmatpush1.msra.mxu0 0.0
    %4819 = vmatprep.subr.mxu0 0.0
    %4820 = vmatpush1.msra.mxu0 0.0
    %4821 = vmatprep.subr.mxu0 0.0
    %4822 = vmatpush1.msra.mxu0 0.0
    %4823 = vmatprep.subr.mxu0 0.0
    %4824 = vmatpush1.msra.mxu0 0.0
    %4825 = vmatprep.mubr.f32.mxu0 0.0
    %4826 = vmatmul.mubr.f32.gmra.mrb[0].mxu0 %v4759
    %v4827 = vpop.f32.mrb[0].mxu0
    %v4828 = vadd.f32 0.0, %v4827
    %v4829 = vpop.f32.mrb[0].mxu0
    %v4830 = vadd.f32 0.0, %v4829
    %4831 = vdwg.mxu0
    %v4832 = vlaneseq
    %v4833 = vshrl.u32 %v4832, 7
    %v4834 = vsub.s32 0, %v4833
    %v4835 = vrot.slane %v4828, %v4834
    %v4836 = vlaneseq
    %v4837 = vshrl.u32 %v4836, 7
    %v4838 = vsub.s32 0, %v4837
    %v4839 = vrot.slane %v4830, %v4838
    %v4840 = vmul.f32 %v4484, %v4835
    %v4841 = vmul.f32 %v4486, %v4839
    %v4842 = vmul.f32 %v4488, %v4835
    %v4843 = vmul.f32 %v4490, %v4839
    %v4844 = vmul.f32 %v4494, %v4835
    %v4845 = vmul.f32 %v4496, %v4839
    %v4846 = vmul.f32 %v4498, %v4835
    %v4847 = vmul.f32 %v4500, %v4839
    %v4848 = vmul.f32 %v4504, %v4835
    %v4849 = vmul.f32 %v4506, %v4839
    %v4850 = vmul.f32 %v4508, %v4835
    %v4851 = vmul.f32 %v4510, %v4839
    %v4852 = vmul.f32 %v4514, %v4835
    %v4853 = vmul.f32 %v4516, %v4839
    %v4854 = vmul.f32 %v4518, %v4835
    %v4855 = vmul.f32 %v4520, %v4839
    %v4856 = vlaneseq
    %v4857 = vshrl.u32 %v4856, 7
    %v4858 = vsub.s32 1, %v4857
    %v4859 = vrot.slane %v4828, %v4858
    %v4860 = vlaneseq
    %v4861 = vshrl.u32 %v4860, 7
    %v4862 = vsub.s32 1, %v4861
    %v4863 = vrot.slane %v4830, %v4862
    %v4864 = vadd.f32 %v4840, %v4859
    %v4865 = vadd.f32 %v4841, %v4863
    %v4866 = vadd.f32 %v4842, %v4859
    %v4867 = vadd.f32 %v4843, %v4863
    %v4868 = vadd.f32 %v4844, %v4859
    %v4869 = vadd.f32 %v4845, %v4863
    %v4870 = vadd.f32 %v4846, %v4859
    %v4871 = vadd.f32 %v4847, %v4863
    %v4872 = vadd.f32 %v4848, %v4859
    %v4873 = vadd.f32 %v4849, %v4863
    %v4874 = vadd.f32 %v4850, %v4859
    %v4875 = vadd.f32 %v4851, %v4863
    %v4876 = vadd.f32 %v4852, %v4859
    %v4877 = vadd.f32 %v4853, %v4863
    %v4878 = vadd.f32 %v4854, %v4859
    %v4879 = vadd.f32 %v4855, %v4863
    %v4880 = vmax.f32 %v4864, 0.0
    %v4881 = vmax.f32 %v4865, 0.0
    %v4882 = vmax.f32 %v4866, 0.0
    %v4883 = vmax.f32 %v4867, 0.0
    %v4884 = vmax.f32 %v4868, 0.0
    %v4885 = vmax.f32 %v4869, 0.0
    %v4886 = vmax.f32 %v4870, 0.0
    %v4887 = vmax.f32 %v4871, 0.0
    %v4888 = vmax.f32 %v4872, 0.0
    %v4889 = vmax.f32 %v4873, 0.0
    %v4890 = vmax.f32 %v4874, 0.0
    %v4891 = vmax.f32 %v4875, 0.0
    %v4892 = vmax.f32 %v4876, 0.0
    %v4893 = vmax.f32 %v4877, 0.0
    %v4894 = vmax.f32 %v4878, 0.0
    %v4895 = vmax.f32 %v4879, 0.0
    %v4896 = vpack.c.bf16 %v4882, %v4880
    %v4897 = vpack.c.bf16 %v4883, %v4881
    %v4898 = vpack.c.bf16 %v4886, %v4884
    %v4899 = vpack.c.bf16 %v4887, %v4885
    %v4900 = vpack.c.bf16 %v4890, %v4888
    %v4901 = vpack.c.bf16 %v4891, %v4889
    %v4902 = vpack.c.bf16 %v4894, %v4892
    %v4903 = vpack.c.bf16 %v4895, %v4893
    %v4904 = vld [vmem:[#allocation7] sm:$0xff]
    %v4905 = vld [vmem:[#allocation7 + $0x8] sm:$0xff]
    %v4906 = vld [vmem:[#allocation7 + $0x10] sm:$0xff]
    %v4907 = vld [vmem:[#allocation7 + $0x18] sm:$0xff]
    %v4908 = vld [vmem:[#allocation7 + $0x20] sm:$0xff]
    %v4909 = vld [vmem:[#allocation7 + $0x28] sm:$0xff]
    %v4910 = vld [vmem:[#allocation7 + $0x30] sm:$0xff]
    %v4911 = vld [vmem:[#allocation7 + $0x38] sm:$0xff]
    %v4912 = vld [vmem:[#allocation7 + $0x40] sm:$0xff]
    %v4913 = vld [vmem:[#allocation7 + $0x48] sm:$0xff]
    %v4914 = vld [vmem:[#allocation7 + $0x50] sm:$0xff]
    %v4915 = vld [vmem:[#allocation7 + $0x58] sm:$0xff]
    %v4916 = vld [vmem:[#allocation7 + $0x60] sm:$0xff]
    %v4917 = vld [vmem:[#allocation7 + $0x68] sm:$0xff]
    %v4918 = vld [vmem:[#allocation7 + $0x70] sm:$0xff]
    %v4919 = vld [vmem:[#allocation7 + $0x78] sm:$0xff]
    %v4920 = vld [vmem:[#allocation7 + $0x80] sm:$0xff]
    %v4921 = vld [vmem:[#allocation7 + $0x88] sm:$0xff]
    %v4922 = vld [vmem:[#allocation7 + $0x90] sm:$0xff]
    %v4923 = vld [vmem:[#allocation7 + $0x98] sm:$0xff]
    %v4924 = vld [vmem:[#allocation7 + $0xa0] sm:$0xff]
    %v4925 = vld [vmem:[#allocation7 + $0xa8] sm:$0xff]
    %v4926 = vld [vmem:[#allocation7 + $0xb0] sm:$0xff]
    %v4927 = vld [vmem:[#allocation7 + $0xb8] sm:$0xff]
    %v4928 = vld [vmem:[#allocation7 + $0xc0] sm:$0xff]
    %v4929 = vld [vmem:[#allocation7 + $0xc8] sm:$0xff]
    %v4930 = vld [vmem:[#allocation7 + $0xd0] sm:$0xff]
    %v4931 = vld [vmem:[#allocation7 + $0xd8] sm:$0xff]
    %v4932 = vld [vmem:[#allocation7 + $0xe0] sm:$0xff]
    %v4933 = vld [vmem:[#allocation7 + $0xe8] sm:$0xff]
    %v4934 = vld [vmem:[#allocation7 + $0xf0] sm:$0xff]
    %v4935 = vld [vmem:[#allocation7 + $0xf8] sm:$0xff]
    %v4936 = vld [vmem:[#allocation7 + $0x100] sm:$0xff]
    %v4937 = vld [vmem:[#allocation7 + $0x108] sm:$0xff]
    %v4938 = vld [vmem:[#allocation7 + $0x110] sm:$0xff]
    %v4939 = vld [vmem:[#allocation7 + $0x118] sm:$0xff]
    %v4940 = vld [vmem:[#allocation7 + $0x120] sm:$0xff]
    %v4941 = vld [vmem:[#allocation7 + $0x128] sm:$0xff]
    %v4942 = vld [vmem:[#allocation7 + $0x130] sm:$0xff]
    %v4943 = vld [vmem:[#allocation7 + $0x138] sm:$0xff]
    %v4944 = vld [vmem:[#allocation7 + $0x140] sm:$0xff]
    %v4945 = vld [vmem:[#allocation7 + $0x148] sm:$0xff]
    %v4946 = vld [vmem:[#allocation7 + $0x150] sm:$0xff]
    %v4947 = vld [vmem:[#allocation7 + $0x158] sm:$0xff]
    %v4948 = vld [vmem:[#allocation7 + $0x160] sm:$0xff]
    %v4949 = vld [vmem:[#allocation7 + $0x168] sm:$0xff]
    %v4950 = vld [vmem:[#allocation7 + $0x170] sm:$0xff]
    %v4951 = vld [vmem:[#allocation7 + $0x178] sm:$0xff]
    %v4952 = vld [vmem:[#allocation7 + $0x180] sm:$0xff]
    %v4953 = vld [vmem:[#allocation7 + $0x188] sm:$0xff]
    %v4954 = vld [vmem:[#allocation7 + $0x190] sm:$0xff]
    %v4955 = vld [vmem:[#allocation7 + $0x198] sm:$0xff]
    %v4956 = vld [vmem:[#allocation7 + $0x1a0] sm:$0xff]
    %v4957 = vld [vmem:[#allocation7 + $0x1a8] sm:$0xff]
    %v4958 = vld [vmem:[#allocation7 + $0x1b0] sm:$0xff]
    %v4959 = vld [vmem:[#allocation7 + $0x1b8] sm:$0xff]
    %v4960 = vld [vmem:[#allocation7 + $0x1c0] sm:$0xff]
    %v4961 = vld [vmem:[#allocation7 + $0x1c8] sm:$0xff]
    %v4962 = vld [vmem:[#allocation7 + $0x1d0] sm:$0xff]
    %v4963 = vld [vmem:[#allocation7 + $0x1d8] sm:$0xff]
    %v4964 = vld [vmem:[#allocation7 + $0x1e0] sm:$0xff]
    %v4965 = vld [vmem:[#allocation7 + $0x1e8] sm:$0xff]
    %v4966 = vld [vmem:[#allocation7 + $0x1f0] sm:$0xff]
    %v4967 = vld [vmem:[#allocation7 + $0x1f8] sm:$0xff]
    %v4968 = vld [vmem:[#allocation7 + $0x200] sm:$0xff]
    %v4969 = vld [vmem:[#allocation7 + $0x208] sm:$0xff]
    %v4970 = vld [vmem:[#allocation7 + $0x210] sm:$0xff]
    %v4971 = vld [vmem:[#allocation7 + $0x218] sm:$0xff]
    %v4972 = vld [vmem:[#allocation7 + $0x220] sm:$0xff]
    %v4973 = vld [vmem:[#allocation7 + $0x228] sm:$0xff]
    %v4974 = vld [vmem:[#allocation7 + $0x230] sm:$0xff]
    %v4975 = vld [vmem:[#allocation7 + $0x238] sm:$0xff]
    %v4976 = vld [vmem:[#allocation7 + $0x240] sm:$0xff]
    %v4977 = vld [vmem:[#allocation7 + $0x248] sm:$0xff]
    %v4978 = vld [vmem:[#allocation7 + $0x250] sm:$0xff]
    %v4979 = vld [vmem:[#allocation7 + $0x258] sm:$0xff]
    %v4980 = vld [vmem:[#allocation7 + $0x260] sm:$0xff]
    %v4981 = vld [vmem:[#allocation7 + $0x268] sm:$0xff]
    %v4982 = vld [vmem:[#allocation7 + $0x270] sm:$0xff]
    %v4983 = vld [vmem:[#allocation7 + $0x278] sm:$0xff]
    %v4984 = vld [vmem:[#allocation7 + $0x280] sm:$0xff]
    %v4985 = vld [vmem:[#allocation7 + $0x288] sm:$0xff]
    %v4986 = vld [vmem:[#allocation7 + $0x290] sm:$0xff]
    %v4987 = vld [vmem:[#allocation7 + $0x298] sm:$0xff]
    %v4988 = vld [vmem:[#allocation7 + $0x2a0] sm:$0xff]
    %v4989 = vld [vmem:[#allocation7 + $0x2a8] sm:$0xff]
    %v4990 = vld [vmem:[#allocation7 + $0x2b0] sm:$0xff]
    %v4991 = vld [vmem:[#allocation7 + $0x2b8] sm:$0xff]
    %v4992 = vld [vmem:[#allocation7 + $0x2c0] sm:$0xff]
    %v4993 = vld [vmem:[#allocation7 + $0x2c8] sm:$0xff]
    %v4994 = vld [vmem:[#allocation7 + $0x2d0] sm:$0xff]
    %v4995 = vld [vmem:[#allocation7 + $0x2d8] sm:$0xff]
    %v4996 = vld [vmem:[#allocation7 + $0x2e0] sm:$0xff]
    %v4997 = vld [vmem:[#allocation7 + $0x2e8] sm:$0xff]
    %v4998 = vld [vmem:[#allocation7 + $0x2f0] sm:$0xff]
    %v4999 = vld [vmem:[#allocation7 + $0x2f8] sm:$0xff]
    %v5000 = vld [vmem:[#allocation7 + $0x300] sm:$0xff]
    %v5001 = vld [vmem:[#allocation7 + $0x308] sm:$0xff]
    %v5002 = vld [vmem:[#allocation7 + $0x310] sm:$0xff]
    %v5003 = vld [vmem:[#allocation7 + $0x318] sm:$0xff]
    %v5004 = vld [vmem:[#allocation7 + $0x320] sm:$0xff]
    %v5005 = vld [vmem:[#allocation7 + $0x328] sm:$0xff]
    %v5006 = vld [vmem:[#allocation7 + $0x330] sm:$0xff]
    %v5007 = vld [vmem:[#allocation7 + $0x338] sm:$0xff]
    %v5008 = vld [vmem:[#allocation7 + $0x340] sm:$0xff]
    %v5009 = vld [vmem:[#allocation7 + $0x348] sm:$0xff]
    %v5010 = vld [vmem:[#allocation7 + $0x350] sm:$0xff]
    %v5011 = vld [vmem:[#allocation7 + $0x358] sm:$0xff]
    %v5012 = vld [vmem:[#allocation7 + $0x360] sm:$0xff]
    %v5013 = vld [vmem:[#allocation7 + $0x368] sm:$0xff]
    %v5014 = vld [vmem:[#allocation7 + $0x370] sm:$0xff]
    %v5015 = vld [vmem:[#allocation7 + $0x378] sm:$0xff]
    %v5016 = vld [vmem:[#allocation7 + $0x380] sm:$0xff]
    %v5017 = vld [vmem:[#allocation7 + $0x388] sm:$0xff]
    %v5018 = vld [vmem:[#allocation7 + $0x390] sm:$0xff]
    %v5019 = vld [vmem:[#allocation7 + $0x398] sm:$0xff]
    %v5020 = vld [vmem:[#allocation7 + $0x3a0] sm:$0xff]
    %v5021 = vld [vmem:[#allocation7 + $0x3a8] sm:$0xff]
    %v5022 = vld [vmem:[#allocation7 + $0x3b0] sm:$0xff]
    %v5023 = vld [vmem:[#allocation7 + $0x3b8] sm:$0xff]
    %v5024 = vld [vmem:[#allocation7 + $0x3c0] sm:$0xff]
    %v5025 = vld [vmem:[#allocation7 + $0x3c8] sm:$0xff]
    %v5026 = vld [vmem:[#allocation7 + $0x3d0] sm:$0xff]
    %v5027 = vld [vmem:[#allocation7 + $0x3d8] sm:$0xff]
    %v5028 = vld [vmem:[#allocation7 + $0x3e0] sm:$0xff]
    %v5029 = vld [vmem:[#allocation7 + $0x3e8] sm:$0xff]
    %v5030 = vld [vmem:[#allocation7 + $0x3f0] sm:$0xff]
    %v5031 = vld [vmem:[#allocation7 + $0x3f8] sm:$0xff]
    %v5160 = vunpack.c.l.b16 %v4904
    %v5161 = vunpack.c.h.b16 %v4904
    %v5162 = vunpack.c.l.b16 %v4905
    %v5163 = vunpack.c.h.b16 %v4905
    %v5164 = vunpack.c.l.b16 %v4906
    %v5165 = vunpack.c.h.b16 %v4906
    %v5166 = vunpack.c.l.b16 %v4907
    %v5167 = vunpack.c.h.b16 %v4907
    %v5168 = vunpack.c.l.b16 %v4908
    %v5169 = vunpack.c.h.b16 %v4908
    %v5170 = vunpack.c.l.b16 %v4909
    %v5171 = vunpack.c.h.b16 %v4909
    %v5172 = vunpack.c.l.b16 %v4910
    %v5173 = vunpack.c.h.b16 %v4910
    %v5174 = vunpack.c.l.b16 %v4911
    %v5175 = vunpack.c.h.b16 %v4911
    %v5176 = vunpack.c.l.b16 %v4912
    %v5177 = vunpack.c.h.b16 %v4912
    %v5178 = vunpack.c.l.b16 %v4913
    %v5179 = vunpack.c.h.b16 %v4913
    %v5180 = vunpack.c.l.b16 %v4914
    %v5181 = vunpack.c.h.b16 %v4914
    %v5182 = vunpack.c.l.b16 %v4915
    %v5183 = vunpack.c.h.b16 %v4915
    %v5184 = vunpack.c.l.b16 %v4916
    %v5185 = vunpack.c.h.b16 %v4916
    %v5186 = vunpack.c.l.b16 %v4917
    %v5187 = vunpack.c.h.b16 %v4917
    %v5188 = vunpack.c.l.b16 %v4918
    %v5189 = vunpack.c.h.b16 %v4918
    %v5190 = vunpack.c.l.b16 %v4919
    %v5191 = vunpack.c.h.b16 %v4919
    %v5192 = vunpack.c.l.b16 %v4920
    %v5193 = vunpack.c.h.b16 %v4920
    %v5194 = vunpack.c.l.b16 %v4921
    %v5195 = vunpack.c.h.b16 %v4921
    %v5196 = vunpack.c.l.b16 %v4922
    %v5197 = vunpack.c.h.b16 %v4922
    %v5198 = vunpack.c.l.b16 %v4923
    %v5199 = vunpack.c.h.b16 %v4923
    %v5200 = vunpack.c.l.b16 %v4924
    %v5201 = vunpack.c.h.b16 %v4924
    %v5202 = vunpack.c.l.b16 %v4925
    %v5203 = vunpack.c.h.b16 %v4925
    %v5204 = vunpack.c.l.b16 %v4926
    %v5205 = vunpack.c.h.b16 %v4926
    %v5206 = vunpack.c.l.b16 %v4927
    %v5207 = vunpack.c.h.b16 %v4927
    %v5208 = vunpack.c.l.b16 %v4928
    %v5209 = vunpack.c.h.b16 %v4928
    %v5210 = vunpack.c.l.b16 %v4929
    %v5211 = vunpack.c.h.b16 %v4929
    %v5212 = vunpack.c.l.b16 %v4930
    %v5213 = vunpack.c.h.b16 %v4930
    %v5214 = vunpack.c.l.b16 %v4931
    %v5215 = vunpack.c.h.b16 %v4931
    %v5216 = vunpack.c.l.b16 %v4932
    %v5217 = vunpack.c.h.b16 %v4932
    %v5218 = vunpack.c.l.b16 %v4933
    %v5219 = vunpack.c.h.b16 %v4933
    %v5220 = vunpack.c.l.b16 %v4934
    %v5221 = vunpack.c.h.b16 %v4934
    %v5222 = vunpack.c.l.b16 %v4935
    %v5223 = vunpack.c.h.b16 %v4935
    %v5224 = vunpack.c.l.b16 %v4936
    %v5225 = vunpack.c.h.b16 %v4936
    %v5226 = vunpack.c.l.b16 %v4937
    %v5227 = vunpack.c.h.b16 %v4937
    %v5228 = vunpack.c.l.b16 %v4938
    %v5229 = vunpack.c.h.b16 %v4938
    %v5230 = vunpack.c.l.b16 %v4939
    %v5231 = vunpack.c.h.b16 %v4939
    %v5232 = vunpack.c.l.b16 %v4940
    %v5233 = vunpack.c.h.b16 %v4940
    %v5234 = vunpack.c.l.b16 %v4941
    %v5235 = vunpack.c.h.b16 %v4941
    %v5236 = vunpack.c.l.b16 %v4942
    %v5237 = vunpack.c.h.b16 %v4942
    %v5238 = vunpack.c.l.b16 %v4943
    %v5239 = vunpack.c.h.b16 %v4943
    %v5240 = vunpack.c.l.b16 %v4944
    %v5241 = vunpack.c.h.b16 %v4944
    %v5242 = vunpack.c.l.b16 %v4945
    %v5243 = vunpack.c.h.b16 %v4945
    %v5244 = vunpack.c.l.b16 %v4946
    %v5245 = vunpack.c.h.b16 %v4946
    %v5246 = vunpack.c.l.b16 %v4947
    %v5247 = vunpack.c.h.b16 %v4947
    %v5248 = vunpack.c.l.b16 %v4948
    %v5249 = vunpack.c.h.b16 %v4948
    %v5250 = vunpack.c.l.b16 %v4949
    %v5251 = vunpack.c.h.b16 %v4949
    %v5252 = vunpack.c.l.b16 %v4950
    %v5253 = vunpack.c.h.b16 %v4950
    %v5254 = vunpack.c.l.b16 %v4951
    %v5255 = vunpack.c.h.b16 %v4951
    %v5256 = vunpack.c.l.b16 %v4952
    %v5257 = vunpack.c.h.b16 %v4952
    %v5258 = vunpack.c.l.b16 %v4953
    %v5259 = vunpack.c.h.b16 %v4953
    %v5260 = vunpack.c.l.b16 %v4954
    %v5261 = vunpack.c.h.b16 %v4954
    %v5262 = vunpack.c.l.b16 %v4955
    %v5263 = vunpack.c.h.b16 %v4955
    %v5264 = vunpack.c.l.b16 %v4956
    %v5265 = vunpack.c.h.b16 %v4956
    %v5266 = vunpack.c.l.b16 %v4957
    %v5267 = vunpack.c.h.b16 %v4957
    %v5268 = vunpack.c.l.b16 %v4958
    %v5269 = vunpack.c.h.b16 %v4958
    %v5270 = vunpack.c.l.b16 %v4959
    %v5271 = vunpack.c.h.b16 %v4959
    %v5272 = vunpack.c.l.b16 %v4960
    %v5273 = vunpack.c.h.b16 %v4960
    %v5274 = vunpack.c.l.b16 %v4961
    %v5275 = vunpack.c.h.b16 %v4961
    %v5276 = vunpack.c.l.b16 %v4962
    %v5277 = vunpack.c.h.b16 %v4962
    %v5278 = vunpack.c.l.b16 %v4963
    %v5279 = vunpack.c.h.b16 %v4963
    %v5280 = vunpack.c.l.b16 %v4964
    %v5281 = vunpack.c.h.b16 %v4964
    %v5282 = vunpack.c.l.b16 %v4965
    %v5283 = vunpack.c.h.b16 %v4965
    %v5284 = vunpack.c.l.b16 %v4966
    %v5285 = vunpack.c.h.b16 %v4966
    %v5286 = vunpack.c.l.b16 %v4967
    %v5287 = vunpack.c.h.b16 %v4967
    %v5288 = vunpack.c.l.b16 %v4968
    %v5289 = vunpack.c.h.b16 %v4968
    %v5290 = vunpack.c.l.b16 %v4969
    %v5291 = vunpack.c.h.b16 %v4969
    %v5292 = vunpack.c.l.b16 %v4970
    %v5293 = vunpack.c.h.b16 %v4970
    %v5294 = vunpack.c.l.b16 %v4971
    %v5295 = vunpack.c.h.b16 %v4971
    %v5296 = vunpack.c.l.b16 %v4972
    %v5297 = vunpack.c.h.b16 %v4972
    %v5298 = vunpack.c.l.b16 %v4973
    %v5299 = vunpack.c.h.b16 %v4973
    %v5300 = vunpack.c.l.b16 %v4974
    %v5301 = vunpack.c.h.b16 %v4974
    %v5302 = vunpack.c.l.b16 %v4975
    %v5303 = vunpack.c.h.b16 %v4975
    %v5304 = vunpack.c.l.b16 %v4976
    %v5305 = vunpack.c.h.b16 %v4976
    %v5306 = vunpack.c.l.b16 %v4977
    %v5307 = vunpack.c.h.b16 %v4977
    %v5308 = vunpack.c.l.b16 %v4978
    %v5309 = vunpack.c.h.b16 %v4978
    %v5310 = vunpack.c.l.b16 %v4979
    %v5311 = vunpack.c.h.b16 %v4979
    %v5312 = vunpack.c.l.b16 %v4980
    %v5313 = vunpack.c.h.b16 %v4980
    %v5314 = vunpack.c.l.b16 %v4981
    %v5315 = vunpack.c.h.b16 %v4981
    %v5316 = vunpack.c.l.b16 %v4982
    %v5317 = vunpack.c.h.b16 %v4982
    %v5318 = vunpack.c.l.b16 %v4983
    %v5319 = vunpack.c.h.b16 %v4983
    %v5320 = vunpack.c.l.b16 %v4984
    %v5321 = vunpack.c.h.b16 %v4984
    %v5322 = vunpack.c.l.b16 %v4985
    %v5323 = vunpack.c.h.b16 %v4985
    %v5324 = vunpack.c.l.b16 %v4986
    %v5325 = vunpack.c.h.b16 %v4986
    %v5326 = vunpack.c.l.b16 %v4987
    %v5327 = vunpack.c.h.b16 %v4987
    %v5328 = vunpack.c.l.b16 %v4988
    %v5329 = vunpack.c.h.b16 %v4988
    %v5330 = vunpack.c.l.b16 %v4989
    %v5331 = vunpack.c.h.b16 %v4989
    %v5332 = vunpack.c.l.b16 %v4990
    %v5333 = vunpack.c.h.b16 %v4990
    %v5334 = vunpack.c.l.b16 %v4991
    %v5335 = vunpack.c.h.b16 %v4991
    %v5336 = vunpack.c.l.b16 %v4992
    %v5337 = vunpack.c.h.b16 %v4992
    %v5338 = vunpack.c.l.b16 %v4993
    %v5339 = vunpack.c.h.b16 %v4993
    %v5340 = vunpack.c.l.b16 %v4994
    %v5341 = vunpack.c.h.b16 %v4994
    %v5342 = vunpack.c.l.b16 %v4995
    %v5343 = vunpack.c.h.b16 %v4995
    %v5344 = vunpack.c.l.b16 %v4996
    %v5345 = vunpack.c.h.b16 %v4996
    %v5346 = vunpack.c.l.b16 %v4997
    %v5347 = vunpack.c.h.b16 %v4997
    %v5348 = vunpack.c.l.b16 %v4998
    %v5349 = vunpack.c.h.b16 %v4998
    %v5350 = vunpack.c.l.b16 %v4999
    %v5351 = vunpack.c.h.b16 %v4999
    %v5352 = vunpack.c.l.b16 %v5000
    %v5353 = vunpack.c.h.b16 %v5000
    %v5354 = vunpack.c.l.b16 %v5001
    %v5355 = vunpack.c.h.b16 %v5001
    %v5356 = vunpack.c.l.b16 %v5002
    %v5357 = vunpack.c.h.b16 %v5002
    %v5358 = vunpack.c.l.b16 %v5003
    %v5359 = vunpack.c.h.b16 %v5003
    %v5360 = vunpack.c.l.b16 %v5004
    %v5361 = vunpack.c.h.b16 %v5004
    %v5362 = vunpack.c.l.b16 %v5005
    %v5363 = vunpack.c.h.b16 %v5005
    %v5364 = vunpack.c.l.b16 %v5006
    %v5365 = vunpack.c.h.b16 %v5006
    %v5366 = vunpack.c.l.b16 %v5007
    %v5367 = vunpack.c.h.b16 %v5007
    %v5368 = vunpack.c.l.b16 %v5008
    %v5369 = vunpack.c.h.b16 %v5008
    %v5370 = vunpack.c.l.b16 %v5009
    %v5371 = vunpack.c.h.b16 %v5009
    %v5372 = vunpack.c.l.b16 %v5010
    %v5373 = vunpack.c.h.b16 %v5010
    %v5374 = vunpack.c.l.b16 %v5011
    %v5375 = vunpack.c.h.b16 %v5011
    %v5376 = vunpack.c.l.b16 %v5012
    %v5377 = vunpack.c.h.b16 %v5012
    %v5378 = vunpack.c.l.b16 %v5013
    %v5379 = vunpack.c.h.b16 %v5013
    %v5380 = vunpack.c.l.b16 %v5014
    %v5381 = vunpack.c.h.b16 %v5014
    %v5382 = vunpack.c.l.b16 %v5015
    %v5383 = vunpack.c.h.b16 %v5015
    %v5384 = vunpack.c.l.b16 %v5016
    %v5385 = vunpack.c.h.b16 %v5016
    %v5386 = vunpack.c.l.b16 %v5017
    %v5387 = vunpack.c.h.b16 %v5017
    %v5388 = vunpack.c.l.b16 %v5018
    %v5389 = vunpack.c.h.b16 %v5018
    %v5390 = vunpack.c.l.b16 %v5019
    %v5391 = vunpack.c.h.b16 %v5019
    %v5392 = vunpack.c.l.b16 %v5020
    %v5393 = vunpack.c.h.b16 %v5020
    %v5394 = vunpack.c.l.b16 %v5021
    %v5395 = vunpack.c.h.b16 %v5021
    %v5396 = vunpack.c.l.b16 %v5022
    %v5397 = vunpack.c.h.b16 %v5022
    %v5398 = vunpack.c.l.b16 %v5023
    %v5399 = vunpack.c.h.b16 %v5023
    %v5400 = vunpack.c.l.b16 %v5024
    %v5401 = vunpack.c.h.b16 %v5024
    %v5402 = vunpack.c.l.b16 %v5025
    %v5403 = vunpack.c.h.b16 %v5025
    %v5404 = vunpack.c.l.b16 %v5026
    %v5405 = vunpack.c.h.b16 %v5026
    %v5406 = vunpack.c.l.b16 %v5027
    %v5407 = vunpack.c.h.b16 %v5027
    %v5408 = vunpack.c.l.b16 %v5028
    %v5409 = vunpack.c.h.b16 %v5028
    %v5410 = vunpack.c.l.b16 %v5029
    %v5411 = vunpack.c.h.b16 %v5029
    %v5412 = vunpack.c.l.b16 %v5030
    %v5413 = vunpack.c.h.b16 %v5030
    %v5414 = vunpack.c.l.b16 %v5031
    %v5415 = vunpack.c.h.b16 %v5031
    %v5416 = vpack.c.b16 %v5168, %v5160
    %v5417 = vpack.c.b16 %v5169, %v5161
    %v5418 = vpack.c.b16 %v5170, %v5162
    %v5419 = vpack.c.b16 %v5171, %v5163
    %v5420 = vpack.c.b16 %v5172, %v5164
    %v5421 = vpack.c.b16 %v5173, %v5165
    %v5422 = vpack.c.b16 %v5174, %v5166
    %v5423 = vpack.c.b16 %v5175, %v5167
    %v5424 = vpack.c.b16 %v5184, %v5176
    %v5425 = vpack.c.b16 %v5185, %v5177
    %v5426 = vpack.c.b16 %v5186, %v5178
    %v5427 = vpack.c.b16 %v5187, %v5179
    %v5428 = vpack.c.b16 %v5188, %v5180
    %v5429 = vpack.c.b16 %v5189, %v5181
    %v5430 = vpack.c.b16 %v5190, %v5182
    %v5431 = vpack.c.b16 %v5191, %v5183
    %v5432 = vpack.c.b16 %v5200, %v5192
    %v5433 = vpack.c.b16 %v5201, %v5193
    %v5434 = vpack.c.b16 %v5202, %v5194
    %v5435 = vpack.c.b16 %v5203, %v5195
    %v5436 = vpack.c.b16 %v5204, %v5196
    %v5437 = vpack.c.b16 %v5205, %v5197
    %v5438 = vpack.c.b16 %v5206, %v5198
    %v5439 = vpack.c.b16 %v5207, %v5199
    %v5440 = vpack.c.b16 %v5216, %v5208
    %v5441 = vpack.c.b16 %v5217, %v5209
    %v5442 = vpack.c.b16 %v5218, %v5210
    %v5443 = vpack.c.b16 %v5219, %v5211
    %v5444 = vpack.c.b16 %v5220, %v5212
    %v5445 = vpack.c.b16 %v5221, %v5213
    %v5446 = vpack.c.b16 %v5222, %v5214
    %v5447 = vpack.c.b16 %v5223, %v5215
    %v5448 = vpack.c.b16 %v5232, %v5224
    %v5449 = vpack.c.b16 %v5233, %v5225
    %v5450 = vpack.c.b16 %v5234, %v5226
    %v5451 = vpack.c.b16 %v5235, %v5227
    %v5452 = vpack.c.b16 %v5236, %v5228
    %v5453 = vpack.c.b16 %v5237, %v5229
    %v5454 = vpack.c.b16 %v5238, %v5230
    %v5455 = vpack.c.b16 %v5239, %v5231
    %v5456 = vpack.c.b16 %v5248, %v5240
    %v5457 = vpack.c.b16 %v5249, %v5241
    %v5458 = vpack.c.b16 %v5250, %v5242
    %v5459 = vpack.c.b16 %v5251, %v5243
    %v5460 = vpack.c.b16 %v5252, %v5244
    %v5461 = vpack.c.b16 %v5253, %v5245
    %v5462 = vpack.c.b16 %v5254, %v5246
    %v5463 = vpack.c.b16 %v5255, %v5247
    %v5464 = vpack.c.b16 %v5264, %v5256
    %v5465 = vpack.c.b16 %v5265, %v5257
    %v5466 = vpack.c.b16 %v5266, %v5258
    %v5467 = vpack.c.b16 %v5267, %v5259
    %v5468 = vpack.c.b16 %v5268, %v5260
    %v5469 = vpack.c.b16 %v5269, %v5261
    %v5470 = vpack.c.b16 %v5270, %v5262
    %v5471 = vpack.c.b16 %v5271, %v5263
    %v5472 = vpack.c.b16 %v5280, %v5272
    %v5473 = vpack.c.b16 %v5281, %v5273
    %v5474 = vpack.c.b16 %v5282, %v5274
    %v5475 = vpack.c.b16 %v5283, %v5275
    %v5476 = vpack.c.b16 %v5284, %v5276
    %v5477 = vpack.c.b16 %v5285, %v5277
    %v5478 = vpack.c.b16 %v5286, %v5278
    %v5479 = vpack.c.b16 %v5287, %v5279
    %v5480 = vpack.c.b16 %v5296, %v5288
    %v5481 = vpack.c.b16 %v5297, %v5289
    %v5482 = vpack.c.b16 %v5298, %v5290
    %v5483 = vpack.c.b16 %v5299, %v5291
    %v5484 = vpack.c.b16 %v5300, %v5292
    %v5485 = vpack.c.b16 %v5301, %v5293
    %v5486 = vpack.c.b16 %v5302, %v5294
    %v5487 = vpack.c.b16 %v5303, %v5295
    %v5488 = vpack.c.b16 %v5312, %v5304
    %v5489 = vpack.c.b16 %v5313, %v5305
    %v5490 = vpack.c.b16 %v5314, %v5306
    %v5491 = vpack.c.b16 %v5315, %v5307
    %v5492 = vpack.c.b16 %v5316, %v5308
    %v5493 = vpack.c.b16 %v5317, %v5309
    %v5494 = vpack.c.b16 %v5318, %v5310
    %v5495 = vpack.c.b16 %v5319, %v5311
    %v5496 = vpack.c.b16 %v5328, %v5320
    %v5497 = vpack.c.b16 %v5329, %v5321
    %v5498 = vpack.c.b16 %v5330, %v5322
    %v5499 = vpack.c.b16 %v5331, %v5323
    %v5500 = vpack.c.b16 %v5332, %v5324
    %v5501 = vpack.c.b16 %v5333, %v5325
    %v5502 = vpack.c.b16 %v5334, %v5326
    %v5503 = vpack.c.b16 %v5335, %v5327
    %v5504 = vpack.c.b16 %v5344, %v5336
    %v5505 = vpack.c.b16 %v5345, %v5337
    %v5506 = vpack.c.b16 %v5346, %v5338
    %v5507 = vpack.c.b16 %v5347, %v5339
    %v5508 = vpack.c.b16 %v5348, %v5340
    %v5509 = vpack.c.b16 %v5349, %v5341
    %v5510 = vpack.c.b16 %v5350, %v5342
    %v5511 = vpack.c.b16 %v5351, %v5343
    %v5512 = vpack.c.b16 %v5360, %v5352
    %v5513 = vpack.c.b16 %v5361, %v5353
    %v5514 = vpack.c.b16 %v5362, %v5354
    %v5515 = vpack.c.b16 %v5363, %v5355
    %v5516 = vpack.c.b16 %v5364, %v5356
    %v5517 = vpack.c.b16 %v5365, %v5357
    %v5518 = vpack.c.b16 %v5366, %v5358
    %v5519 = vpack.c.b16 %v5367, %v5359
    %v5520 = vpack.c.b16 %v5376, %v5368
    %v5521 = vpack.c.b16 %v5377, %v5369
    %v5522 = vpack.c.b16 %v5378, %v5370
    %v5523 = vpack.c.b16 %v5379, %v5371
    %v5524 = vpack.c.b16 %v5380, %v5372
    %v5525 = vpack.c.b16 %v5381, %v5373
    %v5526 = vpack.c.b16 %v5382, %v5374
    %v5527 = vpack.c.b16 %v5383, %v5375
    %v5528 = vpack.c.b16 %v5392, %v5384
    %v5529 = vpack.c.b16 %v5393, %v5385
    %v5530 = vpack.c.b16 %v5394, %v5386
    %v5531 = vpack.c.b16 %v5395, %v5387
    %v5532 = vpack.c.b16 %v5396, %v5388
    %v5533 = vpack.c.b16 %v5397, %v5389
    %v5534 = vpack.c.b16 %v5398, %v5390
    %v5535 = vpack.c.b16 %v5399, %v5391
    %v5536 = vpack.c.b16 %v5408, %v5400
    %v5537 = vpack.c.b16 %v5409, %v5401
    %v5538 = vpack.c.b16 %v5410, %v5402
    %v5539 = vpack.c.b16 %v5411, %v5403
    %v5540 = vpack.c.b16 %v5412, %v5404
    %v5541 = vpack.c.b16 %v5413, %v5405
    %v5542 = vpack.c.b16 %v5414, %v5406
    %v5543 = vpack.c.b16 %v5415, %v5407
    %5672 = vmatprep.subr.bf16.mxu0 %v5417
    %5673 = vmatpush1.bf16.msra.mxu0 %v5416
    %5674 = vmatprep.subr.bf16.mxu0 %v5425
    %5675 = vmatpush1.bf16.msra.mxu0 %v5424
    %5676 = vmatprep.subr.bf16.mxu0 %v5433
    %5677 = vmatpush1.bf16.msra.mxu0 %v5432
    %5678 = vmatprep.subr.bf16.mxu0 %v5441
    %5679 = vmatpush1.bf16.msra.mxu0 %v5440
    %5680 = vmatprep.subr.bf16.mxu0 %v5449
    %5681 = vmatpush1.bf16.msra.mxu0 %v5448
    %5682 = vmatprep.subr.bf16.mxu0 %v5457
    %5683 = vmatpush1.bf16.msra.mxu0 %v5456
    %5684 = vmatprep.subr.bf16.mxu0 %v5465
    %5685 = vmatpush1.bf16.msra.mxu0 %v5464
    %5686 = vmatprep.subr.bf16.mxu0 %v5473
    %5687 = vmatpush1.bf16.msra.mxu0 %v5472
    %5688 = vmatprep.subr.bf16.mxu0 %v5481
    %5689 = vmatpush1.bf16.msra.mxu0 %v5480
    %5690 = vmatprep.subr.bf16.mxu0 %v5489
    %5691 = vmatpush1.bf16.msra.mxu0 %v5488
    %5692 = vmatprep.subr.bf16.mxu0 %v5497
    %5693 = vmatpush1.bf16.msra.mxu0 %v5496
    %5694 = vmatprep.subr.bf16.mxu0 %v5505
    %5695 = vmatpush1.bf16.msra.mxu0 %v5504
    %5696 = vmatprep.subr.bf16.mxu0 %v5513
    %5697 = vmatpush1.bf16.msra.mxu0 %v5512
    %5698 = vmatprep.subr.bf16.mxu0 %v5521
    %5699 = vmatpush1.bf16.msra.mxu0 %v5520
    %5700 = vmatprep.subr.bf16.mxu0 %v5529
    %5701 = vmatpush1.bf16.msra.mxu0 %v5528
    %5702 = vmatprep.subr.bf16.mxu0 %v5537
    %5703 = vmatpush1.bf16.msra.mxu0 %v5536
    %5704 = vmatprep.mubr.bf16.mxu0 %v4897
    %5705 = vmatmul.mubr.bf16.gmra.mrb[0].mxu0 %v4896
    %v5706 = vpop.f32.mrb[0].mxu0
    %v5707 = vadd.f32 0.0, %v5706
    %v5708 = vpop.f32.mrb[0].mxu0
    %v5709 = vadd.f32 0.0, %v5708
    %v5710 = vpop.f32.mrb[0].mxu0
    %v5711 = vadd.f32 0.0, %v5710
    %v5712 = vpop.f32.mrb[0].mxu0
    %v5713 = vadd.f32 0.0, %v5712
    %5714 = vmatprep.mubr.bf16.mxu0 %v4899
    %5715 = vmatmul.mubr.bf16.gmra.mrb[0].mxu0 %v4898
    %v5716 = vpop.f32.mrb[0].mxu0
    %v5717 = vadd.f32 0.0, %v5716
    %v5718 = vpop.f32.mrb[0].mxu0
    %v5719 = vadd.f32 0.0, %v5718
    %v5720 = vpop.f32.mrb[0].mxu0
    %v5721 = vadd.f32 0.0, %v5720
    %v5722 = vpop.f32.mrb[0].mxu0
    %v5723 = vadd.f32 0.0, %v5722
    %5724 = vmatprep.mubr.bf16.mxu0 %v4901
    %5725 = vmatmul.mubr.bf16.gmra.mrb[0].mxu0 %v4900
    %v5726 = vpop.f32.mrb[0].mxu0
    %v5727 = vadd.f32 0.0, %v5726
    %v5728 = vpop.f32.mrb[0].mxu0
    %v5729 = vadd.f32 0.0, %v5728
    %v5730 = vpop.f32.mrb[0].mxu0
    %v5731 = vadd.f32 0.0, %v5730
    %v5732 = vpop.f32.mrb[0].mxu0
    %v5733 = vadd.f32 0.0, %v5732
    %5734 = vmatprep.mubr.bf16.mxu0 %v4903
    %5735 = vmatmul.mubr.bf16.gmra.mrb[0].mxu0 %v4902
    %v5736 = vpop.f32.mrb[0].mxu0
    %v5737 = vadd.f32 0.0, %v5736
    %v5738 = vpop.f32.mrb[0].mxu0
    %v5739 = vadd.f32 0.0, %v5738
    %v5740 = vpop.f32.mrb[0].mxu0
    %v5741 = vadd.f32 0.0, %v5740
    %v5742 = vpop.f32.mrb[0].mxu0
    %v5743 = vadd.f32 0.0, %v5742
    %5744 = vdwg.mxu0
    %5745 = vmatprep.subr.bf16.mxu0 %v5419
    %5746 = vmatpush1.bf16.msra.mxu0 %v5418
    %5747 = vmatprep.subr.bf16.mxu0 %v5427
    %5748 = vmatpush1.bf16.msra.mxu0 %v5426
    %5749 = vmatprep.subr.bf16.mxu0 %v5435
    %5750 = vmatpush1.bf16.msra.mxu0 %v5434
    %5751 = vmatprep.subr.bf16.mxu0 %v5443
    %5752 = vmatpush1.bf16.msra.mxu0 %v5442
    %5753 = vmatprep.subr.bf16.mxu0 %v5451
    %5754 = vmatpush1.bf16.msra.mxu0 %v5450
    %5755 = vmatprep.subr.bf16.mxu0 %v5459
    %5756 = vmatpush1.bf16.msra.mxu0 %v5458
    %5757 = vmatprep.subr.bf16.mxu0 %v5467
    %5758 = vmatpush1.bf16.msra.mxu0 %v5466
    %5759 = vmatprep.subr.bf16.mxu0 %v5475
    %5760 = vmatpush1.bf16.msra.mxu0 %v5474
    %5761 = vmatprep.subr.bf16.mxu0 %v5483
    %5762 = vmatpush1.bf16.msra.mxu0 %v5482
    %5763 = vmatprep.subr.bf16.mxu0 %v5491
    %5764 = vmatpush1.bf16.msra.mxu0 %v5490
    %5765 = vmatprep.subr.bf16.mxu0 %v5499
    %5766 = vmatpush1.bf16.msra.mxu0 %v5498
    %5767 = vmatprep.subr.bf16.mxu0 %v5507
    %5768 = vmatpush1.bf16.msra.mxu0 %v5506
    %5769 = vmatprep.subr.bf16.mxu0 %v5515
    %5770 = vmatpush1.bf16.msra.mxu0 %v5514
    %5771 = vmatprep.subr.bf16.mxu0 %v5523
    %5772 = vmatpush1.bf16.msra.mxu0 %v5522
    %5773 = vmatprep.subr.bf16.mxu0 %v5531
    %5774 = vmatpush1.bf16.msra.mxu0 %v5530
    %5775 = vmatprep.subr.bf16.mxu0 %v5539
    %5776 = vmatpush1.bf16.msra.mxu0 %v5538
    %5777 = vmatprep.mubr.bf16.mxu0 %v4897
    %5778 = vmatmul.mubr.bf16.gmra.mrb[0].mxu0 %v4896
    %v5779 = vpop.f32.mrb[0].mxu0
    %v5780 = vadd.f32 0.0, %v5779
    %v5781 = vpop.f32.mrb[0].mxu0
    %v5782 = vadd.f32 0.0, %v5781
    %v5783 = vpop.f32.mrb[0].mxu0
    %v5784 = vadd.f32 0.0, %v5783
    %v5785 = vpop.f32.mrb[0].mxu0
    %v5786 = vadd.f32 0.0, %v5785
    %5787 = vmatprep.mubr.bf16.mxu0 %v4899
    %5788 = vmatmul.mubr.bf16.gmra.mrb[0].mxu0 %v4898
    %v5789 = vpop.f32.mrb[0].mxu0
    %v5790 = vadd.f32 0.0, %v5789
    %v5791 = vpop.f32.mrb[0].mxu0
    %v5792 = vadd.f32 0.0, %v5791
    %v5793 = vpop.f32.mrb[0].mxu0
    %v5794 = vadd.f32 0.0, %v5793
    %v5795 = vpop.f32.mrb[0].mxu0
    %v5796 = vadd.f32 0.0, %v5795
    %5797 = vmatprep.mubr.bf16.mxu0 %v4901
    %5798 = vmatmul.mubr.bf16.gmra.mrb[0].mxu0 %v4900
    %v5799 = vpop.f32.mrb[0].mxu0
    %v5800 = vadd.f32 0.0, %v5799
    %v5801 = vpop.f32.mrb[0].mxu0
    %v5802 = vadd.f32 0.0, %v5801
    %v5803 = vpop.f32.mrb[0].mxu0
    %v5804 = vadd.f32 0.0, %v5803
    %v5805 = vpop.f32.mrb[0].mxu0
    %v5806 = vadd.f32 0.0, %v5805
    %5807 = vmatprep.mubr.bf16.mxu0 %v4903
    %5808 = vmatmul.mubr.bf16.gmra.mrb[0].mxu0 %v4902
    %v5809 = vpop.f32.mrb[0].mxu0
    %v5810 = vadd.f32 0.0, %v5809
    %v5811 = vpop.f32.mrb[0].mxu0
    %v5812 = vadd.f32 0.0, %v5811
    %v5813 = vpop.f32.mrb[0].mxu0
    %v5814 = vadd.f32 0.0, %v5813
    %v5815 = vpop.f32.mrb[0].mxu0
    %v5816 = vadd.f32 0.0, %v5815
    %5817 = vdwg.mxu0
    %5818 = vmatprep.subr.bf16.mxu0 %v5421
    %5819 = vmatpush1.bf16.msra.mxu0 %v5420
    %5820 = vmatprep.subr.bf16.mxu0 %v5429
    %5821 = vmatpush1.bf16.msra.mxu0 %v5428
    %5822 = vmatprep.subr.bf16.mxu0 %v5437
    %5823 = vmatpush1.bf16.msra.mxu0 %v5436
    %5824 = vmatprep.subr.bf16.mxu0 %v5445
    %5825 = vmatpush1.bf16.msra.mxu0 %v5444
    %5826 = vmatprep.subr.bf16.mxu0 %v5453
    %5827 = vmatpush1.bf16.msra.mxu0 %v5452
    %5828 = vmatprep.subr.bf16.mxu0 %v5461
    %5829 = vmatpush1.bf16.msra.mxu0 %v5460
    %5830 = vmatprep.subr.bf16.mxu0 %v5469
    %5831 = vmatpush1.bf16.msra.mxu0 %v5468
    %5832 = vmatprep.subr.bf16.mxu0 %v5477
    %5833 = vmatpush1.bf16.msra.mxu0 %v5476
    %5834 = vmatprep.subr.bf16.mxu0 %v5485
    %5835 = vmatpush1.bf16.msra.mxu0 %v5484
    %5836 = vmatprep.subr.bf16.mxu0 %v5493
    %5837 = vmatpush1.bf16.msra.mxu0 %v5492
    %5838 = vmatprep.subr.bf16.mxu0 %v5501
    %5839 = vmatpush1.bf16.msra.mxu0 %v5500
    %5840 = vmatprep.subr.bf16.mxu0 %v5509
    %5841 = vmatpush1.bf16.msra.mxu0 %v5508
    %5842 = vmatprep.subr.bf16.mxu0 %v5517
    %5843 = vmatpush1.bf16.msra.mxu0 %v5516
    %5844 = vmatprep.subr.bf16.mxu0 %v5525
    %5845 = vmatpush1.bf16.msra.mxu0 %v5524
    %5846 = vmatprep.subr.bf16.mxu0 %v5533
    %5847 = vmatpush1.bf16.msra.mxu0 %v5532
    %5848 = vmatprep.subr.bf16.mxu0 %v5541
    %5849 = vmatpush1.bf16.msra.mxu0 %v5540
    %5850 = vmatprep.mubr.bf16.mxu0 %v4897
    %5851 = vmatmul.mubr.bf16.gmra.mrb[0].mxu0 %v4896
    %v5852 = vpop.f32.mrb[0].mxu0
    %v5853 = vadd.f32 0.0, %v5852
    %v5854 = vpop.f32.mrb[0].mxu0
    %v5855 = vadd.f32 0.0, %v5854
    %v5856 = vpop.f32.mrb[0].mxu0
    %v5857 = vadd.f32 0.0, %v5856
    %v5858 = vpop.f32.mrb[0].mxu0
    %v5859 = vadd.f32 0.0, %v5858
    %5860 = vmatprep.mubr.bf16.mxu0 %v4899
    %5861 = vmatmul.mubr.bf16.gmra.mrb[0].mxu0 %v4898
    %v5862 = vpop.f32.mrb[0].mxu0
    %v5863 = vadd.f32 0.0, %v5862
    %v5864 = vpop.f32.mrb[0].mxu0
    %v5865 = vadd.f32 0.0, %v5864
    %v5866 = vpop.f32.mrb[0].mxu0
    %v5867 = vadd.f32 0.0, %v5866
    %v5868 = vpop.f32.mrb[0].mxu0
    %v5869 = vadd.f32 0.0, %v5868
    %5870 = vmatprep.mubr.bf16.mxu0 %v4901
    %5871 = vmatmul.mubr.bf16.gmra.mrb[0].mxu0 %v4900
    %v5872 = vpop.f32.mrb[0].mxu0
    %v5873 = vadd.f32 0.0, %v5872
    %v5874 = vpop.f32.mrb[0].mxu0
    %v5875 = vadd.f32 0.0, %v5874
    %v5876 = vpop.f32.mrb[0].mxu0
    %v5877 = vadd.f32 0.0, %v5876
    %v5878 = vpop.f32.mrb[0].mxu0
    %v5879 = vadd.f32 0.0, %v5878
    %5880 = vmatprep.mubr.bf16.mxu0 %v4903
    %5881 = vmatmul.mubr.bf16.gmra.mrb[0].mxu0 %v4902
    %v5882 = vpop.f32.mrb[0].mxu0
    %v5883 = vadd.f32 0.0, %v5882
    %v5884 = vpop.f32.mrb[0].mxu0
    %v5885 = vadd.f32 0.0, %v5884
    %v5886 = vpop.f32.mrb[0].mxu0
    %v5887 = vadd.f32 0.0, %v5886
    %v5888 = vpop.f32.mrb[0].mxu0
    %v5889 = vadd.f32 0.0, %v5888
    %5890 = vdwg.mxu0
    %5891 = vmatprep.subr.bf16.mxu0 %v5423
    %5892 = vmatpush1.bf16.msra.mxu0 %v5422
    %5893 = vmatprep.subr.bf16.mxu0 %v5431
    %5894 = vmatpush1.bf16.msra.mxu0 %v5430
    %5895 = vmatprep.subr.bf16.mxu0 %v5439
    %5896 = vmatpush1.bf16.msra.mxu0 %v5438
    %5897 = vmatprep.subr.bf16.mxu0 %v5447
    %5898 = vmatpush1.bf16.msra.mxu0 %v5446
    %5899 = vmatprep.subr.bf16.mxu0 %v5455
    %5900 = vmatpush1.bf16.msra.mxu0 %v5454
    %5901 = vmatprep.subr.bf16.mxu0 %v5463
    %5902 = vmatpush1.bf16.msra.mxu0 %v5462
    %5903 = vmatprep.subr.bf16.mxu0 %v5471
    %5904 = vmatpush1.bf16.msra.mxu0 %v5470
    %5905 = vmatprep.subr.bf16.mxu0 %v5479
    %5906 = vmatpush1.bf16.msra.mxu0 %v5478
    %5907 = vmatprep.subr.bf16.mxu0 %v5487
    %5908 = vmatpush1.bf16.msra.mxu0 %v5486
    %5909 = vmatprep.subr.bf16.mxu0 %v5495
    %5910 = vmatpush1.bf16.msra.mxu0 %v5494
    %5911 = vmatprep.subr.bf16.mxu0 %v5503
    %5912 = vmatpush1.bf16.msra.mxu0 %v5502
    %5913 = vmatprep.subr.bf16.mxu0 %v5511
    %5914 = vmatpush1.bf16.msra.mxu0 %v5510
    %5915 = vmatprep.subr.bf16.mxu0 %v5519
    %5916 = vmatpush1.bf16.msra.mxu0 %v5518
    %5917 = vmatprep.subr.bf16.mxu0 %v5527
    %5918 = vmatpush1.bf16.msra.mxu0 %v5526
    %5919 = vmatprep.subr.bf16.mxu0 %v5535
    %5920 = vmatpush1.bf16.msra.mxu0 %v5534
    %5921 = vmatprep.subr.bf16.mxu0 %v5543
    %5922 = vmatpush1.bf16.msra.mxu0 %v5542
    %5923 = vmatprep.mubr.bf16.mxu0 %v4897
    %5924 = vmatmul.mubr.bf16.gmra.mrb[0].mxu0 %v4896
    %v5925 = vpop.f32.mrb[0].mxu0
    %v5926 = vadd.f32 0.0, %v5925
    %v5927 = vpop.f32.mrb[0].mxu0
    %v5928 = vadd.f32 0.0, %v5927
    %v5929 = vpop.f32.mrb[0].mxu0
    %v5930 = vadd.f32 0.0, %v5929
    %v5931 = vpop.f32.mrb[0].mxu0
    %v5932 = vadd.f32 0.0, %v5931
    %5933 = vmatprep.mubr.bf16.mxu0 %v4899
    %5934 = vmatmul.mubr.bf16.gmra.mrb[0].mxu0 %v4898
    %v5935 = vpop.f32.mrb[0].mxu0
    %v5936 = vadd.f32 0.0, %v5935
    %v5937 = vpop.f32.mrb[0].mxu0
    %v5938 = vadd.f32 0.0, %v5937
    %v5939 = vpop.f32.mrb[0].mxu0
    %v5940 = vadd.f32 0.0, %v5939
    %v5941 = vpop.f32.mrb[0].mxu0
    %v5942 = vadd.f32 0.0, %v5941
    %5943 = vmatprep.mubr.bf16.mxu0 %v4901
    %5944 = vmatmul.mubr.bf16.gmra.mrb[0].mxu0 %v4900
    %v5945 = vpop.f32.mrb[0].mxu0
    %v5946 = vadd.f32 0.0, %v5945
    %v5947 = vpop.f32.mrb[0].mxu0
    %v5948 = vadd.f32 0.0, %v5947
    %v5949 = vpop.f32.mrb[0].mxu0
    %v5950 = vadd.f32 0.0, %v5949
    %v5951 = vpop.f32.mrb[0].mxu0
    %v5952 = vadd.f32 0.0, %v5951
    %5953 = vmatprep.mubr.bf16.mxu0 %v4903
    %5954 = vmatmul.mubr.bf16.gmra.mrb[0].mxu0 %v4902
    %v5955 = vpop.f32.mrb[0].mxu0
    %v5956 = vadd.f32 0.0, %v5955
    %v5957 = vpop.f32.mrb[0].mxu0
    %v5958 = vadd.f32 0.0, %v5957
    %v5959 = vpop.f32.mrb[0].mxu0
    %v5960 = vadd.f32 0.0, %v5959
    %v5961 = vpop.f32.mrb[0].mxu0
    %v5962 = vadd.f32 0.0, %v5961
    %5963 = vdwg.mxu0
    %v5964 = vld [vmem:[%s49] sm:$0xff]
    %v5965 = vld [vmem:[%s49 + $0x8] sm:$0xff]
    %v5966 = vld [vmem:[%s49 + $0x10] sm:$0xff]
    %v5967 = vld [vmem:[%s49 + $0x18] sm:$0xff]
    %v5968 = vld [vmem:[%s49 + $0x20] sm:$0xff]
    %v5969 = vld [vmem:[%s49 + $0x28] sm:$0xff]
    %v5970 = vld [vmem:[%s49 + $0x30] sm:$0xff]
    %v5971 = vld [vmem:[%s49 + $0x38] sm:$0xff]
    %v5972 = vld [vmem:[%s49 + $0x40] sm:$0xff]
    %v5973 = vld [vmem:[%s49 + $0x48] sm:$0xff]
    %v5974 = vld [vmem:[%s49 + $0x50] sm:$0xff]
    %v5975 = vld [vmem:[%s49 + $0x58] sm:$0xff]
    %v5976 = vld [vmem:[%s49 + $0x60] sm:$0xff]
    %v5977 = vld [vmem:[%s49 + $0x68] sm:$0xff]
    %v5978 = vld [vmem:[%s49 + $0x70] sm:$0xff]
    %v5979 = vld [vmem:[%s49 + $0x78] sm:$0xff]
    %v5980 = vpack.c.bf16 %v5711, %v5707
    %v5981 = vpack.c.bf16 %v5713, %v5709
    %v5982 = vpack.c.bf16 %v5721, %v5717
    %v5983 = vpack.c.bf16 %v5723, %v5719
    %v5984 = vpack.c.bf16 %v5731, %v5727
    %v5985 = vpack.c.bf16 %v5733, %v5729
    %v5986 = vpack.c.bf16 %v5741, %v5737
    %v5987 = vpack.c.bf16 %v5743, %v5739
    %v5988 = vpack.c.bf16 %v5784, %v5780
    %v5989 = vpack.c.bf16 %v5786, %v5782
    %v5990 = vpack.c.bf16 %v5794, %v5790
    %v5991 = vpack.c.bf16 %v5796, %v5792
    %v5992 = vpack.c.bf16 %v5804, %v5800
    %v5993 = vpack.c.bf16 %v5806, %v5802
    %v5994 = vpack.c.bf16 %v5814, %v5810
    %v5995 = vpack.c.bf16 %v5816, %v5812
    %v5996 = vpack.c.bf16 %v5857, %v5853
    %v5997 = vpack.c.bf16 %v5859, %v5855
    %v5998 = vpack.c.bf16 %v5867, %v5863
    %v5999 = vpack.c.bf16 %v5869, %v5865
    %v6000 = vpack.c.bf16 %v5877, %v5873
    %v6001 = vpack.c.bf16 %v5879, %v5875
    %v6002 = vpack.c.bf16 %v5887, %v5883
    %v6003 = vpack.c.bf16 %v5889, %v5885
    %v6004 = vpack.c.bf16 %v5930, %v5926
    %v6005 = vpack.c.bf16 %v5932, %v5928
    %v6006 = vpack.c.bf16 %v5940, %v5936
    %v6007 = vpack.c.bf16 %v5942, %v5938
    %v6008 = vpack.c.bf16 %v5950, %v5946
    %v6009 = vpack.c.bf16 %v5952, %v5948
    %v6010 = vpack.c.bf16 %v5960, %v5956
    %v6011 = vpack.c.bf16 %v5962, %v5958
    %v6028 = vunpack.c.l.b16 %v5964
    %v6029 = vunpack.c.h.b16 %v5964
    %v6030 = vunpack.c.l.b16 %v5965
    %v6031 = vunpack.c.h.b16 %v5965
    %v6032 = vunpack.c.l.b16 %v5966
    %v6033 = vunpack.c.h.b16 %v5966
    %v6034 = vunpack.c.l.b16 %v5967
    %v6035 = vunpack.c.h.b16 %v5967
    %v6036 = vunpack.c.l.b16 %v5968
    %v6037 = vunpack.c.h.b16 %v5968
    %v6038 = vunpack.c.l.b16 %v5969
    %v6039 = vunpack.c.h.b16 %v5969
    %v6040 = vunpack.c.l.b16 %v5970
    %v6041 = vunpack.c.h.b16 %v5970
    %v6042 = vunpack.c.l.b16 %v5971
    %v6043 = vunpack.c.h.b16 %v5971
    %v6044 = vunpack.c.l.b16 %v5972
    %v6045 = vunpack.c.h.b16 %v5972
    %v6046 = vunpack.c.l.b16 %v5973
    %v6047 = vunpack.c.h.b16 %v5973
    %v6048 = vunpack.c.l.b16 %v5974
    %v6049 = vunpack.c.h.b16 %v5974
    %v6050 = vunpack.c.l.b16 %v5975
    %v6051 = vunpack.c.h.b16 %v5975
    %v6052 = vunpack.c.l.b16 %v5976
    %v6053 = vunpack.c.h.b16 %v5976
    %v6054 = vunpack.c.l.b16 %v5977
    %v6055 = vunpack.c.h.b16 %v5977
    %v6056 = vunpack.c.l.b16 %v5978
    %v6057 = vunpack.c.h.b16 %v5978
    %v6058 = vunpack.c.l.b16 %v5979
    %v6059 = vunpack.c.h.b16 %v5979
    %v6060 = vpack.c.b16 %v6030, %v6028
    %v6061 = vpack.c.b16 %v6031, %v6029
    %v6062 = vpack.c.b16 %v6034, %v6032
    %v6063 = vpack.c.b16 %v6035, %v6033
    %v6064 = vpack.c.b16 %v6038, %v6036
    %v6065 = vpack.c.b16 %v6039, %v6037
    %v6066 = vpack.c.b16 %v6042, %v6040
    %v6067 = vpack.c.b16 %v6043, %v6041
    %v6068 = vpack.c.b16 %v6046, %v6044
    %v6069 = vpack.c.b16 %v6047, %v6045
    %v6070 = vpack.c.b16 %v6050, %v6048
    %v6071 = vpack.c.b16 %v6051, %v6049
    %v6072 = vpack.c.b16 %v6054, %v6052
    %v6073 = vpack.c.b16 %v6055, %v6053
    %v6074 = vpack.c.b16 %v6058, %v6056
    %v6075 = vpack.c.b16 %v6059, %v6057
    %6092 = vmatprep.subr.bf16.mxu0 %v5981
    %6093 = vmatpush1.bf16.msra.mxu0 %v5980
    %6094 = vmatprep.subr.bf16.mxu0 %v5983
    %6095 = vmatpush1.bf16.msra.mxu0 %v5982
    %6096 = vmatprep.subr.bf16.mxu0 %v5985
    %6097 = vmatpush1.bf16.msra.mxu0 %v5984
    %6098 = vmatprep.subr.bf16.mxu0 %v5987
    %6099 = vmatpush1.bf16.msra.mxu0 %v5986
    %6100 = vmatprep.subr.bf16.mxu0 %v5989
    %6101 = vmatpush1.bf16.msra.mxu0 %v5988
    %6102 = vmatprep.subr.bf16.mxu0 %v5991
    %6103 = vmatpush1.bf16.msra.mxu0 %v5990
    %6104 = vmatprep.subr.bf16.mxu0 %v5993
    %6105 = vmatpush1.bf16.msra.mxu0 %v5992
    %6106 = vmatprep.subr.bf16.mxu0 %v5995
    %6107 = vmatpush1.bf16.msra.mxu0 %v5994
    %6108 = vmatprep.subr.bf16.mxu0 %v5997
    %6109 = vmatpush1.bf16.msra.mxu0 %v5996
    %6110 = vmatprep.subr.bf16.mxu0 %v5999
    %6111 = vmatpush1.bf16.msra.mxu0 %v5998
    %6112 = vmatprep.subr.bf16.mxu0 %v6001
    %6113 = vmatpush1.bf16.msra.mxu0 %v6000
    %6114 = vmatprep.subr.bf16.mxu0 %v6003
    %6115 = vmatpush1.bf16.msra.mxu0 %v6002
    %6116 = vmatprep.subr.bf16.mxu0 %v6005
    %6117 = vmatpush1.bf16.msra.mxu0 %v6004
    %6118 = vmatprep.subr.bf16.mxu0 %v6007
    %6119 = vmatpush1.bf16.msra.mxu0 %v6006
    %6120 = vmatprep.subr.bf16.mxu0 %v6009
    %6121 = vmatpush1.bf16.msra.mxu0 %v6008
    %6122 = vmatprep.subr.bf16.mxu0 %v6011
    %6123 = vmatpush1.bf16.msra.mxu0 %v6010
    %6124 = vmatprep.mubr.bf16.mxu0 %v6061
    %6125 = vmatmul.mubr.bf16.gmra.mrb[0].mxu0 %v6060
    %v6126 = vpop.f32.mrb[0].mxu0
    %v6127 = vadd.f32 0.0, %v6126
    %v6128 = vpop.f32.mrb[0].mxu0
    %v6129 = vadd.f32 0.0, %v6128
    %v6130 = vpop.f32.mrb[0].mxu0
    %v6131 = vadd.f32 0.0, %v6130
    %v6132 = vpop.f32.mrb[0].mxu0
    %v6133 = vadd.f32 0.0, %v6132
    %6134 = vmatprep.mubr.bf16.mxu0 %v6063
    %6135 = vmatmul.mubr.bf16.gmra.mrb[0].mxu0 %v6062
    %v6136 = vpop.f32.mrb[0].mxu0
    %v6137 = vadd.f32 0.0, %v6136
    %v6138 = vpop.f32.mrb[0].mxu0
    %v6139 = vadd.f32 0.0, %v6138
    %v6140 = vpop.f32.mrb[0].mxu0
    %v6141 = vadd.f32 0.0, %v6140
    %v6142 = vpop.f32.mrb[0].mxu0
    %v6143 = vadd.f32 0.0, %v6142
    %6144 = vmatprep.mubr.bf16.mxu0 %v6065
    %6145 = vmatmul.mubr.bf16.gmra.mrb[0].mxu0 %v6064
    %v6146 = vpop.f32.mrb[0].mxu0
    %v6147 = vadd.f32 0.0, %v6146
    %v6148 = vpop.f32.mrb[0].mxu0
    %v6149 = vadd.f32 0.0, %v6148
    %v6150 = vpop.f32.mrb[0].mxu0
    %v6151 = vadd.f32 0.0, %v6150
    %v6152 = vpop.f32.mrb[0].mxu0
    %v6153 = vadd.f32 0.0, %v6152
    %6154 = vmatprep.mubr.bf16.mxu0 %v6067
    %6155 = vmatmul.mubr.bf16.gmra.mrb[0].mxu0 %v6066
    %v6156 = vpop.f32.mrb[0].mxu0
    %v6157 = vadd.f32 0.0, %v6156
    %v6158 = vpop.f32.mrb[0].mxu0
    %v6159 = vadd.f32 0.0, %v6158
    %v6160 = vpop.f32.mrb[0].mxu0
    %v6161 = vadd.f32 0.0, %v6160
    %v6162 = vpop.f32.mrb[0].mxu0
    %v6163 = vadd.f32 0.0, %v6162
    %6164 = vmatprep.mubr.bf16.mxu0 %v6069
    %6165 = vmatmul.mubr.bf16.gmra.mrb[0].mxu0 %v6068
    %v6166 = vpop.f32.mrb[0].mxu0
    %v6167 = vadd.f32 0.0, %v6166
    %v6168 = vpop.f32.mrb[0].mxu0
    %v6169 = vadd.f32 0.0, %v6168
    %v6170 = vpop.f32.mrb[0].mxu0
    %v6171 = vadd.f32 0.0, %v6170
    %v6172 = vpop.f32.mrb[0].mxu0
    %v6173 = vadd.f32 0.0, %v6172
    %6174 = vmatprep.mubr.bf16.mxu0 %v6071
    %6175 = vmatmul.mubr.bf16.gmra.mrb[0].mxu0 %v6070
    %v6176 = vpop.f32.mrb[0].mxu0
    %v6177 = vadd.f32 0.0, %v6176
    %v6178 = vpop.f32.mrb[0].mxu0
    %v6179 = vadd.f32 0.0, %v6178
    %v6180 = vpop.f32.mrb[0].mxu0
    %v6181 = vadd.f32 0.0, %v6180
    %v6182 = vpop.f32.mrb[0].mxu0
    %v6183 = vadd.f32 0.0, %v6182
    %6184 = vmatprep.mubr.bf16.mxu0 %v6073
    %6185 = vmatmul.mubr.bf16.gmra.mrb[0].mxu0 %v6072
    %v6186 = vpop.f32.mrb[0].mxu0
    %v6187 = vadd.f32 0.0, %v6186
    %v6188 = vpop.f32.mrb[0].mxu0
    %v6189 = vadd.f32 0.0, %v6188
    %v6190 = vpop.f32.mrb[0].mxu0
    %v6191 = vadd.f32 0.0, %v6190
    %v6192 = vpop.f32.mrb[0].mxu0
    %v6193 = vadd.f32 0.0, %v6192
    %6194 = vmatprep.mubr.bf16.mxu0 %v6075
    %6195 = vmatmul.mubr.bf16.gmra.mrb[0].mxu0 %v6074
    %v6196 = vpop.f32.mrb[0].mxu0
    %v6197 = vadd.f32 0.0, %v6196
    %v6198 = vpop.f32.mrb[0].mxu0
    %v6199 = vadd.f32 0.0, %v6198
    %v6200 = vpop.f32.mrb[0].mxu0
    %v6201 = vadd.f32 0.0, %v6200
    %v6202 = vpop.f32.mrb[0].mxu0
    %v6203 = vadd.f32 0.0, %v6202
    %6204 = vdwg.mxu0
    %v6205 = vadd.f32 %v6127, %v6131
    %v6206 = vadd.f32 %v6205, %v6137
    %v6207 = vadd.f32 %v6206, %v6141
    %v6208 = vadd.f32 %v6207, %v6147
    %v6209 = vadd.f32 %v6208, %v6151
    %v6210 = vadd.f32 %v6209, %v6157
    %v6211 = vadd.f32 %v6210, %v6161
    %v6212 = vadd.f32 %v6211, %v6167
    %v6213 = vadd.f32 %v6212, %v6171
    %v6214 = vadd.f32 %v6213, %v6177
    %v6215 = vadd.f32 %v6214, %v6181
    %v6216 = vadd.f32 %v6215, %v6187
    %v6217 = vadd.f32 %v6216, %v6191
    %v6218 = vadd.f32 %v6217, %v6197
    %v6219 = vadd.f32 %v6218, %v6201
    %v6220 = vrot.slane %v6219, 4
    %v6221 = vadd.f32 %v6219, %v6220
    %v6222 = vrot.slane %v6221, 2
    %v6223 = vadd.f32 %v6221, %v6222
    %v6224 = vrot.slane %v6223, 1
    %v6225 = vadd.f32 %v6223, %v6224
    %v6226 = vadd.f32 %v6129, %v6133
    %v6227 = vadd.f32 %v6226, %v6139
    %v6228 = vadd.f32 %v6227, %v6143
    %v6229 = vadd.f32 %v6228, %v6149
    %v6230 = vadd.f32 %v6229, %v6153
    %v6231 = vadd.f32 %v6230, %v6159
    %v6232 = vadd.f32 %v6231, %v6163
    %v6233 = vadd.f32 %v6232, %v6169
    %v6234 = vadd.f32 %v6233, %v6173
    %v6235 = vadd.f32 %v6234, %v6179
    %v6236 = vadd.f32 %v6235, %v6183
    %v6237 = vadd.f32 %v6236, %v6189
    %v6238 = vadd.f32 %v6237, %v6193
    %v6239 = vadd.f32 %v6238, %v6199
    %v6240 = vadd.f32 %v6239, %v6203
    %v6241 = vrot.slane %v6240, 4
    %v6242 = vadd.f32 %v6240, %v6241
    %v6243 = vrot.slane %v6242, 2
    %v6244 = vadd.f32 %v6242, %v6243
    %v6245 = vrot.slane %v6244, 1
    %v6246 = vadd.f32 %v6244, %v6245
    %v6247 = vmul.f32 %v6127, %v6127
    %v6248 = vmul.f32 %v6129, %v6129
    %v6249 = vmul.f32 %v6131, %v6131
    %v6250 = vmul.f32 %v6133, %v6133
    %v6251 = vmul.f32 %v6137, %v6137
    %v6252 = vmul.f32 %v6139, %v6139
    %v6253 = vmul.f32 %v6141, %v6141
    %v6254 = vmul.f32 %v6143, %v6143
    %v6255 = vmul.f32 %v6147, %v6147
    %v6256 = vmul.f32 %v6149, %v6149
    %v6257 = vmul.f32 %v6151, %v6151
    %v6258 = vmul.f32 %v6153, %v6153
    %v6259 = vmul.f32 %v6157, %v6157
    %v6260 = vmul.f32 %v6159, %v6159
    %v6261 = vmul.f32 %v6161, %v6161
    %v6262 = vmul.f32 %v6163, %v6163
    %v6263 = vmul.f32 %v6167, %v6167
    %v6264 = vmul.f32 %v6169, %v6169
    %v6265 = vmul.f32 %v6171, %v6171
    %v6266 = vmul.f32 %v6173, %v6173
    %v6267 = vmul.f32 %v6177, %v6177
    %v6268 = vmul.f32 %v6179, %v6179
    %v6269 = vmul.f32 %v6181, %v6181
    %v6270 = vmul.f32 %v6183, %v6183
    %v6271 = vmul.f32 %v6187, %v6187
    %v6272 = vmul.f32 %v6189, %v6189
    %v6273 = vmul.f32 %v6191, %v6191
    %v6274 = vmul.f32 %v6193, %v6193
    %v6275 = vmul.f32 %v6197, %v6197
    %v6276 = vmul.f32 %v6199, %v6199
    %v6277 = vmul.f32 %v6201, %v6201
    %v6278 = vmul.f32 %v6203, %v6203
    %v6279 = vadd.f32 %v6247, %v6249
    %v6280 = vadd.f32 %v6279, %v6251
    %v6281 = vadd.f32 %v6280, %v6253
    %v6282 = vadd.f32 %v6281, %v6255
    %v6283 = vadd.f32 %v6282, %v6257
    %v6284 = vadd.f32 %v6283, %v6259
    %v6285 = vadd.f32 %v6284, %v6261
    %v6286 = vadd.f32 %v6285, %v6263
    %v6287 = vadd.f32 %v6286, %v6265
    %v6288 = vadd.f32 %v6287, %v6267
    %v6289 = vadd.f32 %v6288, %v6269
    %v6290 = vadd.f32 %v6289, %v6271
    %v6291 = vadd.f32 %v6290, %v6273
    %v6292 = vadd.f32 %v6291, %v6275
    %v6293 = vadd.f32 %v6292, %v6277
    %v6294 = vrot.slane %v6293, 4
    %v6295 = vadd.f32 %v6293, %v6294
    %v6296 = vrot.slane %v6295, 2
    %v6297 = vadd.f32 %v6295, %v6296
    %v6298 = vrot.slane %v6297, 1
    %v6299 = vadd.f32 %v6297, %v6298
    %v6300 = vadd.f32 %v6248, %v6250
    %v6301 = vadd.f32 %v6300, %v6252
    %v6302 = vadd.f32 %v6301, %v6254
    %v6303 = vadd.f32 %v6302, %v6256
    %v6304 = vadd.f32 %v6303, %v6258
    %v6305 = vadd.f32 %v6304, %v6260
    %v6306 = vadd.f32 %v6305, %v6262
    %v6307 = vadd.f32 %v6306, %v6264
    %v6308 = vadd.f32 %v6307, %v6266
    %v6309 = vadd.f32 %v6308, %v6268
    %v6310 = vadd.f32 %v6309, %v6270
    %v6311 = vadd.f32 %v6310, %v6272
    %v6312 = vadd.f32 %v6311, %v6274
    %v6313 = vadd.f32 %v6312, %v6276
    %v6314 = vadd.f32 %v6313, %v6278
    %v6315 = vrot.slane %v6314, 4
    %v6316 = vadd.f32 %v6314, %v6315
    %v6317 = vrot.slane %v6316, 2
    %v6318 = vadd.f32 %v6316, %v6317
    %v6319 = vrot.slane %v6318, 1
    %v6320 = vadd.f32 %v6318, %v6319
    %v6321 = vsel %vm474, %v6225, %v6299
    %v6322 = vsel %vm474, %v6246, %v6320
    %v6323 = vld [vmem:[%s53] sm:$0xf]
    %v6324 = vld [vmem:[%s53 + $0x4] sm:$0xf]
    %v6325 = vld [vmem:[%s53 + $0x8] sm:$0xf]
    %v6326 = vld [vmem:[%s53 + $0xc] sm:$0xf]
    %v6327 = vld [vmem:[%s53 + $0x10] sm:$0xf]
    %v6328 = vld [vmem:[%s53 + $0x14] sm:$0xf]
    %v6329 = vld [vmem:[%s53 + $0x18] sm:$0xf]
    %v6330 = vld [vmem:[%s53 + $0x1c] sm:$0xf]
    %v6331 = vld [vmem:[%s53 + $0x20] sm:$0xf]
    %v6332 = vld [vmem:[%s53 + $0x24] sm:$0xf]
    %v6333 = vld [vmem:[%s53 + $0x28] sm:$0xf]
    %v6334 = vld [vmem:[%s53 + $0x2c] sm:$0xf]
    %v6335 = vld [vmem:[%s53 + $0x30] sm:$0xf]
    %v6336 = vld [vmem:[%s53 + $0x34] sm:$0xf]
    %v6337 = vld [vmem:[%s53 + $0x38] sm:$0xf]
    %v6338 = vld [vmem:[%s53 + $0x3c] sm:$0xf]
    %v6339 = vld [vmem:[%s53 + $0x40] sm:$0xf]
    %v6340 = vld [vmem:[%s53 + $0x44] sm:$0xf]
    %v6341 = vld [vmem:[%s53 + $0x48] sm:$0xf]
    %v6342 = vld [vmem:[%s53 + $0x4c] sm:$0xf]
    %v6343 = vld [vmem:[%s53 + $0x50] sm:$0xf]
    %v6344 = vld [vmem:[%s53 + $0x54] sm:$0xf]
    %v6345 = vld [vmem:[%s53 + $0x58] sm:$0xf]
    %v6346 = vld [vmem:[%s53 + $0x5c] sm:$0xf]
    %v6347 = vld [vmem:[%s53 + $0x60] sm:$0xf]
    %v6348 = vld [vmem:[%s53 + $0x64] sm:$0xf]
    %v6349 = vld [vmem:[%s53 + $0x68] sm:$0xf]
    %v6350 = vld [vmem:[%s53 + $0x6c] sm:$0xf]
    %v6351 = vld [vmem:[%s53 + $0x70] sm:$0xf]
    %v6352 = vld [vmem:[%s53 + $0x74] sm:$0xf]
    %v6353 = vld [vmem:[%s53 + $0x78] sm:$0xf]
    %v6354 = vld [vmem:[%s53 + $0x7c] sm:$0xf]
    %v6355 = vunpack.c.l.bf16 %v6323
    %v6356 = vunpack.c.l.bf16 %v6324
    %v6357 = vunpack.c.l.bf16 %v6325
    %v6358 = vunpack.c.l.bf16 %v6326
    %v6359 = vunpack.c.l.bf16 %v6327
    %v6360 = vunpack.c.l.bf16 %v6328
    %v6361 = vunpack.c.l.bf16 %v6329
    %v6362 = vunpack.c.l.bf16 %v6330
    %v6363 = vunpack.c.l.bf16 %v6331
    %v6364 = vunpack.c.l.bf16 %v6332
    %v6365 = vunpack.c.l.bf16 %v6333
    %v6366 = vunpack.c.l.bf16 %v6334
    %v6367 = vunpack.c.l.bf16 %v6335
    %v6368 = vunpack.c.l.bf16 %v6336
    %v6369 = vunpack.c.l.bf16 %v6337
    %v6370 = vunpack.c.l.bf16 %v6338
    %v6371 = vunpack.c.l.bf16 %v6339
    %v6372 = vunpack.c.l.bf16 %v6340
    %v6373 = vunpack.c.l.bf16 %v6341
    %v6374 = vunpack.c.l.bf16 %v6342
    %v6375 = vunpack.c.l.bf16 %v6343
    %v6376 = vunpack.c.l.bf16 %v6344
    %v6377 = vunpack.c.l.bf16 %v6345
    %v6378 = vunpack.c.l.bf16 %v6346
    %v6379 = vunpack.c.l.bf16 %v6347
    %v6380 = vunpack.c.l.bf16 %v6348
    %v6381 = vunpack.c.l.bf16 %v6349
    %v6382 = vunpack.c.l.bf16 %v6350
    %v6383 = vunpack.c.l.bf16 %v6351
    %v6384 = vunpack.c.l.bf16 %v6352
    %v6385 = vunpack.c.l.bf16 %v6353
    %v6386 = vunpack.c.l.bf16 %v6354
    %6387 = vmatprep.subr.mxu0 0.0
    %6388 = vmatpush1.msra.mxu0 %v6355
    %6389 = vmatprep.subr.mxu0 0.0
    %6390 = vmatpush1.msra.mxu0 %v6356
    %6391 = vmatprep.subr.mxu0 0.0
    %6392 = vmatpush1.msra.mxu0 %v6357
    %6393 = vmatprep.subr.mxu0 0.0
    %6394 = vmatpush1.msra.mxu0 %v6358
    %6395 = vmatprep.subr.mxu0 0.0
    %6396 = vmatpush1.msra.mxu0 %v6359
    %6397 = vmatprep.subr.mxu0 0.0
    %6398 = vmatpush1.msra.mxu0 %v6360
    %6399 = vmatprep.subr.mxu0 0.0
    %6400 = vmatpush1.msra.mxu0 %v6361
    %6401 = vmatprep.subr.mxu0 0.0
    %6402 = vmatpush1.msra.mxu0 %v6362
    %6403 = vmatprep.subr.mxu0 0.0
    %6404 = vmatpush1.msra.mxu0 %v6363
    %6405 = vmatprep.subr.mxu0 0.0
    %6406 = vmatpush1.msra.mxu0 %v6364
    %6407 = vmatprep.subr.mxu0 0.0
    %6408 = vmatpush1.msra.mxu0 %v6365
    %6409 = vmatprep.subr.mxu0 0.0
    %6410 = vmatpush1.msra.mxu0 %v6366
    %6411 = vmatprep.subr.mxu0 0.0
    %6412 = vmatpush1.msra.mxu0 %v6367
    %6413 = vmatprep.subr.mxu0 0.0
    %6414 = vmatpush1.msra.mxu0 %v6368
    %6415 = vmatprep.subr.mxu0 0.0
    %6416 = vmatpush1.msra.mxu0 %v6369
    %6417 = vmatprep.subr.mxu0 0.0
    %6418 = vmatpush1.msra.mxu0 %v6370
    %6419 = vmatprep.subr.mxu0 0.0
    %6420 = vmatpush1.msra.mxu0 %v6371
    %6421 = vmatprep.subr.mxu0 0.0
    %6422 = vmatpush1.msra.mxu0 %v6372
    %6423 = vmatprep.subr.mxu0 0.0
    %6424 = vmatpush1.msra.mxu0 %v6373
    %6425 = vmatprep.subr.mxu0 0.0
    %6426 = vmatpush1.msra.mxu0 %v6374
    %6427 = vmatprep.subr.mxu0 0.0
    %6428 = vmatpush1.msra.mxu0 %v6375
    %6429 = vmatprep.subr.mxu0 0.0
    %6430 = vmatpush1.msra.mxu0 %v6376
    %6431 = vmatprep.subr.mxu0 0.0
    %6432 = vmatpush1.msra.mxu0 %v6377
    %6433 = vmatprep.subr.mxu0 0.0
    %6434 = vmatpush1.msra.mxu0 %v6378
    %6435 = vmatprep.subr.mxu0 0.0
    %6436 = vmatpush1.msra.mxu0 %v6379
    %6437 = vmatprep.subr.mxu0 0.0
    %6438 = vmatpush1.msra.mxu0 %v6380
    %6439 = vmatprep.subr.mxu0 0.0
    %6440 = vmatpush1.msra.mxu0 %v6381
    %6441 = vmatprep.subr.mxu0 0.0
    %6442 = vmatpush1.msra.mxu0 %v6382
    %6443 = vmatprep.subr.mxu0 0.0
    %6444 = vmatpush1.msra.mxu0 %v6383
    %6445 = vmatprep.subr.mxu0 0.0
    %6446 = vmatpush1.msra.mxu0 %v6384
    %6447 = vmatprep.subr.mxu0 0.0
    %6448 = vmatpush1.msra.mxu0 %v6385
    %6449 = vmatprep.subr.mxu0 0.0
    %6450 = vmatpush1.msra.mxu0 %v6386
    %6451 = vmatprep.mubr.f32.mxu0 %v6322
    %6452 = vmatmul.mubr.f32.gmra.mrb[0].mxu0 %v6321
    %v6453 = vpop.f32.mrb[0].mxu0
    %v6454 = vadd.f32 0.0, %v6453
    %v6455 = vpop.f32.mrb[0].mxu0
    %6456 = vdwg.mxu0
    %v6457 = vmul.f32 %v6454, 0.00012207031
    %v6458 = vmul.f32 %v6457, %v6457
    %v6460 = vrot.slane %v6458, 7
    %v6462 = vsub.f32 %v6457, %v6460
    %v6463 = vadd.f32 %v6462, 1e-05
    %v6464 = vrsqrt.pop %v6463
    %v6465 = vld [vmem:[%s57] sm:$0x1]
    %v6467 = vlaneseq
    %v6468 = vshrl.u32 %v6467, 7
    %v6469 = vsub.s32 0, %v6468
    %v6470 = vrot.slane %v6465, %v6469
    %v6472 = vmul.f32 %v6464, %v6470
    %v6473 = vld [vmem:[%s59] sm:$0x1]
    %v6475 = vrot.slane %v6472, 1
    %v6477 = vmul.f32 %v6457, %v6475
    %v6478 = vsub.f32 %v6473, %v6477
    %v6480 = vlaneseq
    %v6481 = vshrl.u32 %v6480, 7
    %v6482 = vsub.s32 0, %v6481
    %v6483 = vrot.slane %v6478, %v6482
    %v6485 = vsel %vm474, %v6475, %v6483
    %v6486 = vld [vmem:[%s55] sm:$0xf]
    %v6487 = vunpack.c.l.bf16 %v6486
    %v6489 = vcombine.high %v6487, %v6487
    %vm6490 = vcmask 31744
    %v6492 = vsel %vm6490, %v6485, 0
    %v6494 = vsel %vm233, %v6487, 0
    %v6496 = vsel %vm233, %v6489, 0
    %6498 = vmatprep.subr.mxu0 %v6496
    %6499 = vmatpush1.msra.mxu0 %v6494
    %6500 = vmatprep.subr.mxu0 0.0
    %6501 = vmatpush1.msra.mxu0 0.0
    %6502 = vmatprep.subr.mxu0 0.0
    %6503 = vmatpush1.msra.mxu0 0.0
    %6504 = vmatprep.subr.mxu0 0.0
    %6505 = vmatpush1.msra.mxu0 0.0
    %6506 = vmatprep.subr.mxu0 0.0
    %6507 = vmatpush1.msra.mxu0 0.0
    %6508 = vmatprep.subr.mxu0 0.0
    %6509 = vmatpush1.msra.mxu0 0.0
    %6510 = vmatprep.subr.mxu0 0.0
    %6511 = vmatpush1.msra.mxu0 0.0
    %6512 = vmatprep.subr.mxu0 0.0
    %6513 = vmatpush1.msra.mxu0 0.0
    %6514 = vmatprep.subr.mxu0 0.0
    %6515 = vmatpush1.msra.mxu0 0.0
    %6516 = vmatprep.subr.mxu0 0.0
    %6517 = vmatpush1.msra.mxu0 0.0
    %6518 = vmatprep.subr.mxu0 0.0
    %6519 = vmatpush1.msra.mxu0 0.0
    %6520 = vmatprep.subr.mxu0 0.0
    %6521 = vmatpush1.msra.mxu0 0.0
    %6522 = vmatprep.subr.mxu0 0.0
    %6523 = vmatpush1.msra.mxu0 0.0
    %6524 = vmatprep.subr.mxu0 0.0
    %6525 = vmatpush1.msra.mxu0 0.0
    %6526 = vmatprep.subr.mxu0 0.0
    %6527 = vmatpush1.msra.mxu0 0.0
    %6528 = vmatprep.subr.mxu0 0.0
    %6529 = vmatpush1.msra.mxu0 0.0
    %6530 = vmatprep.subr.mxu0 0.0
    %6531 = vmatpush1.msra.mxu0 0.0
    %6532 = vmatprep.subr.mxu0 0.0
    %6533 = vmatpush1.msra.mxu0 0.0
    %6534 = vmatprep.subr.mxu0 0.0
    %6535 = vmatpush1.msra.mxu0 0.0
    %6536 = vmatprep.subr.mxu0 0.0
    %6537 = vmatpush1.msra.mxu0 0.0
    %6538 = vmatprep.subr.mxu0 0.0
    %6539 = vmatpush1.msra.mxu0 0.0
    %6540 = vmatprep.subr.mxu0 0.0
    %6541 = vmatpush1.msra.mxu0 0.0
    %6542 = vmatprep.subr.mxu0 0.0
    %6543 = vmatpush1.msra.mxu0 0.0
    %6544 = vmatprep.subr.mxu0 0.0
    %6545 = vmatpush1.msra.mxu0 0.0
    %6546 = vmatprep.subr.mxu0 0.0
    %6547 = vmatpush1.msra.mxu0 0.0
    %6548 = vmatprep.subr.mxu0 0.0
    %6549 = vmatpush1.msra.mxu0 0.0
    %6550 = vmatprep.subr.mxu0 0.0
    %6551 = vmatpush1.msra.mxu0 0.0
    %6552 = vmatprep.subr.mxu0 0.0
    %6553 = vmatpush1.msra.mxu0 0.0
    %6554 = vmatprep.subr.mxu0 0.0
    %6555 = vmatpush1.msra.mxu0 0.0
    %6556 = vmatprep.subr.mxu0 0.0
    %6557 = vmatpush1.msra.mxu0 0.0
    %6558 = vmatprep.subr.mxu0 0.0
    %6559 = vmatpush1.msra.mxu0 0.0
    %6560 = vmatprep.subr.mxu0 0.0
    %6561 = vmatpush1.msra.mxu0 0.0
    %6562 = vmatprep.mubr.f32.mxu0 0.0
    %6563 = vmatmul.mubr.f32.gmra.mrb[0].mxu0 %v6492
    %v6564 = vpop.f32.mrb[0].mxu0
    %v6565 = vadd.f32 0.0, %v6564
    %v6566 = vpop.f32.mrb[0].mxu0
    %v6567 = vadd.f32 0.0, %v6566
    %6568 = vdwg.mxu0
    %v6569 = vlaneseq
    %v6570 = vshrl.u32 %v6569, 7
    %v6571 = vsub.s32 0, %v6570
    %v6572 = vrot.slane %v6565, %v6571
    %v6573 = vlaneseq
    %v6574 = vshrl.u32 %v6573, 7
    %v6575 = vsub.s32 0, %v6574
    %v6576 = vrot.slane %v6567, %v6575
    %v6577 = vmul.f32 %v6127, %v6572
    %v6578 = vmul.f32 %v6129, %v6576
    %v6579 = vmul.f32 %v6131, %v6572
    %v6580 = vmul.f32 %v6133, %v6576
    %v6581 = vmul.f32 %v6137, %v6572
    %v6582 = vmul.f32 %v6139, %v6576
    %v6583 = vmul.f32 %v6141, %v6572
    %v6584 = vmul.f32 %v6143, %v6576
    %v6585 = vmul.f32 %v6147, %v6572
    %v6586 = vmul.f32 %v6149, %v6576
    %v6587 = vmul.f32 %v6151, %v6572
    %v6588 = vmul.f32 %v6153, %v6576
    %v6589 = vmul.f32 %v6157, %v6572
    %v6590 = vmul.f32 %v6159, %v6576
    %v6591 = vmul.f32 %v6161, %v6572
    %v6592 = vmul.f32 %v6163, %v6576
    %v6593 = vmul.f32 %v6167, %v6572
    %v6594 = vmul.f32 %v6169, %v6576
    %v6595 = vmul.f32 %v6171, %v6572
    %v6596 = vmul.f32 %v6173, %v6576
    %v6597 = vmul.f32 %v6177, %v6572
    %v6598 = vmul.f32 %v6179, %v6576
    %v6599 = vmul.f32 %v6181, %v6572
    %v6600 = vmul.f32 %v6183, %v6576
    %v6601 = vmul.f32 %v6187, %v6572
    %v6602 = vmul.f32 %v6189, %v6576
    %v6603 = vmul.f32 %v6191, %v6572
    %v6604 = vmul.f32 %v6193, %v6576
    %v6605 = vmul.f32 %v6197, %v6572
    %v6606 = vmul.f32 %v6199, %v6576
    %v6607 = vmul.f32 %v6201, %v6572
    %v6608 = vmul.f32 %v6203, %v6576
    %v6609 = vlaneseq
    %v6610 = vshrl.u32 %v6609, 7
    %v6611 = vsub.s32 1, %v6610
    %v6612 = vrot.slane %v6565, %v6611
    %v6613 = vlaneseq
    %v6614 = vshrl.u32 %v6613, 7
    %v6615 = vsub.s32 1, %v6614
    %v6616 = vrot.slane %v6567, %v6615
    %v6617 = vadd.f32 %v6577, %v6612
    %v6618 = vadd.f32 %v6578, %v6616
    %v6619 = vadd.f32 %v6579, %v6612
    %v6620 = vadd.f32 %v6580, %v6616
    %v6621 = vadd.f32 %v6581, %v6612
    %v6622 = vadd.f32 %v6582, %v6616
    %v6623 = vadd.f32 %v6583, %v6612
    %v6624 = vadd.f32 %v6584, %v6616
    %v6625 = vadd.f32 %v6585, %v6612
    %v6626 = vadd.f32 %v6586, %v6616
    %v6627 = vadd.f32 %v6587, %v6612
    %v6628 = vadd.f32 %v6588, %v6616
    %v6629 = vadd.f32 %v6589, %v6612
    %v6630 = vadd.f32 %v6590, %v6616
    %v6631 = vadd.f32 %v6591, %v6612
    %v6632 = vadd.f32 %v6592, %v6616
    %v6633 = vadd.f32 %v6593, %v6612
    %v6634 = vadd.f32 %v6594, %v6616
    %v6635 = vadd.f32 %v6595, %v6612
    %v6636 = vadd.f32 %v6596, %v6616
    %v6637 = vadd.f32 %v6597, %v6612
    %v6638 = vadd.f32 %v6598, %v6616
    %v6639 = vadd.f32 %v6599, %v6612
    %v6640 = vadd.f32 %v6600, %v6616
    %v6641 = vadd.f32 %v6601, %v6612
    %v6642 = vadd.f32 %v6602, %v6616
    %v6643 = vadd.f32 %v6603, %v6612
    %v6644 = vadd.f32 %v6604, %v6616
    %v6645 = vadd.f32 %v6605, %v6612
    %v6646 = vadd.f32 %v6606, %v6616
    %v6647 = vadd.f32 %v6607, %v6612
    %v6648 = vadd.f32 %v6608, %v6616
    %v6649 = vmax.f32 %v6617, 0.0
    %v6650 = vmax.f32 %v6618, 0.0
    %v6651 = vmax.f32 %v6619, 0.0
    %v6652 = vmax.f32 %v6620, 0.0
    %v6653 = vmax.f32 %v6621, 0.0
    %v6654 = vmax.f32 %v6622, 0.0
    %v6655 = vmax.f32 %v6623, 0.0
    %v6656 = vmax.f32 %v6624, 0.0
    %v6657 = vmax.f32 %v6625, 0.0
    %v6658 = vmax.f32 %v6626, 0.0
    %v6659 = vmax.f32 %v6627, 0.0
    %v6660 = vmax.f32 %v6628, 0.0
    %v6661 = vmax.f32 %v6629, 0.0
    %v6662 = vmax.f32 %v6630, 0.0
    %v6663 = vmax.f32 %v6631, 0.0
    %v6664 = vmax.f32 %v6632, 0.0
    %v6665 = vmax.f32 %v6633, 0.0
    %v6666 = vmax.f32 %v6634, 0.0
    %v6667 = vmax.f32 %v6635, 0.0
    %v6668 = vmax.f32 %v6636, 0.0
    %v6669 = vmax.f32 %v6637, 0.0
    %v6670 = vmax.f32 %v6638, 0.0
    %v6671 = vmax.f32 %v6639, 0.0
    %v6672 = vmax.f32 %v6640, 0.0
    %v6673 = vmax.f32 %v6641, 0.0
    %v6674 = vmax.f32 %v6642, 0.0
    %v6675 = vmax.f32 %v6643, 0.0
    %v6676 = vmax.f32 %v6644, 0.0
    %v6677 = vmax.f32 %v6645, 0.0
    %v6678 = vmax.f32 %v6646, 0.0
    %v6679 = vmax.f32 %v6647, 0.0
    %v6680 = vmax.f32 %v6648, 0.0
    %v6681 = vpack.c.bf16 %v6651, %v6649
    %v6682 = vpack.c.bf16 %v6652, %v6650
    %v6683 = vpack.c.bf16 %v6655, %v6653
    %v6684 = vpack.c.bf16 %v6656, %v6654
    %v6685 = vpack.c.bf16 %v6659, %v6657
    %v6686 = vpack.c.bf16 %v6660, %v6658
    %v6687 = vpack.c.bf16 %v6663, %v6661
    %v6688 = vpack.c.bf16 %v6664, %v6662
    %v6689 = vpack.c.bf16 %v6667, %v6665
    %v6690 = vpack.c.bf16 %v6668, %v6666
    %v6691 = vpack.c.bf16 %v6671, %v6669
    %v6692 = vpack.c.bf16 %v6672, %v6670
    %v6693 = vpack.c.bf16 %v6675, %v6673
    %v6694 = vpack.c.bf16 %v6676, %v6674
    %v6695 = vpack.c.bf16 %v6679, %v6677
    %v6696 = vpack.c.bf16 %v6680, %v6678
    %v6697 = vld [vmem:[#allocation9] sm:$0xff]
    %v6698 = vld [vmem:[#allocation9 + $0x8] sm:$0xff]
    %v6699 = vld [vmem:[#allocation9 + $0x10] sm:$0xff]
    %v6700 = vld [vmem:[#allocation9 + $0x18] sm:$0xff]
    %v6701 = vld [vmem:[#allocation9 + $0x20] sm:$0xff]
    %v6702 = vld [vmem:[#allocation9 + $0x28] sm:$0xff]
    %v6703 = vld [vmem:[#allocation9 + $0x30] sm:$0xff]
    %v6704 = vld [vmem:[#allocation9 + $0x38] sm:$0xff]
    %v6705 = vld [vmem:[#allocation9 + $0x40] sm:$0xff]
    %v6706 = vld [vmem:[#allocation9 + $0x48] sm:$0xff]
    %v6707 = vld [vmem:[#allocation9 + $0x50] sm:$0xff]
    %v6708 = vld [vmem:[#allocation9 + $0x58] sm:$0xff]
    %v6709 = vld [vmem:[#allocation9 + $0x60] sm:$0xff]
    %v6710 = vld [vmem:[#allocation9 + $0x68] sm:$0xff]
    %v6711 = vld [vmem:[#allocation9 + $0x70] sm:$0xff]
    %v6712 = vld [vmem:[#allocation9 + $0x78] sm:$0xff]
    %v6713 = vld [vmem:[#allocation9 + $0x80] sm:$0xff]
    %v6714 = vld [vmem:[#allocation9 + $0x88] sm:$0xff]
    %v6715 = vld [vmem:[#allocation9 + $0x90] sm:$0xff]
    %v6716 = vld [vmem:[#allocation9 + $0x98] sm:$0xff]
    %v6717 = vld [vmem:[#allocation9 + $0xa0] sm:$0xff]
    %v6718 = vld [vmem:[#allocation9 + $0xa8] sm:$0xff]
    %v6719 = vld [vmem:[#allocation9 + $0xb0] sm:$0xff]
    %v6720 = vld [vmem:[#allocation9 + $0xb8] sm:$0xff]
    %v6721 = vld [vmem:[#allocation9 + $0xc0] sm:$0xff]
    %v6722 = vld [vmem:[#allocation9 + $0xc8] sm:$0xff]
    %v6723 = vld [vmem:[#allocation9 + $0xd0] sm:$0xff]
    %v6724 = vld [vmem:[#allocation9 + $0xd8] sm:$0xff]
    %v6725 = vld [vmem:[#allocation9 + $0xe0] sm:$0xff]
    %v6726 = vld [vmem:[#allocation9 + $0xe8] sm:$0xff]
    %v6727 = vld [vmem:[#allocation9 + $0xf0] sm:$0xff]
    %v6728 = vld [vmem:[#allocation9 + $0xf8] sm:$0xff]
    %v6729 = vld [vmem:[#allocation9 + $0x100] sm:$0xff]
    %v6730 = vld [vmem:[#allocation9 + $0x108] sm:$0xff]
    %v6731 = vld [vmem:[#allocation9 + $0x110] sm:$0xff]
    %v6732 = vld [vmem:[#allocation9 + $0x118] sm:$0xff]
    %v6733 = vld [vmem:[#allocation9 + $0x120] sm:$0xff]
    %v6734 = vld [vmem:[#allocation9 + $0x128] sm:$0xff]
    %v6735 = vld [vmem:[#allocation9 + $0x130] sm:$0xff]
    %v6736 = vld [vmem:[#allocation9 + $0x138] sm:$0xff]
    %v6737 = vld [vmem:[#allocation9 + $0x140] sm:$0xff]
    %v6738 = vld [vmem:[#allocation9 + $0x148] sm:$0xff]
    %v6739 = vld [vmem:[#allocation9 + $0x150] sm:$0xff]
    %v6740 = vld [vmem:[#allocation9 + $0x158] sm:$0xff]
    %v6741 = vld [vmem:[#allocation9 + $0x160] sm:$0xff]
    %v6742 = vld [vmem:[#allocation9 + $0x168] sm:$0xff]
    %v6743 = vld [vmem:[#allocation9 + $0x170] sm:$0xff]
    %v6744 = vld [vmem:[#allocation9 + $0x178] sm:$0xff]
    %v6745 = vld [vmem:[#allocation9 + $0x180] sm:$0xff]
    %v6746 = vld [vmem:[#allocation9 + $0x188] sm:$0xff]
    %v6747 = vld [vmem:[#allocation9 + $0x190] sm:$0xff]
    %v6748 = vld [vmem:[#allocation9 + $0x198] sm:$0xff]
    %v6749 = vld [vmem:[#allocation9 + $0x1a0] sm:$0xff]
    %v6750 = vld [vmem:[#allocation9 + $0x1a8] sm:$0xff]
    %v6751 = vld [vmem:[#allocation9 + $0x1b0] sm:$0xff]
    %v6752 = vld [vmem:[#allocation9 + $0x1b8] sm:$0xff]
    %v6753 = vld [vmem:[#allocation9 + $0x1c0] sm:$0xff]
    %v6754 = vld [vmem:[#allocation9 + $0x1c8] sm:$0xff]
    %v6755 = vld [vmem:[#allocation9 + $0x1d0] sm:$0xff]
    %v6756 = vld [vmem:[#allocation9 + $0x1d8] sm:$0xff]
    %v6757 = vld [vmem:[#allocation9 + $0x1e0] sm:$0xff]
    %v6758 = vld [vmem:[#allocation9 + $0x1e8] sm:$0xff]
    %v6759 = vld [vmem:[#allocation9 + $0x1f0] sm:$0xff]
    %v6760 = vld [vmem:[#allocation9 + $0x1f8] sm:$0xff]
    %v6825 = vunpack.c.l.b16 %v6697
    %v6826 = vunpack.c.h.b16 %v6697
    %v6827 = vunpack.c.l.b16 %v6698
    %v6828 = vunpack.c.h.b16 %v6698
    %v6829 = vunpack.c.l.b16 %v6699
    %v6830 = vunpack.c.h.b16 %v6699
    %v6831 = vunpack.c.l.b16 %v6700
    %v6832 = vunpack.c.h.b16 %v6700
    %v6833 = vunpack.c.l.b16 %v6701
    %v6834 = vunpack.c.h.b16 %v6701
    %v6835 = vunpack.c.l.b16 %v6702
    %v6836 = vunpack.c.h.b16 %v6702
    %v6837 = vunpack.c.l.b16 %v6703
    %v6838 = vunpack.c.h.b16 %v6703
    %v6839 = vunpack.c.l.b16 %v6704
    %v6840 = vunpack.c.h.b16 %v6704
    %v6841 = vunpack.c.l.b16 %v6705
    %v6842 = vunpack.c.h.b16 %v6705
    %v6843 = vunpack.c.l.b16 %v6706
    %v6844 = vunpack.c.h.b16 %v6706
    %v6845 = vunpack.c.l.b16 %v6707
    %v6846 = vunpack.c.h.b16 %v6707
    %v6847 = vunpack.c.l.b16 %v6708
    %v6848 = vunpack.c.h.b16 %v6708
    %v6849 = vunpack.c.l.b16 %v6709
    %v6850 = vunpack.c.h.b16 %v6709
    %v6851 = vunpack.c.l.b16 %v6710
    %v6852 = vunpack.c.h.b16 %v6710
    %v6853 = vunpack.c.l.b16 %v6711
    %v6854 = vunpack.c.h.b16 %v6711
    %v6855 = vunpack.c.l.b16 %v6712
    %v6856 = vunpack.c.h.b16 %v6712
    %v6857 = vunpack.c.l.b16 %v6713
    %v6858 = vunpack.c.h.b16 %v6713
    %v6859 = vunpack.c.l.b16 %v6714
    %v6860 = vunpack.c.h.b16 %v6714
    %v6861 = vunpack.c.l.b16 %v6715
    %v6862 = vunpack.c.h.b16 %v6715
    %v6863 = vunpack.c.l.b16 %v6716
    %v6864 = vunpack.c.h.b16 %v6716
    %v6865 = vunpack.c.l.b16 %v6717
    %v6866 = vunpack.c.h.b16 %v6717
    %v6867 = vunpack.c.l.b16 %v6718
    %v6868 = vunpack.c.h.b16 %v6718
    %v6869 = vunpack.c.l.b16 %v6719
    %v6870 = vunpack.c.h.b16 %v6719
    %v6871 = vunpack.c.l.b16 %v6720
    %v6872 = vunpack.c.h.b16 %v6720
    %v6873 = vunpack.c.l.b16 %v6721
    %v6874 = vunpack.c.h.b16 %v6721
    %v6875 = vunpack.c.l.b16 %v6722
    %v6876 = vunpack.c.h.b16 %v6722
    %v6877 = vunpack.c.l.b16 %v6723
    %v6878 = vunpack.c.h.b16 %v6723
    %v6879 = vunpack.c.l.b16 %v6724
    %v6880 = vunpack.c.h.b16 %v6724
    %v6881 = vunpack.c.l.b16 %v6725
    %v6882 = vunpack.c.h.b16 %v6725
    %v6883 = vunpack.c.l.b16 %v6726
    %v6884 = vunpack.c.h.b16 %v6726
    %v6885 = vunpack.c.l.b16 %v6727
    %v6886 = vunpack.c.h.b16 %v6727
    %v6887 = vunpack.c.l.b16 %v6728
    %v6888 = vunpack.c.h.b16 %v6728
    %v6889 = vunpack.c.l.b16 %v6729
    %v6890 = vunpack.c.h.b16 %v6729
    %v6891 = vunpack.c.l.b16 %v6730
    %v6892 = vunpack.c.h.b16 %v6730
    %v6893 = vunpack.c.l.b16 %v6731
    %v6894 = vunpack.c.h.b16 %v6731
    %v6895 = vunpack.c.l.b16 %v6732
    %v6896 = vunpack.c.h.b16 %v6732
    %v6897 = vunpack.c.l.b16 %v6733
    %v6898 = vunpack.c.h.b16 %v6733
    %v6899 = vunpack.c.l.b16 %v6734
    %v6900 = vunpack.c.h.b16 %v6734
    %v6901 = vunpack.c.l.b16 %v6735
    %v6902 = vunpack.c.h.b16 %v6735
    %v6903 = vunpack.c.l.b16 %v6736
    %v6904 = vunpack.c.h.b16 %v6736
    %v6905 = vunpack.c.l.b16 %v6737
    %v6906 = vunpack.c.h.b16 %v6737
    %v6907 = vunpack.c.l.b16 %v6738
    %v6908 = vunpack.c.h.b16 %v6738
    %v6909 = vunpack.c.l.b16 %v6739
    %v6910 = vunpack.c.h.b16 %v6739
    %v6911 = vunpack.c.l.b16 %v6740
    %v6912 = vunpack.c.h.b16 %v6740
    %v6913 = vunpack.c.l.b16 %v6741
    %v6914 = vunpack.c.h.b16 %v6741
    %v6915 = vunpack.c.l.b16 %v6742
    %v6916 = vunpack.c.h.b16 %v6742
    %v6917 = vunpack.c.l.b16 %v6743
    %v6918 = vunpack.c.h.b16 %v6743
    %v6919 = vunpack.c.l.b16 %v6744
    %v6920 = vunpack.c.h.b16 %v6744
    %v6921 = vunpack.c.l.b16 %v6745
    %v6922 = vunpack.c.h.b16 %v6745
    %v6923 = vunpack.c.l.b16 %v6746
    %v6924 = vunpack.c.h.b16 %v6746
    %v6925 = vunpack.c.l.b16 %v6747
    %v6926 = vunpack.c.h.b16 %v6747
    %v6927 = vunpack.c.l.b16 %v6748
    %v6928 = vunpack.c.h.b16 %v6748
    %v6929 = vunpack.c.l.b16 %v6749
    %v6930 = vunpack.c.h.b16 %v6749
    %v6931 = vunpack.c.l.b16 %v6750
    %v6932 = vunpack.c.h.b16 %v6750
    %v6933 = vunpack.c.l.b16 %v6751
    %v6934 = vunpack.c.h.b16 %v6751
    %v6935 = vunpack.c.l.b16 %v6752
    %v6936 = vunpack.c.h.b16 %v6752
    %v6937 = vunpack.c.l.b16 %v6753
    %v6938 = vunpack.c.h.b16 %v6753
    %v6939 = vunpack.c.l.b16 %v6754
    %v6940 = vunpack.c.h.b16 %v6754
    %v6941 = vunpack.c.l.b16 %v6755
    %v6942 = vunpack.c.h.b16 %v6755
    %v6943 = vunpack.c.l.b16 %v6756
    %v6944 = vunpack.c.h.b16 %v6756
    %v6945 = vunpack.c.l.b16 %v6757
    %v6946 = vunpack.c.h.b16 %v6757
    %v6947 = vunpack.c.l.b16 %v6758
    %v6948 = vunpack.c.h.b16 %v6758
    %v6949 = vunpack.c.l.b16 %v6759
    %v6950 = vunpack.c.h.b16 %v6759
    %v6951 = vunpack.c.l.b16 %v6760
    %v6952 = vunpack.c.h.b16 %v6760
    %v6953 = vpack.c.b16 %v6829, %v6825
    %v6954 = vpack.c.b16 %v6830, %v6826
    %v6955 = vpack.c.b16 %v6831, %v6827
    %v6956 = vpack.c.b16 %v6832, %v6828
    %v6957 = vpack.c.b16 %v6837, %v6833
    %v6958 = vpack.c.b16 %v6838, %v6834
    %v6959 = vpack.c.b16 %v6839, %v6835
    %v6960 = vpack.c.b16 %v6840, %v6836
    %v6961 = vpack.c.b16 %v6845, %v6841
    %v6962 = vpack.c.b16 %v6846, %v6842
    %v6963 = vpack.c.b16 %v6847, %v6843
    %v6964 = vpack.c.b16 %v6848, %v6844
    %v6965 = vpack.c.b16 %v6853, %v6849
    %v6966 = vpack.c.b16 %v6854, %v6850
    %v6967 = vpack.c.b16 %v6855, %v6851
    %v6968 = vpack.c.b16 %v6856, %v6852
    %v6969 = vpack.c.b16 %v6861, %v6857
    %v6970 = vpack.c.b16 %v6862, %v6858
    %v6971 = vpack.c.b16 %v6863, %v6859
    %v6972 = vpack.c.b16 %v6864, %v6860
    %v6973 = vpack.c.b16 %v6869, %v6865
    %v6974 = vpack.c.b16 %v6870, %v6866
    %v6975 = vpack.c.b16 %v6871, %v6867
    %v6976 = vpack.c.b16 %v6872, %v6868
    %v6977 = vpack.c.b16 %v6877, %v6873
    %v6978 = vpack.c.b16 %v6878, %v6874
    %v6979 = vpack.c.b16 %v6879, %v6875
    %v6980 = vpack.c.b16 %v6880, %v6876
    %v6981 = vpack.c.b16 %v6885, %v6881
    %v6982 = vpack.c.b16 %v6886, %v6882
    %v6983 = vpack.c.b16 %v6887, %v6883
    %v6984 = vpack.c.b16 %v6888, %v6884
    %v6985 = vpack.c.b16 %v6893, %v6889
    %v6986 = vpack.c.b16 %v6894, %v6890
    %v6987 = vpack.c.b16 %v6895, %v6891
    %v6988 = vpack.c.b16 %v6896, %v6892
    %v6989 = vpack.c.b16 %v6901, %v6897
    %v6990 = vpack.c.b16 %v6902, %v6898
    %v6991 = vpack.c.b16 %v6903, %v6899
    %v6992 = vpack.c.b16 %v6904, %v6900
    %v6993 = vpack.c.b16 %v6909, %v6905
    %v6994 = vpack.c.b16 %v6910, %v6906
    %v6995 = vpack.c.b16 %v6911, %v6907
    %v6996 = vpack.c.b16 %v6912, %v6908
    %v6997 = vpack.c.b16 %v6917, %v6913
    %v6998 = vpack.c.b16 %v6918, %v6914
    %v6999 = vpack.c.b16 %v6919, %v6915
    %v7000 = vpack.c.b16 %v6920, %v6916
    %v7001 = vpack.c.b16 %v6925, %v6921
    %v7002 = vpack.c.b16 %v6926, %v6922
    %v7003 = vpack.c.b16 %v6927, %v6923
    %v7004 = vpack.c.b16 %v6928, %v6924
    %v7005 = vpack.c.b16 %v6933, %v6929
    %v7006 = vpack.c.b16 %v6934, %v6930
    %v7007 = vpack.c.b16 %v6935, %v6931
    %v7008 = vpack.c.b16 %v6936, %v6932
    %v7009 = vpack.c.b16 %v6941, %v6937
    %v7010 = vpack.c.b16 %v6942, %v6938
    %v7011 = vpack.c.b16 %v6943, %v6939
    %v7012 = vpack.c.b16 %v6944, %v6940
    %v7013 = vpack.c.b16 %v6949, %v6945
    %v7014 = vpack.c.b16 %v6950, %v6946
    %v7015 = vpack.c.b16 %v6951, %v6947
    %v7016 = vpack.c.b16 %v6952, %v6948
    %7081 = vmatprep.subr.bf16.mxu0 %v6954
    %7082 = vmatpush1.bf16.msra.mxu0 %v6953
    %7083 = vmatprep.subr.bf16.mxu0 %v6958
    %7084 = vmatpush1.bf16.msra.mxu0 %v6957
    %7085 = vmatprep.subr.bf16.mxu0 %v6962
    %7086 = vmatpush1.bf16.msra.mxu0 %v6961
    %7087 = vmatprep.subr.bf16.mxu0 %v6966
    %7088 = vmatpush1.bf16.msra.mxu0 %v6965
    %7089 = vmatprep.subr.bf16.mxu0 %v6970
    %7090 = vmatpush1.bf16.msra.mxu0 %v6969
    %7091 = vmatprep.subr.bf16.mxu0 %v6974
    %7092 = vmatpush1.bf16.msra.mxu0 %v6973
    %7093 = vmatprep.subr.bf16.mxu0 %v6978
    %7094 = vmatpush1.bf16.msra.mxu0 %v6977
    %7095 = vmatprep.subr.bf16.mxu0 %v6982
    %7096 = vmatpush1.bf16.msra.mxu0 %v6981
    %7097 = vmatprep.subr.bf16.mxu0 %v6986
    %7098 = vmatpush1.bf16.msra.mxu0 %v6985
    %7099 = vmatprep.subr.bf16.mxu0 %v6990
    %7100 = vmatpush1.bf16.msra.mxu0 %v6989
    %7101 = vmatprep.subr.bf16.mxu0 %v6994
    %7102 = vmatpush1.bf16.msra.mxu0 %v6993
    %7103 = vmatprep.subr.bf16.mxu0 %v6998
    %7104 = vmatpush1.bf16.msra.mxu0 %v6997
    %7105 = vmatprep.subr.bf16.mxu0 %v7002
    %7106 = vmatpush1.bf16.msra.mxu0 %v7001
    %7107 = vmatprep.subr.bf16.mxu0 %v7006
    %7108 = vmatpush1.bf16.msra.mxu0 %v7005
    %7109 = vmatprep.subr.bf16.mxu0 %v7010
    %7110 = vmatpush1.bf16.msra.mxu0 %v7009
    %7111 = vmatprep.subr.bf16.mxu0 %v7014
    %7112 = vmatpush1.bf16.msra.mxu0 %v7013
    %7113 = vmatprep.mubr.bf16.mxu0 %v6682
    %7114 = vmatmul.mubr.bf16.gmra.mrb[0].mxu0 %v6681
    %v7115 = vpop.f32.mrb[0].mxu0
    %v7116 = vadd.f32 0.0, %v7115
    %v7117 = vpop.f32.mrb[0].mxu0
    %v7118 = vadd.f32 0.0, %v7117
    %v7119 = vpop.f32.mrb[0].mxu0
    %v7120 = vadd.f32 0.0, %v7119
    %v7121 = vpop.f32.mrb[0].mxu0
    %v7122 = vadd.f32 0.0, %v7121
    %7123 = vmatprep.mubr.bf16.mxu0 %v6684
    %7124 = vmatmul.mubr.bf16.gmra.mrb[0].mxu0 %v6683
    %v7125 = vpop.f32.mrb[0].mxu0
    %v7126 = vadd.f32 0.0, %v7125
    %v7127 = vpop.f32.mrb[0].mxu0
    %v7128 = vadd.f32 0.0, %v7127
    %v7129 = vpop.f32.mrb[0].mxu0
    %v7130 = vadd.f32 0.0, %v7129
    %v7131 = vpop.f32.mrb[0].mxu0
    %v7132 = vadd.f32 0.0, %v7131
    %7133 = vmatprep.mubr.bf16.mxu0 %v6686
    %7134 = vmatmul.mubr.bf16.gmra.mrb[0].mxu0 %v6685
    %v7135 = vpop.f32.mrb[0].mxu0
    %v7136 = vadd.f32 0.0, %v7135
    %v7137 = vpop.f32.mrb[0].mxu0
    %v7138 = vadd.f32 0.0, %v7137
    %v7139 = vpop.f32.mrb[0].mxu0
    %v7140 = vadd.f32 0.0, %v7139
    %v7141 = vpop.f32.mrb[0].mxu0
    %v7142 = vadd.f32 0.0, %v7141
    %7143 = vmatprep.mubr.bf16.mxu0 %v6688
    %7144 = vmatmul.mubr.bf16.gmra.mrb[0].mxu0 %v6687
    %v7145 = vpop.f32.mrb[0].mxu0
    %v7146 = vadd.f32 0.0, %v7145
    %v7147 = vpop.f32.mrb[0].mxu0
    %v7148 = vadd.f32 0.0, %v7147
    %v7149 = vpop.f32.mrb[0].mxu0
    %v7150 = vadd.f32 0.0, %v7149
    %v7151 = vpop.f32.mrb[0].mxu0
    %v7152 = vadd.f32 0.0, %v7151
    %7153 = vmatprep.mubr.bf16.mxu0 %v6690
    %7154 = vmatmul.mubr.bf16.gmra.mrb[0].mxu0 %v6689
    %v7155 = vpop.f32.mrb[0].mxu0
    %v7156 = vadd.f32 0.0, %v7155
    %v7157 = vpop.f32.mrb[0].mxu0
    %v7158 = vadd.f32 0.0, %v7157
    %v7159 = vpop.f32.mrb[0].mxu0
    %v7160 = vadd.f32 0.0, %v7159
    %v7161 = vpop.f32.mrb[0].mxu0
    %v7162 = vadd.f32 0.0, %v7161
    %7163 = vmatprep.mubr.bf16.mxu0 %v6692
    %7164 = vmatmul.mubr.bf16.gmra.mrb[0].mxu0 %v6691
    %v7165 = vpop.f32.mrb[0].mxu0
    %v7166 = vadd.f32 0.0, %v7165
    %v7167 = vpop.f32.mrb[0].mxu0
    %v7168 = vadd.f32 0.0, %v7167
    %v7169 = vpop.f32.mrb[0].mxu0
    %v7170 = vadd.f32 0.0, %v7169
    %v7171 = vpop.f32.mrb[0].mxu0
    %v7172 = vadd.f32 0.0, %v7171
    %7173 = vmatprep.mubr.bf16.mxu0 %v6694
    %7174 = vmatmul.mubr.bf16.gmra.mrb[0].mxu0 %v6693
    %v7175 = vpop.f32.mrb[0].mxu0
    %v7176 = vadd.f32 0.0, %v7175
    %v7177 = vpop.f32.mrb[0].mxu0
    %v7178 = vadd.f32 0.0, %v7177
    %v7179 = vpop.f32.mrb[0].mxu0
    %v7180 = vadd.f32 0.0, %v7179
    %v7181 = vpop.f32.mrb[0].mxu0
    %v7182 = vadd.f32 0.0, %v7181
    %7183 = vmatprep.mubr.bf16.mxu0 %v6696
    %7184 = vmatmul.mubr.bf16.gmra.mrb[0].mxu0 %v6695
    %v7185 = vpop.f32.mrb[0].mxu0
    %v7186 = vadd.f32 0.0, %v7185
    %v7187 = vpop.f32.mrb[0].mxu0
    %v7188 = vadd.f32 0.0, %v7187
    %v7189 = vpop.f32.mrb[0].mxu0
    %v7190 = vadd.f32 0.0, %v7189
    %v7191 = vpop.f32.mrb[0].mxu0
    %v7192 = vadd.f32 0.0, %v7191
    %7193 = vdwg.mxu0
    %7194 = vmatprep.subr.bf16.mxu0 %v6956
    %7195 = vmatpush1.bf16.msra.mxu0 %v6955
    %7196 = vmatprep.subr.bf16.mxu0 %v6960
    %7197 = vmatpush1.bf16.msra.mxu0 %v6959
    %7198 = vmatprep.subr.bf16.mxu0 %v6964
    %7199 = vmatpush1.bf16.msra.mxu0 %v6963
    %7200 = vmatprep.subr.bf16.mxu0 %v6968
    %7201 = vmatpush1.bf16.msra.mxu0 %v6967
    %7202 = vmatprep.subr.bf16.mxu0 %v6972
    %7203 = vmatpush1.bf16.msra.mxu0 %v6971
    %7204 = vmatprep.subr.bf16.mxu0 %v6976
    %7205 = vmatpush1.bf16.msra.mxu0 %v6975
    %7206 = vmatprep.subr.bf16.mxu0 %v6980
    %7207 = vmatpush1.bf16.msra.mxu0 %v6979
    %7208 = vmatprep.subr.bf16.mxu0 %v6984
    %7209 = vmatpush1.bf16.msra.mxu0 %v6983
    %7210 = vmatprep.subr.bf16.mxu0 %v6988
    %7211 = vmatpush1.bf16.msra.mxu0 %v6987
    %7212 = vmatprep.subr.bf16.mxu0 %v6992
    %7213 = vmatpush1.bf16.msra.mxu0 %v6991
    %7214 = vmatprep.subr.bf16.mxu0 %v6996
    %7215 = vmatpush1.bf16.msra.mxu0 %v6995
    %7216 = vmatprep.subr.bf16.mxu0 %v7000
    %7217 = vmatpush1.bf16.msra.mxu0 %v6999
    %7218 = vmatprep.subr.bf16.mxu0 %v7004
    %7219 = vmatpush1.bf16.msra.mxu0 %v7003
    %7220 = vmatprep.subr.bf16.mxu0 %v7008
    %7221 = vmatpush1.bf16.msra.mxu0 %v7007
    %7222 = vmatprep.subr.bf16.mxu0 %v7012
    %7223 = vmatpush1.bf16.msra.mxu0 %v7011
    %7224 = vmatprep.subr.bf16.mxu0 %v7016
    %7225 = vmatpush1.bf16.msra.mxu0 %v7015
    %7226 = vmatprep.mubr.bf16.mxu0 %v6682
    %7227 = vmatmul.mubr.bf16.gmra.mrb[0].mxu0 %v6681
    %v7228 = vpop.f32.mrb[0].mxu0
    %v7229 = vadd.f32 0.0, %v7228
    %v7230 = vpop.f32.mrb[0].mxu0
    %v7231 = vadd.f32 0.0, %v7230
    %v7232 = vpop.f32.mrb[0].mxu0
    %v7233 = vadd.f32 0.0, %v7232
    %v7234 = vpop.f32.mrb[0].mxu0
    %v7235 = vadd.f32 0.0, %v7234
    %7236 = vmatprep.mubr.bf16.mxu0 %v6684
    %7237 = vmatmul.mubr.bf16.gmra.mrb[0].mxu0 %v6683
    %v7238 = vpop.f32.mrb[0].mxu0
    %v7239 = vadd.f32 0.0, %v7238
    %v7240 = vpop.f32.mrb[0].mxu0
    %v7241 = vadd.f32 0.0, %v7240
    %v7242 = vpop.f32.mrb[0].mxu0
    %v7243 = vadd.f32 0.0, %v7242
    %v7244 = vpop.f32.mrb[0].mxu0
    %v7245 = vadd.f32 0.0, %v7244
    %7246 = vmatprep.mubr.bf16.mxu0 %v6686
    %7247 = vmatmul.mubr.bf16.gmra.mrb[0].mxu0 %v6685
    %v7248 = vpop.f32.mrb[0].mxu0
    %v7249 = vadd.f32 0.0, %v7248
    %v7250 = vpop.f32.mrb[0].mxu0
    %v7251 = vadd.f32 0.0, %v7250
    %v7252 = vpop.f32.mrb[0].mxu0
    %v7253 = vadd.f32 0.0, %v7252
    %v7254 = vpop.f32.mrb[0].mxu0
    %v7255 = vadd.f32 0.0, %v7254
    %7256 = vmatprep.mubr.bf16.mxu0 %v6688
    %7257 = vmatmul.mubr.bf16.gmra.mrb[0].mxu0 %v6687
    %v7258 = vpop.f32.mrb[0].mxu0
    %v7259 = vadd.f32 0.0, %v7258
    %v7260 = vpop.f32.mrb[0].mxu0
    %v7261 = vadd.f32 0.0, %v7260
    %v7262 = vpop.f32.mrb[0].mxu0
    %v7263 = vadd.f32 0.0, %v7262
    %v7264 = vpop.f32.mrb[0].mxu0
    %v7265 = vadd.f32 0.0, %v7264
    %7266 = vmatprep.mubr.bf16.mxu0 %v6690
    %7267 = vmatmul.mubr.bf16.gmra.mrb[0].mxu0 %v6689
    %v7268 = vpop.f32.mrb[0].mxu0
    %v7269 = vadd.f32 0.0, %v7268
    %v7270 = vpop.f32.mrb[0].mxu0
    %v7271 = vadd.f32 0.0, %v7270
    %v7272 = vpop.f32.mrb[0].mxu0
    %v7273 = vadd.f32 0.0, %v7272
    %v7274 = vpop.f32.mrb[0].mxu0
    %v7275 = vadd.f32 0.0, %v7274
    %7276 = vmatprep.mubr.bf16.mxu0 %v6692
    %7277 = vmatmul.mubr.bf16.gmra.mrb[0].mxu0 %v6691
    %v7278 = vpop.f32.mrb[0].mxu0
    %v7279 = vadd.f32 0.0, %v7278
    %v7280 = vpop.f32.mrb[0].mxu0
    %v7281 = vadd.f32 0.0, %v7280
    %v7282 = vpop.f32.mrb[0].mxu0
    %v7283 = vadd.f32 0.0, %v7282
    %v7284 = vpop.f32.mrb[0].mxu0
    %v7285 = vadd.f32 0.0, %v7284
    %7286 = vmatprep.mubr.bf16.mxu0 %v6694
    %7287 = vmatmul.mubr.bf16.gmra.mrb[0].mxu0 %v6693
    %v7288 = vpop.f32.mrb[0].mxu0
    %v7289 = vadd.f32 0.0, %v7288
    %v7290 = vpop.f32.mrb[0].mxu0
    %v7291 = vadd.f32 0.0, %v7290
    %v7292 = vpop.f32.mrb[0].mxu0
    %v7293 = vadd.f32 0.0, %v7292
    %v7294 = vpop.f32.mrb[0].mxu0
    %v7295 = vadd.f32 0.0, %v7294
    %7296 = vmatprep.mubr.bf16.mxu0 %v6696
    %7297 = vmatmul.mubr.bf16.gmra.mrb[0].mxu0 %v6695
    %v7298 = vpop.f32.mrb[0].mxu0
    %v7299 = vadd.f32 0.0, %v7298
    %v7300 = vpop.f32.mrb[0].mxu0
    %v7301 = vadd.f32 0.0, %v7300
    %v7302 = vpop.f32.mrb[0].mxu0
    %v7303 = vadd.f32 0.0, %v7302
    %v7304 = vpop.f32.mrb[0].mxu0
    %v7305 = vadd.f32 0.0, %v7304
    %7306 = vdwg.mxu0
    %v7307 = vld [vmem:[%s61] sm:$0xff]
    %v7308 = vld [vmem:[%s61 + $0x8] sm:$0xff]
    %v7309 = vld [vmem:[%s61 + $0x10] sm:$0xff]
    %v7310 = vld [vmem:[%s61 + $0x18] sm:$0xff]
    %v7311 = vld [vmem:[%s61 + $0x20] sm:$0xff]
    %v7312 = vld [vmem:[%s61 + $0x28] sm:$0xff]
    %v7313 = vld [vmem:[%s61 + $0x30] sm:$0xff]
    %v7314 = vld [vmem:[%s61 + $0x38] sm:$0xff]
    %v7315 = vld [vmem:[%s61 + $0x40] sm:$0xff]
    %v7316 = vld [vmem:[%s61 + $0x48] sm:$0xff]
    %v7317 = vld [vmem:[%s61 + $0x50] sm:$0xff]
    %v7318 = vld [vmem:[%s61 + $0x58] sm:$0xff]
    %v7319 = vld [vmem:[%s61 + $0x60] sm:$0xff]
    %v7320 = vld [vmem:[%s61 + $0x68] sm:$0xff]
    %v7321 = vld [vmem:[%s61 + $0x70] sm:$0xff]
    %v7322 = vld [vmem:[%s61 + $0x78] sm:$0xff]
    %v7323 = vld [vmem:[%s61 + $0x80] sm:$0xff]
    %v7324 = vld [vmem:[%s61 + $0x88] sm:$0xff]
    %v7325 = vld [vmem:[%s61 + $0x90] sm:$0xff]
    %v7326 = vld [vmem:[%s61 + $0x98] sm:$0xff]
    %v7327 = vld [vmem:[%s61 + $0xa0] sm:$0xff]
    %v7328 = vld [vmem:[%s61 + $0xa8] sm:$0xff]
    %v7329 = vld [vmem:[%s61 + $0xb0] sm:$0xff]
    %v7330 = vld [vmem:[%s61 + $0xb8] sm:$0xff]
    %v7331 = vld [vmem:[%s61 + $0xc0] sm:$0xff]
    %v7332 = vld [vmem:[%s61 + $0xc8] sm:$0xff]
    %v7333 = vld [vmem:[%s61 + $0xd0] sm:$0xff]
    %v7334 = vld [vmem:[%s61 + $0xd8] sm:$0xff]
    %v7335 = vld [vmem:[%s61 + $0xe0] sm:$0xff]
    %v7336 = vld [vmem:[%s61 + $0xe8] sm:$0xff]
    %v7337 = vld [vmem:[%s61 + $0xf0] sm:$0xff]
    %v7338 = vld [vmem:[%s61 + $0xf8] sm:$0xff]
    %v7339 = vld [vmem:[%s61 + $0x100] sm:$0xff]
    %v7340 = vld [vmem:[%s61 + $0x108] sm:$0xff]
    %v7341 = vld [vmem:[%s61 + $0x110] sm:$0xff]
    %v7342 = vld [vmem:[%s61 + $0x118] sm:$0xff]
    %v7343 = vld [vmem:[%s61 + $0x120] sm:$0xff]
    %v7344 = vld [vmem:[%s61 + $0x128] sm:$0xff]
    %v7345 = vld [vmem:[%s61 + $0x130] sm:$0xff]
    %v7346 = vld [vmem:[%s61 + $0x138] sm:$0xff]
    %v7347 = vld [vmem:[%s61 + $0x140] sm:$0xff]
    %v7348 = vld [vmem:[%s61 + $0x148] sm:$0xff]
    %v7349 = vld [vmem:[%s61 + $0x150] sm:$0xff]
    %v7350 = vld [vmem:[%s61 + $0x158] sm:$0xff]
    %v7351 = vld [vmem:[%s61 + $0x160] sm:$0xff]
    %v7352 = vld [vmem:[%s61 + $0x168] sm:$0xff]
    %v7353 = vld [vmem:[%s61 + $0x170] sm:$0xff]
    %v7354 = vld [vmem:[%s61 + $0x178] sm:$0xff]
    %v7355 = vld [vmem:[%s61 + $0x180] sm:$0xff]
    %v7356 = vld [vmem:[%s61 + $0x188] sm:$0xff]
    %v7357 = vld [vmem:[%s61 + $0x190] sm:$0xff]
    %v7358 = vld [vmem:[%s61 + $0x198] sm:$0xff]
    %v7359 = vld [vmem:[%s61 + $0x1a0] sm:$0xff]
    %v7360 = vld [vmem:[%s61 + $0x1a8] sm:$0xff]
    %v7361 = vld [vmem:[%s61 + $0x1b0] sm:$0xff]
    %v7362 = vld [vmem:[%s61 + $0x1b8] sm:$0xff]
    %v7363 = vld [vmem:[%s61 + $0x1c0] sm:$0xff]
    %v7364 = vld [vmem:[%s61 + $0x1c8] sm:$0xff]
    %v7365 = vld [vmem:[%s61 + $0x1d0] sm:$0xff]
    %v7366 = vld [vmem:[%s61 + $0x1d8] sm:$0xff]
    %v7367 = vld [vmem:[%s61 + $0x1e0] sm:$0xff]
    %v7368 = vld [vmem:[%s61 + $0x1e8] sm:$0xff]
    %v7369 = vld [vmem:[%s61 + $0x1f0] sm:$0xff]
    %v7370 = vld [vmem:[%s61 + $0x1f8] sm:$0xff]
    %v7371 = vpack.c.bf16 %v7120, %v7116
    %v7372 = vpack.c.bf16 %v7130, %v7126
    %v7373 = vpack.c.bf16 %v7140, %v7136
    %v7374 = vpack.c.bf16 %v7150, %v7146
    %v7375 = vpack.c.bf16 %v7160, %v7156
    %v7376 = vpack.c.bf16 %v7170, %v7166
    %v7377 = vpack.c.bf16 %v7180, %v7176
    %v7378 = vpack.c.bf16 %v7190, %v7186
    %v7379 = vpack.c.bf16 %v7122, %v7118
    %v7380 = vpack.c.bf16 %v7132, %v7128
    %v7381 = vpack.c.bf16 %v7142, %v7138
    %v7382 = vpack.c.bf16 %v7152, %v7148
    %v7383 = vpack.c.bf16 %v7162, %v7158
    %v7384 = vpack.c.bf16 %v7172, %v7168
    %v7385 = vpack.c.bf16 %v7182, %v7178
    %v7386 = vpack.c.bf16 %v7192, %v7188
    %v7387 = vpack.c.bf16 %v7233, %v7229
    %v7388 = vpack.c.bf16 %v7243, %v7239
    %v7389 = vpack.c.bf16 %v7253, %v7249
    %v7390 = vpack.c.bf16 %v7263, %v7259
    %v7391 = vpack.c.bf16 %v7273, %v7269
    %v7392 = vpack.c.bf16 %v7283, %v7279
    %v7393 = vpack.c.bf16 %v7293, %v7289
    %v7394 = vpack.c.bf16 %v7303, %v7299
    %v7395 = vpack.c.bf16 %v7235, %v7231
    %v7396 = vpack.c.bf16 %v7245, %v7241
    %v7397 = vpack.c.bf16 %v7255, %v7251
    %v7398 = vpack.c.bf16 %v7265, %v7261
    %v7399 = vpack.c.bf16 %v7275, %v7271
    %v7400 = vpack.c.bf16 %v7285, %v7281
    %v7401 = vpack.c.bf16 %v7295, %v7291
    %v7402 = vpack.c.bf16 %v7305, %v7301
    %v7467 = vunpack.c.l.b16 %v7307
    %v7468 = vunpack.c.h.b16 %v7307
    %v7469 = vunpack.c.l.b16 %v7308
    %v7470 = vunpack.c.h.b16 %v7308
    %v7471 = vunpack.c.l.b16 %v7309
    %v7472 = vunpack.c.h.b16 %v7309
    %v7473 = vunpack.c.l.b16 %v7310
    %v7474 = vunpack.c.h.b16 %v7310
    %v7475 = vunpack.c.l.b16 %v7311
    %v7476 = vunpack.c.h.b16 %v7311
    %v7477 = vunpack.c.l.b16 %v7312
    %v7478 = vunpack.c.h.b16 %v7312
    %v7479 = vunpack.c.l.b16 %v7313
    %v7480 = vunpack.c.h.b16 %v7313
    %v7481 = vunpack.c.l.b16 %v7314
    %v7482 = vunpack.c.h.b16 %v7314
    %v7483 = vunpack.c.l.b16 %v7315
    %v7484 = vunpack.c.h.b16 %v7315
    %v7485 = vunpack.c.l.b16 %v7316
    %v7486 = vunpack.c.h.b16 %v7316
    %v7487 = vunpack.c.l.b16 %v7317
    %v7488 = vunpack.c.h.b16 %v7317
    %v7489 = vunpack.c.l.b16 %v7318
    %v7490 = vunpack.c.h.b16 %v7318
    %v7491 = vunpack.c.l.b16 %v7319
    %v7492 = vunpack.c.h.b16 %v7319
    %v7493 = vunpack.c.l.b16 %v7320
    %v7494 = vunpack.c.h.b16 %v7320
    %v7495 = vunpack.c.l.b16 %v7321
    %v7496 = vunpack.c.h.b16 %v7321
    %v7497 = vunpack.c.l.b16 %v7322
    %v7498 = vunpack.c.h.b16 %v7322
    %v7499 = vunpack.c.l.b16 %v7323
    %v7500 = vunpack.c.h.b16 %v7323
    %v7501 = vunpack.c.l.b16 %v7324
    %v7502 = vunpack.c.h.b16 %v7324
    %v7503 = vunpack.c.l.b16 %v7325
    %v7504 = vunpack.c.h.b16 %v7325
    %v7505 = vunpack.c.l.b16 %v7326
    %v7506 = vunpack.c.h.b16 %v7326
    %v7507 = vunpack.c.l.b16 %v7327
    %v7508 = vunpack.c.h.b16 %v7327
    %v7509 = vunpack.c.l.b16 %v7328
    %v7510 = vunpack.c.h.b16 %v7328
    %v7511 = vunpack.c.l.b16 %v7329
    %v7512 = vunpack.c.h.b16 %v7329
    %v7513 = vunpack.c.l.b16 %v7330
    %v7514 = vunpack.c.h.b16 %v7330
    %v7515 = vunpack.c.l.b16 %v7331
    %v7516 = vunpack.c.h.b16 %v7331
    %v7517 = vunpack.c.l.b16 %v7332
    %v7518 = vunpack.c.h.b16 %v7332
    %v7519 = vunpack.c.l.b16 %v7333
    %v7520 = vunpack.c.h.b16 %v7333
    %v7521 = vunpack.c.l.b16 %v7334
    %v7522 = vunpack.c.h.b16 %v7334
    %v7523 = vunpack.c.l.b16 %v7335
    %v7524 = vunpack.c.h.b16 %v7335
    %v7525 = vunpack.c.l.b16 %v7336
    %v7526 = vunpack.c.h.b16 %v7336
    %v7527 = vunpack.c.l.b16 %v7337
    %v7528 = vunpack.c.h.b16 %v7337
    %v7529 = vunpack.c.l.b16 %v7338
    %v7530 = vunpack.c.h.b16 %v7338
    %v7531 = vunpack.c.l.b16 %v7339
    %v7532 = vunpack.c.h.b16 %v7339
    %v7533 = vunpack.c.l.b16 %v7340
    %v7534 = vunpack.c.h.b16 %v7340
    %v7535 = vunpack.c.l.b16 %v7341
    %v7536 = vunpack.c.h.b16 %v7341
    %v7537 = vunpack.c.l.b16 %v7342
    %v7538 = vunpack.c.h.b16 %v7342
    %v7539 = vunpack.c.l.b16 %v7343
    %v7540 = vunpack.c.h.b16 %v7343
    %v7541 = vunpack.c.l.b16 %v7344
    %v7542 = vunpack.c.h.b16 %v7344
    %v7543 = vunpack.c.l.b16 %v7345
    %v7544 = vunpack.c.h.b16 %v7345
    %v7545 = vunpack.c.l.b16 %v7346
    %v7546 = vunpack.c.h.b16 %v7346
    %v7547 = vunpack.c.l.b16 %v7347
    %v7548 = vunpack.c.h.b16 %v7347
    %v7549 = vunpack.c.l.b16 %v7348
    %v7550 = vunpack.c.h.b16 %v7348
    %v7551 = vunpack.c.l.b16 %v7349
    %v7552 = vunpack.c.h.b16 %v7349
    %v7553 = vunpack.c.l.b16 %v7350
    %v7554 = vunpack.c.h.b16 %v7350
    %v7555 = vunpack.c.l.b16 %v7351
    %v7556 = vunpack.c.h.b16 %v7351
    %v7557 = vunpack.c.l.b16 %v7352
    %v7558 = vunpack.c.h.b16 %v7352
    %v7559 = vunpack.c.l.b16 %v7353
    %v7560 = vunpack.c.h.b16 %v7353
    %v7561 = vunpack.c.l.b16 %v7354
    %v7562 = vunpack.c.h.b16 %v7354
    %v7563 = vunpack.c.l.b16 %v7355
    %v7564 = vunpack.c.h.b16 %v7355
    %v7565 = vunpack.c.l.b16 %v7356
    %v7566 = vunpack.c.h.b16 %v7356
    %v7567 = vunpack.c.l.b16 %v7357
    %v7568 = vunpack.c.h.b16 %v7357
    %v7569 = vunpack.c.l.b16 %v7358
    %v7570 = vunpack.c.h.b16 %v7358
    %v7571 = vunpack.c.l.b16 %v7359
    %v7572 = vunpack.c.h.b16 %v7359
    %v7573 = vunpack.c.l.b16 %v7360
    %v7574 = vunpack.c.h.b16 %v7360
    %v7575 = vunpack.c.l.b16 %v7361
    %v7576 = vunpack.c.h.b16 %v7361
    %v7577 = vunpack.c.l.b16 %v7362
    %v7578 = vunpack.c.h.b16 %v7362
    %v7579 = vunpack.c.l.b16 %v7363
    %v7580 = vunpack.c.h.b16 %v7363
    %v7581 = vunpack.c.l.b16 %v7364
    %v7582 = vunpack.c.h.b16 %v7364
    %v7583 = vunpack.c.l.b16 %v7365
    %v7584 = vunpack.c.h.b16 %v7365
    %v7585 = vunpack.c.l.b16 %v7366
    %v7586 = vunpack.c.h.b16 %v7366
    %v7587 = vunpack.c.l.b16 %v7367
    %v7588 = vunpack.c.h.b16 %v7367
    %v7589 = vunpack.c.l.b16 %v7368
    %v7590 = vunpack.c.h.b16 %v7368
    %v7591 = vunpack.c.l.b16 %v7369
    %v7592 = vunpack.c.h.b16 %v7369
    %v7593 = vunpack.c.l.b16 %v7370
    %v7594 = vunpack.c.h.b16 %v7370
    %v7595 = vpack.c.b16 %v7471, %v7467
    %v7596 = vpack.c.b16 %v7472, %v7468
    %v7597 = vpack.c.b16 %v7473, %v7469
    %v7598 = vpack.c.b16 %v7474, %v7470
    %v7599 = vpack.c.b16 %v7479, %v7475
    %v7600 = vpack.c.b16 %v7480, %v7476
    %v7601 = vpack.c.b16 %v7481, %v7477
    %v7602 = vpack.c.b16 %v7482, %v7478
    %v7603 = vpack.c.b16 %v7487, %v7483
    %v7604 = vpack.c.b16 %v7488, %v7484
    %v7605 = vpack.c.b16 %v7489, %v7485
    %v7606 = vpack.c.b16 %v7490, %v7486
    %v7607 = vpack.c.b16 %v7495, %v7491
    %v7608 = vpack.c.b16 %v7496, %v7492
    %v7609 = vpack.c.b16 %v7497, %v7493
    %v7610 = vpack.c.b16 %v7498, %v7494
    %v7611 = vpack.c.b16 %v7503, %v7499
    %v7612 = vpack.c.b16 %v7504, %v7500
    %v7613 = vpack.c.b16 %v7505, %v7501
    %v7614 = vpack.c.b16 %v7506, %v7502
    %v7615 = vpack.c.b16 %v7511, %v7507
    %v7616 = vpack.c.b16 %v7512, %v7508
    %v7617 = vpack.c.b16 %v7513, %v7509
    %v7618 = vpack.c.b16 %v7514, %v7510
    %v7619 = vpack.c.b16 %v7519, %v7515
    %v7620 = vpack.c.b16 %v7520, %v7516
    %v7621 = vpack.c.b16 %v7521, %v7517
    %v7622 = vpack.c.b16 %v7522, %v7518
    %v7623 = vpack.c.b16 %v7527, %v7523
    %v7624 = vpack.c.b16 %v7528, %v7524
    %v7625 = vpack.c.b16 %v7529, %v7525
    %v7626 = vpack.c.b16 %v7530, %v7526
    %v7627 = vpack.c.b16 %v7535, %v7531
    %v7628 = vpack.c.b16 %v7536, %v7532
    %v7629 = vpack.c.b16 %v7537, %v7533
    %v7630 = vpack.c.b16 %v7538, %v7534
    %v7631 = vpack.c.b16 %v7543, %v7539
    %v7632 = vpack.c.b16 %v7544, %v7540
    %v7633 = vpack.c.b16 %v7545, %v7541
    %v7634 = vpack.c.b16 %v7546, %v7542
    %v7635 = vpack.c.b16 %v7551, %v7547
    %v7636 = vpack.c.b16 %v7552, %v7548
    %v7637 = vpack.c.b16 %v7553, %v7549
    %v7638 = vpack.c.b16 %v7554, %v7550
    %v7639 = vpack.c.b16 %v7559, %v7555
    %v7640 = vpack.c.b16 %v7560, %v7556
    %v7641 = vpack.c.b16 %v7561, %v7557
    %v7642 = vpack.c.b16 %v7562, %v7558
    %v7643 = vpack.c.b16 %v7567, %v7563
    %v7644 = vpack.c.b16 %v7568, %v7564
    %v7645 = vpack.c.b16 %v7569, %v7565
    %v7646 = vpack.c.b16 %v7570, %v7566
    %v7647 = vpack.c.b16 %v7575, %v7571
    %v7648 = vpack.c.b16 %v7576, %v7572
    %v7649 = vpack.c.b16 %v7577, %v7573
    %v7650 = vpack.c.b16 %v7578, %v7574
    %v7651 = vpack.c.b16 %v7583, %v7579
    %v7652 = vpack.c.b16 %v7584, %v7580
    %v7653 = vpack.c.b16 %v7585, %v7581
    %v7654 = vpack.c.b16 %v7586, %v7582
    %v7655 = vpack.c.b16 %v7591, %v7587
    %v7656 = vpack.c.b16 %v7592, %v7588
    %v7657 = vpack.c.b16 %v7593, %v7589
    %v7658 = vpack.c.b16 %v7594, %v7590
    %7723 = vmatprep.subr.bf16.mxu0 0
    %7724 = vmatpush1.bf16.msra.mxu0 %v7371
    %7725 = vmatprep.subr.bf16.mxu0 0
    %7726 = vmatpush1.bf16.msra.mxu0 %v7372
    %7727 = vmatprep.subr.bf16.mxu0 0
    %7728 = vmatpush1.bf16.msra.mxu0 %v7373
    %7729 = vmatprep.subr.bf16.mxu0 0
    %7730 = vmatpush1.bf16.msra.mxu0 %v7374
    %7731 = vmatprep.subr.bf16.mxu0 0
    %7732 = vmatpush1.bf16.msra.mxu0 %v7375
    %7733 = vmatprep.subr.bf16.mxu0 0
    %7734 = vmatpush1.bf16.msra.mxu0 %v7376
    %7735 = vmatprep.subr.bf16.mxu0 0
    %7736 = vmatpush1.bf16.msra.mxu0 %v7377
    %7737 = vmatprep.subr.bf16.mxu0 0
    %7738 = vmatpush1.bf16.msra.mxu0 %v7378
    %7739 = vmatprep.subr.bf16.mxu0 0
    %7740 = vmatpush1.bf16.msra.mxu0 %v7379
    %7741 = vmatprep.subr.bf16.mxu0 0
    %7742 = vmatpush1.bf16.msra.mxu0 %v7380
    %7743 = vmatprep.subr.bf16.mxu0 0
    %7744 = vmatpush1.bf16.msra.mxu0 %v7381
    %7745 = vmatprep.subr.bf16.mxu0 0
    %7746 = vmatpush1.bf16.msra.mxu0 %v7382
    %7747 = vmatprep.subr.bf16.mxu0 0
    %7748 = vmatpush1.bf16.msra.mxu0 %v7383
    %7749 = vmatprep.subr.bf16.mxu0 0
    %7750 = vmatpush1.bf16.msra.mxu0 %v7384
    %7751 = vmatprep.subr.bf16.mxu0 0
    %7752 = vmatpush1.bf16.msra.mxu0 %v7385
    %7753 = vmatprep.subr.bf16.mxu0 0
    %7754 = vmatpush1.bf16.msra.mxu0 %v7386
    %7755 = vmatprep.mubr.bf16.mxu0 %v7596
    %7756 = vmatmul.mubr.bf16.gmra.mrb[0].mxu0 %v7595
    %v7757 = vpop.f32.mrb[0].mxu0
    %v7758 = vadd.f32 0.0, %v7757
    %v7759 = vpop.f32.mrb[0].mxu0
    %v7760 = vpop.f32.mrb[0].mxu0
    %v7761 = vadd.f32 0.0, %v7760
    %v7762 = vpop.f32.mrb[0].mxu0
    %7763 = vmatprep.mubr.bf16.mxu0 %v7600
    %7764 = vmatmul.mubr.bf16.gmra.mrb[0].mxu0 %v7599
    %v7765 = vpop.f32.mrb[0].mxu0
    %v7766 = vadd.f32 0.0, %v7765
    %v7767 = vpop.f32.mrb[0].mxu0
    %v7768 = vpop.f32.mrb[0].mxu0
    %v7769 = vadd.f32 0.0, %v7768
    %v7770 = vpop.f32.mrb[0].mxu0
    %7771 = vmatprep.mubr.bf16.mxu0 %v7604
    %7772 = vmatmul.mubr.bf16.gmra.mrb[0].mxu0 %v7603
    %v7773 = vpop.f32.mrb[0].mxu0
    %v7774 = vadd.f32 0.0, %v7773
    %v7775 = vpop.f32.mrb[0].mxu0
    %v7776 = vpop.f32.mrb[0].mxu0
    %v7777 = vadd.f32 0.0, %v7776
    %v7778 = vpop.f32.mrb[0].mxu0
    %7779 = vmatprep.mubr.bf16.mxu0 %v7608
    %7780 = vmatmul.mubr.bf16.gmra.mrb[0].mxu0 %v7607
    %v7781 = vpop.f32.mrb[0].mxu0
    %v7782 = vadd.f32 0.0, %v7781
    %v7783 = vpop.f32.mrb[0].mxu0
    %v7784 = vpop.f32.mrb[0].mxu0
    %v7785 = vadd.f32 0.0, %v7784
    %v7786 = vpop.f32.mrb[0].mxu0
    %7787 = vmatprep.mubr.bf16.mxu0 %v7612
    %7788 = vmatmul.mubr.bf16.gmra.mrb[0].mxu0 %v7611
    %v7789 = vpop.f32.mrb[0].mxu0
    %v7790 = vadd.f32 0.0, %v7789
    %v7791 = vpop.f32.mrb[0].mxu0
    %v7792 = vpop.f32.mrb[0].mxu0
    %v7793 = vadd.f32 0.0, %v7792
    %v7794 = vpop.f32.mrb[0].mxu0
    %7795 = vmatprep.mubr.bf16.mxu0 %v7616
    %7796 = vmatmul.mubr.bf16.gmra.mrb[0].mxu0 %v7615
    %v7797 = vpop.f32.mrb[0].mxu0
    %v7798 = vadd.f32 0.0, %v7797
    %v7799 = vpop.f32.mrb[0].mxu0
    %v7800 = vpop.f32.mrb[0].mxu0
    %v7801 = vadd.f32 0.0, %v7800
    %v7802 = vpop.f32.mrb[0].mxu0
    %7803 = vmatprep.mubr.bf16.mxu0 %v7620
    %7804 = vmatmul.mubr.bf16.gmra.mrb[0].mxu0 %v7619
    %v7805 = vpop.f32.mrb[0].mxu0
    %v7806 = vadd.f32 0.0, %v7805
    %v7807 = vpop.f32.mrb[0].mxu0
    %v7808 = vpop.f32.mrb[0].mxu0
    %v7809 = vadd.f32 0.0, %v7808
    %v7810 = vpop.f32.mrb[0].mxu0
    %7811 = vmatprep.mubr.bf16.mxu0 %v7624
    %7812 = vmatmul.mubr.bf16.gmra.mrb[0].mxu0 %v7623
    %v7813 = vpop.f32.mrb[0].mxu0
    %v7814 = vadd.f32 0.0, %v7813
    %v7815 = vpop.f32.mrb[0].mxu0
    %v7816 = vpop.f32.mrb[0].mxu0
    %v7817 = vadd.f32 0.0, %v7816
    %v7818 = vpop.f32.mrb[0].mxu0
    %7819 = vmatprep.mubr.bf16.mxu0 %v7628
    %7820 = vmatmul.mubr.bf16.gmra.mrb[0].mxu0 %v7627
    %v7821 = vpop.f32.mrb[0].mxu0
    %v7822 = vadd.f32 0.0, %v7821
    %v7823 = vpop.f32.mrb[0].mxu0
    %v7824 = vpop.f32.mrb[0].mxu0
    %v7825 = vadd.f32 0.0, %v7824
    %v7826 = vpop.f32.mrb[0].mxu0
    %7827 = vmatprep.mubr.bf16.mxu0 %v7632
    %7828 = vmatmul.mubr.bf16.gmra.mrb[0].mxu0 %v7631
    %v7829 = vpop.f32.mrb[0].mxu0
    %v7830 = vadd.f32 0.0, %v7829
    %v7831 = vpop.f32.mrb[0].mxu0
    %v7832 = vpop.f32.mrb[0].mxu0
    %v7833 = vadd.f32 0.0, %v7832
    %v7834 = vpop.f32.mrb[0].mxu0
    %7835 = vmatprep.mubr.bf16.mxu0 %v7636
    %7836 = vmatmul.mubr.bf16.gmra.mrb[0].mxu0 %v7635
    %v7837 = vpop.f32.mrb[0].mxu0
    %v7838 = vadd.f32 0.0, %v7837
    %v7839 = vpop.f32.mrb[0].mxu0
    %v7840 = vpop.f32.mrb[0].mxu0
    %v7841 = vadd.f32 0.0, %v7840
    %v7842 = vpop.f32.mrb[0].mxu0
    %7843 = vmatprep.mubr.bf16.mxu0 %v7640
    %7844 = vmatmul.mubr.bf16.gmra.mrb[0].mxu0 %v7639
    %v7845 = vpop.f32.mrb[0].mxu0
    %v7846 = vadd.f32 0.0, %v7845
    %v7847 = vpop.f32.mrb[0].mxu0
    %v7848 = vpop.f32.mrb[0].mxu0
    %v7849 = vadd.f32 0.0, %v7848
    %v7850 = vpop.f32.mrb[0].mxu0
    %7851 = vmatprep.mubr.bf16.mxu0 %v7644
    %7852 = vmatmul.mubr.bf16.gmra.mrb[0].mxu0 %v7643
    %v7853 = vpop.f32.mrb[0].mxu0
    %v7854 = vadd.f32 0.0, %v7853
    %v7855 = vpop.f32.mrb[0].mxu0
    %v7856 = vpop.f32.mrb[0].mxu0
    %v7857 = vadd.f32 0.0, %v7856
    %v7858 = vpop.f32.mrb[0].mxu0
    %7859 = vmatprep.mubr.bf16.mxu0 %v7648
    %7860 = vmatmul.mubr.bf16.gmra.mrb[0].mxu0 %v7647
    %v7861 = vpop.f32.mrb[0].mxu0
    %v7862 = vadd.f32 0.0, %v7861
    %v7863 = vpop.f32.mrb[0].mxu0
    %v7864 = vpop.f32.mrb[0].mxu0
    %v7865 = vadd.f32 0.0, %v7864
    %v7866 = vpop.f32.mrb[0].mxu0
    %7867 = vmatprep.mubr.bf16.mxu0 %v7652
    %7868 = vmatmul.mubr.bf16.gmra.mrb[0].mxu0 %v7651
    %v7869 = vpop.f32.mrb[0].mxu0
    %v7870 = vadd.f32 0.0, %v7869
    %v7871 = vpop.f32.mrb[0].mxu0
    %v7872 = vpop.f32.mrb[0].mxu0
    %v7873 = vadd.f32 0.0, %v7872
    %v7874 = vpop.f32.mrb[0].mxu0
    %7875 = vmatprep.mubr.bf16.mxu0 %v7656
    %7876 = vmatmul.mubr.bf16.gmra.mrb[0].mxu0 %v7655
    %v7877 = vpop.f32.mrb[0].mxu0
    %v7878 = vadd.f32 0.0, %v7877
    %v7879 = vpop.f32.mrb[0].mxu0
    %v7880 = vpop.f32.mrb[0].mxu0
    %v7881 = vadd.f32 0.0, %v7880
    %v7882 = vpop.f32.mrb[0].mxu0
    %7883 = vdwg.mxu0
    %7884 = vmatprep.subr.bf16.mxu0 0
    %7885 = vmatpush1.bf16.msra.mxu0 %v7387
    %7886 = vmatprep.subr.bf16.mxu0 0
    %7887 = vmatpush1.bf16.msra.mxu0 %v7388
    %7888 = vmatprep.subr.bf16.mxu0 0
    %7889 = vmatpush1.bf16.msra.mxu0 %v7389
    %7890 = vmatprep.subr.bf16.mxu0 0
    %7891 = vmatpush1.bf16.msra.mxu0 %v7390
    %7892 = vmatprep.subr.bf16.mxu0 0
    %7893 = vmatpush1.bf16.msra.mxu0 %v7391
    %7894 = vmatprep.subr.bf16.mxu0 0
    %7895 = vmatpush1.bf16.msra.mxu0 %v7392
    %7896 = vmatprep.subr.bf16.mxu0 0
    %7897 = vmatpush1.bf16.msra.mxu0 %v7393
    %7898 = vmatprep.subr.bf16.mxu0 0
    %7899 = vmatpush1.bf16.msra.mxu0 %v7394
    %7900 = vmatprep.subr.bf16.mxu0 0
    %7901 = vmatpush1.bf16.msra.mxu0 %v7395
    %7902 = vmatprep.subr.bf16.mxu0 0
    %7903 = vmatpush1.bf16.msra.mxu0 %v7396
    %7904 = vmatprep.subr.bf16.mxu0 0
    %7905 = vmatpush1.bf16.msra.mxu0 %v7397
    %7906 = vmatprep.subr.bf16.mxu0 0
    %7907 = vmatpush1.bf16.msra.mxu0 %v7398
    %7908 = vmatprep.subr.bf16.mxu0 0
    %7909 = vmatpush1.bf16.msra.mxu0 %v7399
    %7910 = vmatprep.subr.bf16.mxu0 0
    %7911 = vmatpush1.bf16.msra.mxu0 %v7400
    %7912 = vmatprep.subr.bf16.mxu0 0
    %7913 = vmatpush1.bf16.msra.mxu0 %v7401
    %7914 = vmatprep.subr.bf16.mxu0 0
    %7915 = vmatpush1.bf16.msra.mxu0 %v7402
    %7916 = vmatprep.mubr.bf16.mxu0 %v7598
    %7917 = vmatmul.mubr.bf16.gmra.mrb[0].mxu0 %v7597
    %v7918 = vpop.f32.mrb[0].mxu0
    %v7919 = vadd.f32 %v7758, %v7918
    %v7920 = vpop.f32.mrb[0].mxu0
    %v7921 = vpop.f32.mrb[0].mxu0
    %v7922 = vadd.f32 %v7761, %v7921
    %v7923 = vpop.f32.mrb[0].mxu0
    %7924 = vmatprep.mubr.bf16.mxu0 %v7602
    %7925 = vmatmul.mubr.bf16.gmra.mrb[0].mxu0 %v7601
    %v7926 = vpop.f32.mrb[0].mxu0
    %v7927 = vadd.f32 %v7766, %v7926
    %v7928 = vpop.f32.mrb[0].mxu0
    %v7929 = vpop.f32.mrb[0].mxu0
    %v7930 = vadd.f32 %v7769, %v7929
    %v7931 = vpop.f32.mrb[0].mxu0
    %7932 = vmatprep.mubr.bf16.mxu0 %v7606
    %7933 = vmatmul.mubr.bf16.gmra.mrb[0].mxu0 %v7605
    %v7934 = vpop.f32.mrb[0].mxu0
    %v7935 = vadd.f32 %v7774, %v7934
    %v7936 = vpop.f32.mrb[0].mxu0
    %v7937 = vpop.f32.mrb[0].mxu0
    %v7938 = vadd.f32 %v7777, %v7937
    %v7939 = vpop.f32.mrb[0].mxu0
    %7940 = vmatprep.mubr.bf16.mxu0 %v7610
    %7941 = vmatmul.mubr.bf16.gmra.mrb[0].mxu0 %v7609
    %v7942 = vpop.f32.mrb[0].mxu0
    %v7943 = vadd.f32 %v7782, %v7942
    %v7944 = vpop.f32.mrb[0].mxu0
    %v7945 = vpop.f32.mrb[0].mxu0
    %v7946 = vadd.f32 %v7785, %v7945
    %v7947 = vpop.f32.mrb[0].mxu0
    %7948 = vmatprep.mubr.bf16.mxu0 %v7614
    %7949 = vmatmul.mubr.bf16.gmra.mrb[0].mxu0 %v7613
    %v7950 = vpop.f32.mrb[0].mxu0
    %v7951 = vadd.f32 %v7790, %v7950
    %v7952 = vpop.f32.mrb[0].mxu0
    %v7953 = vpop.f32.mrb[0].mxu0
    %v7954 = vadd.f32 %v7793, %v7953
    %v7955 = vpop.f32.mrb[0].mxu0
    %7956 = vmatprep.mubr.bf16.mxu0 %v7618
    %7957 = vmatmul.mubr.bf16.gmra.mrb[0].mxu0 %v7617
    %v7958 = vpop.f32.mrb[0].mxu0
    %v7959 = vadd.f32 %v7798, %v7958
    %v7960 = vpop.f32.mrb[0].mxu0
    %v7961 = vpop.f32.mrb[0].mxu0
    %v7962 = vadd.f32 %v7801, %v7961
    %v7963 = vpop.f32.mrb[0].mxu0
    %7964 = vmatprep.mubr.bf16.mxu0 %v7622
    %7965 = vmatmul.mubr.bf16.gmra.mrb[0].mxu0 %v7621
    %v7966 = vpop.f32.mrb[0].mxu0
    %v7967 = vadd.f32 %v7806, %v7966
    %v7968 = vpop.f32.mrb[0].mxu0
    %v7969 = vpop.f32.mrb[0].mxu0
    %v7970 = vadd.f32 %v7809, %v7969
    %v7971 = vpop.f32.mrb[0].mxu0
    %7972 = vmatprep.mubr.bf16.mxu0 %v7626
    %7973 = vmatmul.mubr.bf16.gmra.mrb[0].mxu0 %v7625
    %v7974 = vpop.f32.mrb[0].mxu0
    %v7975 = vadd.f32 %v7814, %v7974
    %v7976 = vpop.f32.mrb[0].mxu0
    %v7977 = vpop.f32.mrb[0].mxu0
    %v7978 = vadd.f32 %v7817, %v7977
    %v7979 = vpop.f32.mrb[0].mxu0
    %7980 = vmatprep.mubr.bf16.mxu0 %v7630
    %7981 = vmatmul.mubr.bf16.gmra.mrb[0].mxu0 %v7629
    %v7982 = vpop.f32.mrb[0].mxu0
    %v7983 = vadd.f32 %v7822, %v7982
    %v7984 = vpop.f32.mrb[0].mxu0
    %v7985 = vpop.f32.mrb[0].mxu0
    %v7986 = vadd.f32 %v7825, %v7985
    %v7987 = vpop.f32.mrb[0].mxu0
    %7988 = vmatprep.mubr.bf16.mxu0 %v7634
    %7989 = vmatmul.mubr.bf16.gmra.mrb[0].mxu0 %v7633
    %v7990 = vpop.f32.mrb[0].mxu0
    %v7991 = vadd.f32 %v7830, %v7990
    %v7992 = vpop.f32.mrb[0].mxu0
    %v7993 = vpop.f32.mrb[0].mxu0
    %v7994 = vadd.f32 %v7833, %v7993
    %v7995 = vpop.f32.mrb[0].mxu0
    %7996 = vmatprep.mubr.bf16.mxu0 %v7638
    %7997 = vmatmul.mubr.bf16.gmra.mrb[0].mxu0 %v7637
    %v7998 = vpop.f32.mrb[0].mxu0
    %v7999 = vadd.f32 %v7838, %v7998
    %v8000 = vpop.f32.mrb[0].mxu0
    %v8001 = vpop.f32.mrb[0].mxu0
    %v8002 = vadd.f32 %v7841, %v8001
    %v8003 = vpop.f32.mrb[0].mxu0
    %8004 = vmatprep.mubr.bf16.mxu0 %v7642
    %8005 = vmatmul.mubr.bf16.gmra.mrb[0].mxu0 %v7641
    %v8006 = vpop.f32.mrb[0].mxu0
    %v8007 = vadd.f32 %v7846, %v8006
    %v8008 = vpop.f32.mrb[0].mxu0
    %v8009 = vpop.f32.mrb[0].mxu0
    %v8010 = vadd.f32 %v7849, %v8009
    %v8011 = vpop.f32.mrb[0].mxu0
    %8012 = vmatprep.mubr.bf16.mxu0 %v7646
    %8013 = vmatmul.mubr.bf16.gmra.mrb[0].mxu0 %v7645
    %v8014 = vpop.f32.mrb[0].mxu0
    %v8015 = vadd.f32 %v7854, %v8014
    %v8016 = vpop.f32.mrb[0].mxu0
    %v8017 = vpop.f32.mrb[0].mxu0
    %v8018 = vadd.f32 %v7857, %v8017
    %v8019 = vpop.f32.mrb[0].mxu0
    %8020 = vmatprep.mubr.bf16.mxu0 %v7650
    %8021 = vmatmul.mubr.bf16.gmra.mrb[0].mxu0 %v7649
    %v8022 = vpop.f32.mrb[0].mxu0
    %v8023 = vadd.f32 %v7862, %v8022
    %v8024 = vpop.f32.mrb[0].mxu0
    %v8025 = vpop.f32.mrb[0].mxu0
    %v8026 = vadd.f32 %v7865, %v8025
    %v8027 = vpop.f32.mrb[0].mxu0
    %8028 = vmatprep.mubr.bf16.mxu0 %v7654
    %8029 = vmatmul.mubr.bf16.gmra.mrb[0].mxu0 %v7653
    %v8030 = vpop.f32.mrb[0].mxu0
    %v8031 = vadd.f32 %v7870, %v8030
    %v8032 = vpop.f32.mrb[0].mxu0
    %v8033 = vpop.f32.mrb[0].mxu0
    %v8034 = vadd.f32 %v7873, %v8033
    %v8035 = vpop.f32.mrb[0].mxu0
    %8036 = vmatprep.mubr.bf16.mxu0 %v7658
    %8037 = vmatmul.mubr.bf16.gmra.mrb[0].mxu0 %v7657
    %v8038 = vpop.f32.mrb[0].mxu0
    %v8039 = vadd.f32 %v7878, %v8038
    %v8040 = vpop.f32.mrb[0].mxu0
    %v8041 = vpop.f32.mrb[0].mxu0
    %v8042 = vadd.f32 %v7881, %v8041
    %v8043 = vpop.f32.mrb[0].mxu0
    %8044 = vdwg.mxu0
    %v8045 = vtanh.pop %v7919
    %v8046 = vtanh.pop %v7922
    %v8047 = vtanh.pop %v7927
    %v8048 = vtanh.pop %v7930
    %v8049 = vtanh.pop %v7935
    %v8050 = vtanh.pop %v7938
    %v8051 = vtanh.pop %v7943
    %v8052 = vtanh.pop %v7946
    %v8053 = vtanh.pop %v7951
    %v8054 = vtanh.pop %v7954
    %v8055 = vtanh.pop %v7959
    %v8056 = vtanh.pop %v7962
    %v8057 = vtanh.pop %v7967
    %v8058 = vtanh.pop %v7970
    %v8059 = vtanh.pop %v7975
    %v8060 = vtanh.pop %v7978
    %v8061 = vtanh.pop %v7983
    %v8062 = vtanh.pop %v7986
    %v8063 = vtanh.pop %v7991
    %v8064 = vtanh.pop %v7994
    %v8065 = vtanh.pop %v7999
    %v8066 = vtanh.pop %v8002
    %v8067 = vtanh.pop %v8007
    %v8068 = vtanh.pop %v8010
    %v8069 = vtanh.pop %v8015
    %v8070 = vtanh.pop %v8018
    %v8071 = vtanh.pop %v8023
    %v8072 = vtanh.pop %v8026
    %v8073 = vtanh.pop %v8031
    %v8074 = vtanh.pop %v8034
    %v8075 = vtanh.pop %v8039
    %v8076 = vtanh.pop %v8042
    %8077 = vst [vmem:[%s65] sm:$0xff] %v8045
    %8078 = vst [vmem:[%s65 + $0x8] sm:$0xff] %v8046
    %8079 = vst [vmem:[%s65 + $0x10] sm:$0xff] %v8047
    %8080 = vst [vmem:[%s65 + $0x18] sm:$0xff] %v8048
    %8081 = vst [vmem:[%s65 + $0x20] sm:$0xff] %v8049
    %8082 = vst [vmem:[%s65 + $0x28] sm:$0xff] %v8050
    %8083 = vst [vmem:[%s65 + $0x30] sm:$0xff] %v8051
    %8084 = vst [vmem:[%s65 + $0x38] sm:$0xff] %v8052
    %8085 = vst [vmem:[%s65 + $0x40] sm:$0xff] %v8053
    %8086 = vst [vmem:[%s65 + $0x48] sm:$0xff] %v8054
    %8087 = vst [vmem:[%s65 + $0x50] sm:$0xff] %v8055
    %8088 = vst [vmem:[%s65 + $0x58] sm:$0xff] %v8056
    %8089 = vst [vmem:[%s65 + $0x60] sm:$0xff] %v8057
    %8090 = vst [vmem:[%s65 + $0x68] sm:$0xff] %v8058
    %8091 = vst [vmem:[%s65 + $0x70] sm:$0xff] %v8059
    %8092 = vst [vmem:[%s65 + $0x78] sm:$0xff] %v8060
    %8093 = vst [vmem:[%s65 + $0x80] sm:$0xff] %v8061
    %8094 = vst [vmem:[%s65 + $0x88] sm:$0xff] %v8062
    %8095 = vst [vmem:[%s65 + $0x90] sm:$0xff] %v8063
    %8096 = vst [vmem:[%s65 + $0x98] sm:$0xff] %v8064
    %8097 = vst [vmem:[%s65 + $0xa0] sm:$0xff] %v8065
    %8098 = vst [vmem:[%s65 + $0xa8] sm:$0xff] %v8066
    %8099 = vst [vmem:[%s65 + $0xb0] sm:$0xff] %v8067
    %8100 = vst [vmem:[%s65 + $0xb8] sm:$0xff] %v8068
    %8101 = vst [vmem:[%s65 + $0xc0] sm:$0xff] %v8069
    %8102 = vst [vmem:[%s65 + $0xc8] sm:$0xff] %v8070
    %8103 = vst [vmem:[%s65 + $0xd0] sm:$0xff] %v8071
    %8104 = vst [vmem:[%s65 + $0xd8] sm:$0xff] %v8072
    %8105 = vst [vmem:[%s65 + $0xe0] sm:$0xff] %v8073
    %8106 = vst [vmem:[%s65 + $0xe8] sm:$0xff] %v8074
    %8107 = vst [vmem:[%s65 + $0xf0] sm:$0xff] %v8075
    %8108 = vst [vmem:[%s65 + $0xf8] sm:$0xff] %v8076
    // Predicated region
    $region150: #{netG_forward.1} parent=1 // pred_check
      _
    $region151: #{netG_forward.1} parent=1 // pred_check_branch
      %8110 = sbr.rel (0) target = $region153
    $region152: #{netG_forward.1} parent=1 // pred_region
      _
    $region153: #{netG_forward.1} parent=1 // pred_fallthru
      _
    // Predicated region
    $region154: #{netG_forward.1} parent=1 // pred_check
      _
    $region155: #{netG_forward.1} parent=1 // pred_check_branch
      %8112 = sbr.rel (0) target = $region157
    $region156: #{netG_forward.1} parent=1 // pred_region
      _
    $region157: #{netG_forward.1} parent=1 // pred_fallthru
      _
    %8113 = vsyncpa [#allocation3], 1
    %8114 = vsyncpa [#allocation5], 1
    %8115 = vsyncpa [#allocation8], 1

</llo_original>
